<compile_context>
chip_gen: v7x
topology: tpu7x:2x2x1
jax: 0.10.0
libtpu: 0.0.40
codegen_flags: <defaults>
</compile_context>

<pallas_src>
import functools

import jax
import jax.numpy as jnp
from jax.experimental import pallas as pl
from jax.experimental.pallas import tpu as pltpu


# --------------------------------------------------------------------------------------
# Fused decoder kernel: repeat + LSTM(197->128) + Linear(128->2), one batch block.
# Gate columns inside the kernel are ordered (i, f, o, g).
# --------------------------------------------------------------------------------------
def _decoder_kernel(feat_ref, wih_ref, whh_ref, b_ref, wlin_ref, blin_ref,
                    out_ref, hall_sc, *, out_length):
    # feat_ref : (BB, Fp)   bf16   padded features for this batch block
    # wih_ref  : (Fp, 4H)   bf16   input->gates weights
    # whh_ref  : (H, 4H)    bf16   hidden->gates weights
    # b_ref    : (1, 4H)    f32    b_ih + b_hh
    # wlin_ref : (H, Np)    f32    final linear, zero-padded to Np=128 lanes
    # blin_ref : (1, Np)    f32
    # out_ref  : (T*BB, Np) f32    lane-dense output block
    # hall_sc  : (T*BB, H)  f32    scratch holding all per-step hidden states
    BB = feat_ref.shape[0]
    H = whh_ref.shape[0]
    T = out_length

    # Identical input every step -> hoist input projection + pre-summed biases.
    gates_x = jnp.dot(feat_ref[...], wih_ref[...],
                      preferred_element_type=jnp.float32) + b_ref[...]      # (BB, 4H) f32

    h = jnp.zeros((BB, H), jnp.float32)
    c = jnp.zeros((BB, H), jnp.float32)

    # Fully unrolled serial recurrence; h/c live in vregs across steps.
    # w_hh is read from the VMEM ref at the dot each step (never pinned in vregs).
    # TODO(synk): pltpu.matmul_push_rhs/acc_lhs/pop could keep w_hh resident in MXU
    # weight registers across steps, but the 4H=512 gate columns exceed a single MXU
    # weight tile and the staging layout is chip-dependent, so jnp.dot is used instead.
    for t in range(T):
        gates = gates_x + jnp.dot(h.astype(jnp.bfloat16), whh_ref[...],
                                  preferred_element_type=jnp.float32)       # (BB, 4H)
        # sigmoid(x) = 0.5*tanh(0.5*x) + 0.5  over the packed (i | f | o) slab.
        sig = 0.5 * jnp.tanh(0.5 * gates[:, :3 * H]) + 0.5
        g = jnp.tanh(gates[:, 3 * H:])
        c = sig[:, H:2 * H] * c + sig[:, :H] * g
        h = sig[:, 2 * H:3 * H] * jnp.tanh(c)
        hall_sc[t * BB:(t + 1) * BB, :] = h          # sublane-aligned store (BB % 8 == 0)

    # linear1 over all T*BB hidden states in one lane-dense matmul; unmasked vst out.
    out_ref[...] = (jnp.dot(hall_sc[...], wlin_ref[...],
                            preferred_element_type=jnp.float32) + blin_ref[...])


def decoder_forward(feature, w_ih, w_hh, b, w_lin, b_lin, *,
                    out_length=25, n_out=2, batch_block=8):
    """feature: (B, F) f32.  Returns fut_pred (out_length, B, n_out), matching PyTorch."""
    B, F = feature.shape
    Fp = w_ih.shape[0]                 # padded feature dim (256)
    H = w_hh.shape[0]                  # 128
    Np = w_lin.shape[1]                # padded output lanes (128)
    T = out_length
    BB = batch_block                   # batch rows per grid step (multiple of 8)
    Bp = ((B + BB - 1) // BB) * BB
    nb = Bp // BB

    feat_p = jnp.zeros((Bp, Fp), jnp.bfloat16).at[:B, :F].set(
        feature.astype(jnp.bfloat16))

    out = pl.pallas_call(
        functools.partial(_decoder_kernel, out_length=T),
        out_shape=jax.ShapeDtypeStruct((nb, T * BB, Np), jnp.float32),
        grid=(nb,),
        in_specs=[
            pl.BlockSpec((BB, Fp), lambda i: (i, 0)),                # per-block features
            pl.BlockSpec((Fp, w_ih.shape[1]), lambda i: (0, 0)),     # w_ih (broadcast)
            pl.BlockSpec((H, w_hh.shape[1]), lambda i: (0, 0)),      # w_hh (broadcast)
            pl.BlockSpec((1, b.shape[1]), lambda i: (0, 0)),         # bias
            pl.BlockSpec((H, Np), lambda i: (0, 0)),                 # w_lin
            pl.BlockSpec((1, Np), lambda i: (0, 0)),                 # b_lin
        ],
        out_specs=pl.BlockSpec((None, T * BB, Np), lambda i: (i, 0, 0)),
        scratch_shapes=[pltpu.VMEM((T * BB, H), jnp.float32)],
        compiler_params=pltpu.CompilerParams(
            dimension_semantics=("parallel",)),      # batch-parallel: both TCs on v7x
    )(feat_p, w_ih, w_hh, b, w_lin, b_lin)

    # (nb, T*BB, Np) -> (T, Bp, Np) -> (T, B, n_out)
    out = out.reshape(nb, T, BB, Np).transpose(1, 0, 2, 3).reshape(T, Bp, Np)
    return out[:, :B, :n_out]


# --------------------------------------------------------------------------------------
# PyTorch -> kernel parameter packing.
# PyTorch nn.LSTM: weight_ih (4H, in), weight_hh (4H, H), biases (4H,), rows = (i,f,g,o).
# Kernel wants: transposed weights, gate columns (i, f, o, g), biases pre-summed, the
# feature dim zero-padded to Fp, bf16 matmul weights, and w_lin zero-padded to Np lanes.
# --------------------------------------------------------------------------------------
def pack_decoder_params(w_ih_t, w_hh_t, b_ih_t, b_hh_t, w_lin_t, b_lin_t,
                        *, f_pad=256, n_pad=128):
    H = w_hh_t.shape[1]
    F = w_ih_t.shape[1]
    n_out = w_lin_t.shape[0]

    def reorder(w):                                  # rows (i,f,g,o) -> (i,f,o,g)
        i, f, g, o = jnp.split(w, 4, axis=0)
        return jnp.concatenate([i, f, o, g], axis=0)

    w_ih = jnp.zeros((f_pad, 4 * H), jnp.bfloat16).at[:F].set(
        jnp.transpose(reorder(w_ih_t)).astype(jnp.bfloat16))                 # (Fp, 4H)
    w_hh = jnp.transpose(reorder(w_hh_t)).astype(jnp.bfloat16)               # (H, 4H)
    b = reorder((b_ih_t + b_hh_t).reshape(4, H)).reshape(1, 4 * H).astype(jnp.float32)
    w_lin = jnp.zeros((H, n_pad), jnp.float32).at[:, :n_out].set(
        jnp.transpose(w_lin_t).astype(jnp.float32))                          # (H, Np)
    b_lin = jnp.zeros((1, n_pad), jnp.float32).at[0, :n_out].set(
        b_lin_t.astype(jnp.float32))                                         # (1, Np)
    return w_ih, w_hh, b, w_lin, b_lin


# --------------------------------------------------------------------------------------
# Pure-JAX reference mirroring the PyTorch module (gate rows i,f,g,o), for checking.
# --------------------------------------------------------------------------------------
def _torch_reference(feature, w_ih_t, w_hh_t, b_ih_t, b_hh_t, w_lin_t, b_lin_t, out_length):
    hp = jax.lax.Precision.HIGHEST
    B = feature.shape[0]
    H = w_hh_t.shape[1]
    h = jnp.zeros((B, H), jnp.float32)
    c = jnp.zeros((B, H), jnp.float32)
    gx = jnp.dot(feature, w_ih_t.T, precision=hp) + b_ih_t + b_hh_t
    outs = []
    for _ in range(out_length):
        gates = gx + jnp.dot(h, w_hh_t.T, precision=hp)
        i = jax.nn.sigmoid(gates[:, 0:H])
        f = jax.nn.sigmoid(gates[:, H:2 * H])
        g = jnp.tanh(gates[:, 2 * H:3 * H])
        o = jax.nn.sigmoid(gates[:, 3 * H:4 * H])
        c = f * c + i * g
        h = o * jnp.tanh(c)
        outs.append(jnp.dot(h, w_lin_t.T, precision=hp) + b_lin_t)
    return jnp.stack(outs, axis=0)                   # (T, B, 2)


if __name__ == "__main__":
    key = jax.random.PRNGKey(0)
    ks = jax.random.split(key, 7)
    B, F, H, T = 2, 197, 128, 25
    scale = 1.0 / (H ** 0.5)

    def rnd(k, shape):
        return (scale * jax.random.normal(k, shape, jnp.float32)).astype(jnp.float32)

    # PyTorch-layout parameters (gate rows ordered i, f, g, o).
    w_ih_t = rnd(ks[0], (4 * H, F))
    w_hh_t = rnd(ks[1], (4 * H, H))
    b_ih_t = rnd(ks[2], (4 * H,))
    b_hh_t = rnd(ks[3], (4 * H,))
    w_lin_t = rnd(ks[4], (2, H))
    b_lin_t = rnd(ks[5], (2,))
    feature = jax.random.normal(ks[6], (B, F), jnp.float32)

    # Convert to kernel packing (reorder gates, pad F->256, pad N->128, bf16 weights).
    w_ih, w_hh, b, w_lin, b_lin = pack_decoder_params(
        w_ih_t, w_hh_t, b_ih_t, b_hh_t, w_lin_t, b_lin_t)

    fwd = jax.jit(functools.partial(decoder_forward, out_length=T, n_out=2))
    fut_pred = fwd(feature, w_ih, w_hh, b, w_lin, b_lin)
    jax.block_until_ready(fut_pred)

    assert fut_pred.shape == (T, B, 2) and fut_pred.dtype == jnp.float32

    ref = _torch_reference(feature, w_ih_t, w_hh_t, b_ih_t, b_hh_t,
                           w_lin_t, b_lin_t, T)
    err = float(jnp.max(jnp.abs(fut_pred - ref)))
    assert err < 5e-2, f"max abs error vs reference: {err}"

    print("KERNEL_OK")
</pallas_src>

<mosaic_0001>
module attributes {stable_mosaic.version = 11 : i64} {
  func.func @_decoder_kernel(%arg0: i32, %arg1: memref<8x256xbf16, #tpu.memory_space<vmem>>, %arg2: memref<256x512xbf16, #tpu.memory_space<vmem>>, %arg3: memref<128x512xbf16, #tpu.memory_space<vmem>>, %arg4: memref<1x512xf32, #tpu.memory_space<vmem>>, %arg5: memref<128x128xf32, #tpu.memory_space<vmem>>, %arg6: memref<1x128xf32, #tpu.memory_space<vmem>>, %arg7: memref<1x200x128xf32, #tpu.memory_space<vmem>>, %arg8: memref<200x128xf32, #tpu.memory_space<vmem>>) attributes {dimension_semantics = [#tpu.dimension_semantics<parallel>], iteration_bounds = array<i64: 1>, scalar_prefetch = 0 : i64, scratch_operands = 1 : i64, tpu.core_type = #tpu.core_type<tc>, window_params = [{transform_indices = @transform_0, window_bounds = array<i64: 8, 256>}, {pipeline_mode = #tpu.pipeline_mode<synchronous>, transform_indices = @transform_1, window_bounds = array<i64: 256, 512>}, {pipeline_mode = #tpu.pipeline_mode<synchronous>, transform_indices = @transform_2, window_bounds = array<i64: 128, 512>}, {pipeline_mode = #tpu.pipeline_mode<synchronous>, transform_indices = @transform_3, window_bounds = array<i64: 1, 512>}, {pipeline_mode = #tpu.pipeline_mode<synchronous>, transform_indices = @transform_4, window_bounds = array<i64: 128, 128>}, {pipeline_mode = #tpu.pipeline_mode<synchronous>, transform_indices = @transform_5, window_bounds = array<i64: 1, 128>}, {transform_indices = @transform_6, window_bounds = array<i64: 1, 200, 128>}]} {
    %c0 = arith.constant 0 : index
    %c0_0 = arith.constant 0 : index
    %0 = vector.load %arg1[%c0, %c0_0] : memref<8x256xbf16, #tpu.memory_space<vmem>>, vector<8x256xbf16>
    %c0_1 = arith.constant 0 : index
    %c0_2 = arith.constant 0 : index
    %1 = vector.load %arg2[%c0_1, %c0_2] : memref<256x512xbf16, #tpu.memory_space<vmem>>, vector<256x512xbf16>
    %cst = arith.constant dense<0.000000e+00> : vector<8x512xf32>
    %2 = tpu.matmul %0, %1, %cst {dimension_numbers = #tpu.dot_dimension_numbers<[1], [0], [0], [1], [0, 0, 1, 1], [], []>} : vector<8x256xbf16>, vector<256x512xbf16>, vector<8x512xf32> -> vector<8x512xf32>
    %c0_3 = arith.constant 0 : index
    %c0_4 = arith.constant 0 : index
    %3 = vector.load %arg4[%c0_3, %c0_4] : memref<1x512xf32, #tpu.memory_space<vmem>>, vector<1x512xf32>
    %4 = vector.broadcast %3 : vector<1x512xf32> to vector<8x512xf32>
    %5 = arith.addf %2, %4 : vector<8x512xf32>
    %cst_5 = arith.constant 0.000000e+00 : f32
    %6 = vector.broadcast %cst_5 : f32 to vector<8x128xf32>
    %cst_6 = arith.constant 0.000000e+00 : f32
    %7 = vector.broadcast %cst_6 : f32 to vector<8x128xf32>
    %8 = arith.truncf %6 : vector<8x128xf32> to vector<8x128xbf16>
    %c0_7 = arith.constant 0 : index
    %c0_8 = arith.constant 0 : index
    %9 = vector.load %arg3[%c0_7, %c0_8] : memref<128x512xbf16, #tpu.memory_space<vmem>>, vector<128x512xbf16>
    %cst_9 = arith.constant dense<0.000000e+00> : vector<8x512xf32>
    %10 = tpu.matmul %8, %9, %cst_9 {dimension_numbers = #tpu.dot_dimension_numbers<[1], [0], [0], [1], [0, 0, 1, 1], [], []>} : vector<8x128xbf16>, vector<128x512xbf16>, vector<8x512xf32> -> vector<8x512xf32>
    %11 = arith.addf %5, %10 : vector<8x512xf32>
    %12 = vector.extract_strided_slice %11 {offsets = [0, 0], sizes = [8, 384], strides = [1, 1]} : vector<8x512xf32> to vector<8x384xf32>
    %cst_10 = arith.constant 5.000000e-01 : f32
    %13 = vector.broadcast %cst_10 : f32 to vector<8x384xf32>
    %14 = arith.mulf %13, %12 : vector<8x384xf32>
    %15 = math.tanh %14 : vector<8x384xf32>
    %cst_11 = arith.constant 5.000000e-01 : f32
    %16 = vector.broadcast %cst_11 : f32 to vector<8x384xf32>
    %17 = arith.mulf %16, %15 : vector<8x384xf32>
    %cst_12 = arith.constant 5.000000e-01 : f32
    %18 = vector.broadcast %cst_12 : f32 to vector<8x384xf32>
    %19 = arith.addf %17, %18 : vector<8x384xf32>
    %20 = vector.extract_strided_slice %11 {offsets = [0, 384], sizes = [8, 128], strides = [1, 1]} : vector<8x512xf32> to vector<8x128xf32>
    %21 = math.tanh %20 : vector<8x128xf32>
    %22 = vector.extract_strided_slice %19 {offsets = [0, 128], sizes = [8, 128], strides = [1, 1]} : vector<8x384xf32> to vector<8x128xf32>
    %23 = arith.mulf %22, %7 : vector<8x128xf32>
    %24 = vector.extract_strided_slice %19 {offsets = [0, 0], sizes = [8, 128], strides = [1, 1]} : vector<8x384xf32> to vector<8x128xf32>
    %25 = arith.mulf %24, %21 : vector<8x128xf32>
    %26 = arith.addf %23, %25 : vector<8x128xf32>
    %27 = vector.extract_strided_slice %19 {offsets = [0, 256], sizes = [8, 128], strides = [1, 1]} : vector<8x384xf32> to vector<8x128xf32>
    %28 = math.tanh %26 : vector<8x128xf32>
    %29 = arith.mulf %27, %28 : vector<8x128xf32>
    %c0_13 = arith.constant 0 : index
    %c0_14 = arith.constant 0 : index
    %30 = vector.load %arg8[%c0_13, %c0_14] : memref<200x128xf32, #tpu.memory_space<vmem>>, vector<8x128xf32>
    tpu.vector_store %arg8[%c0_13, %c0_14], %29 {strides = array<i32>} : memref<200x128xf32, #tpu.memory_space<vmem>>, vector<8x128xf32>,
    %31 = arith.truncf %29 : vector<8x128xf32> to vector<8x128xbf16>
    %c0_15 = arith.constant 0 : index
    %c0_16 = arith.constant 0 : index
    %32 = vector.load %arg3[%c0_15, %c0_16] : memref<128x512xbf16, #tpu.memory_space<vmem>>, vector<128x512xbf16>
    %cst_17 = arith.constant dense<0.000000e+00> : vector<8x512xf32>
    %33 = tpu.matmul %31, %32, %cst_17 {dimension_numbers = #tpu.dot_dimension_numbers<[1], [0], [0], [1], [0, 0, 1, 1], [], []>} : vector<8x128xbf16>, vector<128x512xbf16>, vector<8x512xf32> -> vector<8x512xf32>
    %34 = arith.addf %5, %33 : vector<8x512xf32>
    %35 = vector.extract_strided_slice %34 {offsets = [0, 0], sizes = [8, 384], strides = [1, 1]} : vector<8x512xf32> to vector<8x384xf32>
    %cst_18 = arith.constant 5.000000e-01 : f32
    %36 = vector.broadcast %cst_18 : f32 to vector<8x384xf32>
    %37 = arith.mulf %36, %35 : vector<8x384xf32>
    %38 = math.tanh %37 : vector<8x384xf32>
    %cst_19 = arith.constant 5.000000e-01 : f32
    %39 = vector.broadcast %cst_19 : f32 to vector<8x384xf32>
    %40 = arith.mulf %39, %38 : vector<8x384xf32>
    %cst_20 = arith.constant 5.000000e-01 : f32
    %41 = vector.broadcast %cst_20 : f32 to vector<8x384xf32>
    %42 = arith.addf %40, %41 : vector<8x384xf32>
    %43 = vector.extract_strided_slice %34 {offsets = [0, 384], sizes = [8, 128], strides = [1, 1]} : vector<8x512xf32> to vector<8x128xf32>
    %44 = math.tanh %43 : vector<8x128xf32>
    %45 = vector.extract_strided_slice %42 {offsets = [0, 128], sizes = [8, 128], strides = [1, 1]} : vector<8x384xf32> to vector<8x128xf32>
    %46 = arith.mulf %45, %26 : vector<8x128xf32>
    %47 = vector.extract_strided_slice %42 {offsets = [0, 0], sizes = [8, 128], strides = [1, 1]} : vector<8x384xf32> to vector<8x128xf32>
    %48 = arith.mulf %47, %44 : vector<8x128xf32>
    %49 = arith.addf %46, %48 : vector<8x128xf32>
    %50 = vector.extract_strided_slice %42 {offsets = [0, 256], sizes = [8, 128], strides = [1, 1]} : vector<8x384xf32> to vector<8x128xf32>
    %51 = math.tanh %49 : vector<8x128xf32>
    %52 = arith.mulf %50, %51 : vector<8x128xf32>
    %c8 = arith.constant 8 : index
    %c0_21 = arith.constant 0 : index
    %53 = vector.load %arg8[%c8, %c0_21] : memref<200x128xf32, #tpu.memory_space<vmem>>, vector<8x128xf32>
    tpu.vector_store %arg8[%c8, %c0_21], %52 {strides = array<i32>} : memref<200x128xf32, #tpu.memory_space<vmem>>, vector<8x128xf32>,
    %54 = arith.truncf %52 : vector<8x128xf32> to vector<8x128xbf16>
    %c0_22 = arith.constant 0 : index
    %c0_23 = arith.constant 0 : index
    %55 = vector.load %arg3[%c0_22, %c0_23] : memref<128x512xbf16, #tpu.memory_space<vmem>>, vector<128x512xbf16>
    %cst_24 = arith.constant dense<0.000000e+00> : vector<8x512xf32>
    %56 = tpu.matmul %54, %55, %cst_24 {dimension_numbers = #tpu.dot_dimension_numbers<[1], [0], [0], [1], [0, 0, 1, 1], [], []>} : vector<8x128xbf16>, vector<128x512xbf16>, vector<8x512xf32> -> vector<8x512xf32>
    %57 = arith.addf %5, %56 : vector<8x512xf32>
    %58 = vector.extract_strided_slice %57 {offsets = [0, 0], sizes = [8, 384], strides = [1, 1]} : vector<8x512xf32> to vector<8x384xf32>
    %cst_25 = arith.constant 5.000000e-01 : f32
    %59 = vector.broadcast %cst_25 : f32 to vector<8x384xf32>
    %60 = arith.mulf %59, %58 : vector<8x384xf32>
    %61 = math.tanh %60 : vector<8x384xf32>
    %cst_26 = arith.constant 5.000000e-01 : f32
    %62 = vector.broadcast %cst_26 : f32 to vector<8x384xf32>
    %63 = arith.mulf %62, %61 : vector<8x384xf32>
    %cst_27 = arith.constant 5.000000e-01 : f32
    %64 = vector.broadcast %cst_27 : f32 to vector<8x384xf32>
    %65 = arith.addf %63, %64 : vector<8x384xf32>
    %66 = vector.extract_strided_slice %57 {offsets = [0, 384], sizes = [8, 128], strides = [1, 1]} : vector<8x512xf32> to vector<8x128xf32>
    %67 = math.tanh %66 : vector<8x128xf32>
    %68 = vector.extract_strided_slice %65 {offsets = [0, 128], sizes = [8, 128], strides = [1, 1]} : vector<8x384xf32> to vector<8x128xf32>
    %69 = arith.mulf %68, %49 : vector<8x128xf32>
    %70 = vector.extract_strided_slice %65 {offsets = [0, 0], sizes = [8, 128], strides = [1, 1]} : vector<8x384xf32> to vector<8x128xf32>
    %71 = arith.mulf %70, %67 : vector<8x128xf32>
    %72 = arith.addf %69, %71 : vector<8x128xf32>
    %73 = vector.extract_strided_slice %65 {offsets = [0, 256], sizes = [8, 128], strides = [1, 1]} : vector<8x384xf32> to vector<8x128xf32>
    %74 = math.tanh %72 : vector<8x128xf32>
    %75 = arith.mulf %73, %74 : vector<8x128xf32>
    %c16 = arith.constant 16 : index
    %c0_28 = arith.constant 0 : index
    %76 = vector.load %arg8[%c16, %c0_28] : memref<200x128xf32, #tpu.memory_space<vmem>>, vector<8x128xf32>
    tpu.vector_store %arg8[%c16, %c0_28], %75 {strides = array<i32>} : memref<200x128xf32, #tpu.memory_space<vmem>>, vector<8x128xf32>,
    %77 = arith.truncf %75 : vector<8x128xf32> to vector<8x128xbf16>
    %c0_29 = arith.constant 0 : index
    %c0_30 = arith.constant 0 : index
    %78 = vector.load %arg3[%c0_29, %c0_30] : memref<128x512xbf16, #tpu.memory_space<vmem>>, vector<128x512xbf16>
    %cst_31 = arith.constant dense<0.000000e+00> : vector<8x512xf32>
    %79 = tpu.matmul %77, %78, %cst_31 {dimension_numbers = #tpu.dot_dimension_numbers<[1], [0], [0], [1], [0, 0, 1, 1], [], []>} : vector<8x128xbf16>, vector<128x512xbf16>, vector<8x512xf32> -> vector<8x512xf32>
    %80 = arith.addf %5, %79 : vector<8x512xf32>
    %81 = vector.extract_strided_slice %80 {offsets = [0, 0], sizes = [8, 384], strides = [1, 1]} : vector<8x512xf32> to vector<8x384xf32>
    %cst_32 = arith.constant 5.000000e-01 : f32
    %82 = vector.broadcast %cst_32 : f32 to vector<8x384xf32>
    %83 = arith.mulf %82, %81 : vector<8x384xf32>
    %84 = math.tanh %83 : vector<8x384xf32>
    %cst_33 = arith.constant 5.000000e-01 : f32
    %85 = vector.broadcast %cst_33 : f32 to vector<8x384xf32>
    %86 = arith.mulf %85, %84 : vector<8x384xf32>
    %cst_34 = arith.constant 5.000000e-01 : f32
    %87 = vector.broadcast %cst_34 : f32 to vector<8x384xf32>
    %88 = arith.addf %86, %87 : vector<8x384xf32>
    %89 = vector.extract_strided_slice %80 {offsets = [0, 384], sizes = [8, 128], strides = [1, 1]} : vector<8x512xf32> to vector<8x128xf32>
    %90 = math.tanh %89 : vector<8x128xf32>
    %91 = vector.extract_strided_slice %88 {offsets = [0, 128], sizes = [8, 128], strides = [1, 1]} : vector<8x384xf32> to vector<8x128xf32>
    %92 = arith.mulf %91, %72 : vector<8x128xf32>
    %93 = vector.extract_strided_slice %88 {offsets = [0, 0], sizes = [8, 128], strides = [1, 1]} : vector<8x384xf32> to vector<8x128xf32>
    %94 = arith.mulf %93, %90 : vector<8x128xf32>
    %95 = arith.addf %92, %94 : vector<8x128xf32>
    %96 = vector.extract_strided_slice %88 {offsets = [0, 256], sizes = [8, 128], strides = [1, 1]} : vector<8x384xf32> to vector<8x128xf32>
    %97 = math.tanh %95 : vector<8x128xf32>
    %98 = arith.mulf %96, %97 : vector<8x128xf32>
    %c24 = arith.constant 24 : index
    %c0_35 = arith.constant 0 : index
    %99 = vector.load %arg8[%c24, %c0_35] : memref<200x128xf32, #tpu.memory_space<vmem>>, vector<8x128xf32>
    tpu.vector_store %arg8[%c24, %c0_35], %98 {strides = array<i32>} : memref<200x128xf32, #tpu.memory_space<vmem>>, vector<8x128xf32>,
    %100 = arith.truncf %98 : vector<8x128xf32> to vector<8x128xbf16>
    %c0_36 = arith.constant 0 : index
    %c0_37 = arith.constant 0 : index
    %101 = vector.load %arg3[%c0_36, %c0_37] : memref<128x512xbf16, #tpu.memory_space<vmem>>, vector<128x512xbf16>
    %cst_38 = arith.constant dense<0.000000e+00> : vector<8x512xf32>
    %102 = tpu.matmul %100, %101, %cst_38 {dimension_numbers = #tpu.dot_dimension_numbers<[1], [0], [0], [1], [0, 0, 1, 1], [], []>} : vector<8x128xbf16>, vector<128x512xbf16>, vector<8x512xf32> -> vector<8x512xf32>
    %103 = arith.addf %5, %102 : vector<8x512xf32>
    %104 = vector.extract_strided_slice %103 {offsets = [0, 0], sizes = [8, 384], strides = [1, 1]} : vector<8x512xf32> to vector<8x384xf32>
    %cst_39 = arith.constant 5.000000e-01 : f32
    %105 = vector.broadcast %cst_39 : f32 to vector<8x384xf32>
    %106 = arith.mulf %105, %104 : vector<8x384xf32>
    %107 = math.tanh %106 : vector<8x384xf32>
    %cst_40 = arith.constant 5.000000e-01 : f32
    %108 = vector.broadcast %cst_40 : f32 to vector<8x384xf32>
    %109 = arith.mulf %108, %107 : vector<8x384xf32>
    %cst_41 = arith.constant 5.000000e-01 : f32
    %110 = vector.broadcast %cst_41 : f32 to vector<8x384xf32>
    %111 = arith.addf %109, %110 : vector<8x384xf32>
    %112 = vector.extract_strided_slice %103 {offsets = [0, 384], sizes = [8, 128], strides = [1, 1]} : vector<8x512xf32> to vector<8x128xf32>
    %113 = math.tanh %112 : vector<8x128xf32>
    %114 = vector.extract_strided_slice %111 {offsets = [0, 128], sizes = [8, 128], strides = [1, 1]} : vector<8x384xf32> to vector<8x128xf32>
    %115 = arith.mulf %114, %95 : vector<8x128xf32>
    %116 = vector.extract_strided_slice %111 {offsets = [0, 0], sizes = [8, 128], strides = [1, 1]} : vector<8x384xf32> to vector<8x128xf32>
    %117 = arith.mulf %116, %113 : vector<8x128xf32>
    %118 = arith.addf %115, %117 : vector<8x128xf32>
    %119 = vector.extract_strided_slice %111 {offsets = [0, 256], sizes = [8, 128], strides = [1, 1]} : vector<8x384xf32> to vector<8x128xf32>
    %120 = math.tanh %118 : vector<8x128xf32>
    %121 = arith.mulf %119, %120 : vector<8x128xf32>
    %c32 = arith.constant 32 : index
    %c0_42 = arith.constant 0 : index
    %122 = vector.load %arg8[%c32, %c0_42] : memref<200x128xf32, #tpu.memory_space<vmem>>, vector<8x128xf32>
    tpu.vector_store %arg8[%c32, %c0_42], %121 {strides = array<i32>} : memref<200x128xf32, #tpu.memory_space<vmem>>, vector<8x128xf32>,
    %123 = arith.truncf %121 : vector<8x128xf32> to vector<8x128xbf16>
    %c0_43 = arith.constant 0 : index
    %c0_44 = arith.constant 0 : index
    %124 = vector.load %arg3[%c0_43, %c0_44] : memref<128x512xbf16, #tpu.memory_space<vmem>>, vector<128x512xbf16>
    %cst_45 = arith.constant dense<0.000000e+00> : vector<8x512xf32>
    %125 = tpu.matmul %123, %124, %cst_45 {dimension_numbers = #tpu.dot_dimension_numbers<[1], [0], [0], [1], [0, 0, 1, 1], [], []>} : vector<8x128xbf16>, vector<128x512xbf16>, vector<8x512xf32> -> vector<8x512xf32>
    %126 = arith.addf %5, %125 : vector<8x512xf32>
    %127 = vector.extract_strided_slice %126 {offsets = [0, 0], sizes = [8, 384], strides = [1, 1]} : vector<8x512xf32> to vector<8x384xf32>
    %cst_46 = arith.constant 5.000000e-01 : f32
    %128 = vector.broadcast %cst_46 : f32 to vector<8x384xf32>
    %129 = arith.mulf %128, %127 : vector<8x384xf32>
    %130 = math.tanh %129 : vector<8x384xf32>
    %cst_47 = arith.constant 5.000000e-01 : f32
    %131 = vector.broadcast %cst_47 : f32 to vector<8x384xf32>
    %132 = arith.mulf %131, %130 : vector<8x384xf32>
    %cst_48 = arith.constant 5.000000e-01 : f32
    %133 = vector.broadcast %cst_48 : f32 to vector<8x384xf32>
    %134 = arith.addf %132, %133 : vector<8x384xf32>
    %135 = vector.extract_strided_slice %126 {offsets = [0, 384], sizes = [8, 128], strides = [1, 1]} : vector<8x512xf32> to vector<8x128xf32>
    %136 = math.tanh %135 : vector<8x128xf32>
    %137 = vector.extract_strided_slice %134 {offsets = [0, 128], sizes = [8, 128], strides = [1, 1]} : vector<8x384xf32> to vector<8x128xf32>
    %138 = arith.mulf %137, %118 : vector<8x128xf32>
    %139 = vector.extract_strided_slice %134 {offsets = [0, 0], sizes = [8, 128], strides = [1, 1]} : vector<8x384xf32> to vector<8x128xf32>
    %140 = arith.mulf %139, %136 : vector<8x128xf32>
    %141 = arith.addf %138, %140 : vector<8x128xf32>
    %142 = vector.extract_strided_slice %134 {offsets = [0, 256], sizes = [8, 128], strides = [1, 1]} : vector<8x384xf32> to vector<8x128xf32>
    %143 = math.tanh %141 : vector<8x128xf32>
    %144 = arith.mulf %142, %143 : vector<8x128xf32>
    %c40 = arith.constant 40 : index
    %c0_49 = arith.constant 0 : index
    %145 = vector.load %arg8[%c40, %c0_49] : memref<200x128xf32, #tpu.memory_space<vmem>>, vector<8x128xf32>
    tpu.vector_store %arg8[%c40, %c0_49], %144 {strides = array<i32>} : memref<200x128xf32, #tpu.memory_space<vmem>>, vector<8x128xf32>,
    %146 = arith.truncf %144 : vector<8x128xf32> to vector<8x128xbf16>
    %c0_50 = arith.constant 0 : index
    %c0_51 = arith.constant 0 : index
    %147 = vector.load %arg3[%c0_50, %c0_51] : memref<128x512xbf16, #tpu.memory_space<vmem>>, vector<128x512xbf16>
    %cst_52 = arith.constant dense<0.000000e+00> : vector<8x512xf32>
    %148 = tpu.matmul %146, %147, %cst_52 {dimension_numbers = #tpu.dot_dimension_numbers<[1], [0], [0], [1], [0, 0, 1, 1], [], []>} : vector<8x128xbf16>, vector<128x512xbf16>, vector<8x512xf32> -> vector<8x512xf32>
    %149 = arith.addf %5, %148 : vector<8x512xf32>
    %150 = vector.extract_strided_slice %149 {offsets = [0, 0], sizes = [8, 384], strides = [1, 1]} : vector<8x512xf32> to vector<8x384xf32>
    %cst_53 = arith.constant 5.000000e-01 : f32
    %151 = vector.broadcast %cst_53 : f32 to vector<8x384xf32>
    %152 = arith.mulf %151, %150 : vector<8x384xf32>
    %153 = math.tanh %152 : vector<8x384xf32>
    %cst_54 = arith.constant 5.000000e-01 : f32
    %154 = vector.broadcast %cst_54 : f32 to vector<8x384xf32>
    %155 = arith.mulf %154, %153 : vector<8x384xf32>
    %cst_55 = arith.constant 5.000000e-01 : f32
    %156 = vector.broadcast %cst_55 : f32 to vector<8x384xf32>
    %157 = arith.addf %155, %156 : vector<8x384xf32>
    %158 = vector.extract_strided_slice %149 {offsets = [0, 384], sizes = [8, 128], strides = [1, 1]} : vector<8x512xf32> to vector<8x128xf32>
    %159 = math.tanh %158 : vector<8x128xf32>
    %160 = vector.extract_strided_slice %157 {offsets = [0, 128], sizes = [8, 128], strides = [1, 1]} : vector<8x384xf32> to vector<8x128xf32>
    %161 = arith.mulf %160, %141 : vector<8x128xf32>
    %162 = vector.extract_strided_slice %157 {offsets = [0, 0], sizes = [8, 128], strides = [1, 1]} : vector<8x384xf32> to vector<8x128xf32>
    %163 = arith.mulf %162, %159 : vector<8x128xf32>
    %164 = arith.addf %161, %163 : vector<8x128xf32>
    %165 = vector.extract_strided_slice %157 {offsets = [0, 256], sizes = [8, 128], strides = [1, 1]} : vector<8x384xf32> to vector<8x128xf32>
    %166 = math.tanh %164 : vector<8x128xf32>
    %167 = arith.mulf %165, %166 : vector<8x128xf32>
    %c48 = arith.constant 48 : index
    %c0_56 = arith.constant 0 : index
    %168 = vector.load %arg8[%c48, %c0_56] : memref<200x128xf32, #tpu.memory_space<vmem>>, vector<8x128xf32>
    tpu.vector_store %arg8[%c48, %c0_56], %167 {strides = array<i32>} : memref<200x128xf32, #tpu.memory_space<vmem>>, vector<8x128xf32>,
    %169 = arith.truncf %167 : vector<8x128xf32> to vector<8x128xbf16>
    %c0_57 = arith.constant 0 : index
    %c0_58 = arith.constant 0 : index
    %170 = vector.load %arg3[%c0_57, %c0_58] : memref<128x512xbf16, #tpu.memory_space<vmem>>, vector<128x512xbf16>
    %cst_59 = arith.constant dense<0.000000e+00> : vector<8x512xf32>
    %171 = tpu.matmul %169, %170, %cst_59 {dimension_numbers = #tpu.dot_dimension_numbers<[1], [0], [0], [1], [0, 0, 1, 1], [], []>} : vector<8x128xbf16>, vector<128x512xbf16>, vector<8x512xf32> -> vector<8x512xf32>
    %172 = arith.addf %5, %171 : vector<8x512xf32>
    %173 = vector.extract_strided_slice %172 {offsets = [0, 0], sizes = [8, 384], strides = [1, 1]} : vector<8x512xf32> to vector<8x384xf32>
    %cst_60 = arith.constant 5.000000e-01 : f32
    %174 = vector.broadcast %cst_60 : f32 to vector<8x384xf32>
    %175 = arith.mulf %174, %173 : vector<8x384xf32>
    %176 = math.tanh %175 : vector<8x384xf32>
    %cst_61 = arith.constant 5.000000e-01 : f32
    %177 = vector.broadcast %cst_61 : f32 to vector<8x384xf32>
    %178 = arith.mulf %177, %176 : vector<8x384xf32>
    %cst_62 = arith.constant 5.000000e-01 : f32
    %179 = vector.broadcast %cst_62 : f32 to vector<8x384xf32>
    %180 = arith.addf %178, %179 : vector<8x384xf32>
    %181 = vector.extract_strided_slice %172 {offsets = [0, 384], sizes = [8, 128], strides = [1, 1]} : vector<8x512xf32> to vector<8x128xf32>
    %182 = math.tanh %181 : vector<8x128xf32>
    %183 = vector.extract_strided_slice %180 {offsets = [0, 128], sizes = [8, 128], strides = [1, 1]} : vector<8x384xf32> to vector<8x128xf32>
    %184 = arith.mulf %183, %164 : vector<8x128xf32>
    %185 = vector.extract_strided_slice %180 {offsets = [0, 0], sizes = [8, 128], strides = [1, 1]} : vector<8x384xf32> to vector<8x128xf32>
    %186 = arith.mulf %185, %182 : vector<8x128xf32>
    %187 = arith.addf %184, %186 : vector<8x128xf32>
    %188 = vector.extract_strided_slice %180 {offsets = [0, 256], sizes = [8, 128], strides = [1, 1]} : vector<8x384xf32> to vector<8x128xf32>
    %189 = math.tanh %187 : vector<8x128xf32>
    %190 = arith.mulf %188, %189 : vector<8x128xf32>
    %c56 = arith.constant 56 : index
    %c0_63 = arith.constant 0 : index
    %191 = vector.load %arg8[%c56, %c0_63] : memref<200x128xf32, #tpu.memory_space<vmem>>, vector<8x128xf32>
    tpu.vector_store %arg8[%c56, %c0_63], %190 {strides = array<i32>} : memref<200x128xf32, #tpu.memory_space<vmem>>, vector<8x128xf32>,
    %192 = arith.truncf %190 : vector<8x128xf32> to vector<8x128xbf16>
    %c0_64 = arith.constant 0 : index
    %c0_65 = arith.constant 0 : index
    %193 = vector.load %arg3[%c0_64, %c0_65] : memref<128x512xbf16, #tpu.memory_space<vmem>>, vector<128x512xbf16>
    %cst_66 = arith.constant dense<0.000000e+00> : vector<8x512xf32>
    %194 = tpu.matmul %192, %193, %cst_66 {dimension_numbers = #tpu.dot_dimension_numbers<[1], [0], [0], [1], [0, 0, 1, 1], [], []>} : vector<8x128xbf16>, vector<128x512xbf16>, vector<8x512xf32> -> vector<8x512xf32>
    %195 = arith.addf %5, %194 : vector<8x512xf32>
    %196 = vector.extract_strided_slice %195 {offsets = [0, 0], sizes = [8, 384], strides = [1, 1]} : vector<8x512xf32> to vector<8x384xf32>
    %cst_67 = arith.constant 5.000000e-01 : f32
    %197 = vector.broadcast %cst_67 : f32 to vector<8x384xf32>
    %198 = arith.mulf %197, %196 : vector<8x384xf32>
    %199 = math.tanh %198 : vector<8x384xf32>
    %cst_68 = arith.constant 5.000000e-01 : f32
    %200 = vector.broadcast %cst_68 : f32 to vector<8x384xf32>
    %201 = arith.mulf %200, %199 : vector<8x384xf32>
    %cst_69 = arith.constant 5.000000e-01 : f32
    %202 = vector.broadcast %cst_69 : f32 to vector<8x384xf32>
    %203 = arith.addf %201, %202 : vector<8x384xf32>
    %204 = vector.extract_strided_slice %195 {offsets = [0, 384], sizes = [8, 128], strides = [1, 1]} : vector<8x512xf32> to vector<8x128xf32>
    %205 = math.tanh %204 : vector<8x128xf32>
    %206 = vector.extract_strided_slice %203 {offsets = [0, 128], sizes = [8, 128], strides = [1, 1]} : vector<8x384xf32> to vector<8x128xf32>
    %207 = arith.mulf %206, %187 : vector<8x128xf32>
    %208 = vector.extract_strided_slice %203 {offsets = [0, 0], sizes = [8, 128], strides = [1, 1]} : vector<8x384xf32> to vector<8x128xf32>
    %209 = arith.mulf %208, %205 : vector<8x128xf32>
    %210 = arith.addf %207, %209 : vector<8x128xf32>
    %211 = vector.extract_strided_slice %203 {offsets = [0, 256], sizes = [8, 128], strides = [1, 1]} : vector<8x384xf32> to vector<8x128xf32>
    %212 = math.tanh %210 : vector<8x128xf32>
    %213 = arith.mulf %211, %212 : vector<8x128xf32>
    %c64 = arith.constant 64 : index
    %c0_70 = arith.constant 0 : index
    %214 = vector.load %arg8[%c64, %c0_70] : memref<200x128xf32, #tpu.memory_space<vmem>>, vector<8x128xf32>
    tpu.vector_store %arg8[%c64, %c0_70], %213 {strides = array<i32>} : memref<200x128xf32, #tpu.memory_space<vmem>>, vector<8x128xf32>,
    %215 = arith.truncf %213 : vector<8x128xf32> to vector<8x128xbf16>
    %c0_71 = arith.constant 0 : index
    %c0_72 = arith.constant 0 : index
    %216 = vector.load %arg3[%c0_71, %c0_72] : memref<128x512xbf16, #tpu.memory_space<vmem>>, vector<128x512xbf16>
    %cst_73 = arith.constant dense<0.000000e+00> : vector<8x512xf32>
    %217 = tpu.matmul %215, %216, %cst_73 {dimension_numbers = #tpu.dot_dimension_numbers<[1], [0], [0], [1], [0, 0, 1, 1], [], []>} : vector<8x128xbf16>, vector<128x512xbf16>, vector<8x512xf32> -> vector<8x512xf32>
    %218 = arith.addf %5, %217 : vector<8x512xf32>
    %219 = vector.extract_strided_slice %218 {offsets = [0, 0], sizes = [8, 384], strides = [1, 1]} : vector<8x512xf32> to vector<8x384xf32>
    %cst_74 = arith.constant 5.000000e-01 : f32
    %220 = vector.broadcast %cst_74 : f32 to vector<8x384xf32>
    %221 = arith.mulf %220, %219 : vector<8x384xf32>
    %222 = math.tanh %221 : vector<8x384xf32>
    %cst_75 = arith.constant 5.000000e-01 : f32
    %223 = vector.broadcast %cst_75 : f32 to vector<8x384xf32>
    %224 = arith.mulf %223, %222 : vector<8x384xf32>
    %cst_76 = arith.constant 5.000000e-01 : f32
    %225 = vector.broadcast %cst_76 : f32 to vector<8x384xf32>
    %226 = arith.addf %224, %225 : vector<8x384xf32>
    %227 = vector.extract_strided_slice %218 {offsets = [0, 384], sizes = [8, 128], strides = [1, 1]} : vector<8x512xf32> to vector<8x128xf32>
    %228 = math.tanh %227 : vector<8x128xf32>
    %229 = vector.extract_strided_slice %226 {offsets = [0, 128], sizes = [8, 128], strides = [1, 1]} : vector<8x384xf32> to vector<8x128xf32>
    %230 = arith.mulf %229, %210 : vector<8x128xf32>
    %231 = vector.extract_strided_slice %226 {offsets = [0, 0], sizes = [8, 128], strides = [1, 1]} : vector<8x384xf32> to vector<8x128xf32>
    %232 = arith.mulf %231, %228 : vector<8x128xf32>
    %233 = arith.addf %230, %232 : vector<8x128xf32>
    %234 = vector.extract_strided_slice %226 {offsets = [0, 256], sizes = [8, 128], strides = [1, 1]} : vector<8x384xf32> to vector<8x128xf32>
    %235 = math.tanh %233 : vector<8x128xf32>
    %236 = arith.mulf %234, %235 : vector<8x128xf32>
    %c72 = arith.constant 72 : index
    %c0_77 = arith.constant 0 : index
    %237 = vector.load %arg8[%c72, %c0_77] : memref<200x128xf32, #tpu.memory_space<vmem>>, vector<8x128xf32>
    tpu.vector_store %arg8[%c72, %c0_77], %236 {strides = array<i32>} : memref<200x128xf32, #tpu.memory_space<vmem>>, vector<8x128xf32>,
    %238 = arith.truncf %236 : vector<8x128xf32> to vector<8x128xbf16>
    %c0_78 = arith.constant 0 : index
    %c0_79 = arith.constant 0 : index
    %239 = vector.load %arg3[%c0_78, %c0_79] : memref<128x512xbf16, #tpu.memory_space<vmem>>, vector<128x512xbf16>
    %cst_80 = arith.constant dense<0.000000e+00> : vector<8x512xf32>
    %240 = tpu.matmul %238, %239, %cst_80 {dimension_numbers = #tpu.dot_dimension_numbers<[1], [0], [0], [1], [0, 0, 1, 1], [], []>} : vector<8x128xbf16>, vector<128x512xbf16>, vector<8x512xf32> -> vector<8x512xf32>
    %241 = arith.addf %5, %240 : vector<8x512xf32>
    %242 = vector.extract_strided_slice %241 {offsets = [0, 0], sizes = [8, 384], strides = [1, 1]} : vector<8x512xf32> to vector<8x384xf32>
    %cst_81 = arith.constant 5.000000e-01 : f32
    %243 = vector.broadcast %cst_81 : f32 to vector<8x384xf32>
    %244 = arith.mulf %243, %242 : vector<8x384xf32>
    %245 = math.tanh %244 : vector<8x384xf32>
    %cst_82 = arith.constant 5.000000e-01 : f32
    %246 = vector.broadcast %cst_82 : f32 to vector<8x384xf32>
    %247 = arith.mulf %246, %245 : vector<8x384xf32>
    %cst_83 = arith.constant 5.000000e-01 : f32
    %248 = vector.broadcast %cst_83 : f32 to vector<8x384xf32>
    %249 = arith.addf %247, %248 : vector<8x384xf32>
    %250 = vector.extract_strided_slice %241 {offsets = [0, 384], sizes = [8, 128], strides = [1, 1]} : vector<8x512xf32> to vector<8x128xf32>
    %251 = math.tanh %250 : vector<8x128xf32>
    %252 = vector.extract_strided_slice %249 {offsets = [0, 128], sizes = [8, 128], strides = [1, 1]} : vector<8x384xf32> to vector<8x128xf32>
    %253 = arith.mulf %252, %233 : vector<8x128xf32>
    %254 = vector.extract_strided_slice %249 {offsets = [0, 0], sizes = [8, 128], strides = [1, 1]} : vector<8x384xf32> to vector<8x128xf32>
    %255 = arith.mulf %254, %251 : vector<8x128xf32>
    %256 = arith.addf %253, %255 : vector<8x128xf32>
    %257 = vector.extract_strided_slice %249 {offsets = [0, 256], sizes = [8, 128], strides = [1, 1]} : vector<8x384xf32> to vector<8x128xf32>
    %258 = math.tanh %256 : vector<8x128xf32>
    %259 = arith.mulf %257, %258 : vector<8x128xf32>
    %c80 = arith.constant 80 : index
    %c0_84 = arith.constant 0 : index
    %260 = vector.load %arg8[%c80, %c0_84] : memref<200x128xf32, #tpu.memory_space<vmem>>, vector<8x128xf32>
    tpu.vector_store %arg8[%c80, %c0_84], %259 {strides = array<i32>} : memref<200x128xf32, #tpu.memory_space<vmem>>, vector<8x128xf32>,
    %261 = arith.truncf %259 : vector<8x128xf32> to vector<8x128xbf16>
    %c0_85 = arith.constant 0 : index
    %c0_86 = arith.constant 0 : index
    %262 = vector.load %arg3[%c0_85, %c0_86] : memref<128x512xbf16, #tpu.memory_space<vmem>>, vector<128x512xbf16>
    %cst_87 = arith.constant dense<0.000000e+00> : vector<8x512xf32>
    %263 = tpu.matmul %261, %262, %cst_87 {dimension_numbers = #tpu.dot_dimension_numbers<[1], [0], [0], [1], [0, 0, 1, 1], [], []>} : vector<8x128xbf16>, vector<128x512xbf16>, vector<8x512xf32> -> vector<8x512xf32>
    %264 = arith.addf %5, %263 : vector<8x512xf32>
    %265 = vector.extract_strided_slice %264 {offsets = [0, 0], sizes = [8, 384], strides = [1, 1]} : vector<8x512xf32> to vector<8x384xf32>
    %cst_88 = arith.constant 5.000000e-01 : f32
    %266 = vector.broadcast %cst_88 : f32 to vector<8x384xf32>
    %267 = arith.mulf %266, %265 : vector<8x384xf32>
    %268 = math.tanh %267 : vector<8x384xf32>
    %cst_89 = arith.constant 5.000000e-01 : f32
    %269 = vector.broadcast %cst_89 : f32 to vector<8x384xf32>
    %270 = arith.mulf %269, %268 : vector<8x384xf32>
    %cst_90 = arith.constant 5.000000e-01 : f32
    %271 = vector.broadcast %cst_90 : f32 to vector<8x384xf32>
    %272 = arith.addf %270, %271 : vector<8x384xf32>
    %273 = vector.extract_strided_slice %264 {offsets = [0, 384], sizes = [8, 128], strides = [1, 1]} : vector<8x512xf32> to vector<8x128xf32>
    %274 = math.tanh %273 : vector<8x128xf32>
    %275 = vector.extract_strided_slice %272 {offsets = [0, 128], sizes = [8, 128], strides = [1, 1]} : vector<8x384xf32> to vector<8x128xf32>
    %276 = arith.mulf %275, %256 : vector<8x128xf32>
    %277 = vector.extract_strided_slice %272 {offsets = [0, 0], sizes = [8, 128], strides = [1, 1]} : vector<8x384xf32> to vector<8x128xf32>
    %278 = arith.mulf %277, %274 : vector<8x128xf32>
    %279 = arith.addf %276, %278 : vector<8x128xf32>
    %280 = vector.extract_strided_slice %272 {offsets = [0, 256], sizes = [8, 128], strides = [1, 1]} : vector<8x384xf32> to vector<8x128xf32>
    %281 = math.tanh %279 : vector<8x128xf32>
    %282 = arith.mulf %280, %281 : vector<8x128xf32>
    %c88 = arith.constant 88 : index
    %c0_91 = arith.constant 0 : index
    %283 = vector.load %arg8[%c88, %c0_91] : memref<200x128xf32, #tpu.memory_space<vmem>>, vector<8x128xf32>
    tpu.vector_store %arg8[%c88, %c0_91], %282 {strides = array<i32>} : memref<200x128xf32, #tpu.memory_space<vmem>>, vector<8x128xf32>,
    %284 = arith.truncf %282 : vector<8x128xf32> to vector<8x128xbf16>
    %c0_92 = arith.constant 0 : index
    %c0_93 = arith.constant 0 : index
    %285 = vector.load %arg3[%c0_92, %c0_93] : memref<128x512xbf16, #tpu.memory_space<vmem>>, vector<128x512xbf16>
    %cst_94 = arith.constant dense<0.000000e+00> : vector<8x512xf32>
    %286 = tpu.matmul %284, %285, %cst_94 {dimension_numbers = #tpu.dot_dimension_numbers<[1], [0], [0], [1], [0, 0, 1, 1], [], []>} : vector<8x128xbf16>, vector<128x512xbf16>, vector<8x512xf32> -> vector<8x512xf32>
    %287 = arith.addf %5, %286 : vector<8x512xf32>
    %288 = vector.extract_strided_slice %287 {offsets = [0, 0], sizes = [8, 384], strides = [1, 1]} : vector<8x512xf32> to vector<8x384xf32>
    %cst_95 = arith.constant 5.000000e-01 : f32
    %289 = vector.broadcast %cst_95 : f32 to vector<8x384xf32>
    %290 = arith.mulf %289, %288 : vector<8x384xf32>
    %291 = math.tanh %290 : vector<8x384xf32>
    %cst_96 = arith.constant 5.000000e-01 : f32
    %292 = vector.broadcast %cst_96 : f32 to vector<8x384xf32>
    %293 = arith.mulf %292, %291 : vector<8x384xf32>
    %cst_97 = arith.constant 5.000000e-01 : f32
    %294 = vector.broadcast %cst_97 : f32 to vector<8x384xf32>
    %295 = arith.addf %293, %294 : vector<8x384xf32>
    %296 = vector.extract_strided_slice %287 {offsets = [0, 384], sizes = [8, 128], strides = [1, 1]} : vector<8x512xf32> to vector<8x128xf32>
    %297 = math.tanh %296 : vector<8x128xf32>
    %298 = vector.extract_strided_slice %295 {offsets = [0, 128], sizes = [8, 128], strides = [1, 1]} : vector<8x384xf32> to vector<8x128xf32>
    %299 = arith.mulf %298, %279 : vector<8x128xf32>
    %300 = vector.extract_strided_slice %295 {offsets = [0, 0], sizes = [8, 128], strides = [1, 1]} : vector<8x384xf32> to vector<8x128xf32>
    %301 = arith.mulf %300, %297 : vector<8x128xf32>
    %302 = arith.addf %299, %301 : vector<8x128xf32>
    %303 = vector.extract_strided_slice %295 {offsets = [0, 256], sizes = [8, 128], strides = [1, 1]} : vector<8x384xf32> to vector<8x128xf32>
    %304 = math.tanh %302 : vector<8x128xf32>
    %305 = arith.mulf %303, %304 : vector<8x128xf32>
    %c96 = arith.constant 96 : index
    %c0_98 = arith.constant 0 : index
    %306 = vector.load %arg8[%c96, %c0_98] : memref<200x128xf32, #tpu.memory_space<vmem>>, vector<8x128xf32>
    tpu.vector_store %arg8[%c96, %c0_98], %305 {strides = array<i32>} : memref<200x128xf32, #tpu.memory_space<vmem>>, vector<8x128xf32>,
    %307 = arith.truncf %305 : vector<8x128xf32> to vector<8x128xbf16>
    %c0_99 = arith.constant 0 : index
    %c0_100 = arith.constant 0 : index
    %308 = vector.load %arg3[%c0_99, %c0_100] : memref<128x512xbf16, #tpu.memory_space<vmem>>, vector<128x512xbf16>
    %cst_101 = arith.constant dense<0.000000e+00> : vector<8x512xf32>
    %309 = tpu.matmul %307, %308, %cst_101 {dimension_numbers = #tpu.dot_dimension_numbers<[1], [0], [0], [1], [0, 0, 1, 1], [], []>} : vector<8x128xbf16>, vector<128x512xbf16>, vector<8x512xf32> -> vector<8x512xf32>
    %310 = arith.addf %5, %309 : vector<8x512xf32>
    %311 = vector.extract_strided_slice %310 {offsets = [0, 0], sizes = [8, 384], strides = [1, 1]} : vector<8x512xf32> to vector<8x384xf32>
    %cst_102 = arith.constant 5.000000e-01 : f32
    %312 = vector.broadcast %cst_102 : f32 to vector<8x384xf32>
    %313 = arith.mulf %312, %311 : vector<8x384xf32>
    %314 = math.tanh %313 : vector<8x384xf32>
    %cst_103 = arith.constant 5.000000e-01 : f32
    %315 = vector.broadcast %cst_103 : f32 to vector<8x384xf32>
    %316 = arith.mulf %315, %314 : vector<8x384xf32>
    %cst_104 = arith.constant 5.000000e-01 : f32
    %317 = vector.broadcast %cst_104 : f32 to vector<8x384xf32>
    %318 = arith.addf %316, %317 : vector<8x384xf32>
    %319 = vector.extract_strided_slice %310 {offsets = [0, 384], sizes = [8, 128], strides = [1, 1]} : vector<8x512xf32> to vector<8x128xf32>
    %320 = math.tanh %319 : vector<8x128xf32>
    %321 = vector.extract_strided_slice %318 {offsets = [0, 128], sizes = [8, 128], strides = [1, 1]} : vector<8x384xf32> to vector<8x128xf32>
    %322 = arith.mulf %321, %302 : vector<8x128xf32>
    %323 = vector.extract_strided_slice %318 {offsets = [0, 0], sizes = [8, 128], strides = [1, 1]} : vector<8x384xf32> to vector<8x128xf32>
    %324 = arith.mulf %323, %320 : vector<8x128xf32>
    %325 = arith.addf %322, %324 : vector<8x128xf32>
    %326 = vector.extract_strided_slice %318 {offsets = [0, 256], sizes = [8, 128], strides = [1, 1]} : vector<8x384xf32> to vector<8x128xf32>
    %327 = math.tanh %325 : vector<8x128xf32>
    %328 = arith.mulf %326, %327 : vector<8x128xf32>
    %c104 = arith.constant 104 : index
    %c0_105 = arith.constant 0 : index
    %329 = vector.load %arg8[%c104, %c0_105] : memref<200x128xf32, #tpu.memory_space<vmem>>, vector<8x128xf32>
    tpu.vector_store %arg8[%c104, %c0_105], %328 {strides = array<i32>} : memref<200x128xf32, #tpu.memory_space<vmem>>, vector<8x128xf32>,
    %330 = arith.truncf %328 : vector<8x128xf32> to vector<8x128xbf16>
    %c0_106 = arith.constant 0 : index
    %c0_107 = arith.constant 0 : index
    %331 = vector.load %arg3[%c0_106, %c0_107] : memref<128x512xbf16, #tpu.memory_space<vmem>>, vector<128x512xbf16>
    %cst_108 = arith.constant dense<0.000000e+00> : vector<8x512xf32>
    %332 = tpu.matmul %330, %331, %cst_108 {dimension_numbers = #tpu.dot_dimension_numbers<[1], [0], [0], [1], [0, 0, 1, 1], [], []>} : vector<8x128xbf16>, vector<128x512xbf16>, vector<8x512xf32> -> vector<8x512xf32>
    %333 = arith.addf %5, %332 : vector<8x512xf32>
    %334 = vector.extract_strided_slice %333 {offsets = [0, 0], sizes = [8, 384], strides = [1, 1]} : vector<8x512xf32> to vector<8x384xf32>
    %cst_109 = arith.constant 5.000000e-01 : f32
    %335 = vector.broadcast %cst_109 : f32 to vector<8x384xf32>
    %336 = arith.mulf %335, %334 : vector<8x384xf32>
    %337 = math.tanh %336 : vector<8x384xf32>
    %cst_110 = arith.constant 5.000000e-01 : f32
    %338 = vector.broadcast %cst_110 : f32 to vector<8x384xf32>
    %339 = arith.mulf %338, %337 : vector<8x384xf32>
    %cst_111 = arith.constant 5.000000e-01 : f32
    %340 = vector.broadcast %cst_111 : f32 to vector<8x384xf32>
    %341 = arith.addf %339, %340 : vector<8x384xf32>
    %342 = vector.extract_strided_slice %333 {offsets = [0, 384], sizes = [8, 128], strides = [1, 1]} : vector<8x512xf32> to vector<8x128xf32>
    %343 = math.tanh %342 : vector<8x128xf32>
    %344 = vector.extract_strided_slice %341 {offsets = [0, 128], sizes = [8, 128], strides = [1, 1]} : vector<8x384xf32> to vector<8x128xf32>
    %345 = arith.mulf %344, %325 : vector<8x128xf32>
    %346 = vector.extract_strided_slice %341 {offsets = [0, 0], sizes = [8, 128], strides = [1, 1]} : vector<8x384xf32> to vector<8x128xf32>
    %347 = arith.mulf %346, %343 : vector<8x128xf32>
    %348 = arith.addf %345, %347 : vector<8x128xf32>
    %349 = vector.extract_strided_slice %341 {offsets = [0, 256], sizes = [8, 128], strides = [1, 1]} : vector<8x384xf32> to vector<8x128xf32>
    %350 = math.tanh %348 : vector<8x128xf32>
    %351 = arith.mulf %349, %350 : vector<8x128xf32>
    %c112 = arith.constant 112 : index
    %c0_112 = arith.constant 0 : index
    %352 = vector.load %arg8[%c112, %c0_112] : memref<200x128xf32, #tpu.memory_space<vmem>>, vector<8x128xf32>
    tpu.vector_store %arg8[%c112, %c0_112], %351 {strides = array<i32>} : memref<200x128xf32, #tpu.memory_space<vmem>>, vector<8x128xf32>,
    %353 = arith.truncf %351 : vector<8x128xf32> to vector<8x128xbf16>
    %c0_113 = arith.constant 0 : index
    %c0_114 = arith.constant 0 : index
    %354 = vector.load %arg3[%c0_113, %c0_114] : memref<128x512xbf16, #tpu.memory_space<vmem>>, vector<128x512xbf16>
    %cst_115 = arith.constant dense<0.000000e+00> : vector<8x512xf32>
    %355 = tpu.matmul %353, %354, %cst_115 {dimension_numbers = #tpu.dot_dimension_numbers<[1], [0], [0], [1], [0, 0, 1, 1], [], []>} : vector<8x128xbf16>, vector<128x512xbf16>, vector<8x512xf32> -> vector<8x512xf32>
    %356 = arith.addf %5, %355 : vector<8x512xf32>
    %357 = vector.extract_strided_slice %356 {offsets = [0, 0], sizes = [8, 384], strides = [1, 1]} : vector<8x512xf32> to vector<8x384xf32>
    %cst_116 = arith.constant 5.000000e-01 : f32
    %358 = vector.broadcast %cst_116 : f32 to vector<8x384xf32>
    %359 = arith.mulf %358, %357 : vector<8x384xf32>
    %360 = math.tanh %359 : vector<8x384xf32>
    %cst_117 = arith.constant 5.000000e-01 : f32
    %361 = vector.broadcast %cst_117 : f32 to vector<8x384xf32>
    %362 = arith.mulf %361, %360 : vector<8x384xf32>
    %cst_118 = arith.constant 5.000000e-01 : f32
    %363 = vector.broadcast %cst_118 : f32 to vector<8x384xf32>
    %364 = arith.addf %362, %363 : vector<8x384xf32>
    %365 = vector.extract_strided_slice %356 {offsets = [0, 384], sizes = [8, 128], strides = [1, 1]} : vector<8x512xf32> to vector<8x128xf32>
    %366 = math.tanh %365 : vector<8x128xf32>
    %367 = vector.extract_strided_slice %364 {offsets = [0, 128], sizes = [8, 128], strides = [1, 1]} : vector<8x384xf32> to vector<8x128xf32>
    %368 = arith.mulf %367, %348 : vector<8x128xf32>
    %369 = vector.extract_strided_slice %364 {offsets = [0, 0], sizes = [8, 128], strides = [1, 1]} : vector<8x384xf32> to vector<8x128xf32>
    %370 = arith.mulf %369, %366 : vector<8x128xf32>
    %371 = arith.addf %368, %370 : vector<8x128xf32>
    %372 = vector.extract_strided_slice %364 {offsets = [0, 256], sizes = [8, 128], strides = [1, 1]} : vector<8x384xf32> to vector<8x128xf32>
    %373 = math.tanh %371 : vector<8x128xf32>
    %374 = arith.mulf %372, %373 : vector<8x128xf32>
    %c120 = arith.constant 120 : index
    %c0_119 = arith.constant 0 : index
    %375 = vector.load %arg8[%c120, %c0_119] : memref<200x128xf32, #tpu.memory_space<vmem>>, vector<8x128xf32>
    tpu.vector_store %arg8[%c120, %c0_119], %374 {strides = array<i32>} : memref<200x128xf32, #tpu.memory_space<vmem>>, vector<8x128xf32>,
    %376 = arith.truncf %374 : vector<8x128xf32> to vector<8x128xbf16>
    %c0_120 = arith.constant 0 : index
    %c0_121 = arith.constant 0 : index
    %377 = vector.load %arg3[%c0_120, %c0_121] : memref<128x512xbf16, #tpu.memory_space<vmem>>, vector<128x512xbf16>
    %cst_122 = arith.constant dense<0.000000e+00> : vector<8x512xf32>
    %378 = tpu.matmul %376, %377, %cst_122 {dimension_numbers = #tpu.dot_dimension_numbers<[1], [0], [0], [1], [0, 0, 1, 1], [], []>} : vector<8x128xbf16>, vector<128x512xbf16>, vector<8x512xf32> -> vector<8x512xf32>
    %379 = arith.addf %5, %378 : vector<8x512xf32>
    %380 = vector.extract_strided_slice %379 {offsets = [0, 0], sizes = [8, 384], strides = [1, 1]} : vector<8x512xf32> to vector<8x384xf32>
    %cst_123 = arith.constant 5.000000e-01 : f32
    %381 = vector.broadcast %cst_123 : f32 to vector<8x384xf32>
    %382 = arith.mulf %381, %380 : vector<8x384xf32>
    %383 = math.tanh %382 : vector<8x384xf32>
    %cst_124 = arith.constant 5.000000e-01 : f32
    %384 = vector.broadcast %cst_124 : f32 to vector<8x384xf32>
    %385 = arith.mulf %384, %383 : vector<8x384xf32>
    %cst_125 = arith.constant 5.000000e-01 : f32
    %386 = vector.broadcast %cst_125 : f32 to vector<8x384xf32>
    %387 = arith.addf %385, %386 : vector<8x384xf32>
    %388 = vector.extract_strided_slice %379 {offsets = [0, 384], sizes = [8, 128], strides = [1, 1]} : vector<8x512xf32> to vector<8x128xf32>
    %389 = math.tanh %388 : vector<8x128xf32>
    %390 = vector.extract_strided_slice %387 {offsets = [0, 128], sizes = [8, 128], strides = [1, 1]} : vector<8x384xf32> to vector<8x128xf32>
    %391 = arith.mulf %390, %371 : vector<8x128xf32>
    %392 = vector.extract_strided_slice %387 {offsets = [0, 0], sizes = [8, 128], strides = [1, 1]} : vector<8x384xf32> to vector<8x128xf32>
    %393 = arith.mulf %392, %389 : vector<8x128xf32>
    %394 = arith.addf %391, %393 : vector<8x128xf32>
    %395 = vector.extract_strided_slice %387 {offsets = [0, 256], sizes = [8, 128], strides = [1, 1]} : vector<8x384xf32> to vector<8x128xf32>
    %396 = math.tanh %394 : vector<8x128xf32>
    %397 = arith.mulf %395, %396 : vector<8x128xf32>
    %c128 = arith.constant 128 : index
    %c0_126 = arith.constant 0 : index
    %398 = vector.load %arg8[%c128, %c0_126] : memref<200x128xf32, #tpu.memory_space<vmem>>, vector<8x128xf32>
    tpu.vector_store %arg8[%c128, %c0_126], %397 {strides = array<i32>} : memref<200x128xf32, #tpu.memory_space<vmem>>, vector<8x128xf32>,
    %399 = arith.truncf %397 : vector<8x128xf32> to vector<8x128xbf16>
    %c0_127 = arith.constant 0 : index
    %c0_128 = arith.constant 0 : index
    %400 = vector.load %arg3[%c0_127, %c0_128] : memref<128x512xbf16, #tpu.memory_space<vmem>>, vector<128x512xbf16>
    %cst_129 = arith.constant dense<0.000000e+00> : vector<8x512xf32>
    %401 = tpu.matmul %399, %400, %cst_129 {dimension_numbers = #tpu.dot_dimension_numbers<[1], [0], [0], [1], [0, 0, 1, 1], [], []>} : vector<8x128xbf16>, vector<128x512xbf16>, vector<8x512xf32> -> vector<8x512xf32>
    %402 = arith.addf %5, %401 : vector<8x512xf32>
    %403 = vector.extract_strided_slice %402 {offsets = [0, 0], sizes = [8, 384], strides = [1, 1]} : vector<8x512xf32> to vector<8x384xf32>
    %cst_130 = arith.constant 5.000000e-01 : f32
    %404 = vector.broadcast %cst_130 : f32 to vector<8x384xf32>
    %405 = arith.mulf %404, %403 : vector<8x384xf32>
    %406 = math.tanh %405 : vector<8x384xf32>
    %cst_131 = arith.constant 5.000000e-01 : f32
    %407 = vector.broadcast %cst_131 : f32 to vector<8x384xf32>
    %408 = arith.mulf %407, %406 : vector<8x384xf32>
    %cst_132 = arith.constant 5.000000e-01 : f32
    %409 = vector.broadcast %cst_132 : f32 to vector<8x384xf32>
    %410 = arith.addf %408, %409 : vector<8x384xf32>
    %411 = vector.extract_strided_slice %402 {offsets = [0, 384], sizes = [8, 128], strides = [1, 1]} : vector<8x512xf32> to vector<8x128xf32>
    %412 = math.tanh %411 : vector<8x128xf32>
    %413 = vector.extract_strided_slice %410 {offsets = [0, 128], sizes = [8, 128], strides = [1, 1]} : vector<8x384xf32> to vector<8x128xf32>
    %414 = arith.mulf %413, %394 : vector<8x128xf32>
    %415 = vector.extract_strided_slice %410 {offsets = [0, 0], sizes = [8, 128], strides = [1, 1]} : vector<8x384xf32> to vector<8x128xf32>
    %416 = arith.mulf %415, %412 : vector<8x128xf32>
    %417 = arith.addf %414, %416 : vector<8x128xf32>
    %418 = vector.extract_strided_slice %410 {offsets = [0, 256], sizes = [8, 128], strides = [1, 1]} : vector<8x384xf32> to vector<8x128xf32>
    %419 = math.tanh %417 : vector<8x128xf32>
    %420 = arith.mulf %418, %419 : vector<8x128xf32>
    %c136 = arith.constant 136 : index
    %c0_133 = arith.constant 0 : index
    %421 = vector.load %arg8[%c136, %c0_133] : memref<200x128xf32, #tpu.memory_space<vmem>>, vector<8x128xf32>
    tpu.vector_store %arg8[%c136, %c0_133], %420 {strides = array<i32>} : memref<200x128xf32, #tpu.memory_space<vmem>>, vector<8x128xf32>,
    %422 = arith.truncf %420 : vector<8x128xf32> to vector<8x128xbf16>
    %c0_134 = arith.constant 0 : index
    %c0_135 = arith.constant 0 : index
    %423 = vector.load %arg3[%c0_134, %c0_135] : memref<128x512xbf16, #tpu.memory_space<vmem>>, vector<128x512xbf16>
    %cst_136 = arith.constant dense<0.000000e+00> : vector<8x512xf32>
    %424 = tpu.matmul %422, %423, %cst_136 {dimension_numbers = #tpu.dot_dimension_numbers<[1], [0], [0], [1], [0, 0, 1, 1], [], []>} : vector<8x128xbf16>, vector<128x512xbf16>, vector<8x512xf32> -> vector<8x512xf32>
    %425 = arith.addf %5, %424 : vector<8x512xf32>
    %426 = vector.extract_strided_slice %425 {offsets = [0, 0], sizes = [8, 384], strides = [1, 1]} : vector<8x512xf32> to vector<8x384xf32>
    %cst_137 = arith.constant 5.000000e-01 : f32
    %427 = vector.broadcast %cst_137 : f32 to vector<8x384xf32>
    %428 = arith.mulf %427, %426 : vector<8x384xf32>
    %429 = math.tanh %428 : vector<8x384xf32>
    %cst_138 = arith.constant 5.000000e-01 : f32
    %430 = vector.broadcast %cst_138 : f32 to vector<8x384xf32>
    %431 = arith.mulf %430, %429 : vector<8x384xf32>
    %cst_139 = arith.constant 5.000000e-01 : f32
    %432 = vector.broadcast %cst_139 : f32 to vector<8x384xf32>
    %433 = arith.addf %431, %432 : vector<8x384xf32>
    %434 = vector.extract_strided_slice %425 {offsets = [0, 384], sizes = [8, 128], strides = [1, 1]} : vector<8x512xf32> to vector<8x128xf32>
    %435 = math.tanh %434 : vector<8x128xf32>
    %436 = vector.extract_strided_slice %433 {offsets = [0, 128], sizes = [8, 128], strides = [1, 1]} : vector<8x384xf32> to vector<8x128xf32>
    %437 = arith.mulf %436, %417 : vector<8x128xf32>
    %438 = vector.extract_strided_slice %433 {offsets = [0, 0], sizes = [8, 128], strides = [1, 1]} : vector<8x384xf32> to vector<8x128xf32>
    %439 = arith.mulf %438, %435 : vector<8x128xf32>
    %440 = arith.addf %437, %439 : vector<8x128xf32>
    %441 = vector.extract_strided_slice %433 {offsets = [0, 256], sizes = [8, 128], strides = [1, 1]} : vector<8x384xf32> to vector<8x128xf32>
    %442 = math.tanh %440 : vector<8x128xf32>
    %443 = arith.mulf %441, %442 : vector<8x128xf32>
    %c144 = arith.constant 144 : index
    %c0_140 = arith.constant 0 : index
    %444 = vector.load %arg8[%c144, %c0_140] : memref<200x128xf32, #tpu.memory_space<vmem>>, vector<8x128xf32>
    tpu.vector_store %arg8[%c144, %c0_140], %443 {strides = array<i32>} : memref<200x128xf32, #tpu.memory_space<vmem>>, vector<8x128xf32>,
    %445 = arith.truncf %443 : vector<8x128xf32> to vector<8x128xbf16>
    %c0_141 = arith.constant 0 : index
    %c0_142 = arith.constant 0 : index
    %446 = vector.load %arg3[%c0_141, %c0_142] : memref<128x512xbf16, #tpu.memory_space<vmem>>, vector<128x512xbf16>
    %cst_143 = arith.constant dense<0.000000e+00> : vector<8x512xf32>
    %447 = tpu.matmul %445, %446, %cst_143 {dimension_numbers = #tpu.dot_dimension_numbers<[1], [0], [0], [1], [0, 0, 1, 1], [], []>} : vector<8x128xbf16>, vector<128x512xbf16>, vector<8x512xf32> -> vector<8x512xf32>
    %448 = arith.addf %5, %447 : vector<8x512xf32>
    %449 = vector.extract_strided_slice %448 {offsets = [0, 0], sizes = [8, 384], strides = [1, 1]} : vector<8x512xf32> to vector<8x384xf32>
    %cst_144 = arith.constant 5.000000e-01 : f32
    %450 = vector.broadcast %cst_144 : f32 to vector<8x384xf32>
    %451 = arith.mulf %450, %449 : vector<8x384xf32>
    %452 = math.tanh %451 : vector<8x384xf32>
    %cst_145 = arith.constant 5.000000e-01 : f32
    %453 = vector.broadcast %cst_145 : f32 to vector<8x384xf32>
    %454 = arith.mulf %453, %452 : vector<8x384xf32>
    %cst_146 = arith.constant 5.000000e-01 : f32
    %455 = vector.broadcast %cst_146 : f32 to vector<8x384xf32>
    %456 = arith.addf %454, %455 : vector<8x384xf32>
    %457 = vector.extract_strided_slice %448 {offsets = [0, 384], sizes = [8, 128], strides = [1, 1]} : vector<8x512xf32> to vector<8x128xf32>
    %458 = math.tanh %457 : vector<8x128xf32>
    %459 = vector.extract_strided_slice %456 {offsets = [0, 128], sizes = [8, 128], strides = [1, 1]} : vector<8x384xf32> to vector<8x128xf32>
    %460 = arith.mulf %459, %440 : vector<8x128xf32>
    %461 = vector.extract_strided_slice %456 {offsets = [0, 0], sizes = [8, 128], strides = [1, 1]} : vector<8x384xf32> to vector<8x128xf32>
    %462 = arith.mulf %461, %458 : vector<8x128xf32>
    %463 = arith.addf %460, %462 : vector<8x128xf32>
    %464 = vector.extract_strided_slice %456 {offsets = [0, 256], sizes = [8, 128], strides = [1, 1]} : vector<8x384xf32> to vector<8x128xf32>
    %465 = math.tanh %463 : vector<8x128xf32>
    %466 = arith.mulf %464, %465 : vector<8x128xf32>
    %c152 = arith.constant 152 : index
    %c0_147 = arith.constant 0 : index
    %467 = vector.load %arg8[%c152, %c0_147] : memref<200x128xf32, #tpu.memory_space<vmem>>, vector<8x128xf32>
    tpu.vector_store %arg8[%c152, %c0_147], %466 {strides = array<i32>} : memref<200x128xf32, #tpu.memory_space<vmem>>, vector<8x128xf32>,
    %468 = arith.truncf %466 : vector<8x128xf32> to vector<8x128xbf16>
    %c0_148 = arith.constant 0 : index
    %c0_149 = arith.constant 0 : index
    %469 = vector.load %arg3[%c0_148, %c0_149] : memref<128x512xbf16, #tpu.memory_space<vmem>>, vector<128x512xbf16>
    %cst_150 = arith.constant dense<0.000000e+00> : vector<8x512xf32>
    %470 = tpu.matmul %468, %469, %cst_150 {dimension_numbers = #tpu.dot_dimension_numbers<[1], [0], [0], [1], [0, 0, 1, 1], [], []>} : vector<8x128xbf16>, vector<128x512xbf16>, vector<8x512xf32> -> vector<8x512xf32>
    %471 = arith.addf %5, %470 : vector<8x512xf32>
    %472 = vector.extract_strided_slice %471 {offsets = [0, 0], sizes = [8, 384], strides = [1, 1]} : vector<8x512xf32> to vector<8x384xf32>
    %cst_151 = arith.constant 5.000000e-01 : f32
    %473 = vector.broadcast %cst_151 : f32 to vector<8x384xf32>
    %474 = arith.mulf %473, %472 : vector<8x384xf32>
    %475 = math.tanh %474 : vector<8x384xf32>
    %cst_152 = arith.constant 5.000000e-01 : f32
    %476 = vector.broadcast %cst_152 : f32 to vector<8x384xf32>
    %477 = arith.mulf %476, %475 : vector<8x384xf32>
    %cst_153 = arith.constant 5.000000e-01 : f32
    %478 = vector.broadcast %cst_153 : f32 to vector<8x384xf32>
    %479 = arith.addf %477, %478 : vector<8x384xf32>
    %480 = vector.extract_strided_slice %471 {offsets = [0, 384], sizes = [8, 128], strides = [1, 1]} : vector<8x512xf32> to vector<8x128xf32>
    %481 = math.tanh %480 : vector<8x128xf32>
    %482 = vector.extract_strided_slice %479 {offsets = [0, 128], sizes = [8, 128], strides = [1, 1]} : vector<8x384xf32> to vector<8x128xf32>
    %483 = arith.mulf %482, %463 : vector<8x128xf32>
    %484 = vector.extract_strided_slice %479 {offsets = [0, 0], sizes = [8, 128], strides = [1, 1]} : vector<8x384xf32> to vector<8x128xf32>
    %485 = arith.mulf %484, %481 : vector<8x128xf32>
    %486 = arith.addf %483, %485 : vector<8x128xf32>
    %487 = vector.extract_strided_slice %479 {offsets = [0, 256], sizes = [8, 128], strides = [1, 1]} : vector<8x384xf32> to vector<8x128xf32>
    %488 = math.tanh %486 : vector<8x128xf32>
    %489 = arith.mulf %487, %488 : vector<8x128xf32>
    %c160 = arith.constant 160 : index
    %c0_154 = arith.constant 0 : index
    %490 = vector.load %arg8[%c160, %c0_154] : memref<200x128xf32, #tpu.memory_space<vmem>>, vector<8x128xf32>
    tpu.vector_store %arg8[%c160, %c0_154], %489 {strides = array<i32>} : memref<200x128xf32, #tpu.memory_space<vmem>>, vector<8x128xf32>,
    %491 = arith.truncf %489 : vector<8x128xf32> to vector<8x128xbf16>
    %c0_155 = arith.constant 0 : index
    %c0_156 = arith.constant 0 : index
    %492 = vector.load %arg3[%c0_155, %c0_156] : memref<128x512xbf16, #tpu.memory_space<vmem>>, vector<128x512xbf16>
    %cst_157 = arith.constant dense<0.000000e+00> : vector<8x512xf32>
    %493 = tpu.matmul %491, %492, %cst_157 {dimension_numbers = #tpu.dot_dimension_numbers<[1], [0], [0], [1], [0, 0, 1, 1], [], []>} : vector<8x128xbf16>, vector<128x512xbf16>, vector<8x512xf32> -> vector<8x512xf32>
    %494 = arith.addf %5, %493 : vector<8x512xf32>
    %495 = vector.extract_strided_slice %494 {offsets = [0, 0], sizes = [8, 384], strides = [1, 1]} : vector<8x512xf32> to vector<8x384xf32>
    %cst_158 = arith.constant 5.000000e-01 : f32
    %496 = vector.broadcast %cst_158 : f32 to vector<8x384xf32>
    %497 = arith.mulf %496, %495 : vector<8x384xf32>
    %498 = math.tanh %497 : vector<8x384xf32>
    %cst_159 = arith.constant 5.000000e-01 : f32
    %499 = vector.broadcast %cst_159 : f32 to vector<8x384xf32>
    %500 = arith.mulf %499, %498 : vector<8x384xf32>
    %cst_160 = arith.constant 5.000000e-01 : f32
    %501 = vector.broadcast %cst_160 : f32 to vector<8x384xf32>
    %502 = arith.addf %500, %501 : vector<8x384xf32>
    %503 = vector.extract_strided_slice %494 {offsets = [0, 384], sizes = [8, 128], strides = [1, 1]} : vector<8x512xf32> to vector<8x128xf32>
    %504 = math.tanh %503 : vector<8x128xf32>
    %505 = vector.extract_strided_slice %502 {offsets = [0, 128], sizes = [8, 128], strides = [1, 1]} : vector<8x384xf32> to vector<8x128xf32>
    %506 = arith.mulf %505, %486 : vector<8x128xf32>
    %507 = vector.extract_strided_slice %502 {offsets = [0, 0], sizes = [8, 128], strides = [1, 1]} : vector<8x384xf32> to vector<8x128xf32>
    %508 = arith.mulf %507, %504 : vector<8x128xf32>
    %509 = arith.addf %506, %508 : vector<8x128xf32>
    %510 = vector.extract_strided_slice %502 {offsets = [0, 256], sizes = [8, 128], strides = [1, 1]} : vector<8x384xf32> to vector<8x128xf32>
    %511 = math.tanh %509 : vector<8x128xf32>
    %512 = arith.mulf %510, %511 : vector<8x128xf32>
    %c168 = arith.constant 168 : index
    %c0_161 = arith.constant 0 : index
    %513 = vector.load %arg8[%c168, %c0_161] : memref<200x128xf32, #tpu.memory_space<vmem>>, vector<8x128xf32>
    tpu.vector_store %arg8[%c168, %c0_161], %512 {strides = array<i32>} : memref<200x128xf32, #tpu.memory_space<vmem>>, vector<8x128xf32>,
    %514 = arith.truncf %512 : vector<8x128xf32> to vector<8x128xbf16>
    %c0_162 = arith.constant 0 : index
    %c0_163 = arith.constant 0 : index
    %515 = vector.load %arg3[%c0_162, %c0_163] : memref<128x512xbf16, #tpu.memory_space<vmem>>, vector<128x512xbf16>
    %cst_164 = arith.constant dense<0.000000e+00> : vector<8x512xf32>
    %516 = tpu.matmul %514, %515, %cst_164 {dimension_numbers = #tpu.dot_dimension_numbers<[1], [0], [0], [1], [0, 0, 1, 1], [], []>} : vector<8x128xbf16>, vector<128x512xbf16>, vector<8x512xf32> -> vector<8x512xf32>
    %517 = arith.addf %5, %516 : vector<8x512xf32>
    %518 = vector.extract_strided_slice %517 {offsets = [0, 0], sizes = [8, 384], strides = [1, 1]} : vector<8x512xf32> to vector<8x384xf32>
    %cst_165 = arith.constant 5.000000e-01 : f32
    %519 = vector.broadcast %cst_165 : f32 to vector<8x384xf32>
    %520 = arith.mulf %519, %518 : vector<8x384xf32>
    %521 = math.tanh %520 : vector<8x384xf32>
    %cst_166 = arith.constant 5.000000e-01 : f32
    %522 = vector.broadcast %cst_166 : f32 to vector<8x384xf32>
    %523 = arith.mulf %522, %521 : vector<8x384xf32>
    %cst_167 = arith.constant 5.000000e-01 : f32
    %524 = vector.broadcast %cst_167 : f32 to vector<8x384xf32>
    %525 = arith.addf %523, %524 : vector<8x384xf32>
    %526 = vector.extract_strided_slice %517 {offsets = [0, 384], sizes = [8, 128], strides = [1, 1]} : vector<8x512xf32> to vector<8x128xf32>
    %527 = math.tanh %526 : vector<8x128xf32>
    %528 = vector.extract_strided_slice %525 {offsets = [0, 128], sizes = [8, 128], strides = [1, 1]} : vector<8x384xf32> to vector<8x128xf32>
    %529 = arith.mulf %528, %509 : vector<8x128xf32>
    %530 = vector.extract_strided_slice %525 {offsets = [0, 0], sizes = [8, 128], strides = [1, 1]} : vector<8x384xf32> to vector<8x128xf32>
    %531 = arith.mulf %530, %527 : vector<8x128xf32>
    %532 = arith.addf %529, %531 : vector<8x128xf32>
    %533 = vector.extract_strided_slice %525 {offsets = [0, 256], sizes = [8, 128], strides = [1, 1]} : vector<8x384xf32> to vector<8x128xf32>
    %534 = math.tanh %532 : vector<8x128xf32>
    %535 = arith.mulf %533, %534 : vector<8x128xf32>
    %c176 = arith.constant 176 : index
    %c0_168 = arith.constant 0 : index
    %536 = vector.load %arg8[%c176, %c0_168] : memref<200x128xf32, #tpu.memory_space<vmem>>, vector<8x128xf32>
    tpu.vector_store %arg8[%c176, %c0_168], %535 {strides = array<i32>} : memref<200x128xf32, #tpu.memory_space<vmem>>, vector<8x128xf32>,
    %537 = arith.truncf %535 : vector<8x128xf32> to vector<8x128xbf16>
    %c0_169 = arith.constant 0 : index
    %c0_170 = arith.constant 0 : index
    %538 = vector.load %arg3[%c0_169, %c0_170] : memref<128x512xbf16, #tpu.memory_space<vmem>>, vector<128x512xbf16>
    %cst_171 = arith.constant dense<0.000000e+00> : vector<8x512xf32>
    %539 = tpu.matmul %537, %538, %cst_171 {dimension_numbers = #tpu.dot_dimension_numbers<[1], [0], [0], [1], [0, 0, 1, 1], [], []>} : vector<8x128xbf16>, vector<128x512xbf16>, vector<8x512xf32> -> vector<8x512xf32>
    %540 = arith.addf %5, %539 : vector<8x512xf32>
    %541 = vector.extract_strided_slice %540 {offsets = [0, 0], sizes = [8, 384], strides = [1, 1]} : vector<8x512xf32> to vector<8x384xf32>
    %cst_172 = arith.constant 5.000000e-01 : f32
    %542 = vector.broadcast %cst_172 : f32 to vector<8x384xf32>
    %543 = arith.mulf %542, %541 : vector<8x384xf32>
    %544 = math.tanh %543 : vector<8x384xf32>
    %cst_173 = arith.constant 5.000000e-01 : f32
    %545 = vector.broadcast %cst_173 : f32 to vector<8x384xf32>
    %546 = arith.mulf %545, %544 : vector<8x384xf32>
    %cst_174 = arith.constant 5.000000e-01 : f32
    %547 = vector.broadcast %cst_174 : f32 to vector<8x384xf32>
    %548 = arith.addf %546, %547 : vector<8x384xf32>
    %549 = vector.extract_strided_slice %540 {offsets = [0, 384], sizes = [8, 128], strides = [1, 1]} : vector<8x512xf32> to vector<8x128xf32>
    %550 = math.tanh %549 : vector<8x128xf32>
    %551 = vector.extract_strided_slice %548 {offsets = [0, 128], sizes = [8, 128], strides = [1, 1]} : vector<8x384xf32> to vector<8x128xf32>
    %552 = arith.mulf %551, %532 : vector<8x128xf32>
    %553 = vector.extract_strided_slice %548 {offsets = [0, 0], sizes = [8, 128], strides = [1, 1]} : vector<8x384xf32> to vector<8x128xf32>
    %554 = arith.mulf %553, %550 : vector<8x128xf32>
    %555 = arith.addf %552, %554 : vector<8x128xf32>
    %556 = vector.extract_strided_slice %548 {offsets = [0, 256], sizes = [8, 128], strides = [1, 1]} : vector<8x384xf32> to vector<8x128xf32>
    %557 = math.tanh %555 : vector<8x128xf32>
    %558 = arith.mulf %556, %557 : vector<8x128xf32>
    %c184 = arith.constant 184 : index
    %c0_175 = arith.constant 0 : index
    %559 = vector.load %arg8[%c184, %c0_175] : memref<200x128xf32, #tpu.memory_space<vmem>>, vector<8x128xf32>
    tpu.vector_store %arg8[%c184, %c0_175], %558 {strides = array<i32>} : memref<200x128xf32, #tpu.memory_space<vmem>>, vector<8x128xf32>,
    %560 = arith.truncf %558 : vector<8x128xf32> to vector<8x128xbf16>
    %c0_176 = arith.constant 0 : index
    %c0_177 = arith.constant 0 : index
    %561 = vector.load %arg3[%c0_176, %c0_177] : memref<128x512xbf16, #tpu.memory_space<vmem>>, vector<128x512xbf16>
    %cst_178 = arith.constant dense<0.000000e+00> : vector<8x512xf32>
    %562 = tpu.matmul %560, %561, %cst_178 {dimension_numbers = #tpu.dot_dimension_numbers<[1], [0], [0], [1], [0, 0, 1, 1], [], []>} : vector<8x128xbf16>, vector<128x512xbf16>, vector<8x512xf32> -> vector<8x512xf32>
    %563 = arith.addf %5, %562 : vector<8x512xf32>
    %564 = vector.extract_strided_slice %563 {offsets = [0, 0], sizes = [8, 384], strides = [1, 1]} : vector<8x512xf32> to vector<8x384xf32>
    %cst_179 = arith.constant 5.000000e-01 : f32
    %565 = vector.broadcast %cst_179 : f32 to vector<8x384xf32>
    %566 = arith.mulf %565, %564 : vector<8x384xf32>
    %567 = math.tanh %566 : vector<8x384xf32>
    %cst_180 = arith.constant 5.000000e-01 : f32
    %568 = vector.broadcast %cst_180 : f32 to vector<8x384xf32>
    %569 = arith.mulf %568, %567 : vector<8x384xf32>
    %cst_181 = arith.constant 5.000000e-01 : f32
    %570 = vector.broadcast %cst_181 : f32 to vector<8x384xf32>
    %571 = arith.addf %569, %570 : vector<8x384xf32>
    %572 = vector.extract_strided_slice %563 {offsets = [0, 384], sizes = [8, 128], strides = [1, 1]} : vector<8x512xf32> to vector<8x128xf32>
    %573 = math.tanh %572 : vector<8x128xf32>
    %574 = vector.extract_strided_slice %571 {offsets = [0, 128], sizes = [8, 128], strides = [1, 1]} : vector<8x384xf32> to vector<8x128xf32>
    %575 = arith.mulf %574, %555 : vector<8x128xf32>
    %576 = vector.extract_strided_slice %571 {offsets = [0, 0], sizes = [8, 128], strides = [1, 1]} : vector<8x384xf32> to vector<8x128xf32>
    %577 = arith.mulf %576, %573 : vector<8x128xf32>
    %578 = arith.addf %575, %577 : vector<8x128xf32>
    %579 = vector.extract_strided_slice %571 {offsets = [0, 256], sizes = [8, 128], strides = [1, 1]} : vector<8x384xf32> to vector<8x128xf32>
    %580 = math.tanh %578 : vector<8x128xf32>
    %581 = arith.mulf %579, %580 : vector<8x128xf32>
    %c192 = arith.constant 192 : index
    %c0_182 = arith.constant 0 : index
    %582 = vector.load %arg8[%c192, %c0_182] : memref<200x128xf32, #tpu.memory_space<vmem>>, vector<8x128xf32>
    tpu.vector_store %arg8[%c192, %c0_182], %581 {strides = array<i32>} : memref<200x128xf32, #tpu.memory_space<vmem>>, vector<8x128xf32>,
    %c0_183 = arith.constant 0 : index
    %c0_184 = arith.constant 0 : index
    %583 = vector.load %arg8[%c0_183, %c0_184] : memref<200x128xf32, #tpu.memory_space<vmem>>, vector<200x128xf32>
    %c0_185 = arith.constant 0 : index
    %c0_186 = arith.constant 0 : index
    %584 = vector.load %arg5[%c0_185, %c0_186] : memref<128x128xf32, #tpu.memory_space<vmem>>, vector<128x128xf32>
    %cst_187 = arith.constant dense<0.000000e+00> : vector<200x128xf32>
    %585 = tpu.matmul %583, %584, %cst_187 {dimension_numbers = #tpu.dot_dimension_numbers<[1], [0], [0], [1], [0, 0, 1, 1], [], []>} : vector<200x128xf32>, vector<128x128xf32>, vector<200x128xf32> -> vector<200x128xf32>
    %c0_188 = arith.constant 0 : index
    %c0_189 = arith.constant 0 : index
    %586 = vector.load %arg6[%c0_188, %c0_189] : memref<1x128xf32, #tpu.memory_space<vmem>>, vector<1x128xf32>
    %587 = vector.broadcast %586 : vector<1x128xf32> to vector<200x128xf32>
    %588 = arith.addf %585, %587 : vector<200x128xf32>
    %c0_190 = arith.constant 0 : index
    %c0_191 = arith.constant 0 : index
    %c0_192 = arith.constant 0 : index
    %589 = vector.load %arg7[%c0_190, %c0_191, %c0_192] : memref<1x200x128xf32, #tpu.memory_space<vmem>>, vector<1x200x128xf32>
    %590 = vector.shape_cast %589 : vector<1x200x128xf32> to vector<200x128xf32>
    %591 = vector.shape_cast %588 : vector<200x128xf32> to vector<1x200x128xf32>
    tpu.vector_store %arg7[%c0_190, %c0_191, %c0_192], %591 {strides = array<i32>} : memref<1x200x128xf32, #tpu.memory_space<vmem>>, vector<1x200x128xf32>,
    return
  }
  func.func @transform_0(%arg0: i32) -> (i32, i32) {
    %c0_i32 = arith.constant 0 : i32
    %c0_i32_0 = arith.constant 0 : i32
    return %arg0, %c0_i32 : i32, i32
  }
  func.func @transform_1(%arg0: i32) -> (i32, i32) {
    %c0_i32 = arith.constant 0 : i32
    %c0_i32_0 = arith.constant 0 : i32
    %c0_i32_1 = arith.constant 0 : i32
    return %c0_i32, %c0_i32_0 : i32, i32
  }
  func.func @transform_2(%arg0: i32) -> (i32, i32) {
    %c0_i32 = arith.constant 0 : i32
    %c0_i32_0 = arith.constant 0 : i32
    %c0_i32_1 = arith.constant 0 : i32
    return %c0_i32, %c0_i32_0 : i32, i32
  }
  func.func @transform_3(%arg0: i32) -> (i32, i32) {
    %c0_i32 = arith.constant 0 : i32
    %c0_i32_0 = arith.constant 0 : i32
    %c0_i32_1 = arith.constant 0 : i32
    return %c0_i32, %c0_i32_0 : i32, i32
  }
  func.func @transform_4(%arg0: i32) -> (i32, i32) {
    %c0_i32 = arith.constant 0 : i32
    %c0_i32_0 = arith.constant 0 : i32
    %c0_i32_1 = arith.constant 0 : i32
    return %c0_i32, %c0_i32_0 : i32, i32
  }
  func.func @transform_5(%arg0: i32) -> (i32, i32) {
    %c0_i32 = arith.constant 0 : i32
    %c0_i32_0 = arith.constant 0 : i32
    %c0_i32_1 = arith.constant 0 : i32
    return %c0_i32, %c0_i32_0 : i32, i32
  }
  func.func @transform_6(%arg0: i32) -> (i32, i32, i32) {
    %c0_i32 = arith.constant 0 : i32
    %c0_i32_0 = arith.constant 0 : i32
    %c0_i32_1 = arith.constant 0 : i32
    return %arg0, %c0_i32, %c0_i32_0 : i32, i32, i32
  }
}

</mosaic_0001>

<llo_original>
// kernel: decoder_forward.1
$region0: #{decoder_forward.1}
  #allocation0 [shape = 'u32[]', space=smem, size = 0x4, offset = 0x4, fixed_abs, tag = 'smem constant byte address 0x4 - core index']
  #allocation1 [shape = 'u32[144,128]{1,0:T(1,128)}', space=vmem, size = 0x12000, scoped, tag = 'internal scratch']
  #allocation2 [shape = 'f32[200,128]{1,0:T(8,128)}', space=vmem, size = 0x19000, scoped, tag = 'scratch operand']
  %s0 = inlined_call_operand.vmem [shape: bf16[8,256], index: 0, kind: input, shape index: {}]
  %s1 = inlined_call_operand.hbm [shape: bf16[256,512], index: 1, kind: input, shape index: {}]
  %s2 = inlined_call_operand.hbm [shape: bf16[128,512], index: 2, kind: input, shape index: {}]
  %s3 = inlined_call_operand.vmem [shape: f32[1,512], index: 3, kind: input, shape index: {}]
  %s4 = inlined_call_operand.hbm [shape: f32[128,128], index: 4, kind: input, shape index: {}]
  %s5 = inlined_call_operand.vmem [shape: f32[1,128], index: 5, kind: input, shape index: {}]
  %s6 = inlined_call_operand.vmem [shape: f32[1,200,128], index: 6, kind: output, shape index: {}]
  %s7 = sld [smem:[#allocation0]]
  $region46: #{decoder_forward.1} parent=0
    _
  %s9 = ssub.s32 1, %s7
  %s10 = scalar_select 0, %s9, %s7
  $region1: #{decoder_forward.1} parent=0
    #allocation3 [shape = 'u8[262144]{0}', space=vmem, size = 0x40000, scoped, tag = 'input window, operand 1, single buffered']
    #allocation4 [shape = 's32[1]{0}', space=sflag, size = 0x4, scoped, tag = 'scoped memory for decoder_forward.1']
    #allocation5 [shape = 'u8[131072]{0}', space=vmem, size = 0x20000, scoped, tag = 'input window, operand 2, single buffered']
    #allocation6 [shape = 's32[1]{0}', space=sflag, size = 0x4, scoped, tag = 'scoped memory for decoder_forward.1']
    #allocation7 [shape = 'u8[65536]{0}', space=vmem, size = 0x10000, scoped, tag = 'input window, operand 4, single buffered']
    %11 = vsyncpa [#allocation4], 0
    %12 = vsyncpa [#allocation6], 0
    // Predicated region
    $region2: #{decoder_forward.1} parent=1 // pred_check
      _
    $region3: #{decoder_forward.1} parent=1 // pred_check_branch
      %14 = sbr.rel (0) target = $region5
    $region4: #{decoder_forward.1} parent=1 // pred_region
      _
    $region5: #{decoder_forward.1} parent=1 // pred_fallthru
      _
    // Predicated region
    $region6: #{decoder_forward.1} parent=1 // pred_check
      _
    $region7: #{decoder_forward.1} parent=1 // pred_check_branch
      %16 = sbr.rel (0) target = $region9
    $region8: #{decoder_forward.1} parent=1 // pred_region
      %s18 = ssub.s32 8192, 8192
      %19 = vsyncadd [#allocation4], %s18
      %s20 = sshll.u32 [#allocation3], 4
      %s21 = int_to_ptr.vmem [resolvable:$true] %s20
      %26 = dma.hbm_to_vmem [thread:$0]  %s1, 8192, %s21, [#allocation4], 256, 256, 16
    $region9: #{decoder_forward.1} parent=1 // pred_fallthru
      _
    // Predicated region
    $region10: #{decoder_forward.1} parent=1 // pred_check
      _
    $region11: #{decoder_forward.1} parent=1 // pred_check_branch
      %28 = sbr.rel (0) target = $region13
    $region12: #{decoder_forward.1} parent=1 // pred_region
      %s30 = ssub.s32 4096, 4096
      %31 = vsyncadd [#allocation6], %s30
      %s32 = sshll.u32 [#allocation5], 4
      %s33 = int_to_ptr.vmem [resolvable:$true] %s32
      %38 = dma.hbm_to_vmem [thread:$0]  %s2, 4096, %s33, [#allocation6], 256, 256, 16
    $region13: #{decoder_forward.1} parent=1 // pred_fallthru
      _
    // Predicated region
    $region14: #{decoder_forward.1} parent=1 // pred_check
      _
    $region15: #{decoder_forward.1} parent=1 // pred_check_branch
      %40 = sbr.rel (0) target = $region17
    $region16: #{decoder_forward.1} parent=1 // pred_region
      _
    $region17: #{decoder_forward.1} parent=1 // pred_fallthru
      _
    // Predicated region
    $region18: #{decoder_forward.1} parent=1 // pred_check
      _
    $region19: #{decoder_forward.1} parent=1 // pred_check_branch
      %42 = sbr.rel (0) target = $region21
    $region20: #{decoder_forward.1} parent=1 // pred_region
      %s44 = ssub.s32 2048, 2048
      %45 = vsyncadd [#allocation6], %s44
      %s46 = sshll.u32 [#allocation7], 4
      %s47 = int_to_ptr.vmem [resolvable:$true] %s46
      %52 = dma.hbm_to_vmem [thread:$0]  %s4, 2048, %s47, [#allocation6], 128, 128, 8
    $region21: #{decoder_forward.1} parent=1 // pred_fallthru
      _
    // Predicated region
    $region22: #{decoder_forward.1} parent=1 // pred_check
      _
    $region23: #{decoder_forward.1} parent=1 // pred_check_branch
      %54 = sbr.rel (0) target = $region25
    $region24: #{decoder_forward.1} parent=1 // pred_region
      _
    $region25: #{decoder_forward.1} parent=1 // pred_fallthru
      _
    // Predicated region
    $region26: #{decoder_forward.1} parent=1 // pred_check
      _
    $region27: #{decoder_forward.1} parent=1 // pred_check_branch
      %56 = sbr.rel (0) target = $region29
    $region28: #{decoder_forward.1} parent=1 // pred_region
      %57 = dma.done [#allocation4], 8192
    $region29: #{decoder_forward.1} parent=1 // pred_fallthru
      _
    // Predicated region
    $region30: #{decoder_forward.1} parent=1 // pred_check
      _
    $region31: #{decoder_forward.1} parent=1 // pred_check_branch
      %59 = sbr.rel (0) target = $region33
    $region32: #{decoder_forward.1} parent=1 // pred_region
      %60 = dma.done [#allocation6], 4096
    $region33: #{decoder_forward.1} parent=1 // pred_fallthru
      _
    // Predicated region
    $region34: #{decoder_forward.1} parent=1 // pred_check
      _
    $region35: #{decoder_forward.1} parent=1 // pred_check_branch
      %62 = sbr.rel (0) target = $region37
    $region36: #{decoder_forward.1} parent=1 // pred_region
      %63 = dma.done [#allocation6], 2048
    $region37: #{decoder_forward.1} parent=1 // pred_fallthru
      _
    %v65 = vld [vmem:[%s0] sm:$0xff]
    %v66 = vld [vmem:[#allocation3] sm:$0xff]
    %v67 = vld [vmem:[#allocation3 + $0x8] sm:$0xff]
    %v68 = vld [vmem:[#allocation3 + $0x10] sm:$0xff]
    %v69 = vld [vmem:[#allocation3 + $0x18] sm:$0xff]
    %v70 = vld [vmem:[#allocation3 + $0x20] sm:$0xff]
    %v71 = vld [vmem:[#allocation3 + $0x28] sm:$0xff]
    %v72 = vld [vmem:[#allocation3 + $0x30] sm:$0xff]
    %v73 = vld [vmem:[#allocation3 + $0x38] sm:$0xff]
    %v74 = vld [vmem:[#allocation3 + $0x40] sm:$0xff]
    %v75 = vld [vmem:[#allocation3 + $0x48] sm:$0xff]
    %v76 = vld [vmem:[#allocation3 + $0x50] sm:$0xff]
    %v77 = vld [vmem:[#allocation3 + $0x58] sm:$0xff]
    %v78 = vld [vmem:[#allocation3 + $0x60] sm:$0xff]
    %v79 = vld [vmem:[#allocation3 + $0x68] sm:$0xff]
    %v80 = vld [vmem:[#allocation3 + $0x70] sm:$0xff]
    %v81 = vld [vmem:[#allocation3 + $0x78] sm:$0xff]
    %v82 = vld [vmem:[#allocation3 + $0x80] sm:$0xff]
    %v83 = vld [vmem:[#allocation3 + $0x88] sm:$0xff]
    %v84 = vld [vmem:[#allocation3 + $0x90] sm:$0xff]
    %v85 = vld [vmem:[#allocation3 + $0x98] sm:$0xff]
    %v86 = vld [vmem:[#allocation3 + $0xa0] sm:$0xff]
    %v87 = vld [vmem:[#allocation3 + $0xa8] sm:$0xff]
    %v88 = vld [vmem:[#allocation3 + $0xb0] sm:$0xff]
    %v89 = vld [vmem:[#allocation3 + $0xb8] sm:$0xff]
    %v90 = vld [vmem:[#allocation3 + $0xc0] sm:$0xff]
    %v91 = vld [vmem:[#allocation3 + $0xc8] sm:$0xff]
    %v92 = vld [vmem:[#allocation3 + $0xd0] sm:$0xff]
    %v93 = vld [vmem:[#allocation3 + $0xd8] sm:$0xff]
    %v94 = vld [vmem:[#allocation3 + $0xe0] sm:$0xff]
    %v95 = vld [vmem:[#allocation3 + $0xe8] sm:$0xff]
    %v96 = vld [vmem:[#allocation3 + $0xf0] sm:$0xff]
    %v97 = vld [vmem:[#allocation3 + $0xf8] sm:$0xff]
    %v98 = vld [vmem:[#allocation3 + $0x100] sm:$0xff]
    %v99 = vld [vmem:[#allocation3 + $0x108] sm:$0xff]
    %v100 = vld [vmem:[#allocation3 + $0x110] sm:$0xff]
    %v101 = vld [vmem:[#allocation3 + $0x118] sm:$0xff]
    %v102 = vld [vmem:[#allocation3 + $0x120] sm:$0xff]
    %v103 = vld [vmem:[#allocation3 + $0x128] sm:$0xff]
    %v104 = vld [vmem:[#allocation3 + $0x130] sm:$0xff]
    %v105 = vld [vmem:[#allocation3 + $0x138] sm:$0xff]
    %v106 = vld [vmem:[#allocation3 + $0x140] sm:$0xff]
    %v107 = vld [vmem:[#allocation3 + $0x148] sm:$0xff]
    %v108 = vld [vmem:[#allocation3 + $0x150] sm:$0xff]
    %v109 = vld [vmem:[#allocation3 + $0x158] sm:$0xff]
    %v110 = vld [vmem:[#allocation3 + $0x160] sm:$0xff]
    %v111 = vld [vmem:[#allocation3 + $0x168] sm:$0xff]
    %v112 = vld [vmem:[#allocation3 + $0x170] sm:$0xff]
    %v113 = vld [vmem:[#allocation3 + $0x178] sm:$0xff]
    %v114 = vld [vmem:[#allocation3 + $0x180] sm:$0xff]
    %v115 = vld [vmem:[#allocation3 + $0x188] sm:$0xff]
    %v116 = vld [vmem:[#allocation3 + $0x190] sm:$0xff]
    %v117 = vld [vmem:[#allocation3 + $0x198] sm:$0xff]
    %v118 = vld [vmem:[#allocation3 + $0x1a0] sm:$0xff]
    %v119 = vld [vmem:[#allocation3 + $0x1a8] sm:$0xff]
    %v120 = vld [vmem:[#allocation3 + $0x1b0] sm:$0xff]
    %v121 = vld [vmem:[#allocation3 + $0x1b8] sm:$0xff]
    %v122 = vld [vmem:[#allocation3 + $0x1c0] sm:$0xff]
    %v123 = vld [vmem:[#allocation3 + $0x1c8] sm:$0xff]
    %v124 = vld [vmem:[#allocation3 + $0x1d0] sm:$0xff]
    %v125 = vld [vmem:[#allocation3 + $0x1d8] sm:$0xff]
    %v126 = vld [vmem:[#allocation3 + $0x1e0] sm:$0xff]
    %v127 = vld [vmem:[#allocation3 + $0x1e8] sm:$0xff]
    %v128 = vld [vmem:[#allocation3 + $0x1f0] sm:$0xff]
    %v129 = vld [vmem:[#allocation3 + $0x1f8] sm:$0xff]
    %v130 = vld [vmem:[%s3] sm:$0xf]
    %v132 = vlaneseq
    %v133 = vshrl.u32 %v132, 7
    %v134 = vsub.s32 0, %v133
    %v135 = vrot.slane %v130, %v134
    %v136 = vlaneseq
    %v137 = vshrl.u32 %v136, 7
    %v138 = vsub.s32 1, %v137
    %v139 = vrot.slane %v130, %v138
    %v140 = vlaneseq
    %v141 = vshrl.u32 %v140, 7
    %v142 = vsub.s32 2, %v141
    %v143 = vrot.slane %v130, %v142
    %v144 = vlaneseq
    %v145 = vshrl.u32 %v144, 7
    %v146 = vsub.s32 3, %v145
    %v147 = vrot.slane %v130, %v146
    %v153 = vunpack.c.l.b16 %v65
    %v154 = vunpack.c.h.b16 %v65
    %v155 = vpack.c.b16 %v153, %v153
    %v156 = vpack.c.b16 %v154, %v154
    %v223 = vunpack.c.l.b16 %v66
    %v224 = vunpack.c.h.b16 %v66
    %v225 = vunpack.c.l.b16 %v67
    %v226 = vunpack.c.h.b16 %v67
    %v227 = vunpack.c.l.b16 %v68
    %v228 = vunpack.c.h.b16 %v68
    %v229 = vunpack.c.l.b16 %v69
    %v230 = vunpack.c.h.b16 %v69
    %v231 = vunpack.c.l.b16 %v70
    %v232 = vunpack.c.h.b16 %v70
    %v233 = vunpack.c.l.b16 %v71
    %v234 = vunpack.c.h.b16 %v71
    %v235 = vunpack.c.l.b16 %v72
    %v236 = vunpack.c.h.b16 %v72
    %v237 = vunpack.c.l.b16 %v73
    %v238 = vunpack.c.h.b16 %v73
    %v239 = vunpack.c.l.b16 %v74
    %v240 = vunpack.c.h.b16 %v74
    %v241 = vunpack.c.l.b16 %v75
    %v242 = vunpack.c.h.b16 %v75
    %v243 = vunpack.c.l.b16 %v76
    %v244 = vunpack.c.h.b16 %v76
    %v245 = vunpack.c.l.b16 %v77
    %v246 = vunpack.c.h.b16 %v77
    %v247 = vunpack.c.l.b16 %v78
    %v248 = vunpack.c.h.b16 %v78
    %v249 = vunpack.c.l.b16 %v79
    %v250 = vunpack.c.h.b16 %v79
    %v251 = vunpack.c.l.b16 %v80
    %v252 = vunpack.c.h.b16 %v80
    %v253 = vunpack.c.l.b16 %v81
    %v254 = vunpack.c.h.b16 %v81
    %v255 = vunpack.c.l.b16 %v82
    %v256 = vunpack.c.h.b16 %v82
    %v257 = vunpack.c.l.b16 %v83
    %v258 = vunpack.c.h.b16 %v83
    %v259 = vunpack.c.l.b16 %v84
    %v260 = vunpack.c.h.b16 %v84
    %v261 = vunpack.c.l.b16 %v85
    %v262 = vunpack.c.h.b16 %v85
    %v263 = vunpack.c.l.b16 %v86
    %v264 = vunpack.c.h.b16 %v86
    %v265 = vunpack.c.l.b16 %v87
    %v266 = vunpack.c.h.b16 %v87
    %v267 = vunpack.c.l.b16 %v88
    %v268 = vunpack.c.h.b16 %v88
    %v269 = vunpack.c.l.b16 %v89
    %v270 = vunpack.c.h.b16 %v89
    %v271 = vunpack.c.l.b16 %v90
    %v272 = vunpack.c.h.b16 %v90
    %v273 = vunpack.c.l.b16 %v91
    %v274 = vunpack.c.h.b16 %v91
    %v275 = vunpack.c.l.b16 %v92
    %v276 = vunpack.c.h.b16 %v92
    %v277 = vunpack.c.l.b16 %v93
    %v278 = vunpack.c.h.b16 %v93
    %v279 = vunpack.c.l.b16 %v94
    %v280 = vunpack.c.h.b16 %v94
    %v281 = vunpack.c.l.b16 %v95
    %v282 = vunpack.c.h.b16 %v95
    %v283 = vunpack.c.l.b16 %v96
    %v284 = vunpack.c.h.b16 %v96
    %v285 = vunpack.c.l.b16 %v97
    %v286 = vunpack.c.h.b16 %v97
    %v287 = vunpack.c.l.b16 %v98
    %v288 = vunpack.c.h.b16 %v98
    %v289 = vunpack.c.l.b16 %v99
    %v290 = vunpack.c.h.b16 %v99
    %v291 = vunpack.c.l.b16 %v100
    %v292 = vunpack.c.h.b16 %v100
    %v293 = vunpack.c.l.b16 %v101
    %v294 = vunpack.c.h.b16 %v101
    %v295 = vunpack.c.l.b16 %v102
    %v296 = vunpack.c.h.b16 %v102
    %v297 = vunpack.c.l.b16 %v103
    %v298 = vunpack.c.h.b16 %v103
    %v299 = vunpack.c.l.b16 %v104
    %v300 = vunpack.c.h.b16 %v104
    %v301 = vunpack.c.l.b16 %v105
    %v302 = vunpack.c.h.b16 %v105
    %v303 = vunpack.c.l.b16 %v106
    %v304 = vunpack.c.h.b16 %v106
    %v305 = vunpack.c.l.b16 %v107
    %v306 = vunpack.c.h.b16 %v107
    %v307 = vunpack.c.l.b16 %v108
    %v308 = vunpack.c.h.b16 %v108
    %v309 = vunpack.c.l.b16 %v109
    %v310 = vunpack.c.h.b16 %v109
    %v311 = vunpack.c.l.b16 %v110
    %v312 = vunpack.c.h.b16 %v110
    %v313 = vunpack.c.l.b16 %v111
    %v314 = vunpack.c.h.b16 %v111
    %v315 = vunpack.c.l.b16 %v112
    %v316 = vunpack.c.h.b16 %v112
    %v317 = vunpack.c.l.b16 %v113
    %v318 = vunpack.c.h.b16 %v113
    %v319 = vunpack.c.l.b16 %v114
    %v320 = vunpack.c.h.b16 %v114
    %v321 = vunpack.c.l.b16 %v115
    %v322 = vunpack.c.h.b16 %v115
    %v323 = vunpack.c.l.b16 %v116
    %v324 = vunpack.c.h.b16 %v116
    %v325 = vunpack.c.l.b16 %v117
    %v326 = vunpack.c.h.b16 %v117
    %v327 = vunpack.c.l.b16 %v118
    %v328 = vunpack.c.h.b16 %v118
    %v329 = vunpack.c.l.b16 %v119
    %v330 = vunpack.c.h.b16 %v119
    %v331 = vunpack.c.l.b16 %v120
    %v332 = vunpack.c.h.b16 %v120
    %v333 = vunpack.c.l.b16 %v121
    %v334 = vunpack.c.h.b16 %v121
    %v335 = vunpack.c.l.b16 %v122
    %v336 = vunpack.c.h.b16 %v122
    %v337 = vunpack.c.l.b16 %v123
    %v338 = vunpack.c.h.b16 %v123
    %v339 = vunpack.c.l.b16 %v124
    %v340 = vunpack.c.h.b16 %v124
    %v341 = vunpack.c.l.b16 %v125
    %v342 = vunpack.c.h.b16 %v125
    %v343 = vunpack.c.l.b16 %v126
    %v344 = vunpack.c.h.b16 %v126
    %v345 = vunpack.c.l.b16 %v127
    %v346 = vunpack.c.h.b16 %v127
    %v347 = vunpack.c.l.b16 %v128
    %v348 = vunpack.c.h.b16 %v128
    %v349 = vunpack.c.l.b16 %v129
    %v350 = vunpack.c.h.b16 %v129
    %v351 = vpack.c.b16 %v227, %v223
    %v352 = vpack.c.b16 %v228, %v224
    %v353 = vpack.c.b16 %v229, %v225
    %v354 = vpack.c.b16 %v230, %v226
    %v355 = vpack.c.b16 %v235, %v231
    %v356 = vpack.c.b16 %v236, %v232
    %v357 = vpack.c.b16 %v237, %v233
    %v358 = vpack.c.b16 %v238, %v234
    %v359 = vpack.c.b16 %v243, %v239
    %v360 = vpack.c.b16 %v244, %v240
    %v361 = vpack.c.b16 %v245, %v241
    %v362 = vpack.c.b16 %v246, %v242
    %v363 = vpack.c.b16 %v251, %v247
    %v364 = vpack.c.b16 %v252, %v248
    %v365 = vpack.c.b16 %v253, %v249
    %v366 = vpack.c.b16 %v254, %v250
    %v367 = vpack.c.b16 %v259, %v255
    %v368 = vpack.c.b16 %v260, %v256
    %v369 = vpack.c.b16 %v261, %v257
    %v370 = vpack.c.b16 %v262, %v258
    %v371 = vpack.c.b16 %v267, %v263
    %v372 = vpack.c.b16 %v268, %v264
    %v373 = vpack.c.b16 %v269, %v265
    %v374 = vpack.c.b16 %v270, %v266
    %v375 = vpack.c.b16 %v275, %v271
    %v376 = vpack.c.b16 %v276, %v272
    %v377 = vpack.c.b16 %v277, %v273
    %v378 = vpack.c.b16 %v278, %v274
    %v379 = vpack.c.b16 %v283, %v279
    %v380 = vpack.c.b16 %v284, %v280
    %v381 = vpack.c.b16 %v285, %v281
    %v382 = vpack.c.b16 %v286, %v282
    %v383 = vpack.c.b16 %v291, %v287
    %v384 = vpack.c.b16 %v292, %v288
    %v385 = vpack.c.b16 %v293, %v289
    %v386 = vpack.c.b16 %v294, %v290
    %v387 = vpack.c.b16 %v299, %v295
    %v388 = vpack.c.b16 %v300, %v296
    %v389 = vpack.c.b16 %v301, %v297
    %v390 = vpack.c.b16 %v302, %v298
    %v391 = vpack.c.b16 %v307, %v303
    %v392 = vpack.c.b16 %v308, %v304
    %v393 = vpack.c.b16 %v309, %v305
    %v394 = vpack.c.b16 %v310, %v306
    %v395 = vpack.c.b16 %v315, %v311
    %v396 = vpack.c.b16 %v316, %v312
    %v397 = vpack.c.b16 %v317, %v313
    %v398 = vpack.c.b16 %v318, %v314
    %v399 = vpack.c.b16 %v323, %v319
    %v400 = vpack.c.b16 %v324, %v320
    %v401 = vpack.c.b16 %v325, %v321
    %v402 = vpack.c.b16 %v326, %v322
    %v403 = vpack.c.b16 %v331, %v327
    %v404 = vpack.c.b16 %v332, %v328
    %v405 = vpack.c.b16 %v333, %v329
    %v406 = vpack.c.b16 %v334, %v330
    %v407 = vpack.c.b16 %v339, %v335
    %v408 = vpack.c.b16 %v340, %v336
    %v409 = vpack.c.b16 %v341, %v337
    %v410 = vpack.c.b16 %v342, %v338
    %v411 = vpack.c.b16 %v347, %v343
    %v412 = vpack.c.b16 %v348, %v344
    %v413 = vpack.c.b16 %v349, %v345
    %v414 = vpack.c.b16 %v350, %v346
    %479 = vmatprep.subr.bf16.mxu0 %v352
    %480 = vmatpush1.bf16.msra.mxu0 %v351
    %481 = vmatprep.subr.bf16.mxu0 %v356
    %482 = vmatpush1.bf16.msra.mxu0 %v355
    %483 = vmatprep.subr.bf16.mxu0 %v360
    %484 = vmatpush1.bf16.msra.mxu0 %v359
    %485 = vmatprep.subr.bf16.mxu0 %v364
    %486 = vmatpush1.bf16.msra.mxu0 %v363
    %487 = vmatprep.subr.bf16.mxu0 %v368
    %488 = vmatpush1.bf16.msra.mxu0 %v367
    %489 = vmatprep.subr.bf16.mxu0 %v372
    %490 = vmatpush1.bf16.msra.mxu0 %v371
    %491 = vmatprep.subr.bf16.mxu0 %v376
    %492 = vmatpush1.bf16.msra.mxu0 %v375
    %493 = vmatprep.subr.bf16.mxu0 %v380
    %494 = vmatpush1.bf16.msra.mxu0 %v379
    %495 = vmatprep.subr.bf16.mxu0 %v384
    %496 = vmatpush1.bf16.msra.mxu0 %v383
    %497 = vmatprep.subr.bf16.mxu0 %v388
    %498 = vmatpush1.bf16.msra.mxu0 %v387
    %499 = vmatprep.subr.bf16.mxu0 %v392
    %500 = vmatpush1.bf16.msra.mxu0 %v391
    %501 = vmatprep.subr.bf16.mxu0 %v396
    %502 = vmatpush1.bf16.msra.mxu0 %v395
    %503 = vmatprep.subr.bf16.mxu0 %v400
    %504 = vmatpush1.bf16.msra.mxu0 %v399
    %505 = vmatprep.subr.bf16.mxu0 %v404
    %506 = vmatpush1.bf16.msra.mxu0 %v403
    %507 = vmatprep.subr.bf16.mxu0 %v408
    %508 = vmatpush1.bf16.msra.mxu0 %v407
    %509 = vmatprep.subr.bf16.mxu0 %v412
    %510 = vmatpush1.bf16.msra.mxu0 %v411
    %511 = vmatprep.mubr.bf16.mxu0 %v156
    %512 = vmatmul.mubr.bf16.gmra.mrb[0].mxu0 %v155
    %v513 = vpop.f32.mrb[0].mxu0
    %v514 = vadd.f32 %v135, %v513
    %v515 = vpop.f32.mrb[0].mxu0
    %v516 = vadd.f32 %v139, %v515
    %v517 = vpop.f32.mrb[0].mxu0
    %v518 = vpop.f32.mrb[0].mxu0
    %519 = vdwg.mxu0
    %520 = vmatprep.subr.bf16.mxu0 %v354
    %521 = vmatpush1.bf16.msra.mxu0 %v353
    %522 = vmatprep.subr.bf16.mxu0 %v358
    %523 = vmatpush1.bf16.msra.mxu0 %v357
    %524 = vmatprep.subr.bf16.mxu0 %v362
    %525 = vmatpush1.bf16.msra.mxu0 %v361
    %526 = vmatprep.subr.bf16.mxu0 %v366
    %527 = vmatpush1.bf16.msra.mxu0 %v365
    %528 = vmatprep.subr.bf16.mxu0 %v370
    %529 = vmatpush1.bf16.msra.mxu0 %v369
    %530 = vmatprep.subr.bf16.mxu0 %v374
    %531 = vmatpush1.bf16.msra.mxu0 %v373
    %532 = vmatprep.subr.bf16.mxu0 %v378
    %533 = vmatpush1.bf16.msra.mxu0 %v377
    %534 = vmatprep.subr.bf16.mxu0 %v382
    %535 = vmatpush1.bf16.msra.mxu0 %v381
    %536 = vmatprep.subr.bf16.mxu0 %v386
    %537 = vmatpush1.bf16.msra.mxu0 %v385
    %538 = vmatprep.subr.bf16.mxu0 %v390
    %539 = vmatpush1.bf16.msra.mxu0 %v389
    %540 = vmatprep.subr.bf16.mxu0 %v394
    %541 = vmatpush1.bf16.msra.mxu0 %v393
    %542 = vmatprep.subr.bf16.mxu0 %v398
    %543 = vmatpush1.bf16.msra.mxu0 %v397
    %544 = vmatprep.subr.bf16.mxu0 %v402
    %545 = vmatpush1.bf16.msra.mxu0 %v401
    %546 = vmatprep.subr.bf16.mxu0 %v406
    %547 = vmatpush1.bf16.msra.mxu0 %v405
    %548 = vmatprep.subr.bf16.mxu0 %v410
    %549 = vmatpush1.bf16.msra.mxu0 %v409
    %550 = vmatprep.subr.bf16.mxu0 %v414
    %551 = vmatpush1.bf16.msra.mxu0 %v413
    %552 = vmatprep.mubr.bf16.mxu0 %v156
    %553 = vmatmul.mubr.bf16.gmra.mrb[0].mxu0 %v155
    %v554 = vpop.f32.mrb[0].mxu0
    %v555 = vadd.f32 %v143, %v554
    %v556 = vpop.f32.mrb[0].mxu0
    %v557 = vadd.f32 %v147, %v556
    %v558 = vpop.f32.mrb[0].mxu0
    %v559 = vpop.f32.mrb[0].mxu0
    %560 = vdwg.mxu0
    %v561 = vld [vmem:[#allocation5] sm:$0xff]
    %v562 = vld [vmem:[#allocation5 + $0x8] sm:$0xff]
    %v563 = vld [vmem:[#allocation5 + $0x10] sm:$0xff]
    %v564 = vld [vmem:[#allocation5 + $0x18] sm:$0xff]
    %v565 = vld [vmem:[#allocation5 + $0x20] sm:$0xff]
    %v566 = vld [vmem:[#allocation5 + $0x28] sm:$0xff]
    %v567 = vld [vmem:[#allocation5 + $0x30] sm:$0xff]
    %v568 = vld [vmem:[#allocation5 + $0x38] sm:$0xff]
    %v569 = vld [vmem:[#allocation5 + $0x40] sm:$0xff]
    %v570 = vld [vmem:[#allocation5 + $0x48] sm:$0xff]
    %v571 = vld [vmem:[#allocation5 + $0x50] sm:$0xff]
    %v572 = vld [vmem:[#allocation5 + $0x58] sm:$0xff]
    %v573 = vld [vmem:[#allocation5 + $0x60] sm:$0xff]
    %v574 = vld [vmem:[#allocation5 + $0x68] sm:$0xff]
    %v575 = vld [vmem:[#allocation5 + $0x70] sm:$0xff]
    %v576 = vld [vmem:[#allocation5 + $0x78] sm:$0xff]
    %v577 = vld [vmem:[#allocation5 + $0x80] sm:$0xff]
    %v578 = vld [vmem:[#allocation5 + $0x88] sm:$0xff]
    %v579 = vld [vmem:[#allocation5 + $0x90] sm:$0xff]
    %v580 = vld [vmem:[#allocation5 + $0x98] sm:$0xff]
    %v581 = vld [vmem:[#allocation5 + $0xa0] sm:$0xff]
    %v582 = vld [vmem:[#allocation5 + $0xa8] sm:$0xff]
    %v583 = vld [vmem:[#allocation5 + $0xb0] sm:$0xff]
    %v584 = vld [vmem:[#allocation5 + $0xb8] sm:$0xff]
    %v585 = vld [vmem:[#allocation5 + $0xc0] sm:$0xff]
    %v586 = vld [vmem:[#allocation5 + $0xc8] sm:$0xff]
    %v587 = vld [vmem:[#allocation5 + $0xd0] sm:$0xff]
    %v588 = vld [vmem:[#allocation5 + $0xd8] sm:$0xff]
    %v589 = vld [vmem:[#allocation5 + $0xe0] sm:$0xff]
    %v590 = vld [vmem:[#allocation5 + $0xe8] sm:$0xff]
    %v591 = vld [vmem:[#allocation5 + $0xf0] sm:$0xff]
    %v592 = vld [vmem:[#allocation5 + $0xf8] sm:$0xff]
    %v625 = vunpack.c.l.b16 %v561
    %v626 = vunpack.c.h.b16 %v561
    %v627 = vunpack.c.l.b16 %v562
    %v628 = vunpack.c.h.b16 %v562
    %v629 = vunpack.c.l.b16 %v563
    %v630 = vunpack.c.h.b16 %v563
    %v631 = vunpack.c.l.b16 %v564
    %v632 = vunpack.c.h.b16 %v564
    %v633 = vunpack.c.l.b16 %v565
    %v634 = vunpack.c.h.b16 %v565
    %v635 = vunpack.c.l.b16 %v566
    %v636 = vunpack.c.h.b16 %v566
    %v637 = vunpack.c.l.b16 %v567
    %v638 = vunpack.c.h.b16 %v567
    %v639 = vunpack.c.l.b16 %v568
    %v640 = vunpack.c.h.b16 %v568
    %v641 = vunpack.c.l.b16 %v569
    %v642 = vunpack.c.h.b16 %v569
    %v643 = vunpack.c.l.b16 %v570
    %v644 = vunpack.c.h.b16 %v570
    %v645 = vunpack.c.l.b16 %v571
    %v646 = vunpack.c.h.b16 %v571
    %v647 = vunpack.c.l.b16 %v572
    %v648 = vunpack.c.h.b16 %v572
    %v649 = vunpack.c.l.b16 %v573
    %v650 = vunpack.c.h.b16 %v573
    %v651 = vunpack.c.l.b16 %v574
    %v652 = vunpack.c.h.b16 %v574
    %v653 = vunpack.c.l.b16 %v575
    %v654 = vunpack.c.h.b16 %v575
    %v655 = vunpack.c.l.b16 %v576
    %v656 = vunpack.c.h.b16 %v576
    %v657 = vunpack.c.l.b16 %v577
    %v658 = vunpack.c.h.b16 %v577
    %v659 = vunpack.c.l.b16 %v578
    %v660 = vunpack.c.h.b16 %v578
    %v661 = vunpack.c.l.b16 %v579
    %v662 = vunpack.c.h.b16 %v579
    %v663 = vunpack.c.l.b16 %v580
    %v664 = vunpack.c.h.b16 %v580
    %v665 = vunpack.c.l.b16 %v581
    %v666 = vunpack.c.h.b16 %v581
    %v667 = vunpack.c.l.b16 %v582
    %v668 = vunpack.c.h.b16 %v582
    %v669 = vunpack.c.l.b16 %v583
    %v670 = vunpack.c.h.b16 %v583
    %v671 = vunpack.c.l.b16 %v584
    %v672 = vunpack.c.h.b16 %v584
    %v673 = vunpack.c.l.b16 %v585
    %v674 = vunpack.c.h.b16 %v585
    %v675 = vunpack.c.l.b16 %v586
    %v676 = vunpack.c.h.b16 %v586
    %v677 = vunpack.c.l.b16 %v587
    %v678 = vunpack.c.h.b16 %v587
    %v679 = vunpack.c.l.b16 %v588
    %v680 = vunpack.c.h.b16 %v588
    %v681 = vunpack.c.l.b16 %v589
    %v682 = vunpack.c.h.b16 %v589
    %v683 = vunpack.c.l.b16 %v590
    %v684 = vunpack.c.h.b16 %v590
    %v685 = vunpack.c.l.b16 %v591
    %v686 = vunpack.c.h.b16 %v591
    %v687 = vunpack.c.l.b16 %v592
    %v688 = vunpack.c.h.b16 %v592
    %v689 = vpack.c.b16 %v629, %v625
    %v690 = vpack.c.b16 %v630, %v626
    %v691 = vpack.c.b16 %v631, %v627
    %v692 = vpack.c.b16 %v632, %v628
    %v693 = vpack.c.b16 %v637, %v633
    %v694 = vpack.c.b16 %v638, %v634
    %v695 = vpack.c.b16 %v639, %v635
    %v696 = vpack.c.b16 %v640, %v636
    %v697 = vpack.c.b16 %v645, %v641
    %v698 = vpack.c.b16 %v646, %v642
    %v699 = vpack.c.b16 %v647, %v643
    %v700 = vpack.c.b16 %v648, %v644
    %v701 = vpack.c.b16 %v653, %v649
    %v702 = vpack.c.b16 %v654, %v650
    %v703 = vpack.c.b16 %v655, %v651
    %v704 = vpack.c.b16 %v656, %v652
    %v705 = vpack.c.b16 %v661, %v657
    %v706 = vpack.c.b16 %v662, %v658
    %v707 = vpack.c.b16 %v663, %v659
    %v708 = vpack.c.b16 %v664, %v660
    %v709 = vpack.c.b16 %v669, %v665
    %v710 = vpack.c.b16 %v670, %v666
    %v711 = vpack.c.b16 %v671, %v667
    %v712 = vpack.c.b16 %v672, %v668
    %v713 = vpack.c.b16 %v677, %v673
    %v714 = vpack.c.b16 %v678, %v674
    %v715 = vpack.c.b16 %v679, %v675
    %v716 = vpack.c.b16 %v680, %v676
    %v717 = vpack.c.b16 %v685, %v681
    %v718 = vpack.c.b16 %v686, %v682
    %v719 = vpack.c.b16 %v687, %v683
    %v720 = vpack.c.b16 %v688, %v684
    %753 = vmatprep.subr.bf16.mxu0 %v690
    %754 = vmatpush1.bf16.msra.mxu0 %v689
    %755 = vmatprep.subr.bf16.mxu0 %v694
    %756 = vmatpush1.bf16.msra.mxu0 %v693
    %757 = vmatprep.subr.bf16.mxu0 %v698
    %758 = vmatpush1.bf16.msra.mxu0 %v697
    %759 = vmatprep.subr.bf16.mxu0 %v702
    %760 = vmatpush1.bf16.msra.mxu0 %v701
    %761 = vmatprep.subr.bf16.mxu0 %v706
    %762 = vmatpush1.bf16.msra.mxu0 %v705
    %763 = vmatprep.subr.bf16.mxu0 %v710
    %764 = vmatpush1.bf16.msra.mxu0 %v709
    %765 = vmatprep.subr.bf16.mxu0 %v714
    %766 = vmatpush1.bf16.msra.mxu0 %v713
    %767 = vmatprep.subr.bf16.mxu0 %v718
    %768 = vmatpush1.bf16.msra.mxu0 %v717
    %769 = vmatprep.subr.bf16.mxu0 0
    %770 = vmatpush1.bf16.msra.mxu0 0
    %771 = vmatprep.subr.bf16.mxu0 0
    %772 = vmatpush1.bf16.msra.mxu0 0
    %773 = vmatprep.subr.bf16.mxu0 0
    %774 = vmatpush1.bf16.msra.mxu0 0
    %775 = vmatprep.subr.bf16.mxu0 0
    %776 = vmatpush1.bf16.msra.mxu0 0
    %777 = vmatprep.subr.bf16.mxu0 0
    %778 = vmatpush1.bf16.msra.mxu0 0
    %779 = vmatprep.subr.bf16.mxu0 0
    %780 = vmatpush1.bf16.msra.mxu0 0
    %781 = vmatprep.subr.bf16.mxu0 0
    %782 = vmatpush1.bf16.msra.mxu0 0
    %783 = vmatprep.subr.bf16.mxu0 0
    %784 = vmatpush1.bf16.msra.mxu0 0
    %785 = vmatprep.mubr.bf16.mxu0 0
    %786 = vmatmul.mubr.bf16.gmra.mrb[0].mxu0 0
    %v787 = vpop.f32.mrb[0].mxu0
    %v788 = vadd.f32 0.0, %v787
    %v789 = vpop.f32.mrb[0].mxu0
    %v790 = vadd.f32 0.0, %v789
    %v791 = vpop.f32.mrb[0].mxu0
    %v792 = vpop.f32.mrb[0].mxu0
    %793 = vdwg.mxu0
    %794 = vmatprep.subr.bf16.mxu0 %v692
    %795 = vmatpush1.bf16.msra.mxu0 %v691
    %796 = vmatprep.subr.bf16.mxu0 %v696
    %797 = vmatpush1.bf16.msra.mxu0 %v695
    %798 = vmatprep.subr.bf16.mxu0 %v700
    %799 = vmatpush1.bf16.msra.mxu0 %v699
    %800 = vmatprep.subr.bf16.mxu0 %v704
    %801 = vmatpush1.bf16.msra.mxu0 %v703
    %802 = vmatprep.subr.bf16.mxu0 %v708
    %803 = vmatpush1.bf16.msra.mxu0 %v707
    %804 = vmatprep.subr.bf16.mxu0 %v712
    %805 = vmatpush1.bf16.msra.mxu0 %v711
    %806 = vmatprep.subr.bf16.mxu0 %v716
    %807 = vmatpush1.bf16.msra.mxu0 %v715
    %808 = vmatprep.subr.bf16.mxu0 %v720
    %809 = vmatpush1.bf16.msra.mxu0 %v719
    %810 = vmatprep.subr.bf16.mxu0 0
    %811 = vmatpush1.bf16.msra.mxu0 0
    %812 = vmatprep.subr.bf16.mxu0 0
    %813 = vmatpush1.bf16.msra.mxu0 0
    %814 = vmatprep.subr.bf16.mxu0 0
    %815 = vmatpush1.bf16.msra.mxu0 0
    %816 = vmatprep.subr.bf16.mxu0 0
    %817 = vmatpush1.bf16.msra.mxu0 0
    %818 = vmatprep.subr.bf16.mxu0 0
    %819 = vmatpush1.bf16.msra.mxu0 0
    %820 = vmatprep.subr.bf16.mxu0 0
    %821 = vmatpush1.bf16.msra.mxu0 0
    %822 = vmatprep.subr.bf16.mxu0 0
    %823 = vmatpush1.bf16.msra.mxu0 0
    %824 = vmatprep.subr.bf16.mxu0 0
    %825 = vmatpush1.bf16.msra.mxu0 0
    %826 = vmatprep.mubr.bf16.mxu0 0
    %827 = vmatmul.mubr.bf16.gmra.mrb[0].mxu0 0
    %v828 = vpop.f32.mrb[0].mxu0
    %v829 = vadd.f32 0.0, %v828
    %v830 = vpop.f32.mrb[0].mxu0
    %v831 = vadd.f32 0.0, %v830
    %v832 = vpop.f32.mrb[0].mxu0
    %v833 = vpop.f32.mrb[0].mxu0
    %834 = vdwg.mxu0
    %v835 = vadd.f32 %v514, %v788
    %v836 = vadd.f32 %v516, %v790
    %v837 = vadd.f32 %v555, %v829
    %v838 = vadd.f32 %v557, %v831
    %v839 = vmul.f32 %v835, 0.5
    %v840 = vmul.f32 %v836, 0.5
    %v841 = vmul.f32 %v837, 0.5
    %v842 = vtanh.pop %v839
    %v843 = vtanh.pop %v840
    %v844 = vtanh.pop %v841
    %v845 = vmul.f32 %v842, 0.5
    %v846 = vmul.f32 %v843, 0.5
    %v847 = vmul.f32 %v844, 0.5
    %v848 = vadd.f32 %v845, 0.5
    %v849 = vadd.f32 %v846, 0.5
    %v850 = vadd.f32 %v847, 0.5
    %v851 = vtanh.pop %v838
    %v852 = vmul.f32 %v849, 0.0
    %v853 = vmul.f32 %v848, %v851
    %v854 = vadd.f32 %v852, %v853
    %v855 = vtanh.pop %v854
    %v856 = vmul.f32 %v850, %v855
    %857 = vst [vmem:[#allocation2] sm:$0xff] %v856
    %v858 = vpack.c.bf16 %v856, %v856
    %v859 = vld [vmem:[#allocation5] sm:$0xff]
    %v860 = vld [vmem:[#allocation5 + $0x8] sm:$0xff]
    %v861 = vld [vmem:[#allocation5 + $0x10] sm:$0xff]
    %v862 = vld [vmem:[#allocation5 + $0x18] sm:$0xff]
    %v863 = vld [vmem:[#allocation5 + $0x20] sm:$0xff]
    %v864 = vld [vmem:[#allocation5 + $0x28] sm:$0xff]
    %v865 = vld [vmem:[#allocation5 + $0x30] sm:$0xff]
    %v866 = vld [vmem:[#allocation5 + $0x38] sm:$0xff]
    %v867 = vld [vmem:[#allocation5 + $0x40] sm:$0xff]
    %v868 = vld [vmem:[#allocation5 + $0x48] sm:$0xff]
    %v869 = vld [vmem:[#allocation5 + $0x50] sm:$0xff]
    %v870 = vld [vmem:[#allocation5 + $0x58] sm:$0xff]
    %v871 = vld [vmem:[#allocation5 + $0x60] sm:$0xff]
    %v872 = vld [vmem:[#allocation5 + $0x68] sm:$0xff]
    %v873 = vld [vmem:[#allocation5 + $0x70] sm:$0xff]
    %v874 = vld [vmem:[#allocation5 + $0x78] sm:$0xff]
    %v875 = vld [vmem:[#allocation5 + $0x80] sm:$0xff]
    %v876 = vld [vmem:[#allocation5 + $0x88] sm:$0xff]
    %v877 = vld [vmem:[#allocation5 + $0x90] sm:$0xff]
    %v878 = vld [vmem:[#allocation5 + $0x98] sm:$0xff]
    %v879 = vld [vmem:[#allocation5 + $0xa0] sm:$0xff]
    %v880 = vld [vmem:[#allocation5 + $0xa8] sm:$0xff]
    %v881 = vld [vmem:[#allocation5 + $0xb0] sm:$0xff]
    %v882 = vld [vmem:[#allocation5 + $0xb8] sm:$0xff]
    %v883 = vld [vmem:[#allocation5 + $0xc0] sm:$0xff]
    %v884 = vld [vmem:[#allocation5 + $0xc8] sm:$0xff]
    %v885 = vld [vmem:[#allocation5 + $0xd0] sm:$0xff]
    %v886 = vld [vmem:[#allocation5 + $0xd8] sm:$0xff]
    %v887 = vld [vmem:[#allocation5 + $0xe0] sm:$0xff]
    %v888 = vld [vmem:[#allocation5 + $0xe8] sm:$0xff]
    %v889 = vld [vmem:[#allocation5 + $0xf0] sm:$0xff]
    %v890 = vld [vmem:[#allocation5 + $0xf8] sm:$0xff]
    %v923 = vunpack.c.l.b16 %v859
    %v924 = vunpack.c.h.b16 %v859
    %v925 = vunpack.c.l.b16 %v860
    %v926 = vunpack.c.h.b16 %v860
    %v927 = vunpack.c.l.b16 %v861
    %v928 = vunpack.c.h.b16 %v861
    %v929 = vunpack.c.l.b16 %v862
    %v930 = vunpack.c.h.b16 %v862
    %v931 = vunpack.c.l.b16 %v863
    %v932 = vunpack.c.h.b16 %v863
    %v933 = vunpack.c.l.b16 %v864
    %v934 = vunpack.c.h.b16 %v864
    %v935 = vunpack.c.l.b16 %v865
    %v936 = vunpack.c.h.b16 %v865
    %v937 = vunpack.c.l.b16 %v866
    %v938 = vunpack.c.h.b16 %v866
    %v939 = vunpack.c.l.b16 %v867
    %v940 = vunpack.c.h.b16 %v867
    %v941 = vunpack.c.l.b16 %v868
    %v942 = vunpack.c.h.b16 %v868
    %v943 = vunpack.c.l.b16 %v869
    %v944 = vunpack.c.h.b16 %v869
    %v945 = vunpack.c.l.b16 %v870
    %v946 = vunpack.c.h.b16 %v870
    %v947 = vunpack.c.l.b16 %v871
    %v948 = vunpack.c.h.b16 %v871
    %v949 = vunpack.c.l.b16 %v872
    %v950 = vunpack.c.h.b16 %v872
    %v951 = vunpack.c.l.b16 %v873
    %v952 = vunpack.c.h.b16 %v873
    %v953 = vunpack.c.l.b16 %v874
    %v954 = vunpack.c.h.b16 %v874
    %v955 = vunpack.c.l.b16 %v875
    %v956 = vunpack.c.h.b16 %v875
    %v957 = vunpack.c.l.b16 %v876
    %v958 = vunpack.c.h.b16 %v876
    %v959 = vunpack.c.l.b16 %v877
    %v960 = vunpack.c.h.b16 %v877
    %v961 = vunpack.c.l.b16 %v878
    %v962 = vunpack.c.h.b16 %v878
    %v963 = vunpack.c.l.b16 %v879
    %v964 = vunpack.c.h.b16 %v879
    %v965 = vunpack.c.l.b16 %v880
    %v966 = vunpack.c.h.b16 %v880
    %v967 = vunpack.c.l.b16 %v881
    %v968 = vunpack.c.h.b16 %v881
    %v969 = vunpack.c.l.b16 %v882
    %v970 = vunpack.c.h.b16 %v882
    %v971 = vunpack.c.l.b16 %v883
    %v972 = vunpack.c.h.b16 %v883
    %v973 = vunpack.c.l.b16 %v884
    %v974 = vunpack.c.h.b16 %v884
    %v975 = vunpack.c.l.b16 %v885
    %v976 = vunpack.c.h.b16 %v885
    %v977 = vunpack.c.l.b16 %v886
    %v978 = vunpack.c.h.b16 %v886
    %v979 = vunpack.c.l.b16 %v887
    %v980 = vunpack.c.h.b16 %v887
    %v981 = vunpack.c.l.b16 %v888
    %v982 = vunpack.c.h.b16 %v888
    %v983 = vunpack.c.l.b16 %v889
    %v984 = vunpack.c.h.b16 %v889
    %v985 = vunpack.c.l.b16 %v890
    %v986 = vunpack.c.h.b16 %v890
    %v987 = vpack.c.b16 %v927, %v923
    %v988 = vpack.c.b16 %v928, %v924
    %v989 = vpack.c.b16 %v929, %v925
    %v990 = vpack.c.b16 %v930, %v926
    %v991 = vpack.c.b16 %v935, %v931
    %v992 = vpack.c.b16 %v936, %v932
    %v993 = vpack.c.b16 %v937, %v933
    %v994 = vpack.c.b16 %v938, %v934
    %v995 = vpack.c.b16 %v943, %v939
    %v996 = vpack.c.b16 %v944, %v940
    %v997 = vpack.c.b16 %v945, %v941
    %v998 = vpack.c.b16 %v946, %v942
    %v999 = vpack.c.b16 %v951, %v947
    %v1000 = vpack.c.b16 %v952, %v948
    %v1001 = vpack.c.b16 %v953, %v949
    %v1002 = vpack.c.b16 %v954, %v950
    %v1003 = vpack.c.b16 %v959, %v955
    %v1004 = vpack.c.b16 %v960, %v956
    %v1005 = vpack.c.b16 %v961, %v957
    %v1006 = vpack.c.b16 %v962, %v958
    %v1007 = vpack.c.b16 %v967, %v963
    %v1008 = vpack.c.b16 %v968, %v964
    %v1009 = vpack.c.b16 %v969, %v965
    %v1010 = vpack.c.b16 %v970, %v966
    %v1011 = vpack.c.b16 %v975, %v971
    %v1012 = vpack.c.b16 %v976, %v972
    %v1013 = vpack.c.b16 %v977, %v973
    %v1014 = vpack.c.b16 %v978, %v974
    %v1015 = vpack.c.b16 %v983, %v979
    %v1016 = vpack.c.b16 %v984, %v980
    %v1017 = vpack.c.b16 %v985, %v981
    %v1018 = vpack.c.b16 %v986, %v982
    %1051 = vmatprep.subr.bf16.mxu0 %v988
    %1052 = vmatpush1.bf16.msra.mxu0 %v987
    %1053 = vmatprep.subr.bf16.mxu0 %v992
    %1054 = vmatpush1.bf16.msra.mxu0 %v991
    %1055 = vmatprep.subr.bf16.mxu0 %v996
    %1056 = vmatpush1.bf16.msra.mxu0 %v995
    %1057 = vmatprep.subr.bf16.mxu0 %v1000
    %1058 = vmatpush1.bf16.msra.mxu0 %v999
    %1059 = vmatprep.subr.bf16.mxu0 %v1004
    %1060 = vmatpush1.bf16.msra.mxu0 %v1003
    %1061 = vmatprep.subr.bf16.mxu0 %v1008
    %1062 = vmatpush1.bf16.msra.mxu0 %v1007
    %1063 = vmatprep.subr.bf16.mxu0 %v1012
    %1064 = vmatpush1.bf16.msra.mxu0 %v1011
    %1065 = vmatprep.subr.bf16.mxu0 %v1016
    %1066 = vmatpush1.bf16.msra.mxu0 %v1015
    %1067 = vmatprep.subr.bf16.mxu0 0
    %1068 = vmatpush1.bf16.msra.mxu0 0
    %1069 = vmatprep.subr.bf16.mxu0 0
    %1070 = vmatpush1.bf16.msra.mxu0 0
    %1071 = vmatprep.subr.bf16.mxu0 0
    %1072 = vmatpush1.bf16.msra.mxu0 0
    %1073 = vmatprep.subr.bf16.mxu0 0
    %1074 = vmatpush1.bf16.msra.mxu0 0
    %1075 = vmatprep.subr.bf16.mxu0 0
    %1076 = vmatpush1.bf16.msra.mxu0 0
    %1077 = vmatprep.subr.bf16.mxu0 0
    %1078 = vmatpush1.bf16.msra.mxu0 0
    %1079 = vmatprep.subr.bf16.mxu0 0
    %1080 = vmatpush1.bf16.msra.mxu0 0
    %1081 = vmatprep.subr.bf16.mxu0 0
    %1082 = vmatpush1.bf16.msra.mxu0 0
    %1083 = vmatprep.mubr.bf16.mxu0 0
    %1084 = vmatmul.mubr.bf16.gmra.mrb[0].mxu0 %v858
    %v1085 = vpop.f32.mrb[0].mxu0
    %v1086 = vadd.f32 0.0, %v1085
    %v1087 = vpop.f32.mrb[0].mxu0
    %v1088 = vadd.f32 0.0, %v1087
    %v1089 = vpop.f32.mrb[0].mxu0
    %v1090 = vpop.f32.mrb[0].mxu0
    %1091 = vdwg.mxu0
    %1092 = vmatprep.subr.bf16.mxu0 %v990
    %1093 = vmatpush1.bf16.msra.mxu0 %v989
    %1094 = vmatprep.subr.bf16.mxu0 %v994
    %1095 = vmatpush1.bf16.msra.mxu0 %v993
    %1096 = vmatprep.subr.bf16.mxu0 %v998
    %1097 = vmatpush1.bf16.msra.mxu0 %v997
    %1098 = vmatprep.subr.bf16.mxu0 %v1002
    %1099 = vmatpush1.bf16.msra.mxu0 %v1001
    %1100 = vmatprep.subr.bf16.mxu0 %v1006
    %1101 = vmatpush1.bf16.msra.mxu0 %v1005
    %1102 = vmatprep.subr.bf16.mxu0 %v1010
    %1103 = vmatpush1.bf16.msra.mxu0 %v1009
    %1104 = vmatprep.subr.bf16.mxu0 %v1014
    %1105 = vmatpush1.bf16.msra.mxu0 %v1013
    %1106 = vmatprep.subr.bf16.mxu0 %v1018
    %1107 = vmatpush1.bf16.msra.mxu0 %v1017
    %1108 = vmatprep.subr.bf16.mxu0 0
    %1109 = vmatpush1.bf16.msra.mxu0 0
    %1110 = vmatprep.subr.bf16.mxu0 0
    %1111 = vmatpush1.bf16.msra.mxu0 0
    %1112 = vmatprep.subr.bf16.mxu0 0
    %1113 = vmatpush1.bf16.msra.mxu0 0
    %1114 = vmatprep.subr.bf16.mxu0 0
    %1115 = vmatpush1.bf16.msra.mxu0 0
    %1116 = vmatprep.subr.bf16.mxu0 0
    %1117 = vmatpush1.bf16.msra.mxu0 0
    %1118 = vmatprep.subr.bf16.mxu0 0
    %1119 = vmatpush1.bf16.msra.mxu0 0
    %1120 = vmatprep.subr.bf16.mxu0 0
    %1121 = vmatpush1.bf16.msra.mxu0 0
    %1122 = vmatprep.subr.bf16.mxu0 0
    %1123 = vmatpush1.bf16.msra.mxu0 0
    %1124 = vmatprep.mubr.bf16.mxu0 0
    %1125 = vmatmul.mubr.bf16.gmra.mrb[0].mxu0 %v858
    %v1126 = vpop.f32.mrb[0].mxu0
    %v1127 = vadd.f32 0.0, %v1126
    %v1128 = vpop.f32.mrb[0].mxu0
    %v1129 = vadd.f32 0.0, %v1128
    %v1130 = vpop.f32.mrb[0].mxu0
    %v1131 = vpop.f32.mrb[0].mxu0
    %1132 = vdwg.mxu0
    %v1133 = vadd.f32 %v514, %v1086
    %v1134 = vadd.f32 %v516, %v1088
    %v1135 = vadd.f32 %v555, %v1127
    %v1136 = vadd.f32 %v557, %v1129
    %v1137 = vmul.f32 %v1133, 0.5
    %v1138 = vmul.f32 %v1134, 0.5
    %v1139 = vmul.f32 %v1135, 0.5
    %v1140 = vtanh.pop %v1137
    %v1141 = vtanh.pop %v1138
    %v1142 = vtanh.pop %v1139
    %v1143 = vmul.f32 %v1140, 0.5
    %v1144 = vmul.f32 %v1141, 0.5
    %v1145 = vmul.f32 %v1142, 0.5
    %v1146 = vadd.f32 %v1143, 0.5
    %v1147 = vadd.f32 %v1144, 0.5
    %v1148 = vadd.f32 %v1145, 0.5
    %v1149 = vtanh.pop %v1136
    %v1150 = vmul.f32 %v1147, %v854
    %v1151 = vmul.f32 %v1146, %v1149
    %v1152 = vadd.f32 %v1150, %v1151
    %v1153 = vtanh.pop %v1152
    %v1154 = vmul.f32 %v1148, %v1153
    %1155 = vst [vmem:[#allocation2 + $0x8] sm:$0xff] %v1154
    %v1156 = vpack.c.bf16 %v1154, %v1154
    %v1157 = vld [vmem:[#allocation5] sm:$0xff]
    %v1158 = vld [vmem:[#allocation5 + $0x8] sm:$0xff]
    %v1159 = vld [vmem:[#allocation5 + $0x10] sm:$0xff]
    %v1160 = vld [vmem:[#allocation5 + $0x18] sm:$0xff]
    %v1161 = vld [vmem:[#allocation5 + $0x20] sm:$0xff]
    %v1162 = vld [vmem:[#allocation5 + $0x28] sm:$0xff]
    %v1163 = vld [vmem:[#allocation5 + $0x30] sm:$0xff]
    %v1164 = vld [vmem:[#allocation5 + $0x38] sm:$0xff]
    %v1165 = vld [vmem:[#allocation5 + $0x40] sm:$0xff]
    %v1166 = vld [vmem:[#allocation5 + $0x48] sm:$0xff]
    %v1167 = vld [vmem:[#allocation5 + $0x50] sm:$0xff]
    %v1168 = vld [vmem:[#allocation5 + $0x58] sm:$0xff]
    %v1169 = vld [vmem:[#allocation5 + $0x60] sm:$0xff]
    %v1170 = vld [vmem:[#allocation5 + $0x68] sm:$0xff]
    %v1171 = vld [vmem:[#allocation5 + $0x70] sm:$0xff]
    %v1172 = vld [vmem:[#allocation5 + $0x78] sm:$0xff]
    %v1173 = vld [vmem:[#allocation5 + $0x80] sm:$0xff]
    %v1174 = vld [vmem:[#allocation5 + $0x88] sm:$0xff]
    %v1175 = vld [vmem:[#allocation5 + $0x90] sm:$0xff]
    %v1176 = vld [vmem:[#allocation5 + $0x98] sm:$0xff]
    %v1177 = vld [vmem:[#allocation5 + $0xa0] sm:$0xff]
    %v1178 = vld [vmem:[#allocation5 + $0xa8] sm:$0xff]
    %v1179 = vld [vmem:[#allocation5 + $0xb0] sm:$0xff]
    %v1180 = vld [vmem:[#allocation5 + $0xb8] sm:$0xff]
    %v1181 = vld [vmem:[#allocation5 + $0xc0] sm:$0xff]
    %v1182 = vld [vmem:[#allocation5 + $0xc8] sm:$0xff]
    %v1183 = vld [vmem:[#allocation5 + $0xd0] sm:$0xff]
    %v1184 = vld [vmem:[#allocation5 + $0xd8] sm:$0xff]
    %v1185 = vld [vmem:[#allocation5 + $0xe0] sm:$0xff]
    %v1186 = vld [vmem:[#allocation5 + $0xe8] sm:$0xff]
    %v1187 = vld [vmem:[#allocation5 + $0xf0] sm:$0xff]
    %v1188 = vld [vmem:[#allocation5 + $0xf8] sm:$0xff]
    %v1221 = vunpack.c.l.b16 %v1157
    %v1222 = vunpack.c.h.b16 %v1157
    %v1223 = vunpack.c.l.b16 %v1158
    %v1224 = vunpack.c.h.b16 %v1158
    %v1225 = vunpack.c.l.b16 %v1159
    %v1226 = vunpack.c.h.b16 %v1159
    %v1227 = vunpack.c.l.b16 %v1160
    %v1228 = vunpack.c.h.b16 %v1160
    %v1229 = vunpack.c.l.b16 %v1161
    %v1230 = vunpack.c.h.b16 %v1161
    %v1231 = vunpack.c.l.b16 %v1162
    %v1232 = vunpack.c.h.b16 %v1162
    %v1233 = vunpack.c.l.b16 %v1163
    %v1234 = vunpack.c.h.b16 %v1163
    %v1235 = vunpack.c.l.b16 %v1164
    %v1236 = vunpack.c.h.b16 %v1164
    %v1237 = vunpack.c.l.b16 %v1165
    %v1238 = vunpack.c.h.b16 %v1165
    %v1239 = vunpack.c.l.b16 %v1166
    %v1240 = vunpack.c.h.b16 %v1166
    %v1241 = vunpack.c.l.b16 %v1167
    %v1242 = vunpack.c.h.b16 %v1167
    %v1243 = vunpack.c.l.b16 %v1168
    %v1244 = vunpack.c.h.b16 %v1168
    %v1245 = vunpack.c.l.b16 %v1169
    %v1246 = vunpack.c.h.b16 %v1169
    %v1247 = vunpack.c.l.b16 %v1170
    %v1248 = vunpack.c.h.b16 %v1170
    %v1249 = vunpack.c.l.b16 %v1171
    %v1250 = vunpack.c.h.b16 %v1171
    %v1251 = vunpack.c.l.b16 %v1172
    %v1252 = vunpack.c.h.b16 %v1172
    %v1253 = vunpack.c.l.b16 %v1173
    %v1254 = vunpack.c.h.b16 %v1173
    %v1255 = vunpack.c.l.b16 %v1174
    %v1256 = vunpack.c.h.b16 %v1174
    %v1257 = vunpack.c.l.b16 %v1175
    %v1258 = vunpack.c.h.b16 %v1175
    %v1259 = vunpack.c.l.b16 %v1176
    %v1260 = vunpack.c.h.b16 %v1176
    %v1261 = vunpack.c.l.b16 %v1177
    %v1262 = vunpack.c.h.b16 %v1177
    %v1263 = vunpack.c.l.b16 %v1178
    %v1264 = vunpack.c.h.b16 %v1178
    %v1265 = vunpack.c.l.b16 %v1179
    %v1266 = vunpack.c.h.b16 %v1179
    %v1267 = vunpack.c.l.b16 %v1180
    %v1268 = vunpack.c.h.b16 %v1180
    %v1269 = vunpack.c.l.b16 %v1181
    %v1270 = vunpack.c.h.b16 %v1181
    %v1271 = vunpack.c.l.b16 %v1182
    %v1272 = vunpack.c.h.b16 %v1182
    %v1273 = vunpack.c.l.b16 %v1183
    %v1274 = vunpack.c.h.b16 %v1183
    %v1275 = vunpack.c.l.b16 %v1184
    %v1276 = vunpack.c.h.b16 %v1184
    %v1277 = vunpack.c.l.b16 %v1185
    %v1278 = vunpack.c.h.b16 %v1185
    %v1279 = vunpack.c.l.b16 %v1186
    %v1280 = vunpack.c.h.b16 %v1186
    %v1281 = vunpack.c.l.b16 %v1187
    %v1282 = vunpack.c.h.b16 %v1187
    %v1283 = vunpack.c.l.b16 %v1188
    %v1284 = vunpack.c.h.b16 %v1188
    %v1285 = vpack.c.b16 %v1225, %v1221
    %v1286 = vpack.c.b16 %v1226, %v1222
    %v1287 = vpack.c.b16 %v1227, %v1223
    %v1288 = vpack.c.b16 %v1228, %v1224
    %v1289 = vpack.c.b16 %v1233, %v1229
    %v1290 = vpack.c.b16 %v1234, %v1230
    %v1291 = vpack.c.b16 %v1235, %v1231
    %v1292 = vpack.c.b16 %v1236, %v1232
    %v1293 = vpack.c.b16 %v1241, %v1237
    %v1294 = vpack.c.b16 %v1242, %v1238
    %v1295 = vpack.c.b16 %v1243, %v1239
    %v1296 = vpack.c.b16 %v1244, %v1240
    %v1297 = vpack.c.b16 %v1249, %v1245
    %v1298 = vpack.c.b16 %v1250, %v1246
    %v1299 = vpack.c.b16 %v1251, %v1247
    %v1300 = vpack.c.b16 %v1252, %v1248
    %v1301 = vpack.c.b16 %v1257, %v1253
    %v1302 = vpack.c.b16 %v1258, %v1254
    %v1303 = vpack.c.b16 %v1259, %v1255
    %v1304 = vpack.c.b16 %v1260, %v1256
    %v1305 = vpack.c.b16 %v1265, %v1261
    %v1306 = vpack.c.b16 %v1266, %v1262
    %v1307 = vpack.c.b16 %v1267, %v1263
    %v1308 = vpack.c.b16 %v1268, %v1264
    %v1309 = vpack.c.b16 %v1273, %v1269
    %v1310 = vpack.c.b16 %v1274, %v1270
    %v1311 = vpack.c.b16 %v1275, %v1271
    %v1312 = vpack.c.b16 %v1276, %v1272
    %v1313 = vpack.c.b16 %v1281, %v1277
    %v1314 = vpack.c.b16 %v1282, %v1278
    %v1315 = vpack.c.b16 %v1283, %v1279
    %v1316 = vpack.c.b16 %v1284, %v1280
    %1349 = vmatprep.subr.bf16.mxu0 %v1286
    %1350 = vmatpush1.bf16.msra.mxu0 %v1285
    %1351 = vmatprep.subr.bf16.mxu0 %v1290
    %1352 = vmatpush1.bf16.msra.mxu0 %v1289
    %1353 = vmatprep.subr.bf16.mxu0 %v1294
    %1354 = vmatpush1.bf16.msra.mxu0 %v1293
    %1355 = vmatprep.subr.bf16.mxu0 %v1298
    %1356 = vmatpush1.bf16.msra.mxu0 %v1297
    %1357 = vmatprep.subr.bf16.mxu0 %v1302
    %1358 = vmatpush1.bf16.msra.mxu0 %v1301
    %1359 = vmatprep.subr.bf16.mxu0 %v1306
    %1360 = vmatpush1.bf16.msra.mxu0 %v1305
    %1361 = vmatprep.subr.bf16.mxu0 %v1310
    %1362 = vmatpush1.bf16.msra.mxu0 %v1309
    %1363 = vmatprep.subr.bf16.mxu0 %v1314
    %1364 = vmatpush1.bf16.msra.mxu0 %v1313
    %1365 = vmatprep.subr.bf16.mxu0 0
    %1366 = vmatpush1.bf16.msra.mxu0 0
    %1367 = vmatprep.subr.bf16.mxu0 0
    %1368 = vmatpush1.bf16.msra.mxu0 0
    %1369 = vmatprep.subr.bf16.mxu0 0
    %1370 = vmatpush1.bf16.msra.mxu0 0
    %1371 = vmatprep.subr.bf16.mxu0 0
    %1372 = vmatpush1.bf16.msra.mxu0 0
    %1373 = vmatprep.subr.bf16.mxu0 0
    %1374 = vmatpush1.bf16.msra.mxu0 0
    %1375 = vmatprep.subr.bf16.mxu0 0
    %1376 = vmatpush1.bf16.msra.mxu0 0
    %1377 = vmatprep.subr.bf16.mxu0 0
    %1378 = vmatpush1.bf16.msra.mxu0 0
    %1379 = vmatprep.subr.bf16.mxu0 0
    %1380 = vmatpush1.bf16.msra.mxu0 0
    %1381 = vmatprep.mubr.bf16.mxu0 0
    %1382 = vmatmul.mubr.bf16.gmra.mrb[0].mxu0 %v1156
    %v1383 = vpop.f32.mrb[0].mxu0
    %v1384 = vadd.f32 0.0, %v1383
    %v1385 = vpop.f32.mrb[0].mxu0
    %v1386 = vadd.f32 0.0, %v1385
    %v1387 = vpop.f32.mrb[0].mxu0
    %v1388 = vpop.f32.mrb[0].mxu0
    %1389 = vdwg.mxu0
    %1390 = vmatprep.subr.bf16.mxu0 %v1288
    %1391 = vmatpush1.bf16.msra.mxu0 %v1287
    %1392 = vmatprep.subr.bf16.mxu0 %v1292
    %1393 = vmatpush1.bf16.msra.mxu0 %v1291
    %1394 = vmatprep.subr.bf16.mxu0 %v1296
    %1395 = vmatpush1.bf16.msra.mxu0 %v1295
    %1396 = vmatprep.subr.bf16.mxu0 %v1300
    %1397 = vmatpush1.bf16.msra.mxu0 %v1299
    %1398 = vmatprep.subr.bf16.mxu0 %v1304
    %1399 = vmatpush1.bf16.msra.mxu0 %v1303
    %1400 = vmatprep.subr.bf16.mxu0 %v1308
    %1401 = vmatpush1.bf16.msra.mxu0 %v1307
    %1402 = vmatprep.subr.bf16.mxu0 %v1312
    %1403 = vmatpush1.bf16.msra.mxu0 %v1311
    %1404 = vmatprep.subr.bf16.mxu0 %v1316
    %1405 = vmatpush1.bf16.msra.mxu0 %v1315
    %1406 = vmatprep.subr.bf16.mxu0 0
    %1407 = vmatpush1.bf16.msra.mxu0 0
    %1408 = vmatprep.subr.bf16.mxu0 0
    %1409 = vmatpush1.bf16.msra.mxu0 0
    %1410 = vmatprep.subr.bf16.mxu0 0
    %1411 = vmatpush1.bf16.msra.mxu0 0
    %1412 = vmatprep.subr.bf16.mxu0 0
    %1413 = vmatpush1.bf16.msra.mxu0 0
    %1414 = vmatprep.subr.bf16.mxu0 0
    %1415 = vmatpush1.bf16.msra.mxu0 0
    %1416 = vmatprep.subr.bf16.mxu0 0
    %1417 = vmatpush1.bf16.msra.mxu0 0
    %1418 = vmatprep.subr.bf16.mxu0 0
    %1419 = vmatpush1.bf16.msra.mxu0 0
    %1420 = vmatprep.subr.bf16.mxu0 0
    %1421 = vmatpush1.bf16.msra.mxu0 0
    %1422 = vmatprep.mubr.bf16.mxu0 0
    %1423 = vmatmul.mubr.bf16.gmra.mrb[0].mxu0 %v1156
    %v1424 = vpop.f32.mrb[0].mxu0
    %v1425 = vadd.f32 0.0, %v1424
    %v1426 = vpop.f32.mrb[0].mxu0
    %v1427 = vadd.f32 0.0, %v1426
    %v1428 = vpop.f32.mrb[0].mxu0
    %v1429 = vpop.f32.mrb[0].mxu0
    %1430 = vdwg.mxu0
    %v1431 = vadd.f32 %v514, %v1384
    %v1432 = vadd.f32 %v516, %v1386
    %v1433 = vadd.f32 %v555, %v1425
    %v1434 = vadd.f32 %v557, %v1427
    %v1435 = vmul.f32 %v1431, 0.5
    %v1436 = vmul.f32 %v1432, 0.5
    %v1437 = vmul.f32 %v1433, 0.5
    %v1438 = vtanh.pop %v1435
    %v1439 = vtanh.pop %v1436
    %v1440 = vtanh.pop %v1437
    %v1441 = vmul.f32 %v1438, 0.5
    %v1442 = vmul.f32 %v1439, 0.5
    %v1443 = vmul.f32 %v1440, 0.5
    %v1444 = vadd.f32 %v1441, 0.5
    %v1445 = vadd.f32 %v1442, 0.5
    %v1446 = vadd.f32 %v1443, 0.5
    %v1447 = vtanh.pop %v1434
    %v1448 = vmul.f32 %v1445, %v1152
    %v1449 = vmul.f32 %v1444, %v1447
    %v1450 = vadd.f32 %v1448, %v1449
    %v1451 = vtanh.pop %v1450
    %v1452 = vmul.f32 %v1446, %v1451
    %1453 = vst [vmem:[#allocation2 + $0x10] sm:$0xff] %v1452
    %v1454 = vpack.c.bf16 %v1452, %v1452
    %v1455 = vld [vmem:[#allocation5] sm:$0xff]
    %v1456 = vld [vmem:[#allocation5 + $0x8] sm:$0xff]
    %v1457 = vld [vmem:[#allocation5 + $0x10] sm:$0xff]
    %v1458 = vld [vmem:[#allocation5 + $0x18] sm:$0xff]
    %v1459 = vld [vmem:[#allocation5 + $0x20] sm:$0xff]
    %v1460 = vld [vmem:[#allocation5 + $0x28] sm:$0xff]
    %v1461 = vld [vmem:[#allocation5 + $0x30] sm:$0xff]
    %v1462 = vld [vmem:[#allocation5 + $0x38] sm:$0xff]
    %v1463 = vld [vmem:[#allocation5 + $0x40] sm:$0xff]
    %v1464 = vld [vmem:[#allocation5 + $0x48] sm:$0xff]
    %v1465 = vld [vmem:[#allocation5 + $0x50] sm:$0xff]
    %v1466 = vld [vmem:[#allocation5 + $0x58] sm:$0xff]
    %v1467 = vld [vmem:[#allocation5 + $0x60] sm:$0xff]
    %v1468 = vld [vmem:[#allocation5 + $0x68] sm:$0xff]
    %v1469 = vld [vmem:[#allocation5 + $0x70] sm:$0xff]
    %v1470 = vld [vmem:[#allocation5 + $0x78] sm:$0xff]
    %v1471 = vld [vmem:[#allocation5 + $0x80] sm:$0xff]
    %v1472 = vld [vmem:[#allocation5 + $0x88] sm:$0xff]
    %v1473 = vld [vmem:[#allocation5 + $0x90] sm:$0xff]
    %v1474 = vld [vmem:[#allocation5 + $0x98] sm:$0xff]
    %v1475 = vld [vmem:[#allocation5 + $0xa0] sm:$0xff]
    %v1476 = vld [vmem:[#allocation5 + $0xa8] sm:$0xff]
    %v1477 = vld [vmem:[#allocation5 + $0xb0] sm:$0xff]
    %v1478 = vld [vmem:[#allocation5 + $0xb8] sm:$0xff]
    %v1479 = vld [vmem:[#allocation5 + $0xc0] sm:$0xff]
    %v1480 = vld [vmem:[#allocation5 + $0xc8] sm:$0xff]
    %v1481 = vld [vmem:[#allocation5 + $0xd0] sm:$0xff]
    %v1482 = vld [vmem:[#allocation5 + $0xd8] sm:$0xff]
    %v1483 = vld [vmem:[#allocation5 + $0xe0] sm:$0xff]
    %v1484 = vld [vmem:[#allocation5 + $0xe8] sm:$0xff]
    %v1485 = vld [vmem:[#allocation5 + $0xf0] sm:$0xff]
    %v1486 = vld [vmem:[#allocation5 + $0xf8] sm:$0xff]
    %v1519 = vunpack.c.l.b16 %v1455
    %v1520 = vunpack.c.h.b16 %v1455
    %v1521 = vunpack.c.l.b16 %v1456
    %v1522 = vunpack.c.h.b16 %v1456
    %v1523 = vunpack.c.l.b16 %v1457
    %v1524 = vunpack.c.h.b16 %v1457
    %v1525 = vunpack.c.l.b16 %v1458
    %v1526 = vunpack.c.h.b16 %v1458
    %v1527 = vunpack.c.l.b16 %v1459
    %v1528 = vunpack.c.h.b16 %v1459
    %v1529 = vunpack.c.l.b16 %v1460
    %v1530 = vunpack.c.h.b16 %v1460
    %v1531 = vunpack.c.l.b16 %v1461
    %v1532 = vunpack.c.h.b16 %v1461
    %v1533 = vunpack.c.l.b16 %v1462
    %v1534 = vunpack.c.h.b16 %v1462
    %v1535 = vunpack.c.l.b16 %v1463
    %v1536 = vunpack.c.h.b16 %v1463
    %v1537 = vunpack.c.l.b16 %v1464
    %v1538 = vunpack.c.h.b16 %v1464
    %v1539 = vunpack.c.l.b16 %v1465
    %v1540 = vunpack.c.h.b16 %v1465
    %v1541 = vunpack.c.l.b16 %v1466
    %v1542 = vunpack.c.h.b16 %v1466
    %v1543 = vunpack.c.l.b16 %v1467
    %v1544 = vunpack.c.h.b16 %v1467
    %v1545 = vunpack.c.l.b16 %v1468
    %v1546 = vunpack.c.h.b16 %v1468
    %v1547 = vunpack.c.l.b16 %v1469
    %v1548 = vunpack.c.h.b16 %v1469
    %v1549 = vunpack.c.l.b16 %v1470
    %v1550 = vunpack.c.h.b16 %v1470
    %v1551 = vunpack.c.l.b16 %v1471
    %v1552 = vunpack.c.h.b16 %v1471
    %v1553 = vunpack.c.l.b16 %v1472
    %v1554 = vunpack.c.h.b16 %v1472
    %v1555 = vunpack.c.l.b16 %v1473
    %v1556 = vunpack.c.h.b16 %v1473
    %v1557 = vunpack.c.l.b16 %v1474
    %v1558 = vunpack.c.h.b16 %v1474
    %v1559 = vunpack.c.l.b16 %v1475
    %v1560 = vunpack.c.h.b16 %v1475
    %v1561 = vunpack.c.l.b16 %v1476
    %v1562 = vunpack.c.h.b16 %v1476
    %v1563 = vunpack.c.l.b16 %v1477
    %v1564 = vunpack.c.h.b16 %v1477
    %v1565 = vunpack.c.l.b16 %v1478
    %v1566 = vunpack.c.h.b16 %v1478
    %v1567 = vunpack.c.l.b16 %v1479
    %v1568 = vunpack.c.h.b16 %v1479
    %v1569 = vunpack.c.l.b16 %v1480
    %v1570 = vunpack.c.h.b16 %v1480
    %v1571 = vunpack.c.l.b16 %v1481
    %v1572 = vunpack.c.h.b16 %v1481
    %v1573 = vunpack.c.l.b16 %v1482
    %v1574 = vunpack.c.h.b16 %v1482
    %v1575 = vunpack.c.l.b16 %v1483
    %v1576 = vunpack.c.h.b16 %v1483
    %v1577 = vunpack.c.l.b16 %v1484
    %v1578 = vunpack.c.h.b16 %v1484
    %v1579 = vunpack.c.l.b16 %v1485
    %v1580 = vunpack.c.h.b16 %v1485
    %v1581 = vunpack.c.l.b16 %v1486
    %v1582 = vunpack.c.h.b16 %v1486
    %v1583 = vpack.c.b16 %v1523, %v1519
    %v1584 = vpack.c.b16 %v1524, %v1520
    %v1585 = vpack.c.b16 %v1525, %v1521
    %v1586 = vpack.c.b16 %v1526, %v1522
    %v1587 = vpack.c.b16 %v1531, %v1527
    %v1588 = vpack.c.b16 %v1532, %v1528
    %v1589 = vpack.c.b16 %v1533, %v1529
    %v1590 = vpack.c.b16 %v1534, %v1530
    %v1591 = vpack.c.b16 %v1539, %v1535
    %v1592 = vpack.c.b16 %v1540, %v1536
    %v1593 = vpack.c.b16 %v1541, %v1537
    %v1594 = vpack.c.b16 %v1542, %v1538
    %v1595 = vpack.c.b16 %v1547, %v1543
    %v1596 = vpack.c.b16 %v1548, %v1544
    %v1597 = vpack.c.b16 %v1549, %v1545
    %v1598 = vpack.c.b16 %v1550, %v1546
    %v1599 = vpack.c.b16 %v1555, %v1551
    %v1600 = vpack.c.b16 %v1556, %v1552
    %v1601 = vpack.c.b16 %v1557, %v1553
    %v1602 = vpack.c.b16 %v1558, %v1554
    %v1603 = vpack.c.b16 %v1563, %v1559
    %v1604 = vpack.c.b16 %v1564, %v1560
    %v1605 = vpack.c.b16 %v1565, %v1561
    %v1606 = vpack.c.b16 %v1566, %v1562
    %v1607 = vpack.c.b16 %v1571, %v1567
    %v1608 = vpack.c.b16 %v1572, %v1568
    %v1609 = vpack.c.b16 %v1573, %v1569
    %v1610 = vpack.c.b16 %v1574, %v1570
    %v1611 = vpack.c.b16 %v1579, %v1575
    %v1612 = vpack.c.b16 %v1580, %v1576
    %v1613 = vpack.c.b16 %v1581, %v1577
    %v1614 = vpack.c.b16 %v1582, %v1578
    %1647 = vmatprep.subr.bf16.mxu0 %v1584
    %1648 = vmatpush1.bf16.msra.mxu0 %v1583
    %1649 = vmatprep.subr.bf16.mxu0 %v1588
    %1650 = vmatpush1.bf16.msra.mxu0 %v1587
    %1651 = vmatprep.subr.bf16.mxu0 %v1592
    %1652 = vmatpush1.bf16.msra.mxu0 %v1591
    %1653 = vmatprep.subr.bf16.mxu0 %v1596
    %1654 = vmatpush1.bf16.msra.mxu0 %v1595
    %1655 = vmatprep.subr.bf16.mxu0 %v1600
    %1656 = vmatpush1.bf16.msra.mxu0 %v1599
    %1657 = vmatprep.subr.bf16.mxu0 %v1604
    %1658 = vmatpush1.bf16.msra.mxu0 %v1603
    %1659 = vmatprep.subr.bf16.mxu0 %v1608
    %1660 = vmatpush1.bf16.msra.mxu0 %v1607
    %1661 = vmatprep.subr.bf16.mxu0 %v1612
    %1662 = vmatpush1.bf16.msra.mxu0 %v1611
    %1663 = vmatprep.subr.bf16.mxu0 0
    %1664 = vmatpush1.bf16.msra.mxu0 0
    %1665 = vmatprep.subr.bf16.mxu0 0
    %1666 = vmatpush1.bf16.msra.mxu0 0
    %1667 = vmatprep.subr.bf16.mxu0 0
    %1668 = vmatpush1.bf16.msra.mxu0 0
    %1669 = vmatprep.subr.bf16.mxu0 0
    %1670 = vmatpush1.bf16.msra.mxu0 0
    %1671 = vmatprep.subr.bf16.mxu0 0
    %1672 = vmatpush1.bf16.msra.mxu0 0
    %1673 = vmatprep.subr.bf16.mxu0 0
    %1674 = vmatpush1.bf16.msra.mxu0 0
    %1675 = vmatprep.subr.bf16.mxu0 0
    %1676 = vmatpush1.bf16.msra.mxu0 0
    %1677 = vmatprep.subr.bf16.mxu0 0
    %1678 = vmatpush1.bf16.msra.mxu0 0
    %1679 = vmatprep.mubr.bf16.mxu0 0
    %1680 = vmatmul.mubr.bf16.gmra.mrb[0].mxu0 %v1454
    %v1681 = vpop.f32.mrb[0].mxu0
    %v1682 = vadd.f32 0.0, %v1681
    %v1683 = vpop.f32.mrb[0].mxu0
    %v1684 = vadd.f32 0.0, %v1683
    %v1685 = vpop.f32.mrb[0].mxu0
    %v1686 = vpop.f32.mrb[0].mxu0
    %1687 = vdwg.mxu0
    %1688 = vmatprep.subr.bf16.mxu0 %v1586
    %1689 = vmatpush1.bf16.msra.mxu0 %v1585
    %1690 = vmatprep.subr.bf16.mxu0 %v1590
    %1691 = vmatpush1.bf16.msra.mxu0 %v1589
    %1692 = vmatprep.subr.bf16.mxu0 %v1594
    %1693 = vmatpush1.bf16.msra.mxu0 %v1593
    %1694 = vmatprep.subr.bf16.mxu0 %v1598
    %1695 = vmatpush1.bf16.msra.mxu0 %v1597
    %1696 = vmatprep.subr.bf16.mxu0 %v1602
    %1697 = vmatpush1.bf16.msra.mxu0 %v1601
    %1698 = vmatprep.subr.bf16.mxu0 %v1606
    %1699 = vmatpush1.bf16.msra.mxu0 %v1605
    %1700 = vmatprep.subr.bf16.mxu0 %v1610
    %1701 = vmatpush1.bf16.msra.mxu0 %v1609
    %1702 = vmatprep.subr.bf16.mxu0 %v1614
    %1703 = vmatpush1.bf16.msra.mxu0 %v1613
    %1704 = vmatprep.subr.bf16.mxu0 0
    %1705 = vmatpush1.bf16.msra.mxu0 0
    %1706 = vmatprep.subr.bf16.mxu0 0
    %1707 = vmatpush1.bf16.msra.mxu0 0
    %1708 = vmatprep.subr.bf16.mxu0 0
    %1709 = vmatpush1.bf16.msra.mxu0 0
    %1710 = vmatprep.subr.bf16.mxu0 0
    %1711 = vmatpush1.bf16.msra.mxu0 0
    %1712 = vmatprep.subr.bf16.mxu0 0
    %1713 = vmatpush1.bf16.msra.mxu0 0
    %1714 = vmatprep.subr.bf16.mxu0 0
    %1715 = vmatpush1.bf16.msra.mxu0 0
    %1716 = vmatprep.subr.bf16.mxu0 0
    %1717 = vmatpush1.bf16.msra.mxu0 0
    %1718 = vmatprep.subr.bf16.mxu0 0
    %1719 = vmatpush1.bf16.msra.mxu0 0
    %1720 = vmatprep.mubr.bf16.mxu0 0
    %1721 = vmatmul.mubr.bf16.gmra.mrb[0].mxu0 %v1454
    %v1722 = vpop.f32.mrb[0].mxu0
    %v1723 = vadd.f32 0.0, %v1722
    %v1724 = vpop.f32.mrb[0].mxu0
    %v1725 = vadd.f32 0.0, %v1724
    %v1726 = vpop.f32.mrb[0].mxu0
    %v1727 = vpop.f32.mrb[0].mxu0
    %1728 = vdwg.mxu0
    %v1729 = vadd.f32 %v514, %v1682
    %v1730 = vadd.f32 %v516, %v1684
    %v1731 = vadd.f32 %v555, %v1723
    %v1732 = vadd.f32 %v557, %v1725
    %v1733 = vmul.f32 %v1729, 0.5
    %v1734 = vmul.f32 %v1730, 0.5
    %v1735 = vmul.f32 %v1731, 0.5
    %v1736 = vtanh.pop %v1733
    %v1737 = vtanh.pop %v1734
    %v1738 = vtanh.pop %v1735
    %v1739 = vmul.f32 %v1736, 0.5
    %v1740 = vmul.f32 %v1737, 0.5
    %v1741 = vmul.f32 %v1738, 0.5
    %v1742 = vadd.f32 %v1739, 0.5
    %v1743 = vadd.f32 %v1740, 0.5
    %v1744 = vadd.f32 %v1741, 0.5
    %v1745 = vtanh.pop %v1732
    %v1746 = vmul.f32 %v1743, %v1450
    %v1747 = vmul.f32 %v1742, %v1745
    %v1748 = vadd.f32 %v1746, %v1747
    %v1749 = vtanh.pop %v1748
    %v1750 = vmul.f32 %v1744, %v1749
    %1751 = vst [vmem:[#allocation2 + $0x18] sm:$0xff] %v1750
    %v1752 = vpack.c.bf16 %v1750, %v1750
    %v1753 = vld [vmem:[#allocation5] sm:$0xff]
    %v1754 = vld [vmem:[#allocation5 + $0x8] sm:$0xff]
    %v1755 = vld [vmem:[#allocation5 + $0x10] sm:$0xff]
    %v1756 = vld [vmem:[#allocation5 + $0x18] sm:$0xff]
    %v1757 = vld [vmem:[#allocation5 + $0x20] sm:$0xff]
    %v1758 = vld [vmem:[#allocation5 + $0x28] sm:$0xff]
    %v1759 = vld [vmem:[#allocation5 + $0x30] sm:$0xff]
    %v1760 = vld [vmem:[#allocation5 + $0x38] sm:$0xff]
    %v1761 = vld [vmem:[#allocation5 + $0x40] sm:$0xff]
    %v1762 = vld [vmem:[#allocation5 + $0x48] sm:$0xff]
    %v1763 = vld [vmem:[#allocation5 + $0x50] sm:$0xff]
    %v1764 = vld [vmem:[#allocation5 + $0x58] sm:$0xff]
    %v1765 = vld [vmem:[#allocation5 + $0x60] sm:$0xff]
    %v1766 = vld [vmem:[#allocation5 + $0x68] sm:$0xff]
    %v1767 = vld [vmem:[#allocation5 + $0x70] sm:$0xff]
    %v1768 = vld [vmem:[#allocation5 + $0x78] sm:$0xff]
    %v1769 = vld [vmem:[#allocation5 + $0x80] sm:$0xff]
    %v1770 = vld [vmem:[#allocation5 + $0x88] sm:$0xff]
    %v1771 = vld [vmem:[#allocation5 + $0x90] sm:$0xff]
    %v1772 = vld [vmem:[#allocation5 + $0x98] sm:$0xff]
    %v1773 = vld [vmem:[#allocation5 + $0xa0] sm:$0xff]
    %v1774 = vld [vmem:[#allocation5 + $0xa8] sm:$0xff]
    %v1775 = vld [vmem:[#allocation5 + $0xb0] sm:$0xff]
    %v1776 = vld [vmem:[#allocation5 + $0xb8] sm:$0xff]
    %v1777 = vld [vmem:[#allocation5 + $0xc0] sm:$0xff]
    %v1778 = vld [vmem:[#allocation5 + $0xc8] sm:$0xff]
    %v1779 = vld [vmem:[#allocation5 + $0xd0] sm:$0xff]
    %v1780 = vld [vmem:[#allocation5 + $0xd8] sm:$0xff]
    %v1781 = vld [vmem:[#allocation5 + $0xe0] sm:$0xff]
    %v1782 = vld [vmem:[#allocation5 + $0xe8] sm:$0xff]
    %v1783 = vld [vmem:[#allocation5 + $0xf0] sm:$0xff]
    %v1784 = vld [vmem:[#allocation5 + $0xf8] sm:$0xff]
    %v1817 = vunpack.c.l.b16 %v1753
    %v1818 = vunpack.c.h.b16 %v1753
    %v1819 = vunpack.c.l.b16 %v1754
    %v1820 = vunpack.c.h.b16 %v1754
    %v1821 = vunpack.c.l.b16 %v1755
    %v1822 = vunpack.c.h.b16 %v1755
    %v1823 = vunpack.c.l.b16 %v1756
    %v1824 = vunpack.c.h.b16 %v1756
    %v1825 = vunpack.c.l.b16 %v1757
    %v1826 = vunpack.c.h.b16 %v1757
    %v1827 = vunpack.c.l.b16 %v1758
    %v1828 = vunpack.c.h.b16 %v1758
    %v1829 = vunpack.c.l.b16 %v1759
    %v1830 = vunpack.c.h.b16 %v1759
    %v1831 = vunpack.c.l.b16 %v1760
    %v1832 = vunpack.c.h.b16 %v1760
    %v1833 = vunpack.c.l.b16 %v1761
    %v1834 = vunpack.c.h.b16 %v1761
    %v1835 = vunpack.c.l.b16 %v1762
    %v1836 = vunpack.c.h.b16 %v1762
    %v1837 = vunpack.c.l.b16 %v1763
    %v1838 = vunpack.c.h.b16 %v1763
    %v1839 = vunpack.c.l.b16 %v1764
    %v1840 = vunpack.c.h.b16 %v1764
    %v1841 = vunpack.c.l.b16 %v1765
    %v1842 = vunpack.c.h.b16 %v1765
    %v1843 = vunpack.c.l.b16 %v1766
    %v1844 = vunpack.c.h.b16 %v1766
    %v1845 = vunpack.c.l.b16 %v1767
    %v1846 = vunpack.c.h.b16 %v1767
    %v1847 = vunpack.c.l.b16 %v1768
    %v1848 = vunpack.c.h.b16 %v1768
    %v1849 = vunpack.c.l.b16 %v1769
    %v1850 = vunpack.c.h.b16 %v1769
    %v1851 = vunpack.c.l.b16 %v1770
    %v1852 = vunpack.c.h.b16 %v1770
    %v1853 = vunpack.c.l.b16 %v1771
    %v1854 = vunpack.c.h.b16 %v1771
    %v1855 = vunpack.c.l.b16 %v1772
    %v1856 = vunpack.c.h.b16 %v1772
    %v1857 = vunpack.c.l.b16 %v1773
    %v1858 = vunpack.c.h.b16 %v1773
    %v1859 = vunpack.c.l.b16 %v1774
    %v1860 = vunpack.c.h.b16 %v1774
    %v1861 = vunpack.c.l.b16 %v1775
    %v1862 = vunpack.c.h.b16 %v1775
    %v1863 = vunpack.c.l.b16 %v1776
    %v1864 = vunpack.c.h.b16 %v1776
    %v1865 = vunpack.c.l.b16 %v1777
    %v1866 = vunpack.c.h.b16 %v1777
    %v1867 = vunpack.c.l.b16 %v1778
    %v1868 = vunpack.c.h.b16 %v1778
    %v1869 = vunpack.c.l.b16 %v1779
    %v1870 = vunpack.c.h.b16 %v1779
    %v1871 = vunpack.c.l.b16 %v1780
    %v1872 = vunpack.c.h.b16 %v1780
    %v1873 = vunpack.c.l.b16 %v1781
    %v1874 = vunpack.c.h.b16 %v1781
    %v1875 = vunpack.c.l.b16 %v1782
    %v1876 = vunpack.c.h.b16 %v1782
    %v1877 = vunpack.c.l.b16 %v1783
    %v1878 = vunpack.c.h.b16 %v1783
    %v1879 = vunpack.c.l.b16 %v1784
    %v1880 = vunpack.c.h.b16 %v1784
    %v1881 = vpack.c.b16 %v1821, %v1817
    %v1882 = vpack.c.b16 %v1822, %v1818
    %v1883 = vpack.c.b16 %v1823, %v1819
    %v1884 = vpack.c.b16 %v1824, %v1820
    %v1885 = vpack.c.b16 %v1829, %v1825
    %v1886 = vpack.c.b16 %v1830, %v1826
    %v1887 = vpack.c.b16 %v1831, %v1827
    %v1888 = vpack.c.b16 %v1832, %v1828
    %v1889 = vpack.c.b16 %v1837, %v1833
    %v1890 = vpack.c.b16 %v1838, %v1834
    %v1891 = vpack.c.b16 %v1839, %v1835
    %v1892 = vpack.c.b16 %v1840, %v1836
    %v1893 = vpack.c.b16 %v1845, %v1841
    %v1894 = vpack.c.b16 %v1846, %v1842
    %v1895 = vpack.c.b16 %v1847, %v1843
    %v1896 = vpack.c.b16 %v1848, %v1844
    %v1897 = vpack.c.b16 %v1853, %v1849
    %v1898 = vpack.c.b16 %v1854, %v1850
    %v1899 = vpack.c.b16 %v1855, %v1851
    %v1900 = vpack.c.b16 %v1856, %v1852
    %v1901 = vpack.c.b16 %v1861, %v1857
    %v1902 = vpack.c.b16 %v1862, %v1858
    %v1903 = vpack.c.b16 %v1863, %v1859
    %v1904 = vpack.c.b16 %v1864, %v1860
    %v1905 = vpack.c.b16 %v1869, %v1865
    %v1906 = vpack.c.b16 %v1870, %v1866
    %v1907 = vpack.c.b16 %v1871, %v1867
    %v1908 = vpack.c.b16 %v1872, %v1868
    %v1909 = vpack.c.b16 %v1877, %v1873
    %v1910 = vpack.c.b16 %v1878, %v1874
    %v1911 = vpack.c.b16 %v1879, %v1875
    %v1912 = vpack.c.b16 %v1880, %v1876
    %1945 = vmatprep.subr.bf16.mxu0 %v1882
    %1946 = vmatpush1.bf16.msra.mxu0 %v1881
    %1947 = vmatprep.subr.bf16.mxu0 %v1886
    %1948 = vmatpush1.bf16.msra.mxu0 %v1885
    %1949 = vmatprep.subr.bf16.mxu0 %v1890
    %1950 = vmatpush1.bf16.msra.mxu0 %v1889
    %1951 = vmatprep.subr.bf16.mxu0 %v1894
    %1952 = vmatpush1.bf16.msra.mxu0 %v1893
    %1953 = vmatprep.subr.bf16.mxu0 %v1898
    %1954 = vmatpush1.bf16.msra.mxu0 %v1897
    %1955 = vmatprep.subr.bf16.mxu0 %v1902
    %1956 = vmatpush1.bf16.msra.mxu0 %v1901
    %1957 = vmatprep.subr.bf16.mxu0 %v1906
    %1958 = vmatpush1.bf16.msra.mxu0 %v1905
    %1959 = vmatprep.subr.bf16.mxu0 %v1910
    %1960 = vmatpush1.bf16.msra.mxu0 %v1909
    %1961 = vmatprep.subr.bf16.mxu0 0
    %1962 = vmatpush1.bf16.msra.mxu0 0
    %1963 = vmatprep.subr.bf16.mxu0 0
    %1964 = vmatpush1.bf16.msra.mxu0 0
    %1965 = vmatprep.subr.bf16.mxu0 0
    %1966 = vmatpush1.bf16.msra.mxu0 0
    %1967 = vmatprep.subr.bf16.mxu0 0
    %1968 = vmatpush1.bf16.msra.mxu0 0
    %1969 = vmatprep.subr.bf16.mxu0 0
    %1970 = vmatpush1.bf16.msra.mxu0 0
    %1971 = vmatprep.subr.bf16.mxu0 0
    %1972 = vmatpush1.bf16.msra.mxu0 0
    %1973 = vmatprep.subr.bf16.mxu0 0
    %1974 = vmatpush1.bf16.msra.mxu0 0
    %1975 = vmatprep.subr.bf16.mxu0 0
    %1976 = vmatpush1.bf16.msra.mxu0 0
    %1977 = vmatprep.mubr.bf16.mxu0 0
    %1978 = vmatmul.mubr.bf16.gmra.mrb[0].mxu0 %v1752
    %v1979 = vpop.f32.mrb[0].mxu0
    %v1980 = vadd.f32 0.0, %v1979
    %v1981 = vpop.f32.mrb[0].mxu0
    %v1982 = vadd.f32 0.0, %v1981
    %v1983 = vpop.f32.mrb[0].mxu0
    %v1984 = vpop.f32.mrb[0].mxu0
    %1985 = vdwg.mxu0
    %1986 = vmatprep.subr.bf16.mxu0 %v1884
    %1987 = vmatpush1.bf16.msra.mxu0 %v1883
    %1988 = vmatprep.subr.bf16.mxu0 %v1888
    %1989 = vmatpush1.bf16.msra.mxu0 %v1887
    %1990 = vmatprep.subr.bf16.mxu0 %v1892
    %1991 = vmatpush1.bf16.msra.mxu0 %v1891
    %1992 = vmatprep.subr.bf16.mxu0 %v1896
    %1993 = vmatpush1.bf16.msra.mxu0 %v1895
    %1994 = vmatprep.subr.bf16.mxu0 %v1900
    %1995 = vmatpush1.bf16.msra.mxu0 %v1899
    %1996 = vmatprep.subr.bf16.mxu0 %v1904
    %1997 = vmatpush1.bf16.msra.mxu0 %v1903
    %1998 = vmatprep.subr.bf16.mxu0 %v1908
    %1999 = vmatpush1.bf16.msra.mxu0 %v1907
    %2000 = vmatprep.subr.bf16.mxu0 %v1912
    %2001 = vmatpush1.bf16.msra.mxu0 %v1911
    %2002 = vmatprep.subr.bf16.mxu0 0
    %2003 = vmatpush1.bf16.msra.mxu0 0
    %2004 = vmatprep.subr.bf16.mxu0 0
    %2005 = vmatpush1.bf16.msra.mxu0 0
    %2006 = vmatprep.subr.bf16.mxu0 0
    %2007 = vmatpush1.bf16.msra.mxu0 0
    %2008 = vmatprep.subr.bf16.mxu0 0
    %2009 = vmatpush1.bf16.msra.mxu0 0
    %2010 = vmatprep.subr.bf16.mxu0 0
    %2011 = vmatpush1.bf16.msra.mxu0 0
    %2012 = vmatprep.subr.bf16.mxu0 0
    %2013 = vmatpush1.bf16.msra.mxu0 0
    %2014 = vmatprep.subr.bf16.mxu0 0
    %2015 = vmatpush1.bf16.msra.mxu0 0
    %2016 = vmatprep.subr.bf16.mxu0 0
    %2017 = vmatpush1.bf16.msra.mxu0 0
    %2018 = vmatprep.mubr.bf16.mxu0 0
    %2019 = vmatmul.mubr.bf16.gmra.mrb[0].mxu0 %v1752
    %v2020 = vpop.f32.mrb[0].mxu0
    %v2021 = vadd.f32 0.0, %v2020
    %v2022 = vpop.f32.mrb[0].mxu0
    %v2023 = vadd.f32 0.0, %v2022
    %v2024 = vpop.f32.mrb[0].mxu0
    %v2025 = vpop.f32.mrb[0].mxu0
    %2026 = vdwg.mxu0
    %v2027 = vadd.f32 %v514, %v1980
    %v2028 = vadd.f32 %v516, %v1982
    %v2029 = vadd.f32 %v555, %v2021
    %v2030 = vadd.f32 %v557, %v2023
    %v2031 = vmul.f32 %v2027, 0.5
    %v2032 = vmul.f32 %v2028, 0.5
    %v2033 = vmul.f32 %v2029, 0.5
    %v2034 = vtanh.pop %v2031
    %v2035 = vtanh.pop %v2032
    %v2036 = vtanh.pop %v2033
    %v2037 = vmul.f32 %v2034, 0.5
    %v2038 = vmul.f32 %v2035, 0.5
    %v2039 = vmul.f32 %v2036, 0.5
    %v2040 = vadd.f32 %v2037, 0.5
    %v2041 = vadd.f32 %v2038, 0.5
    %v2042 = vadd.f32 %v2039, 0.5
    %v2043 = vtanh.pop %v2030
    %v2044 = vmul.f32 %v2041, %v1748
    %v2045 = vmul.f32 %v2040, %v2043
    %v2046 = vadd.f32 %v2044, %v2045
    %v2047 = vtanh.pop %v2046
    %v2048 = vmul.f32 %v2042, %v2047
    %2049 = vst [vmem:[#allocation2 + $0x20] sm:$0xff] %v2048
    %v2050 = vpack.c.bf16 %v2048, %v2048
    %v2051 = vld [vmem:[#allocation5] sm:$0xff]
    %v2052 = vld [vmem:[#allocation5 + $0x8] sm:$0xff]
    %v2053 = vld [vmem:[#allocation5 + $0x10] sm:$0xff]
    %v2054 = vld [vmem:[#allocation5 + $0x18] sm:$0xff]
    %v2055 = vld [vmem:[#allocation5 + $0x20] sm:$0xff]
    %v2056 = vld [vmem:[#allocation5 + $0x28] sm:$0xff]
    %v2057 = vld [vmem:[#allocation5 + $0x30] sm:$0xff]
    %v2058 = vld [vmem:[#allocation5 + $0x38] sm:$0xff]
    %v2059 = vld [vmem:[#allocation5 + $0x40] sm:$0xff]
    %v2060 = vld [vmem:[#allocation5 + $0x48] sm:$0xff]
    %v2061 = vld [vmem:[#allocation5 + $0x50] sm:$0xff]
    %v2062 = vld [vmem:[#allocation5 + $0x58] sm:$0xff]
    %v2063 = vld [vmem:[#allocation5 + $0x60] sm:$0xff]
    %v2064 = vld [vmem:[#allocation5 + $0x68] sm:$0xff]
    %v2065 = vld [vmem:[#allocation5 + $0x70] sm:$0xff]
    %v2066 = vld [vmem:[#allocation5 + $0x78] sm:$0xff]
    %v2067 = vld [vmem:[#allocation5 + $0x80] sm:$0xff]
    %v2068 = vld [vmem:[#allocation5 + $0x88] sm:$0xff]
    %v2069 = vld [vmem:[#allocation5 + $0x90] sm:$0xff]
    %v2070 = vld [vmem:[#allocation5 + $0x98] sm:$0xff]
    %v2071 = vld [vmem:[#allocation5 + $0xa0] sm:$0xff]
    %v2072 = vld [vmem:[#allocation5 + $0xa8] sm:$0xff]
    %v2073 = vld [vmem:[#allocation5 + $0xb0] sm:$0xff]
    %v2074 = vld [vmem:[#allocation5 + $0xb8] sm:$0xff]
    %v2075 = vld [vmem:[#allocation5 + $0xc0] sm:$0xff]
    %v2076 = vld [vmem:[#allocation5 + $0xc8] sm:$0xff]
    %v2077 = vld [vmem:[#allocation5 + $0xd0] sm:$0xff]
    %v2078 = vld [vmem:[#allocation5 + $0xd8] sm:$0xff]
    %v2079 = vld [vmem:[#allocation5 + $0xe0] sm:$0xff]
    %v2080 = vld [vmem:[#allocation5 + $0xe8] sm:$0xff]
    %v2081 = vld [vmem:[#allocation5 + $0xf0] sm:$0xff]
    %v2082 = vld [vmem:[#allocation5 + $0xf8] sm:$0xff]
    %v2115 = vunpack.c.l.b16 %v2051
    %v2116 = vunpack.c.h.b16 %v2051
    %v2117 = vunpack.c.l.b16 %v2052
    %v2118 = vunpack.c.h.b16 %v2052
    %v2119 = vunpack.c.l.b16 %v2053
    %v2120 = vunpack.c.h.b16 %v2053
    %v2121 = vunpack.c.l.b16 %v2054
    %v2122 = vunpack.c.h.b16 %v2054
    %v2123 = vunpack.c.l.b16 %v2055
    %v2124 = vunpack.c.h.b16 %v2055
    %v2125 = vunpack.c.l.b16 %v2056
    %v2126 = vunpack.c.h.b16 %v2056
    %v2127 = vunpack.c.l.b16 %v2057
    %v2128 = vunpack.c.h.b16 %v2057
    %v2129 = vunpack.c.l.b16 %v2058
    %v2130 = vunpack.c.h.b16 %v2058
    %v2131 = vunpack.c.l.b16 %v2059
    %v2132 = vunpack.c.h.b16 %v2059
    %v2133 = vunpack.c.l.b16 %v2060
    %v2134 = vunpack.c.h.b16 %v2060
    %v2135 = vunpack.c.l.b16 %v2061
    %v2136 = vunpack.c.h.b16 %v2061
    %v2137 = vunpack.c.l.b16 %v2062
    %v2138 = vunpack.c.h.b16 %v2062
    %v2139 = vunpack.c.l.b16 %v2063
    %v2140 = vunpack.c.h.b16 %v2063
    %v2141 = vunpack.c.l.b16 %v2064
    %v2142 = vunpack.c.h.b16 %v2064
    %v2143 = vunpack.c.l.b16 %v2065
    %v2144 = vunpack.c.h.b16 %v2065
    %v2145 = vunpack.c.l.b16 %v2066
    %v2146 = vunpack.c.h.b16 %v2066
    %v2147 = vunpack.c.l.b16 %v2067
    %v2148 = vunpack.c.h.b16 %v2067
    %v2149 = vunpack.c.l.b16 %v2068
    %v2150 = vunpack.c.h.b16 %v2068
    %v2151 = vunpack.c.l.b16 %v2069
    %v2152 = vunpack.c.h.b16 %v2069
    %v2153 = vunpack.c.l.b16 %v2070
    %v2154 = vunpack.c.h.b16 %v2070
    %v2155 = vunpack.c.l.b16 %v2071
    %v2156 = vunpack.c.h.b16 %v2071
    %v2157 = vunpack.c.l.b16 %v2072
    %v2158 = vunpack.c.h.b16 %v2072
    %v2159 = vunpack.c.l.b16 %v2073
    %v2160 = vunpack.c.h.b16 %v2073
    %v2161 = vunpack.c.l.b16 %v2074
    %v2162 = vunpack.c.h.b16 %v2074
    %v2163 = vunpack.c.l.b16 %v2075
    %v2164 = vunpack.c.h.b16 %v2075
    %v2165 = vunpack.c.l.b16 %v2076
    %v2166 = vunpack.c.h.b16 %v2076
    %v2167 = vunpack.c.l.b16 %v2077
    %v2168 = vunpack.c.h.b16 %v2077
    %v2169 = vunpack.c.l.b16 %v2078
    %v2170 = vunpack.c.h.b16 %v2078
    %v2171 = vunpack.c.l.b16 %v2079
    %v2172 = vunpack.c.h.b16 %v2079
    %v2173 = vunpack.c.l.b16 %v2080
    %v2174 = vunpack.c.h.b16 %v2080
    %v2175 = vunpack.c.l.b16 %v2081
    %v2176 = vunpack.c.h.b16 %v2081
    %v2177 = vunpack.c.l.b16 %v2082
    %v2178 = vunpack.c.h.b16 %v2082
    %v2179 = vpack.c.b16 %v2119, %v2115
    %v2180 = vpack.c.b16 %v2120, %v2116
    %v2181 = vpack.c.b16 %v2121, %v2117
    %v2182 = vpack.c.b16 %v2122, %v2118
    %v2183 = vpack.c.b16 %v2127, %v2123
    %v2184 = vpack.c.b16 %v2128, %v2124
    %v2185 = vpack.c.b16 %v2129, %v2125
    %v2186 = vpack.c.b16 %v2130, %v2126
    %v2187 = vpack.c.b16 %v2135, %v2131
    %v2188 = vpack.c.b16 %v2136, %v2132
    %v2189 = vpack.c.b16 %v2137, %v2133
    %v2190 = vpack.c.b16 %v2138, %v2134
    %v2191 = vpack.c.b16 %v2143, %v2139
    %v2192 = vpack.c.b16 %v2144, %v2140
    %v2193 = vpack.c.b16 %v2145, %v2141
    %v2194 = vpack.c.b16 %v2146, %v2142
    %v2195 = vpack.c.b16 %v2151, %v2147
    %v2196 = vpack.c.b16 %v2152, %v2148
    %v2197 = vpack.c.b16 %v2153, %v2149
    %v2198 = vpack.c.b16 %v2154, %v2150
    %v2199 = vpack.c.b16 %v2159, %v2155
    %v2200 = vpack.c.b16 %v2160, %v2156
    %v2201 = vpack.c.b16 %v2161, %v2157
    %v2202 = vpack.c.b16 %v2162, %v2158
    %v2203 = vpack.c.b16 %v2167, %v2163
    %v2204 = vpack.c.b16 %v2168, %v2164
    %v2205 = vpack.c.b16 %v2169, %v2165
    %v2206 = vpack.c.b16 %v2170, %v2166
    %v2207 = vpack.c.b16 %v2175, %v2171
    %v2208 = vpack.c.b16 %v2176, %v2172
    %v2209 = vpack.c.b16 %v2177, %v2173
    %v2210 = vpack.c.b16 %v2178, %v2174
    %2243 = vmatprep.subr.bf16.mxu0 %v2180
    %2244 = vmatpush1.bf16.msra.mxu0 %v2179
    %2245 = vmatprep.subr.bf16.mxu0 %v2184
    %2246 = vmatpush1.bf16.msra.mxu0 %v2183
    %2247 = vmatprep.subr.bf16.mxu0 %v2188
    %2248 = vmatpush1.bf16.msra.mxu0 %v2187
    %2249 = vmatprep.subr.bf16.mxu0 %v2192
    %2250 = vmatpush1.bf16.msra.mxu0 %v2191
    %2251 = vmatprep.subr.bf16.mxu0 %v2196
    %2252 = vmatpush1.bf16.msra.mxu0 %v2195
    %2253 = vmatprep.subr.bf16.mxu0 %v2200
    %2254 = vmatpush1.bf16.msra.mxu0 %v2199
    %2255 = vmatprep.subr.bf16.mxu0 %v2204
    %2256 = vmatpush1.bf16.msra.mxu0 %v2203
    %2257 = vmatprep.subr.bf16.mxu0 %v2208
    %2258 = vmatpush1.bf16.msra.mxu0 %v2207
    %2259 = vmatprep.subr.bf16.mxu0 0
    %2260 = vmatpush1.bf16.msra.mxu0 0
    %2261 = vmatprep.subr.bf16.mxu0 0
    %2262 = vmatpush1.bf16.msra.mxu0 0
    %2263 = vmatprep.subr.bf16.mxu0 0
    %2264 = vmatpush1.bf16.msra.mxu0 0
    %2265 = vmatprep.subr.bf16.mxu0 0
    %2266 = vmatpush1.bf16.msra.mxu0 0
    %2267 = vmatprep.subr.bf16.mxu0 0
    %2268 = vmatpush1.bf16.msra.mxu0 0
    %2269 = vmatprep.subr.bf16.mxu0 0
    %2270 = vmatpush1.bf16.msra.mxu0 0
    %2271 = vmatprep.subr.bf16.mxu0 0
    %2272 = vmatpush1.bf16.msra.mxu0 0
    %2273 = vmatprep.subr.bf16.mxu0 0
    %2274 = vmatpush1.bf16.msra.mxu0 0
    %2275 = vmatprep.mubr.bf16.mxu0 0
    %2276 = vmatmul.mubr.bf16.gmra.mrb[0].mxu0 %v2050
    %v2277 = vpop.f32.mrb[0].mxu0
    %v2278 = vadd.f32 0.0, %v2277
    %v2279 = vpop.f32.mrb[0].mxu0
    %v2280 = vadd.f32 0.0, %v2279
    %v2281 = vpop.f32.mrb[0].mxu0
    %v2282 = vpop.f32.mrb[0].mxu0
    %2283 = vdwg.mxu0
    %2284 = vmatprep.subr.bf16.mxu0 %v2182
    %2285 = vmatpush1.bf16.msra.mxu0 %v2181
    %2286 = vmatprep.subr.bf16.mxu0 %v2186
    %2287 = vmatpush1.bf16.msra.mxu0 %v2185
    %2288 = vmatprep.subr.bf16.mxu0 %v2190
    %2289 = vmatpush1.bf16.msra.mxu0 %v2189
    %2290 = vmatprep.subr.bf16.mxu0 %v2194
    %2291 = vmatpush1.bf16.msra.mxu0 %v2193
    %2292 = vmatprep.subr.bf16.mxu0 %v2198
    %2293 = vmatpush1.bf16.msra.mxu0 %v2197
    %2294 = vmatprep.subr.bf16.mxu0 %v2202
    %2295 = vmatpush1.bf16.msra.mxu0 %v2201
    %2296 = vmatprep.subr.bf16.mxu0 %v2206
    %2297 = vmatpush1.bf16.msra.mxu0 %v2205
    %2298 = vmatprep.subr.bf16.mxu0 %v2210
    %2299 = vmatpush1.bf16.msra.mxu0 %v2209
    %2300 = vmatprep.subr.bf16.mxu0 0
    %2301 = vmatpush1.bf16.msra.mxu0 0
    %2302 = vmatprep.subr.bf16.mxu0 0
    %2303 = vmatpush1.bf16.msra.mxu0 0
    %2304 = vmatprep.subr.bf16.mxu0 0
    %2305 = vmatpush1.bf16.msra.mxu0 0
    %2306 = vmatprep.subr.bf16.mxu0 0
    %2307 = vmatpush1.bf16.msra.mxu0 0
    %2308 = vmatprep.subr.bf16.mxu0 0
    %2309 = vmatpush1.bf16.msra.mxu0 0
    %2310 = vmatprep.subr.bf16.mxu0 0
    %2311 = vmatpush1.bf16.msra.mxu0 0
    %2312 = vmatprep.subr.bf16.mxu0 0
    %2313 = vmatpush1.bf16.msra.mxu0 0
    %2314 = vmatprep.subr.bf16.mxu0 0
    %2315 = vmatpush1.bf16.msra.mxu0 0
    %2316 = vmatprep.mubr.bf16.mxu0 0
    %2317 = vmatmul.mubr.bf16.gmra.mrb[0].mxu0 %v2050
    %v2318 = vpop.f32.mrb[0].mxu0
    %v2319 = vadd.f32 0.0, %v2318
    %v2320 = vpop.f32.mrb[0].mxu0
    %v2321 = vadd.f32 0.0, %v2320
    %v2322 = vpop.f32.mrb[0].mxu0
    %v2323 = vpop.f32.mrb[0].mxu0
    %2324 = vdwg.mxu0
    %v2325 = vadd.f32 %v514, %v2278
    %v2326 = vadd.f32 %v516, %v2280
    %v2327 = vadd.f32 %v555, %v2319
    %v2328 = vadd.f32 %v557, %v2321
    %v2329 = vmul.f32 %v2325, 0.5
    %v2330 = vmul.f32 %v2326, 0.5
    %v2331 = vmul.f32 %v2327, 0.5
    %v2332 = vtanh.pop %v2329
    %v2333 = vtanh.pop %v2330
    %v2334 = vtanh.pop %v2331
    %v2335 = vmul.f32 %v2332, 0.5
    %v2336 = vmul.f32 %v2333, 0.5
    %v2337 = vmul.f32 %v2334, 0.5
    %v2338 = vadd.f32 %v2335, 0.5
    %v2339 = vadd.f32 %v2336, 0.5
    %v2340 = vadd.f32 %v2337, 0.5
    %v2341 = vtanh.pop %v2328
    %v2342 = vmul.f32 %v2339, %v2046
    %v2343 = vmul.f32 %v2338, %v2341
    %v2344 = vadd.f32 %v2342, %v2343
    %v2345 = vtanh.pop %v2344
    %v2346 = vmul.f32 %v2340, %v2345
    %2347 = vst [vmem:[#allocation2 + $0x28] sm:$0xff] %v2346
    %v2348 = vpack.c.bf16 %v2346, %v2346
    %v2349 = vld [vmem:[#allocation5] sm:$0xff]
    %v2350 = vld [vmem:[#allocation5 + $0x8] sm:$0xff]
    %v2351 = vld [vmem:[#allocation5 + $0x10] sm:$0xff]
    %v2352 = vld [vmem:[#allocation5 + $0x18] sm:$0xff]
    %v2353 = vld [vmem:[#allocation5 + $0x20] sm:$0xff]
    %v2354 = vld [vmem:[#allocation5 + $0x28] sm:$0xff]
    %v2355 = vld [vmem:[#allocation5 + $0x30] sm:$0xff]
    %v2356 = vld [vmem:[#allocation5 + $0x38] sm:$0xff]
    %v2357 = vld [vmem:[#allocation5 + $0x40] sm:$0xff]
    %v2358 = vld [vmem:[#allocation5 + $0x48] sm:$0xff]
    %v2359 = vld [vmem:[#allocation5 + $0x50] sm:$0xff]
    %v2360 = vld [vmem:[#allocation5 + $0x58] sm:$0xff]
    %v2361 = vld [vmem:[#allocation5 + $0x60] sm:$0xff]
    %v2362 = vld [vmem:[#allocation5 + $0x68] sm:$0xff]
    %v2363 = vld [vmem:[#allocation5 + $0x70] sm:$0xff]
    %v2364 = vld [vmem:[#allocation5 + $0x78] sm:$0xff]
    %v2365 = vld [vmem:[#allocation5 + $0x80] sm:$0xff]
    %v2366 = vld [vmem:[#allocation5 + $0x88] sm:$0xff]
    %v2367 = vld [vmem:[#allocation5 + $0x90] sm:$0xff]
    %v2368 = vld [vmem:[#allocation5 + $0x98] sm:$0xff]
    %v2369 = vld [vmem:[#allocation5 + $0xa0] sm:$0xff]
    %v2370 = vld [vmem:[#allocation5 + $0xa8] sm:$0xff]
    %v2371 = vld [vmem:[#allocation5 + $0xb0] sm:$0xff]
    %v2372 = vld [vmem:[#allocation5 + $0xb8] sm:$0xff]
    %v2373 = vld [vmem:[#allocation5 + $0xc0] sm:$0xff]
    %v2374 = vld [vmem:[#allocation5 + $0xc8] sm:$0xff]
    %v2375 = vld [vmem:[#allocation5 + $0xd0] sm:$0xff]
    %v2376 = vld [vmem:[#allocation5 + $0xd8] sm:$0xff]
    %v2377 = vld [vmem:[#allocation5 + $0xe0] sm:$0xff]
    %v2378 = vld [vmem:[#allocation5 + $0xe8] sm:$0xff]
    %v2379 = vld [vmem:[#allocation5 + $0xf0] sm:$0xff]
    %v2380 = vld [vmem:[#allocation5 + $0xf8] sm:$0xff]
    %v2413 = vunpack.c.l.b16 %v2349
    %v2414 = vunpack.c.h.b16 %v2349
    %v2415 = vunpack.c.l.b16 %v2350
    %v2416 = vunpack.c.h.b16 %v2350
    %v2417 = vunpack.c.l.b16 %v2351
    %v2418 = vunpack.c.h.b16 %v2351
    %v2419 = vunpack.c.l.b16 %v2352
    %v2420 = vunpack.c.h.b16 %v2352
    %v2421 = vunpack.c.l.b16 %v2353
    %v2422 = vunpack.c.h.b16 %v2353
    %v2423 = vunpack.c.l.b16 %v2354
    %v2424 = vunpack.c.h.b16 %v2354
    %v2425 = vunpack.c.l.b16 %v2355
    %v2426 = vunpack.c.h.b16 %v2355
    %v2427 = vunpack.c.l.b16 %v2356
    %v2428 = vunpack.c.h.b16 %v2356
    %v2429 = vunpack.c.l.b16 %v2357
    %v2430 = vunpack.c.h.b16 %v2357
    %v2431 = vunpack.c.l.b16 %v2358
    %v2432 = vunpack.c.h.b16 %v2358
    %v2433 = vunpack.c.l.b16 %v2359
    %v2434 = vunpack.c.h.b16 %v2359
    %v2435 = vunpack.c.l.b16 %v2360
    %v2436 = vunpack.c.h.b16 %v2360
    %v2437 = vunpack.c.l.b16 %v2361
    %v2438 = vunpack.c.h.b16 %v2361
    %v2439 = vunpack.c.l.b16 %v2362
    %v2440 = vunpack.c.h.b16 %v2362
    %v2441 = vunpack.c.l.b16 %v2363
    %v2442 = vunpack.c.h.b16 %v2363
    %v2443 = vunpack.c.l.b16 %v2364
    %v2444 = vunpack.c.h.b16 %v2364
    %v2445 = vunpack.c.l.b16 %v2365
    %v2446 = vunpack.c.h.b16 %v2365
    %v2447 = vunpack.c.l.b16 %v2366
    %v2448 = vunpack.c.h.b16 %v2366
    %v2449 = vunpack.c.l.b16 %v2367
    %v2450 = vunpack.c.h.b16 %v2367
    %v2451 = vunpack.c.l.b16 %v2368
    %v2452 = vunpack.c.h.b16 %v2368
    %v2453 = vunpack.c.l.b16 %v2369
    %v2454 = vunpack.c.h.b16 %v2369
    %v2455 = vunpack.c.l.b16 %v2370
    %v2456 = vunpack.c.h.b16 %v2370
    %v2457 = vunpack.c.l.b16 %v2371
    %v2458 = vunpack.c.h.b16 %v2371
    %v2459 = vunpack.c.l.b16 %v2372
    %v2460 = vunpack.c.h.b16 %v2372
    %v2461 = vunpack.c.l.b16 %v2373
    %v2462 = vunpack.c.h.b16 %v2373
    %v2463 = vunpack.c.l.b16 %v2374
    %v2464 = vunpack.c.h.b16 %v2374
    %v2465 = vunpack.c.l.b16 %v2375
    %v2466 = vunpack.c.h.b16 %v2375
    %v2467 = vunpack.c.l.b16 %v2376
    %v2468 = vunpack.c.h.b16 %v2376
    %v2469 = vunpack.c.l.b16 %v2377
    %v2470 = vunpack.c.h.b16 %v2377
    %v2471 = vunpack.c.l.b16 %v2378
    %v2472 = vunpack.c.h.b16 %v2378
    %v2473 = vunpack.c.l.b16 %v2379
    %v2474 = vunpack.c.h.b16 %v2379
    %v2475 = vunpack.c.l.b16 %v2380
    %v2476 = vunpack.c.h.b16 %v2380
    %v2477 = vpack.c.b16 %v2417, %v2413
    %v2478 = vpack.c.b16 %v2418, %v2414
    %v2479 = vpack.c.b16 %v2419, %v2415
    %v2480 = vpack.c.b16 %v2420, %v2416
    %v2481 = vpack.c.b16 %v2425, %v2421
    %v2482 = vpack.c.b16 %v2426, %v2422
    %v2483 = vpack.c.b16 %v2427, %v2423
    %v2484 = vpack.c.b16 %v2428, %v2424
    %v2485 = vpack.c.b16 %v2433, %v2429
    %v2486 = vpack.c.b16 %v2434, %v2430
    %v2487 = vpack.c.b16 %v2435, %v2431
    %v2488 = vpack.c.b16 %v2436, %v2432
    %v2489 = vpack.c.b16 %v2441, %v2437
    %v2490 = vpack.c.b16 %v2442, %v2438
    %v2491 = vpack.c.b16 %v2443, %v2439
    %v2492 = vpack.c.b16 %v2444, %v2440
    %v2493 = vpack.c.b16 %v2449, %v2445
    %v2494 = vpack.c.b16 %v2450, %v2446
    %v2495 = vpack.c.b16 %v2451, %v2447
    %v2496 = vpack.c.b16 %v2452, %v2448
    %v2497 = vpack.c.b16 %v2457, %v2453
    %v2498 = vpack.c.b16 %v2458, %v2454
    %v2499 = vpack.c.b16 %v2459, %v2455
    %v2500 = vpack.c.b16 %v2460, %v2456
    %v2501 = vpack.c.b16 %v2465, %v2461
    %v2502 = vpack.c.b16 %v2466, %v2462
    %v2503 = vpack.c.b16 %v2467, %v2463
    %v2504 = vpack.c.b16 %v2468, %v2464
    %v2505 = vpack.c.b16 %v2473, %v2469
    %v2506 = vpack.c.b16 %v2474, %v2470
    %v2507 = vpack.c.b16 %v2475, %v2471
    %v2508 = vpack.c.b16 %v2476, %v2472
    %2541 = vmatprep.subr.bf16.mxu0 %v2478
    %2542 = vmatpush1.bf16.msra.mxu0 %v2477
    %2543 = vmatprep.subr.bf16.mxu0 %v2482
    %2544 = vmatpush1.bf16.msra.mxu0 %v2481
    %2545 = vmatprep.subr.bf16.mxu0 %v2486
    %2546 = vmatpush1.bf16.msra.mxu0 %v2485
    %2547 = vmatprep.subr.bf16.mxu0 %v2490
    %2548 = vmatpush1.bf16.msra.mxu0 %v2489
    %2549 = vmatprep.subr.bf16.mxu0 %v2494
    %2550 = vmatpush1.bf16.msra.mxu0 %v2493
    %2551 = vmatprep.subr.bf16.mxu0 %v2498
    %2552 = vmatpush1.bf16.msra.mxu0 %v2497
    %2553 = vmatprep.subr.bf16.mxu0 %v2502
    %2554 = vmatpush1.bf16.msra.mxu0 %v2501
    %2555 = vmatprep.subr.bf16.mxu0 %v2506
    %2556 = vmatpush1.bf16.msra.mxu0 %v2505
    %2557 = vmatprep.subr.bf16.mxu0 0
    %2558 = vmatpush1.bf16.msra.mxu0 0
    %2559 = vmatprep.subr.bf16.mxu0 0
    %2560 = vmatpush1.bf16.msra.mxu0 0
    %2561 = vmatprep.subr.bf16.mxu0 0
    %2562 = vmatpush1.bf16.msra.mxu0 0
    %2563 = vmatprep.subr.bf16.mxu0 0
    %2564 = vmatpush1.bf16.msra.mxu0 0
    %2565 = vmatprep.subr.bf16.mxu0 0
    %2566 = vmatpush1.bf16.msra.mxu0 0
    %2567 = vmatprep.subr.bf16.mxu0 0
    %2568 = vmatpush1.bf16.msra.mxu0 0
    %2569 = vmatprep.subr.bf16.mxu0 0
    %2570 = vmatpush1.bf16.msra.mxu0 0
    %2571 = vmatprep.subr.bf16.mxu0 0
    %2572 = vmatpush1.bf16.msra.mxu0 0
    %2573 = vmatprep.mubr.bf16.mxu0 0
    %2574 = vmatmul.mubr.bf16.gmra.mrb[0].mxu0 %v2348
    %v2575 = vpop.f32.mrb[0].mxu0
    %v2576 = vadd.f32 0.0, %v2575
    %v2577 = vpop.f32.mrb[0].mxu0
    %v2578 = vadd.f32 0.0, %v2577
    %v2579 = vpop.f32.mrb[0].mxu0
    %v2580 = vpop.f32.mrb[0].mxu0
    %2581 = vdwg.mxu0
    %2582 = vmatprep.subr.bf16.mxu0 %v2480
    %2583 = vmatpush1.bf16.msra.mxu0 %v2479
    %2584 = vmatprep.subr.bf16.mxu0 %v2484
    %2585 = vmatpush1.bf16.msra.mxu0 %v2483
    %2586 = vmatprep.subr.bf16.mxu0 %v2488
    %2587 = vmatpush1.bf16.msra.mxu0 %v2487
    %2588 = vmatprep.subr.bf16.mxu0 %v2492
    %2589 = vmatpush1.bf16.msra.mxu0 %v2491
    %2590 = vmatprep.subr.bf16.mxu0 %v2496
    %2591 = vmatpush1.bf16.msra.mxu0 %v2495
    %2592 = vmatprep.subr.bf16.mxu0 %v2500
    %2593 = vmatpush1.bf16.msra.mxu0 %v2499
    %2594 = vmatprep.subr.bf16.mxu0 %v2504
    %2595 = vmatpush1.bf16.msra.mxu0 %v2503
    %2596 = vmatprep.subr.bf16.mxu0 %v2508
    %2597 = vmatpush1.bf16.msra.mxu0 %v2507
    %2598 = vmatprep.subr.bf16.mxu0 0
    %2599 = vmatpush1.bf16.msra.mxu0 0
    %2600 = vmatprep.subr.bf16.mxu0 0
    %2601 = vmatpush1.bf16.msra.mxu0 0
    %2602 = vmatprep.subr.bf16.mxu0 0
    %2603 = vmatpush1.bf16.msra.mxu0 0
    %2604 = vmatprep.subr.bf16.mxu0 0
    %2605 = vmatpush1.bf16.msra.mxu0 0
    %2606 = vmatprep.subr.bf16.mxu0 0
    %2607 = vmatpush1.bf16.msra.mxu0 0
    %2608 = vmatprep.subr.bf16.mxu0 0
    %2609 = vmatpush1.bf16.msra.mxu0 0
    %2610 = vmatprep.subr.bf16.mxu0 0
    %2611 = vmatpush1.bf16.msra.mxu0 0
    %2612 = vmatprep.subr.bf16.mxu0 0
    %2613 = vmatpush1.bf16.msra.mxu0 0
    %2614 = vmatprep.mubr.bf16.mxu0 0
    %2615 = vmatmul.mubr.bf16.gmra.mrb[0].mxu0 %v2348
    %v2616 = vpop.f32.mrb[0].mxu0
    %v2617 = vadd.f32 0.0, %v2616
    %v2618 = vpop.f32.mrb[0].mxu0
    %v2619 = vadd.f32 0.0, %v2618
    %v2620 = vpop.f32.mrb[0].mxu0
    %v2621 = vpop.f32.mrb[0].mxu0
    %2622 = vdwg.mxu0
    %v2623 = vadd.f32 %v514, %v2576
    %v2624 = vadd.f32 %v516, %v2578
    %v2625 = vadd.f32 %v555, %v2617
    %v2626 = vadd.f32 %v557, %v2619
    %v2627 = vmul.f32 %v2623, 0.5
    %v2628 = vmul.f32 %v2624, 0.5
    %v2629 = vmul.f32 %v2625, 0.5
    %v2630 = vtanh.pop %v2627
    %v2631 = vtanh.pop %v2628
    %v2632 = vtanh.pop %v2629
    %v2633 = vmul.f32 %v2630, 0.5
    %v2634 = vmul.f32 %v2631, 0.5
    %v2635 = vmul.f32 %v2632, 0.5
    %v2636 = vadd.f32 %v2633, 0.5
    %v2637 = vadd.f32 %v2634, 0.5
    %v2638 = vadd.f32 %v2635, 0.5
    %v2639 = vtanh.pop %v2626
    %v2640 = vmul.f32 %v2637, %v2344
    %v2641 = vmul.f32 %v2636, %v2639
    %v2642 = vadd.f32 %v2640, %v2641
    %v2643 = vtanh.pop %v2642
    %v2644 = vmul.f32 %v2638, %v2643
    %2645 = vst [vmem:[#allocation2 + $0x30] sm:$0xff] %v2644
    %v2646 = vpack.c.bf16 %v2644, %v2644
    %v2647 = vld [vmem:[#allocation5] sm:$0xff]
    %v2648 = vld [vmem:[#allocation5 + $0x8] sm:$0xff]
    %v2649 = vld [vmem:[#allocation5 + $0x10] sm:$0xff]
    %v2650 = vld [vmem:[#allocation5 + $0x18] sm:$0xff]
    %v2651 = vld [vmem:[#allocation5 + $0x20] sm:$0xff]
    %v2652 = vld [vmem:[#allocation5 + $0x28] sm:$0xff]
    %v2653 = vld [vmem:[#allocation5 + $0x30] sm:$0xff]
    %v2654 = vld [vmem:[#allocation5 + $0x38] sm:$0xff]
    %v2655 = vld [vmem:[#allocation5 + $0x40] sm:$0xff]
    %v2656 = vld [vmem:[#allocation5 + $0x48] sm:$0xff]
    %v2657 = vld [vmem:[#allocation5 + $0x50] sm:$0xff]
    %v2658 = vld [vmem:[#allocation5 + $0x58] sm:$0xff]
    %v2659 = vld [vmem:[#allocation5 + $0x60] sm:$0xff]
    %v2660 = vld [vmem:[#allocation5 + $0x68] sm:$0xff]
    %v2661 = vld [vmem:[#allocation5 + $0x70] sm:$0xff]
    %v2662 = vld [vmem:[#allocation5 + $0x78] sm:$0xff]
    %v2663 = vld [vmem:[#allocation5 + $0x80] sm:$0xff]
    %v2664 = vld [vmem:[#allocation5 + $0x88] sm:$0xff]
    %v2665 = vld [vmem:[#allocation5 + $0x90] sm:$0xff]
    %v2666 = vld [vmem:[#allocation5 + $0x98] sm:$0xff]
    %v2667 = vld [vmem:[#allocation5 + $0xa0] sm:$0xff]
    %v2668 = vld [vmem:[#allocation5 + $0xa8] sm:$0xff]
    %v2669 = vld [vmem:[#allocation5 + $0xb0] sm:$0xff]
    %v2670 = vld [vmem:[#allocation5 + $0xb8] sm:$0xff]
    %v2671 = vld [vmem:[#allocation5 + $0xc0] sm:$0xff]
    %v2672 = vld [vmem:[#allocation5 + $0xc8] sm:$0xff]
    %v2673 = vld [vmem:[#allocation5 + $0xd0] sm:$0xff]
    %v2674 = vld [vmem:[#allocation5 + $0xd8] sm:$0xff]
    %v2675 = vld [vmem:[#allocation5 + $0xe0] sm:$0xff]
    %v2676 = vld [vmem:[#allocation5 + $0xe8] sm:$0xff]
    %v2677 = vld [vmem:[#allocation5 + $0xf0] sm:$0xff]
    %v2678 = vld [vmem:[#allocation5 + $0xf8] sm:$0xff]
    %v2711 = vunpack.c.l.b16 %v2647
    %v2712 = vunpack.c.h.b16 %v2647
    %v2713 = vunpack.c.l.b16 %v2648
    %v2714 = vunpack.c.h.b16 %v2648
    %v2715 = vunpack.c.l.b16 %v2649
    %v2716 = vunpack.c.h.b16 %v2649
    %v2717 = vunpack.c.l.b16 %v2650
    %v2718 = vunpack.c.h.b16 %v2650
    %v2719 = vunpack.c.l.b16 %v2651
    %v2720 = vunpack.c.h.b16 %v2651
    %v2721 = vunpack.c.l.b16 %v2652
    %v2722 = vunpack.c.h.b16 %v2652
    %v2723 = vunpack.c.l.b16 %v2653
    %v2724 = vunpack.c.h.b16 %v2653
    %v2725 = vunpack.c.l.b16 %v2654
    %v2726 = vunpack.c.h.b16 %v2654
    %v2727 = vunpack.c.l.b16 %v2655
    %v2728 = vunpack.c.h.b16 %v2655
    %v2729 = vunpack.c.l.b16 %v2656
    %v2730 = vunpack.c.h.b16 %v2656
    %v2731 = vunpack.c.l.b16 %v2657
    %v2732 = vunpack.c.h.b16 %v2657
    %v2733 = vunpack.c.l.b16 %v2658
    %v2734 = vunpack.c.h.b16 %v2658
    %v2735 = vunpack.c.l.b16 %v2659
    %v2736 = vunpack.c.h.b16 %v2659
    %v2737 = vunpack.c.l.b16 %v2660
    %v2738 = vunpack.c.h.b16 %v2660
    %v2739 = vunpack.c.l.b16 %v2661
    %v2740 = vunpack.c.h.b16 %v2661
    %v2741 = vunpack.c.l.b16 %v2662
    %v2742 = vunpack.c.h.b16 %v2662
    %v2743 = vunpack.c.l.b16 %v2663
    %v2744 = vunpack.c.h.b16 %v2663
    %v2745 = vunpack.c.l.b16 %v2664
    %v2746 = vunpack.c.h.b16 %v2664
    %v2747 = vunpack.c.l.b16 %v2665
    %v2748 = vunpack.c.h.b16 %v2665
    %v2749 = vunpack.c.l.b16 %v2666
    %v2750 = vunpack.c.h.b16 %v2666
    %v2751 = vunpack.c.l.b16 %v2667
    %v2752 = vunpack.c.h.b16 %v2667
    %v2753 = vunpack.c.l.b16 %v2668
    %v2754 = vunpack.c.h.b16 %v2668
    %v2755 = vunpack.c.l.b16 %v2669
    %v2756 = vunpack.c.h.b16 %v2669
    %v2757 = vunpack.c.l.b16 %v2670
    %v2758 = vunpack.c.h.b16 %v2670
    %v2759 = vunpack.c.l.b16 %v2671
    %v2760 = vunpack.c.h.b16 %v2671
    %v2761 = vunpack.c.l.b16 %v2672
    %v2762 = vunpack.c.h.b16 %v2672
    %v2763 = vunpack.c.l.b16 %v2673
    %v2764 = vunpack.c.h.b16 %v2673
    %v2765 = vunpack.c.l.b16 %v2674
    %v2766 = vunpack.c.h.b16 %v2674
    %v2767 = vunpack.c.l.b16 %v2675
    %v2768 = vunpack.c.h.b16 %v2675
    %v2769 = vunpack.c.l.b16 %v2676
    %v2770 = vunpack.c.h.b16 %v2676
    %v2771 = vunpack.c.l.b16 %v2677
    %v2772 = vunpack.c.h.b16 %v2677
    %v2773 = vunpack.c.l.b16 %v2678
    %v2774 = vunpack.c.h.b16 %v2678
    %v2775 = vpack.c.b16 %v2715, %v2711
    %v2776 = vpack.c.b16 %v2716, %v2712
    %v2777 = vpack.c.b16 %v2717, %v2713
    %v2778 = vpack.c.b16 %v2718, %v2714
    %v2779 = vpack.c.b16 %v2723, %v2719
    %v2780 = vpack.c.b16 %v2724, %v2720
    %v2781 = vpack.c.b16 %v2725, %v2721
    %v2782 = vpack.c.b16 %v2726, %v2722
    %v2783 = vpack.c.b16 %v2731, %v2727
    %v2784 = vpack.c.b16 %v2732, %v2728
    %v2785 = vpack.c.b16 %v2733, %v2729
    %v2786 = vpack.c.b16 %v2734, %v2730
    %v2787 = vpack.c.b16 %v2739, %v2735
    %v2788 = vpack.c.b16 %v2740, %v2736
    %v2789 = vpack.c.b16 %v2741, %v2737
    %v2790 = vpack.c.b16 %v2742, %v2738
    %v2791 = vpack.c.b16 %v2747, %v2743
    %v2792 = vpack.c.b16 %v2748, %v2744
    %v2793 = vpack.c.b16 %v2749, %v2745
    %v2794 = vpack.c.b16 %v2750, %v2746
    %v2795 = vpack.c.b16 %v2755, %v2751
    %v2796 = vpack.c.b16 %v2756, %v2752
    %v2797 = vpack.c.b16 %v2757, %v2753
    %v2798 = vpack.c.b16 %v2758, %v2754
    %v2799 = vpack.c.b16 %v2763, %v2759
    %v2800 = vpack.c.b16 %v2764, %v2760
    %v2801 = vpack.c.b16 %v2765, %v2761
    %v2802 = vpack.c.b16 %v2766, %v2762
    %v2803 = vpack.c.b16 %v2771, %v2767
    %v2804 = vpack.c.b16 %v2772, %v2768
    %v2805 = vpack.c.b16 %v2773, %v2769
    %v2806 = vpack.c.b16 %v2774, %v2770
    %2839 = vmatprep.subr.bf16.mxu0 %v2776
    %2840 = vmatpush1.bf16.msra.mxu0 %v2775
    %2841 = vmatprep.subr.bf16.mxu0 %v2780
    %2842 = vmatpush1.bf16.msra.mxu0 %v2779
    %2843 = vmatprep.subr.bf16.mxu0 %v2784
    %2844 = vmatpush1.bf16.msra.mxu0 %v2783
    %2845 = vmatprep.subr.bf16.mxu0 %v2788
    %2846 = vmatpush1.bf16.msra.mxu0 %v2787
    %2847 = vmatprep.subr.bf16.mxu0 %v2792
    %2848 = vmatpush1.bf16.msra.mxu0 %v2791
    %2849 = vmatprep.subr.bf16.mxu0 %v2796
    %2850 = vmatpush1.bf16.msra.mxu0 %v2795
    %2851 = vmatprep.subr.bf16.mxu0 %v2800
    %2852 = vmatpush1.bf16.msra.mxu0 %v2799
    %2853 = vmatprep.subr.bf16.mxu0 %v2804
    %2854 = vmatpush1.bf16.msra.mxu0 %v2803
    %2855 = vmatprep.subr.bf16.mxu0 0
    %2856 = vmatpush1.bf16.msra.mxu0 0
    %2857 = vmatprep.subr.bf16.mxu0 0
    %2858 = vmatpush1.bf16.msra.mxu0 0
    %2859 = vmatprep.subr.bf16.mxu0 0
    %2860 = vmatpush1.bf16.msra.mxu0 0
    %2861 = vmatprep.subr.bf16.mxu0 0
    %2862 = vmatpush1.bf16.msra.mxu0 0
    %2863 = vmatprep.subr.bf16.mxu0 0
    %2864 = vmatpush1.bf16.msra.mxu0 0
    %2865 = vmatprep.subr.bf16.mxu0 0
    %2866 = vmatpush1.bf16.msra.mxu0 0
    %2867 = vmatprep.subr.bf16.mxu0 0
    %2868 = vmatpush1.bf16.msra.mxu0 0
    %2869 = vmatprep.subr.bf16.mxu0 0
    %2870 = vmatpush1.bf16.msra.mxu0 0
    %2871 = vmatprep.mubr.bf16.mxu0 0
    %2872 = vmatmul.mubr.bf16.gmra.mrb[0].mxu0 %v2646
    %v2873 = vpop.f32.mrb[0].mxu0
    %v2874 = vadd.f32 0.0, %v2873
    %v2875 = vpop.f32.mrb[0].mxu0
    %v2876 = vadd.f32 0.0, %v2875
    %v2877 = vpop.f32.mrb[0].mxu0
    %v2878 = vpop.f32.mrb[0].mxu0
    %2879 = vdwg.mxu0
    %2880 = vmatprep.subr.bf16.mxu0 %v2778
    %2881 = vmatpush1.bf16.msra.mxu0 %v2777
    %2882 = vmatprep.subr.bf16.mxu0 %v2782
    %2883 = vmatpush1.bf16.msra.mxu0 %v2781
    %2884 = vmatprep.subr.bf16.mxu0 %v2786
    %2885 = vmatpush1.bf16.msra.mxu0 %v2785
    %2886 = vmatprep.subr.bf16.mxu0 %v2790
    %2887 = vmatpush1.bf16.msra.mxu0 %v2789
    %2888 = vmatprep.subr.bf16.mxu0 %v2794
    %2889 = vmatpush1.bf16.msra.mxu0 %v2793
    %2890 = vmatprep.subr.bf16.mxu0 %v2798
    %2891 = vmatpush1.bf16.msra.mxu0 %v2797
    %2892 = vmatprep.subr.bf16.mxu0 %v2802
    %2893 = vmatpush1.bf16.msra.mxu0 %v2801
    %2894 = vmatprep.subr.bf16.mxu0 %v2806
    %2895 = vmatpush1.bf16.msra.mxu0 %v2805
    %2896 = vmatprep.subr.bf16.mxu0 0
    %2897 = vmatpush1.bf16.msra.mxu0 0
    %2898 = vmatprep.subr.bf16.mxu0 0
    %2899 = vmatpush1.bf16.msra.mxu0 0
    %2900 = vmatprep.subr.bf16.mxu0 0
    %2901 = vmatpush1.bf16.msra.mxu0 0
    %2902 = vmatprep.subr.bf16.mxu0 0
    %2903 = vmatpush1.bf16.msra.mxu0 0
    %2904 = vmatprep.subr.bf16.mxu0 0
    %2905 = vmatpush1.bf16.msra.mxu0 0
    %2906 = vmatprep.subr.bf16.mxu0 0
    %2907 = vmatpush1.bf16.msra.mxu0 0
    %2908 = vmatprep.subr.bf16.mxu0 0
    %2909 = vmatpush1.bf16.msra.mxu0 0
    %2910 = vmatprep.subr.bf16.mxu0 0
    %2911 = vmatpush1.bf16.msra.mxu0 0
    %2912 = vmatprep.mubr.bf16.mxu0 0
    %2913 = vmatmul.mubr.bf16.gmra.mrb[0].mxu0 %v2646
    %v2914 = vpop.f32.mrb[0].mxu0
    %v2915 = vadd.f32 0.0, %v2914
    %v2916 = vpop.f32.mrb[0].mxu0
    %v2917 = vadd.f32 0.0, %v2916
    %v2918 = vpop.f32.mrb[0].mxu0
    %v2919 = vpop.f32.mrb[0].mxu0
    %2920 = vdwg.mxu0
    %v2921 = vadd.f32 %v514, %v2874
    %v2922 = vadd.f32 %v516, %v2876
    %v2923 = vadd.f32 %v555, %v2915
    %v2924 = vadd.f32 %v557, %v2917
    %v2925 = vmul.f32 %v2921, 0.5
    %v2926 = vmul.f32 %v2922, 0.5
    %v2927 = vmul.f32 %v2923, 0.5
    %v2928 = vtanh.pop %v2925
    %v2929 = vtanh.pop %v2926
    %v2930 = vtanh.pop %v2927
    %v2931 = vmul.f32 %v2928, 0.5
    %v2932 = vmul.f32 %v2929, 0.5
    %v2933 = vmul.f32 %v2930, 0.5
    %v2934 = vadd.f32 %v2931, 0.5
    %v2935 = vadd.f32 %v2932, 0.5
    %v2936 = vadd.f32 %v2933, 0.5
    %v2937 = vtanh.pop %v2924
    %v2938 = vmul.f32 %v2935, %v2642
    %v2939 = vmul.f32 %v2934, %v2937
    %v2940 = vadd.f32 %v2938, %v2939
    %v2941 = vtanh.pop %v2940
    %v2942 = vmul.f32 %v2936, %v2941
    %2943 = vst [vmem:[#allocation2 + $0x38] sm:$0xff] %v2942
    %v2944 = vpack.c.bf16 %v2942, %v2942
    %v2945 = vld [vmem:[#allocation5] sm:$0xff]
    %v2946 = vld [vmem:[#allocation5 + $0x8] sm:$0xff]
    %v2947 = vld [vmem:[#allocation5 + $0x10] sm:$0xff]
    %v2948 = vld [vmem:[#allocation5 + $0x18] sm:$0xff]
    %v2949 = vld [vmem:[#allocation5 + $0x20] sm:$0xff]
    %v2950 = vld [vmem:[#allocation5 + $0x28] sm:$0xff]
    %v2951 = vld [vmem:[#allocation5 + $0x30] sm:$0xff]
    %v2952 = vld [vmem:[#allocation5 + $0x38] sm:$0xff]
    %v2953 = vld [vmem:[#allocation5 + $0x40] sm:$0xff]
    %v2954 = vld [vmem:[#allocation5 + $0x48] sm:$0xff]
    %v2955 = vld [vmem:[#allocation5 + $0x50] sm:$0xff]
    %v2956 = vld [vmem:[#allocation5 + $0x58] sm:$0xff]
    %v2957 = vld [vmem:[#allocation5 + $0x60] sm:$0xff]
    %v2958 = vld [vmem:[#allocation5 + $0x68] sm:$0xff]
    %v2959 = vld [vmem:[#allocation5 + $0x70] sm:$0xff]
    %v2960 = vld [vmem:[#allocation5 + $0x78] sm:$0xff]
    %v2961 = vld [vmem:[#allocation5 + $0x80] sm:$0xff]
    %v2962 = vld [vmem:[#allocation5 + $0x88] sm:$0xff]
    %v2963 = vld [vmem:[#allocation5 + $0x90] sm:$0xff]
    %v2964 = vld [vmem:[#allocation5 + $0x98] sm:$0xff]
    %v2965 = vld [vmem:[#allocation5 + $0xa0] sm:$0xff]
    %v2966 = vld [vmem:[#allocation5 + $0xa8] sm:$0xff]
    %v2967 = vld [vmem:[#allocation5 + $0xb0] sm:$0xff]
    %v2968 = vld [vmem:[#allocation5 + $0xb8] sm:$0xff]
    %v2969 = vld [vmem:[#allocation5 + $0xc0] sm:$0xff]
    %v2970 = vld [vmem:[#allocation5 + $0xc8] sm:$0xff]
    %v2971 = vld [vmem:[#allocation5 + $0xd0] sm:$0xff]
    %v2972 = vld [vmem:[#allocation5 + $0xd8] sm:$0xff]
    %v2973 = vld [vmem:[#allocation5 + $0xe0] sm:$0xff]
    %v2974 = vld [vmem:[#allocation5 + $0xe8] sm:$0xff]
    %v2975 = vld [vmem:[#allocation5 + $0xf0] sm:$0xff]
    %v2976 = vld [vmem:[#allocation5 + $0xf8] sm:$0xff]
    %v3009 = vunpack.c.l.b16 %v2945
    %v3010 = vunpack.c.h.b16 %v2945
    %v3011 = vunpack.c.l.b16 %v2946
    %v3012 = vunpack.c.h.b16 %v2946
    %v3013 = vunpack.c.l.b16 %v2947
    %v3014 = vunpack.c.h.b16 %v2947
    %v3015 = vunpack.c.l.b16 %v2948
    %v3016 = vunpack.c.h.b16 %v2948
    %v3017 = vunpack.c.l.b16 %v2949
    %v3018 = vunpack.c.h.b16 %v2949
    %v3019 = vunpack.c.l.b16 %v2950
    %v3020 = vunpack.c.h.b16 %v2950
    %v3021 = vunpack.c.l.b16 %v2951
    %v3022 = vunpack.c.h.b16 %v2951
    %v3023 = vunpack.c.l.b16 %v2952
    %v3024 = vunpack.c.h.b16 %v2952
    %v3025 = vunpack.c.l.b16 %v2953
    %v3026 = vunpack.c.h.b16 %v2953
    %v3027 = vunpack.c.l.b16 %v2954
    %v3028 = vunpack.c.h.b16 %v2954
    %v3029 = vunpack.c.l.b16 %v2955
    %v3030 = vunpack.c.h.b16 %v2955
    %v3031 = vunpack.c.l.b16 %v2956
    %v3032 = vunpack.c.h.b16 %v2956
    %v3033 = vunpack.c.l.b16 %v2957
    %v3034 = vunpack.c.h.b16 %v2957
    %v3035 = vunpack.c.l.b16 %v2958
    %v3036 = vunpack.c.h.b16 %v2958
    %v3037 = vunpack.c.l.b16 %v2959
    %v3038 = vunpack.c.h.b16 %v2959
    %v3039 = vunpack.c.l.b16 %v2960
    %v3040 = vunpack.c.h.b16 %v2960
    %v3041 = vunpack.c.l.b16 %v2961
    %v3042 = vunpack.c.h.b16 %v2961
    %v3043 = vunpack.c.l.b16 %v2962
    %v3044 = vunpack.c.h.b16 %v2962
    %v3045 = vunpack.c.l.b16 %v2963
    %v3046 = vunpack.c.h.b16 %v2963
    %v3047 = vunpack.c.l.b16 %v2964
    %v3048 = vunpack.c.h.b16 %v2964
    %v3049 = vunpack.c.l.b16 %v2965
    %v3050 = vunpack.c.h.b16 %v2965
    %v3051 = vunpack.c.l.b16 %v2966
    %v3052 = vunpack.c.h.b16 %v2966
    %v3053 = vunpack.c.l.b16 %v2967
    %v3054 = vunpack.c.h.b16 %v2967
    %v3055 = vunpack.c.l.b16 %v2968
    %v3056 = vunpack.c.h.b16 %v2968
    %v3057 = vunpack.c.l.b16 %v2969
    %v3058 = vunpack.c.h.b16 %v2969
    %v3059 = vunpack.c.l.b16 %v2970
    %v3060 = vunpack.c.h.b16 %v2970
    %v3061 = vunpack.c.l.b16 %v2971
    %v3062 = vunpack.c.h.b16 %v2971
    %v3063 = vunpack.c.l.b16 %v2972
    %v3064 = vunpack.c.h.b16 %v2972
    %v3065 = vunpack.c.l.b16 %v2973
    %v3066 = vunpack.c.h.b16 %v2973
    %v3067 = vunpack.c.l.b16 %v2974
    %v3068 = vunpack.c.h.b16 %v2974
    %v3069 = vunpack.c.l.b16 %v2975
    %v3070 = vunpack.c.h.b16 %v2975
    %v3071 = vunpack.c.l.b16 %v2976
    %v3072 = vunpack.c.h.b16 %v2976
    %v3073 = vpack.c.b16 %v3013, %v3009
    %v3074 = vpack.c.b16 %v3014, %v3010
    %v3075 = vpack.c.b16 %v3015, %v3011
    %v3076 = vpack.c.b16 %v3016, %v3012
    %v3077 = vpack.c.b16 %v3021, %v3017
    %v3078 = vpack.c.b16 %v3022, %v3018
    %v3079 = vpack.c.b16 %v3023, %v3019
    %v3080 = vpack.c.b16 %v3024, %v3020
    %v3081 = vpack.c.b16 %v3029, %v3025
    %v3082 = vpack.c.b16 %v3030, %v3026
    %v3083 = vpack.c.b16 %v3031, %v3027
    %v3084 = vpack.c.b16 %v3032, %v3028
    %v3085 = vpack.c.b16 %v3037, %v3033
    %v3086 = vpack.c.b16 %v3038, %v3034
    %v3087 = vpack.c.b16 %v3039, %v3035
    %v3088 = vpack.c.b16 %v3040, %v3036
    %v3089 = vpack.c.b16 %v3045, %v3041
    %v3090 = vpack.c.b16 %v3046, %v3042
    %v3091 = vpack.c.b16 %v3047, %v3043
    %v3092 = vpack.c.b16 %v3048, %v3044
    %v3093 = vpack.c.b16 %v3053, %v3049
    %v3094 = vpack.c.b16 %v3054, %v3050
    %v3095 = vpack.c.b16 %v3055, %v3051
    %v3096 = vpack.c.b16 %v3056, %v3052
    %v3097 = vpack.c.b16 %v3061, %v3057
    %v3098 = vpack.c.b16 %v3062, %v3058
    %v3099 = vpack.c.b16 %v3063, %v3059
    %v3100 = vpack.c.b16 %v3064, %v3060
    %v3101 = vpack.c.b16 %v3069, %v3065
    %v3102 = vpack.c.b16 %v3070, %v3066
    %v3103 = vpack.c.b16 %v3071, %v3067
    %v3104 = vpack.c.b16 %v3072, %v3068
    %3137 = vmatprep.subr.bf16.mxu0 %v3074
    %3138 = vmatpush1.bf16.msra.mxu0 %v3073
    %3139 = vmatprep.subr.bf16.mxu0 %v3078
    %3140 = vmatpush1.bf16.msra.mxu0 %v3077
    %3141 = vmatprep.subr.bf16.mxu0 %v3082
    %3142 = vmatpush1.bf16.msra.mxu0 %v3081
    %3143 = vmatprep.subr.bf16.mxu0 %v3086
    %3144 = vmatpush1.bf16.msra.mxu0 %v3085
    %3145 = vmatprep.subr.bf16.mxu0 %v3090
    %3146 = vmatpush1.bf16.msra.mxu0 %v3089
    %3147 = vmatprep.subr.bf16.mxu0 %v3094
    %3148 = vmatpush1.bf16.msra.mxu0 %v3093
    %3149 = vmatprep.subr.bf16.mxu0 %v3098
    %3150 = vmatpush1.bf16.msra.mxu0 %v3097
    %3151 = vmatprep.subr.bf16.mxu0 %v3102
    %3152 = vmatpush1.bf16.msra.mxu0 %v3101
    %3153 = vmatprep.subr.bf16.mxu0 0
    %3154 = vmatpush1.bf16.msra.mxu0 0
    %3155 = vmatprep.subr.bf16.mxu0 0
    %3156 = vmatpush1.bf16.msra.mxu0 0
    %3157 = vmatprep.subr.bf16.mxu0 0
    %3158 = vmatpush1.bf16.msra.mxu0 0
    %3159 = vmatprep.subr.bf16.mxu0 0
    %3160 = vmatpush1.bf16.msra.mxu0 0
    %3161 = vmatprep.subr.bf16.mxu0 0
    %3162 = vmatpush1.bf16.msra.mxu0 0
    %3163 = vmatprep.subr.bf16.mxu0 0
    %3164 = vmatpush1.bf16.msra.mxu0 0
    %3165 = vmatprep.subr.bf16.mxu0 0
    %3166 = vmatpush1.bf16.msra.mxu0 0
    %3167 = vmatprep.subr.bf16.mxu0 0
    %3168 = vmatpush1.bf16.msra.mxu0 0
    %3169 = vmatprep.mubr.bf16.mxu0 0
    %3170 = vmatmul.mubr.bf16.gmra.mrb[0].mxu0 %v2944
    %v3171 = vpop.f32.mrb[0].mxu0
    %v3172 = vadd.f32 0.0, %v3171
    %v3173 = vpop.f32.mrb[0].mxu0
    %v3174 = vadd.f32 0.0, %v3173
    %v3175 = vpop.f32.mrb[0].mxu0
    %v3176 = vpop.f32.mrb[0].mxu0
    %3177 = vdwg.mxu0
    %3178 = vmatprep.subr.bf16.mxu0 %v3076
    %3179 = vmatpush1.bf16.msra.mxu0 %v3075
    %3180 = vmatprep.subr.bf16.mxu0 %v3080
    %3181 = vmatpush1.bf16.msra.mxu0 %v3079
    %3182 = vmatprep.subr.bf16.mxu0 %v3084
    %3183 = vmatpush1.bf16.msra.mxu0 %v3083
    %3184 = vmatprep.subr.bf16.mxu0 %v3088
    %3185 = vmatpush1.bf16.msra.mxu0 %v3087
    %3186 = vmatprep.subr.bf16.mxu0 %v3092
    %3187 = vmatpush1.bf16.msra.mxu0 %v3091
    %3188 = vmatprep.subr.bf16.mxu0 %v3096
    %3189 = vmatpush1.bf16.msra.mxu0 %v3095
    %3190 = vmatprep.subr.bf16.mxu0 %v3100
    %3191 = vmatpush1.bf16.msra.mxu0 %v3099
    %3192 = vmatprep.subr.bf16.mxu0 %v3104
    %3193 = vmatpush1.bf16.msra.mxu0 %v3103
    %3194 = vmatprep.subr.bf16.mxu0 0
    %3195 = vmatpush1.bf16.msra.mxu0 0
    %3196 = vmatprep.subr.bf16.mxu0 0
    %3197 = vmatpush1.bf16.msra.mxu0 0
    %3198 = vmatprep.subr.bf16.mxu0 0
    %3199 = vmatpush1.bf16.msra.mxu0 0
    %3200 = vmatprep.subr.bf16.mxu0 0
    %3201 = vmatpush1.bf16.msra.mxu0 0
    %3202 = vmatprep.subr.bf16.mxu0 0
    %3203 = vmatpush1.bf16.msra.mxu0 0
    %3204 = vmatprep.subr.bf16.mxu0 0
    %3205 = vmatpush1.bf16.msra.mxu0 0
    %3206 = vmatprep.subr.bf16.mxu0 0
    %3207 = vmatpush1.bf16.msra.mxu0 0
    %3208 = vmatprep.subr.bf16.mxu0 0
    %3209 = vmatpush1.bf16.msra.mxu0 0
    %3210 = vmatprep.mubr.bf16.mxu0 0
    %3211 = vmatmul.mubr.bf16.gmra.mrb[0].mxu0 %v2944
    %v3212 = vpop.f32.mrb[0].mxu0
    %v3213 = vadd.f32 0.0, %v3212
    %v3214 = vpop.f32.mrb[0].mxu0
    %v3215 = vadd.f32 0.0, %v3214
    %v3216 = vpop.f32.mrb[0].mxu0
    %v3217 = vpop.f32.mrb[0].mxu0
    %3218 = vdwg.mxu0
    %v3219 = vadd.f32 %v514, %v3172
    %v3220 = vadd.f32 %v516, %v3174
    %v3221 = vadd.f32 %v555, %v3213
    %v3222 = vadd.f32 %v557, %v3215
    %v3223 = vmul.f32 %v3219, 0.5
    %v3224 = vmul.f32 %v3220, 0.5
    %v3225 = vmul.f32 %v3221, 0.5
    %v3226 = vtanh.pop %v3223
    %v3227 = vtanh.pop %v3224
    %v3228 = vtanh.pop %v3225
    %v3229 = vmul.f32 %v3226, 0.5
    %v3230 = vmul.f32 %v3227, 0.5
    %v3231 = vmul.f32 %v3228, 0.5
    %v3232 = vadd.f32 %v3229, 0.5
    %v3233 = vadd.f32 %v3230, 0.5
    %v3234 = vadd.f32 %v3231, 0.5
    %v3235 = vtanh.pop %v3222
    %v3236 = vmul.f32 %v3233, %v2940
    %v3237 = vmul.f32 %v3232, %v3235
    %v3238 = vadd.f32 %v3236, %v3237
    %v3239 = vtanh.pop %v3238
    %v3240 = vmul.f32 %v3234, %v3239
    %3241 = vst [vmem:[#allocation2 + $0x40] sm:$0xff] %v3240
    %v3242 = vpack.c.bf16 %v3240, %v3240
    %v3243 = vld [vmem:[#allocation5] sm:$0xff]
    %v3244 = vld [vmem:[#allocation5 + $0x8] sm:$0xff]
    %v3245 = vld [vmem:[#allocation5 + $0x10] sm:$0xff]
    %v3246 = vld [vmem:[#allocation5 + $0x18] sm:$0xff]
    %v3247 = vld [vmem:[#allocation5 + $0x20] sm:$0xff]
    %v3248 = vld [vmem:[#allocation5 + $0x28] sm:$0xff]
    %v3249 = vld [vmem:[#allocation5 + $0x30] sm:$0xff]
    %v3250 = vld [vmem:[#allocation5 + $0x38] sm:$0xff]
    %v3251 = vld [vmem:[#allocation5 + $0x40] sm:$0xff]
    %v3252 = vld [vmem:[#allocation5 + $0x48] sm:$0xff]
    %v3253 = vld [vmem:[#allocation5 + $0x50] sm:$0xff]
    %v3254 = vld [vmem:[#allocation5 + $0x58] sm:$0xff]
    %v3255 = vld [vmem:[#allocation5 + $0x60] sm:$0xff]
    %v3256 = vld [vmem:[#allocation5 + $0x68] sm:$0xff]
    %v3257 = vld [vmem:[#allocation5 + $0x70] sm:$0xff]
    %v3258 = vld [vmem:[#allocation5 + $0x78] sm:$0xff]
    %v3259 = vld [vmem:[#allocation5 + $0x80] sm:$0xff]
    %v3260 = vld [vmem:[#allocation5 + $0x88] sm:$0xff]
    %v3261 = vld [vmem:[#allocation5 + $0x90] sm:$0xff]
    %v3262 = vld [vmem:[#allocation5 + $0x98] sm:$0xff]
    %v3263 = vld [vmem:[#allocation5 + $0xa0] sm:$0xff]
    %v3264 = vld [vmem:[#allocation5 + $0xa8] sm:$0xff]
    %v3265 = vld [vmem:[#allocation5 + $0xb0] sm:$0xff]
    %v3266 = vld [vmem:[#allocation5 + $0xb8] sm:$0xff]
    %v3267 = vld [vmem:[#allocation5 + $0xc0] sm:$0xff]
    %v3268 = vld [vmem:[#allocation5 + $0xc8] sm:$0xff]
    %v3269 = vld [vmem:[#allocation5 + $0xd0] sm:$0xff]
    %v3270 = vld [vmem:[#allocation5 + $0xd8] sm:$0xff]
    %v3271 = vld [vmem:[#allocation5 + $0xe0] sm:$0xff]
    %v3272 = vld [vmem:[#allocation5 + $0xe8] sm:$0xff]
    %v3273 = vld [vmem:[#allocation5 + $0xf0] sm:$0xff]
    %v3274 = vld [vmem:[#allocation5 + $0xf8] sm:$0xff]
    %v3307 = vunpack.c.l.b16 %v3243
    %v3308 = vunpack.c.h.b16 %v3243
    %v3309 = vunpack.c.l.b16 %v3244
    %v3310 = vunpack.c.h.b16 %v3244
    %v3311 = vunpack.c.l.b16 %v3245
    %v3312 = vunpack.c.h.b16 %v3245
    %v3313 = vunpack.c.l.b16 %v3246
    %v3314 = vunpack.c.h.b16 %v3246
    %v3315 = vunpack.c.l.b16 %v3247
    %v3316 = vunpack.c.h.b16 %v3247
    %v3317 = vunpack.c.l.b16 %v3248
    %v3318 = vunpack.c.h.b16 %v3248
    %v3319 = vunpack.c.l.b16 %v3249
    %v3320 = vunpack.c.h.b16 %v3249
    %v3321 = vunpack.c.l.b16 %v3250
    %v3322 = vunpack.c.h.b16 %v3250
    %v3323 = vunpack.c.l.b16 %v3251
    %v3324 = vunpack.c.h.b16 %v3251
    %v3325 = vunpack.c.l.b16 %v3252
    %v3326 = vunpack.c.h.b16 %v3252
    %v3327 = vunpack.c.l.b16 %v3253
    %v3328 = vunpack.c.h.b16 %v3253
    %v3329 = vunpack.c.l.b16 %v3254
    %v3330 = vunpack.c.h.b16 %v3254
    %v3331 = vunpack.c.l.b16 %v3255
    %v3332 = vunpack.c.h.b16 %v3255
    %v3333 = vunpack.c.l.b16 %v3256
    %v3334 = vunpack.c.h.b16 %v3256
    %v3335 = vunpack.c.l.b16 %v3257
    %v3336 = vunpack.c.h.b16 %v3257
    %v3337 = vunpack.c.l.b16 %v3258
    %v3338 = vunpack.c.h.b16 %v3258
    %v3339 = vunpack.c.l.b16 %v3259
    %v3340 = vunpack.c.h.b16 %v3259
    %v3341 = vunpack.c.l.b16 %v3260
    %v3342 = vunpack.c.h.b16 %v3260
    %v3343 = vunpack.c.l.b16 %v3261
    %v3344 = vunpack.c.h.b16 %v3261
    %v3345 = vunpack.c.l.b16 %v3262
    %v3346 = vunpack.c.h.b16 %v3262
    %v3347 = vunpack.c.l.b16 %v3263
    %v3348 = vunpack.c.h.b16 %v3263
    %v3349 = vunpack.c.l.b16 %v3264
    %v3350 = vunpack.c.h.b16 %v3264
    %v3351 = vunpack.c.l.b16 %v3265
    %v3352 = vunpack.c.h.b16 %v3265
    %v3353 = vunpack.c.l.b16 %v3266
    %v3354 = vunpack.c.h.b16 %v3266
    %v3355 = vunpack.c.l.b16 %v3267
    %v3356 = vunpack.c.h.b16 %v3267
    %v3357 = vunpack.c.l.b16 %v3268
    %v3358 = vunpack.c.h.b16 %v3268
    %v3359 = vunpack.c.l.b16 %v3269
    %v3360 = vunpack.c.h.b16 %v3269
    %v3361 = vunpack.c.l.b16 %v3270
    %v3362 = vunpack.c.h.b16 %v3270
    %v3363 = vunpack.c.l.b16 %v3271
    %v3364 = vunpack.c.h.b16 %v3271
    %v3365 = vunpack.c.l.b16 %v3272
    %v3366 = vunpack.c.h.b16 %v3272
    %v3367 = vunpack.c.l.b16 %v3273
    %v3368 = vunpack.c.h.b16 %v3273
    %v3369 = vunpack.c.l.b16 %v3274
    %v3370 = vunpack.c.h.b16 %v3274
    %v3371 = vpack.c.b16 %v3311, %v3307
    %v3372 = vpack.c.b16 %v3312, %v3308
    %v3373 = vpack.c.b16 %v3313, %v3309
    %v3374 = vpack.c.b16 %v3314, %v3310
    %v3375 = vpack.c.b16 %v3319, %v3315
    %v3376 = vpack.c.b16 %v3320, %v3316
    %v3377 = vpack.c.b16 %v3321, %v3317
    %v3378 = vpack.c.b16 %v3322, %v3318
    %v3379 = vpack.c.b16 %v3327, %v3323
    %v3380 = vpack.c.b16 %v3328, %v3324
    %v3381 = vpack.c.b16 %v3329, %v3325
    %v3382 = vpack.c.b16 %v3330, %v3326
    %v3383 = vpack.c.b16 %v3335, %v3331
    %v3384 = vpack.c.b16 %v3336, %v3332
    %v3385 = vpack.c.b16 %v3337, %v3333
    %v3386 = vpack.c.b16 %v3338, %v3334
    %v3387 = vpack.c.b16 %v3343, %v3339
    %v3388 = vpack.c.b16 %v3344, %v3340
    %v3389 = vpack.c.b16 %v3345, %v3341
    %v3390 = vpack.c.b16 %v3346, %v3342
    %v3391 = vpack.c.b16 %v3351, %v3347
    %v3392 = vpack.c.b16 %v3352, %v3348
    %v3393 = vpack.c.b16 %v3353, %v3349
    %v3394 = vpack.c.b16 %v3354, %v3350
    %v3395 = vpack.c.b16 %v3359, %v3355
    %v3396 = vpack.c.b16 %v3360, %v3356
    %v3397 = vpack.c.b16 %v3361, %v3357
    %v3398 = vpack.c.b16 %v3362, %v3358
    %v3399 = vpack.c.b16 %v3367, %v3363
    %v3400 = vpack.c.b16 %v3368, %v3364
    %v3401 = vpack.c.b16 %v3369, %v3365
    %v3402 = vpack.c.b16 %v3370, %v3366
    %3435 = vmatprep.subr.bf16.mxu0 %v3372
    %3436 = vmatpush1.bf16.msra.mxu0 %v3371
    %3437 = vmatprep.subr.bf16.mxu0 %v3376
    %3438 = vmatpush1.bf16.msra.mxu0 %v3375
    %3439 = vmatprep.subr.bf16.mxu0 %v3380
    %3440 = vmatpush1.bf16.msra.mxu0 %v3379
    %3441 = vmatprep.subr.bf16.mxu0 %v3384
    %3442 = vmatpush1.bf16.msra.mxu0 %v3383
    %3443 = vmatprep.subr.bf16.mxu0 %v3388
    %3444 = vmatpush1.bf16.msra.mxu0 %v3387
    %3445 = vmatprep.subr.bf16.mxu0 %v3392
    %3446 = vmatpush1.bf16.msra.mxu0 %v3391
    %3447 = vmatprep.subr.bf16.mxu0 %v3396
    %3448 = vmatpush1.bf16.msra.mxu0 %v3395
    %3449 = vmatprep.subr.bf16.mxu0 %v3400
    %3450 = vmatpush1.bf16.msra.mxu0 %v3399
    %3451 = vmatprep.subr.bf16.mxu0 0
    %3452 = vmatpush1.bf16.msra.mxu0 0
    %3453 = vmatprep.subr.bf16.mxu0 0
    %3454 = vmatpush1.bf16.msra.mxu0 0
    %3455 = vmatprep.subr.bf16.mxu0 0
    %3456 = vmatpush1.bf16.msra.mxu0 0
    %3457 = vmatprep.subr.bf16.mxu0 0
    %3458 = vmatpush1.bf16.msra.mxu0 0
    %3459 = vmatprep.subr.bf16.mxu0 0
    %3460 = vmatpush1.bf16.msra.mxu0 0
    %3461 = vmatprep.subr.bf16.mxu0 0
    %3462 = vmatpush1.bf16.msra.mxu0 0
    %3463 = vmatprep.subr.bf16.mxu0 0
    %3464 = vmatpush1.bf16.msra.mxu0 0
    %3465 = vmatprep.subr.bf16.mxu0 0
    %3466 = vmatpush1.bf16.msra.mxu0 0
    %3467 = vmatprep.mubr.bf16.mxu0 0
    %3468 = vmatmul.mubr.bf16.gmra.mrb[0].mxu0 %v3242
    %v3469 = vpop.f32.mrb[0].mxu0
    %v3470 = vadd.f32 0.0, %v3469
    %v3471 = vpop.f32.mrb[0].mxu0
    %v3472 = vadd.f32 0.0, %v3471
    %v3473 = vpop.f32.mrb[0].mxu0
    %v3474 = vpop.f32.mrb[0].mxu0
    %3475 = vdwg.mxu0
    %3476 = vmatprep.subr.bf16.mxu0 %v3374
    %3477 = vmatpush1.bf16.msra.mxu0 %v3373
    %3478 = vmatprep.subr.bf16.mxu0 %v3378
    %3479 = vmatpush1.bf16.msra.mxu0 %v3377
    %3480 = vmatprep.subr.bf16.mxu0 %v3382
    %3481 = vmatpush1.bf16.msra.mxu0 %v3381
    %3482 = vmatprep.subr.bf16.mxu0 %v3386
    %3483 = vmatpush1.bf16.msra.mxu0 %v3385
    %3484 = vmatprep.subr.bf16.mxu0 %v3390
    %3485 = vmatpush1.bf16.msra.mxu0 %v3389
    %3486 = vmatprep.subr.bf16.mxu0 %v3394
    %3487 = vmatpush1.bf16.msra.mxu0 %v3393
    %3488 = vmatprep.subr.bf16.mxu0 %v3398
    %3489 = vmatpush1.bf16.msra.mxu0 %v3397
    %3490 = vmatprep.subr.bf16.mxu0 %v3402
    %3491 = vmatpush1.bf16.msra.mxu0 %v3401
    %3492 = vmatprep.subr.bf16.mxu0 0
    %3493 = vmatpush1.bf16.msra.mxu0 0
    %3494 = vmatprep.subr.bf16.mxu0 0
    %3495 = vmatpush1.bf16.msra.mxu0 0
    %3496 = vmatprep.subr.bf16.mxu0 0
    %3497 = vmatpush1.bf16.msra.mxu0 0
    %3498 = vmatprep.subr.bf16.mxu0 0
    %3499 = vmatpush1.bf16.msra.mxu0 0
    %3500 = vmatprep.subr.bf16.mxu0 0
    %3501 = vmatpush1.bf16.msra.mxu0 0
    %3502 = vmatprep.subr.bf16.mxu0 0
    %3503 = vmatpush1.bf16.msra.mxu0 0
    %3504 = vmatprep.subr.bf16.mxu0 0
    %3505 = vmatpush1.bf16.msra.mxu0 0
    %3506 = vmatprep.subr.bf16.mxu0 0
    %3507 = vmatpush1.bf16.msra.mxu0 0
    %3508 = vmatprep.mubr.bf16.mxu0 0
    %3509 = vmatmul.mubr.bf16.gmra.mrb[0].mxu0 %v3242
    %v3510 = vpop.f32.mrb[0].mxu0
    %v3511 = vadd.f32 0.0, %v3510
    %v3512 = vpop.f32.mrb[0].mxu0
    %v3513 = vadd.f32 0.0, %v3512
    %v3514 = vpop.f32.mrb[0].mxu0
    %v3515 = vpop.f32.mrb[0].mxu0
    %3516 = vdwg.mxu0
    %v3517 = vadd.f32 %v514, %v3470
    %v3518 = vadd.f32 %v516, %v3472
    %v3519 = vadd.f32 %v555, %v3511
    %v3520 = vadd.f32 %v557, %v3513
    %v3521 = vmul.f32 %v3517, 0.5
    %v3522 = vmul.f32 %v3518, 0.5
    %v3523 = vmul.f32 %v3519, 0.5
    %v3524 = vtanh.pop %v3521
    %v3525 = vtanh.pop %v3522
    %v3526 = vtanh.pop %v3523
    %v3527 = vmul.f32 %v3524, 0.5
    %v3528 = vmul.f32 %v3525, 0.5
    %v3529 = vmul.f32 %v3526, 0.5
    %v3530 = vadd.f32 %v3527, 0.5
    %v3531 = vadd.f32 %v3528, 0.5
    %v3532 = vadd.f32 %v3529, 0.5
    %v3533 = vtanh.pop %v3520
    %v3534 = vmul.f32 %v3531, %v3238
    %v3535 = vmul.f32 %v3530, %v3533
    %v3536 = vadd.f32 %v3534, %v3535
    %v3537 = vtanh.pop %v3536
    %v3538 = vmul.f32 %v3532, %v3537
    %3539 = vst [vmem:[#allocation2 + $0x48] sm:$0xff] %v3538
    %v3540 = vpack.c.bf16 %v3538, %v3538
    %v3541 = vld [vmem:[#allocation5] sm:$0xff]
    %v3542 = vld [vmem:[#allocation5 + $0x8] sm:$0xff]
    %v3543 = vld [vmem:[#allocation5 + $0x10] sm:$0xff]
    %v3544 = vld [vmem:[#allocation5 + $0x18] sm:$0xff]
    %v3545 = vld [vmem:[#allocation5 + $0x20] sm:$0xff]
    %v3546 = vld [vmem:[#allocation5 + $0x28] sm:$0xff]
    %v3547 = vld [vmem:[#allocation5 + $0x30] sm:$0xff]
    %v3548 = vld [vmem:[#allocation5 + $0x38] sm:$0xff]
    %v3549 = vld [vmem:[#allocation5 + $0x40] sm:$0xff]
    %v3550 = vld [vmem:[#allocation5 + $0x48] sm:$0xff]
    %v3551 = vld [vmem:[#allocation5 + $0x50] sm:$0xff]
    %v3552 = vld [vmem:[#allocation5 + $0x58] sm:$0xff]
    %v3553 = vld [vmem:[#allocation5 + $0x60] sm:$0xff]
    %v3554 = vld [vmem:[#allocation5 + $0x68] sm:$0xff]
    %v3555 = vld [vmem:[#allocation5 + $0x70] sm:$0xff]
    %v3556 = vld [vmem:[#allocation5 + $0x78] sm:$0xff]
    %v3557 = vld [vmem:[#allocation5 + $0x80] sm:$0xff]
    %v3558 = vld [vmem:[#allocation5 + $0x88] sm:$0xff]
    %v3559 = vld [vmem:[#allocation5 + $0x90] sm:$0xff]
    %v3560 = vld [vmem:[#allocation5 + $0x98] sm:$0xff]
    %v3561 = vld [vmem:[#allocation5 + $0xa0] sm:$0xff]
    %v3562 = vld [vmem:[#allocation5 + $0xa8] sm:$0xff]
    %v3563 = vld [vmem:[#allocation5 + $0xb0] sm:$0xff]
    %v3564 = vld [vmem:[#allocation5 + $0xb8] sm:$0xff]
    %v3565 = vld [vmem:[#allocation5 + $0xc0] sm:$0xff]
    %v3566 = vld [vmem:[#allocation5 + $0xc8] sm:$0xff]
    %v3567 = vld [vmem:[#allocation5 + $0xd0] sm:$0xff]
    %v3568 = vld [vmem:[#allocation5 + $0xd8] sm:$0xff]
    %v3569 = vld [vmem:[#allocation5 + $0xe0] sm:$0xff]
    %v3570 = vld [vmem:[#allocation5 + $0xe8] sm:$0xff]
    %v3571 = vld [vmem:[#allocation5 + $0xf0] sm:$0xff]
    %v3572 = vld [vmem:[#allocation5 + $0xf8] sm:$0xff]
    %v3605 = vunpack.c.l.b16 %v3541
    %v3606 = vunpack.c.h.b16 %v3541
    %v3607 = vunpack.c.l.b16 %v3542
    %v3608 = vunpack.c.h.b16 %v3542
    %v3609 = vunpack.c.l.b16 %v3543
    %v3610 = vunpack.c.h.b16 %v3543
    %v3611 = vunpack.c.l.b16 %v3544
    %v3612 = vunpack.c.h.b16 %v3544
    %v3613 = vunpack.c.l.b16 %v3545
    %v3614 = vunpack.c.h.b16 %v3545
    %v3615 = vunpack.c.l.b16 %v3546
    %v3616 = vunpack.c.h.b16 %v3546
    %v3617 = vunpack.c.l.b16 %v3547
    %v3618 = vunpack.c.h.b16 %v3547
    %v3619 = vunpack.c.l.b16 %v3548
    %v3620 = vunpack.c.h.b16 %v3548
    %v3621 = vunpack.c.l.b16 %v3549
    %v3622 = vunpack.c.h.b16 %v3549
    %v3623 = vunpack.c.l.b16 %v3550
    %v3624 = vunpack.c.h.b16 %v3550
    %v3625 = vunpack.c.l.b16 %v3551
    %v3626 = vunpack.c.h.b16 %v3551
    %v3627 = vunpack.c.l.b16 %v3552
    %v3628 = vunpack.c.h.b16 %v3552
    %v3629 = vunpack.c.l.b16 %v3553
    %v3630 = vunpack.c.h.b16 %v3553
    %v3631 = vunpack.c.l.b16 %v3554
    %v3632 = vunpack.c.h.b16 %v3554
    %v3633 = vunpack.c.l.b16 %v3555
    %v3634 = vunpack.c.h.b16 %v3555
    %v3635 = vunpack.c.l.b16 %v3556
    %v3636 = vunpack.c.h.b16 %v3556
    %v3637 = vunpack.c.l.b16 %v3557
    %v3638 = vunpack.c.h.b16 %v3557
    %v3639 = vunpack.c.l.b16 %v3558
    %v3640 = vunpack.c.h.b16 %v3558
    %v3641 = vunpack.c.l.b16 %v3559
    %v3642 = vunpack.c.h.b16 %v3559
    %v3643 = vunpack.c.l.b16 %v3560
    %v3644 = vunpack.c.h.b16 %v3560
    %v3645 = vunpack.c.l.b16 %v3561
    %v3646 = vunpack.c.h.b16 %v3561
    %v3647 = vunpack.c.l.b16 %v3562
    %v3648 = vunpack.c.h.b16 %v3562
    %v3649 = vunpack.c.l.b16 %v3563
    %v3650 = vunpack.c.h.b16 %v3563
    %v3651 = vunpack.c.l.b16 %v3564
    %v3652 = vunpack.c.h.b16 %v3564
    %v3653 = vunpack.c.l.b16 %v3565
    %v3654 = vunpack.c.h.b16 %v3565
    %v3655 = vunpack.c.l.b16 %v3566
    %v3656 = vunpack.c.h.b16 %v3566
    %v3657 = vunpack.c.l.b16 %v3567
    %v3658 = vunpack.c.h.b16 %v3567
    %v3659 = vunpack.c.l.b16 %v3568
    %v3660 = vunpack.c.h.b16 %v3568
    %v3661 = vunpack.c.l.b16 %v3569
    %v3662 = vunpack.c.h.b16 %v3569
    %v3663 = vunpack.c.l.b16 %v3570
    %v3664 = vunpack.c.h.b16 %v3570
    %v3665 = vunpack.c.l.b16 %v3571
    %v3666 = vunpack.c.h.b16 %v3571
    %v3667 = vunpack.c.l.b16 %v3572
    %v3668 = vunpack.c.h.b16 %v3572
    %v3669 = vpack.c.b16 %v3609, %v3605
    %v3670 = vpack.c.b16 %v3610, %v3606
    %v3671 = vpack.c.b16 %v3611, %v3607
    %v3672 = vpack.c.b16 %v3612, %v3608
    %v3673 = vpack.c.b16 %v3617, %v3613
    %v3674 = vpack.c.b16 %v3618, %v3614
    %v3675 = vpack.c.b16 %v3619, %v3615
    %v3676 = vpack.c.b16 %v3620, %v3616
    %v3677 = vpack.c.b16 %v3625, %v3621
    %v3678 = vpack.c.b16 %v3626, %v3622
    %v3679 = vpack.c.b16 %v3627, %v3623
    %v3680 = vpack.c.b16 %v3628, %v3624
    %v3681 = vpack.c.b16 %v3633, %v3629
    %v3682 = vpack.c.b16 %v3634, %v3630
    %v3683 = vpack.c.b16 %v3635, %v3631
    %v3684 = vpack.c.b16 %v3636, %v3632
    %v3685 = vpack.c.b16 %v3641, %v3637
    %v3686 = vpack.c.b16 %v3642, %v3638
    %v3687 = vpack.c.b16 %v3643, %v3639
    %v3688 = vpack.c.b16 %v3644, %v3640
    %v3689 = vpack.c.b16 %v3649, %v3645
    %v3690 = vpack.c.b16 %v3650, %v3646
    %v3691 = vpack.c.b16 %v3651, %v3647
    %v3692 = vpack.c.b16 %v3652, %v3648
    %v3693 = vpack.c.b16 %v3657, %v3653
    %v3694 = vpack.c.b16 %v3658, %v3654
    %v3695 = vpack.c.b16 %v3659, %v3655
    %v3696 = vpack.c.b16 %v3660, %v3656
    %v3697 = vpack.c.b16 %v3665, %v3661
    %v3698 = vpack.c.b16 %v3666, %v3662
    %v3699 = vpack.c.b16 %v3667, %v3663
    %v3700 = vpack.c.b16 %v3668, %v3664
    %3733 = vmatprep.subr.bf16.mxu0 %v3670
    %3734 = vmatpush1.bf16.msra.mxu0 %v3669
    %3735 = vmatprep.subr.bf16.mxu0 %v3674
    %3736 = vmatpush1.bf16.msra.mxu0 %v3673
    %3737 = vmatprep.subr.bf16.mxu0 %v3678
    %3738 = vmatpush1.bf16.msra.mxu0 %v3677
    %3739 = vmatprep.subr.bf16.mxu0 %v3682
    %3740 = vmatpush1.bf16.msra.mxu0 %v3681
    %3741 = vmatprep.subr.bf16.mxu0 %v3686
    %3742 = vmatpush1.bf16.msra.mxu0 %v3685
    %3743 = vmatprep.subr.bf16.mxu0 %v3690
    %3744 = vmatpush1.bf16.msra.mxu0 %v3689
    %3745 = vmatprep.subr.bf16.mxu0 %v3694
    %3746 = vmatpush1.bf16.msra.mxu0 %v3693
    %3747 = vmatprep.subr.bf16.mxu0 %v3698
    %3748 = vmatpush1.bf16.msra.mxu0 %v3697
    %3749 = vmatprep.subr.bf16.mxu0 0
    %3750 = vmatpush1.bf16.msra.mxu0 0
    %3751 = vmatprep.subr.bf16.mxu0 0
    %3752 = vmatpush1.bf16.msra.mxu0 0
    %3753 = vmatprep.subr.bf16.mxu0 0
    %3754 = vmatpush1.bf16.msra.mxu0 0
    %3755 = vmatprep.subr.bf16.mxu0 0
    %3756 = vmatpush1.bf16.msra.mxu0 0
    %3757 = vmatprep.subr.bf16.mxu0 0
    %3758 = vmatpush1.bf16.msra.mxu0 0
    %3759 = vmatprep.subr.bf16.mxu0 0
    %3760 = vmatpush1.bf16.msra.mxu0 0
    %3761 = vmatprep.subr.bf16.mxu0 0
    %3762 = vmatpush1.bf16.msra.mxu0 0
    %3763 = vmatprep.subr.bf16.mxu0 0
    %3764 = vmatpush1.bf16.msra.mxu0 0
    %3765 = vmatprep.mubr.bf16.mxu0 0
    %3766 = vmatmul.mubr.bf16.gmra.mrb[0].mxu0 %v3540
    %v3767 = vpop.f32.mrb[0].mxu0
    %v3768 = vadd.f32 0.0, %v3767
    %v3769 = vpop.f32.mrb[0].mxu0
    %v3770 = vadd.f32 0.0, %v3769
    %v3771 = vpop.f32.mrb[0].mxu0
    %v3772 = vpop.f32.mrb[0].mxu0
    %3773 = vdwg.mxu0
    %3774 = vmatprep.subr.bf16.mxu0 %v3672
    %3775 = vmatpush1.bf16.msra.mxu0 %v3671
    %3776 = vmatprep.subr.bf16.mxu0 %v3676
    %3777 = vmatpush1.bf16.msra.mxu0 %v3675
    %3778 = vmatprep.subr.bf16.mxu0 %v3680
    %3779 = vmatpush1.bf16.msra.mxu0 %v3679
    %3780 = vmatprep.subr.bf16.mxu0 %v3684
    %3781 = vmatpush1.bf16.msra.mxu0 %v3683
    %3782 = vmatprep.subr.bf16.mxu0 %v3688
    %3783 = vmatpush1.bf16.msra.mxu0 %v3687
    %3784 = vmatprep.subr.bf16.mxu0 %v3692
    %3785 = vmatpush1.bf16.msra.mxu0 %v3691
    %3786 = vmatprep.subr.bf16.mxu0 %v3696
    %3787 = vmatpush1.bf16.msra.mxu0 %v3695
    %3788 = vmatprep.subr.bf16.mxu0 %v3700
    %3789 = vmatpush1.bf16.msra.mxu0 %v3699
    %3790 = vmatprep.subr.bf16.mxu0 0
    %3791 = vmatpush1.bf16.msra.mxu0 0
    %3792 = vmatprep.subr.bf16.mxu0 0
    %3793 = vmatpush1.bf16.msra.mxu0 0
    %3794 = vmatprep.subr.bf16.mxu0 0
    %3795 = vmatpush1.bf16.msra.mxu0 0
    %3796 = vmatprep.subr.bf16.mxu0 0
    %3797 = vmatpush1.bf16.msra.mxu0 0
    %3798 = vmatprep.subr.bf16.mxu0 0
    %3799 = vmatpush1.bf16.msra.mxu0 0
    %3800 = vmatprep.subr.bf16.mxu0 0
    %3801 = vmatpush1.bf16.msra.mxu0 0
    %3802 = vmatprep.subr.bf16.mxu0 0
    %3803 = vmatpush1.bf16.msra.mxu0 0
    %3804 = vmatprep.subr.bf16.mxu0 0
    %3805 = vmatpush1.bf16.msra.mxu0 0
    %3806 = vmatprep.mubr.bf16.mxu0 0
    %3807 = vmatmul.mubr.bf16.gmra.mrb[0].mxu0 %v3540
    %v3808 = vpop.f32.mrb[0].mxu0
    %v3809 = vadd.f32 0.0, %v3808
    %v3810 = vpop.f32.mrb[0].mxu0
    %v3811 = vadd.f32 0.0, %v3810
    %v3812 = vpop.f32.mrb[0].mxu0
    %v3813 = vpop.f32.mrb[0].mxu0
    %3814 = vdwg.mxu0
    %v3815 = vadd.f32 %v514, %v3768
    %v3816 = vadd.f32 %v516, %v3770
    %v3817 = vadd.f32 %v555, %v3809
    %v3818 = vadd.f32 %v557, %v3811
    %v3819 = vmul.f32 %v3815, 0.5
    %v3820 = vmul.f32 %v3816, 0.5
    %v3821 = vmul.f32 %v3817, 0.5
    %v3822 = vtanh.pop %v3819
    %v3823 = vtanh.pop %v3820
    %v3824 = vtanh.pop %v3821
    %v3825 = vmul.f32 %v3822, 0.5
    %v3826 = vmul.f32 %v3823, 0.5
    %v3827 = vmul.f32 %v3824, 0.5
    %v3828 = vadd.f32 %v3825, 0.5
    %v3829 = vadd.f32 %v3826, 0.5
    %v3830 = vadd.f32 %v3827, 0.5
    %v3831 = vtanh.pop %v3818
    %v3832 = vmul.f32 %v3829, %v3536
    %v3833 = vmul.f32 %v3828, %v3831
    %v3834 = vadd.f32 %v3832, %v3833
    %v3835 = vtanh.pop %v3834
    %v3836 = vmul.f32 %v3830, %v3835
    %3837 = vst [vmem:[#allocation2 + $0x50] sm:$0xff] %v3836
    %v3838 = vpack.c.bf16 %v3836, %v3836
    %v3839 = vld [vmem:[#allocation5] sm:$0xff]
    %v3840 = vld [vmem:[#allocation5 + $0x8] sm:$0xff]
    %v3841 = vld [vmem:[#allocation5 + $0x10] sm:$0xff]
    %v3842 = vld [vmem:[#allocation5 + $0x18] sm:$0xff]
    %v3843 = vld [vmem:[#allocation5 + $0x20] sm:$0xff]
    %v3844 = vld [vmem:[#allocation5 + $0x28] sm:$0xff]
    %v3845 = vld [vmem:[#allocation5 + $0x30] sm:$0xff]
    %v3846 = vld [vmem:[#allocation5 + $0x38] sm:$0xff]
    %v3847 = vld [vmem:[#allocation5 + $0x40] sm:$0xff]
    %v3848 = vld [vmem:[#allocation5 + $0x48] sm:$0xff]
    %v3849 = vld [vmem:[#allocation5 + $0x50] sm:$0xff]
    %v3850 = vld [vmem:[#allocation5 + $0x58] sm:$0xff]
    %v3851 = vld [vmem:[#allocation5 + $0x60] sm:$0xff]
    %v3852 = vld [vmem:[#allocation5 + $0x68] sm:$0xff]
    %v3853 = vld [vmem:[#allocation5 + $0x70] sm:$0xff]
    %v3854 = vld [vmem:[#allocation5 + $0x78] sm:$0xff]
    %v3855 = vld [vmem:[#allocation5 + $0x80] sm:$0xff]
    %v3856 = vld [vmem:[#allocation5 + $0x88] sm:$0xff]
    %v3857 = vld [vmem:[#allocation5 + $0x90] sm:$0xff]
    %v3858 = vld [vmem:[#allocation5 + $0x98] sm:$0xff]
    %v3859 = vld [vmem:[#allocation5 + $0xa0] sm:$0xff]
    %v3860 = vld [vmem:[#allocation5 + $0xa8] sm:$0xff]
    %v3861 = vld [vmem:[#allocation5 + $0xb0] sm:$0xff]
    %v3862 = vld [vmem:[#allocation5 + $0xb8] sm:$0xff]
    %v3863 = vld [vmem:[#allocation5 + $0xc0] sm:$0xff]
    %v3864 = vld [vmem:[#allocation5 + $0xc8] sm:$0xff]
    %v3865 = vld [vmem:[#allocation5 + $0xd0] sm:$0xff]
    %v3866 = vld [vmem:[#allocation5 + $0xd8] sm:$0xff]
    %v3867 = vld [vmem:[#allocation5 + $0xe0] sm:$0xff]
    %v3868 = vld [vmem:[#allocation5 + $0xe8] sm:$0xff]
    %v3869 = vld [vmem:[#allocation5 + $0xf0] sm:$0xff]
    %v3870 = vld [vmem:[#allocation5 + $0xf8] sm:$0xff]
    %v3903 = vunpack.c.l.b16 %v3839
    %v3904 = vunpack.c.h.b16 %v3839
    %v3905 = vunpack.c.l.b16 %v3840
    %v3906 = vunpack.c.h.b16 %v3840
    %v3907 = vunpack.c.l.b16 %v3841
    %v3908 = vunpack.c.h.b16 %v3841
    %v3909 = vunpack.c.l.b16 %v3842
    %v3910 = vunpack.c.h.b16 %v3842
    %v3911 = vunpack.c.l.b16 %v3843
    %v3912 = vunpack.c.h.b16 %v3843
    %v3913 = vunpack.c.l.b16 %v3844
    %v3914 = vunpack.c.h.b16 %v3844
    %v3915 = vunpack.c.l.b16 %v3845
    %v3916 = vunpack.c.h.b16 %v3845
    %v3917 = vunpack.c.l.b16 %v3846
    %v3918 = vunpack.c.h.b16 %v3846
    %v3919 = vunpack.c.l.b16 %v3847
    %v3920 = vunpack.c.h.b16 %v3847
    %v3921 = vunpack.c.l.b16 %v3848
    %v3922 = vunpack.c.h.b16 %v3848
    %v3923 = vunpack.c.l.b16 %v3849
    %v3924 = vunpack.c.h.b16 %v3849
    %v3925 = vunpack.c.l.b16 %v3850
    %v3926 = vunpack.c.h.b16 %v3850
    %v3927 = vunpack.c.l.b16 %v3851
    %v3928 = vunpack.c.h.b16 %v3851
    %v3929 = vunpack.c.l.b16 %v3852
    %v3930 = vunpack.c.h.b16 %v3852
    %v3931 = vunpack.c.l.b16 %v3853
    %v3932 = vunpack.c.h.b16 %v3853
    %v3933 = vunpack.c.l.b16 %v3854
    %v3934 = vunpack.c.h.b16 %v3854
    %v3935 = vunpack.c.l.b16 %v3855
    %v3936 = vunpack.c.h.b16 %v3855
    %v3937 = vunpack.c.l.b16 %v3856
    %v3938 = vunpack.c.h.b16 %v3856
    %v3939 = vunpack.c.l.b16 %v3857
    %v3940 = vunpack.c.h.b16 %v3857
    %v3941 = vunpack.c.l.b16 %v3858
    %v3942 = vunpack.c.h.b16 %v3858
    %v3943 = vunpack.c.l.b16 %v3859
    %v3944 = vunpack.c.h.b16 %v3859
    %v3945 = vunpack.c.l.b16 %v3860
    %v3946 = vunpack.c.h.b16 %v3860
    %v3947 = vunpack.c.l.b16 %v3861
    %v3948 = vunpack.c.h.b16 %v3861
    %v3949 = vunpack.c.l.b16 %v3862
    %v3950 = vunpack.c.h.b16 %v3862
    %v3951 = vunpack.c.l.b16 %v3863
    %v3952 = vunpack.c.h.b16 %v3863
    %v3953 = vunpack.c.l.b16 %v3864
    %v3954 = vunpack.c.h.b16 %v3864
    %v3955 = vunpack.c.l.b16 %v3865
    %v3956 = vunpack.c.h.b16 %v3865
    %v3957 = vunpack.c.l.b16 %v3866
    %v3958 = vunpack.c.h.b16 %v3866
    %v3959 = vunpack.c.l.b16 %v3867
    %v3960 = vunpack.c.h.b16 %v3867
    %v3961 = vunpack.c.l.b16 %v3868
    %v3962 = vunpack.c.h.b16 %v3868
    %v3963 = vunpack.c.l.b16 %v3869
    %v3964 = vunpack.c.h.b16 %v3869
    %v3965 = vunpack.c.l.b16 %v3870
    %v3966 = vunpack.c.h.b16 %v3870
    %v3967 = vpack.c.b16 %v3907, %v3903
    %v3968 = vpack.c.b16 %v3908, %v3904
    %v3969 = vpack.c.b16 %v3909, %v3905
    %v3970 = vpack.c.b16 %v3910, %v3906
    %v3971 = vpack.c.b16 %v3915, %v3911
    %v3972 = vpack.c.b16 %v3916, %v3912
    %v3973 = vpack.c.b16 %v3917, %v3913
    %v3974 = vpack.c.b16 %v3918, %v3914
    %v3975 = vpack.c.b16 %v3923, %v3919
    %v3976 = vpack.c.b16 %v3924, %v3920
    %v3977 = vpack.c.b16 %v3925, %v3921
    %v3978 = vpack.c.b16 %v3926, %v3922
    %v3979 = vpack.c.b16 %v3931, %v3927
    %v3980 = vpack.c.b16 %v3932, %v3928
    %v3981 = vpack.c.b16 %v3933, %v3929
    %v3982 = vpack.c.b16 %v3934, %v3930
    %v3983 = vpack.c.b16 %v3939, %v3935
    %v3984 = vpack.c.b16 %v3940, %v3936
    %v3985 = vpack.c.b16 %v3941, %v3937
    %v3986 = vpack.c.b16 %v3942, %v3938
    %v3987 = vpack.c.b16 %v3947, %v3943
    %v3988 = vpack.c.b16 %v3948, %v3944
    %v3989 = vpack.c.b16 %v3949, %v3945
    %v3990 = vpack.c.b16 %v3950, %v3946
    %v3991 = vpack.c.b16 %v3955, %v3951
    %v3992 = vpack.c.b16 %v3956, %v3952
    %v3993 = vpack.c.b16 %v3957, %v3953
    %v3994 = vpack.c.b16 %v3958, %v3954
    %v3995 = vpack.c.b16 %v3963, %v3959
    %v3996 = vpack.c.b16 %v3964, %v3960
    %v3997 = vpack.c.b16 %v3965, %v3961
    %v3998 = vpack.c.b16 %v3966, %v3962
    %4031 = vmatprep.subr.bf16.mxu0 %v3968
    %4032 = vmatpush1.bf16.msra.mxu0 %v3967
    %4033 = vmatprep.subr.bf16.mxu0 %v3972
    %4034 = vmatpush1.bf16.msra.mxu0 %v3971
    %4035 = vmatprep.subr.bf16.mxu0 %v3976
    %4036 = vmatpush1.bf16.msra.mxu0 %v3975
    %4037 = vmatprep.subr.bf16.mxu0 %v3980
    %4038 = vmatpush1.bf16.msra.mxu0 %v3979
    %4039 = vmatprep.subr.bf16.mxu0 %v3984
    %4040 = vmatpush1.bf16.msra.mxu0 %v3983
    %4041 = vmatprep.subr.bf16.mxu0 %v3988
    %4042 = vmatpush1.bf16.msra.mxu0 %v3987
    %4043 = vmatprep.subr.bf16.mxu0 %v3992
    %4044 = vmatpush1.bf16.msra.mxu0 %v3991
    %4045 = vmatprep.subr.bf16.mxu0 %v3996
    %4046 = vmatpush1.bf16.msra.mxu0 %v3995
    %4047 = vmatprep.subr.bf16.mxu0 0
    %4048 = vmatpush1.bf16.msra.mxu0 0
    %4049 = vmatprep.subr.bf16.mxu0 0
    %4050 = vmatpush1.bf16.msra.mxu0 0
    %4051 = vmatprep.subr.bf16.mxu0 0
    %4052 = vmatpush1.bf16.msra.mxu0 0
    %4053 = vmatprep.subr.bf16.mxu0 0
    %4054 = vmatpush1.bf16.msra.mxu0 0
    %4055 = vmatprep.subr.bf16.mxu0 0
    %4056 = vmatpush1.bf16.msra.mxu0 0
    %4057 = vmatprep.subr.bf16.mxu0 0
    %4058 = vmatpush1.bf16.msra.mxu0 0
    %4059 = vmatprep.subr.bf16.mxu0 0
    %4060 = vmatpush1.bf16.msra.mxu0 0
    %4061 = vmatprep.subr.bf16.mxu0 0
    %4062 = vmatpush1.bf16.msra.mxu0 0
    %4063 = vmatprep.mubr.bf16.mxu0 0
    %4064 = vmatmul.mubr.bf16.gmra.mrb[0].mxu0 %v3838
    %v4065 = vpop.f32.mrb[0].mxu0
    %v4066 = vadd.f32 0.0, %v4065
    %v4067 = vpop.f32.mrb[0].mxu0
    %v4068 = vadd.f32 0.0, %v4067
    %v4069 = vpop.f32.mrb[0].mxu0
    %v4070 = vpop.f32.mrb[0].mxu0
    %4071 = vdwg.mxu0
    %4072 = vmatprep.subr.bf16.mxu0 %v3970
    %4073 = vmatpush1.bf16.msra.mxu0 %v3969
    %4074 = vmatprep.subr.bf16.mxu0 %v3974
    %4075 = vmatpush1.bf16.msra.mxu0 %v3973
    %4076 = vmatprep.subr.bf16.mxu0 %v3978
    %4077 = vmatpush1.bf16.msra.mxu0 %v3977
    %4078 = vmatprep.subr.bf16.mxu0 %v3982
    %4079 = vmatpush1.bf16.msra.mxu0 %v3981
    %4080 = vmatprep.subr.bf16.mxu0 %v3986
    %4081 = vmatpush1.bf16.msra.mxu0 %v3985
    %4082 = vmatprep.subr.bf16.mxu0 %v3990
    %4083 = vmatpush1.bf16.msra.mxu0 %v3989
    %4084 = vmatprep.subr.bf16.mxu0 %v3994
    %4085 = vmatpush1.bf16.msra.mxu0 %v3993
    %4086 = vmatprep.subr.bf16.mxu0 %v3998
    %4087 = vmatpush1.bf16.msra.mxu0 %v3997
    %4088 = vmatprep.subr.bf16.mxu0 0
    %4089 = vmatpush1.bf16.msra.mxu0 0
    %4090 = vmatprep.subr.bf16.mxu0 0
    %4091 = vmatpush1.bf16.msra.mxu0 0
    %4092 = vmatprep.subr.bf16.mxu0 0
    %4093 = vmatpush1.bf16.msra.mxu0 0
    %4094 = vmatprep.subr.bf16.mxu0 0
    %4095 = vmatpush1.bf16.msra.mxu0 0
    %4096 = vmatprep.subr.bf16.mxu0 0
    %4097 = vmatpush1.bf16.msra.mxu0 0
    %4098 = vmatprep.subr.bf16.mxu0 0
    %4099 = vmatpush1.bf16.msra.mxu0 0
    %4100 = vmatprep.subr.bf16.mxu0 0
    %4101 = vmatpush1.bf16.msra.mxu0 0
    %4102 = vmatprep.subr.bf16.mxu0 0
    %4103 = vmatpush1.bf16.msra.mxu0 0
    %4104 = vmatprep.mubr.bf16.mxu0 0
    %4105 = vmatmul.mubr.bf16.gmra.mrb[0].mxu0 %v3838
    %v4106 = vpop.f32.mrb[0].mxu0
    %v4107 = vadd.f32 0.0, %v4106
    %v4108 = vpop.f32.mrb[0].mxu0
    %v4109 = vadd.f32 0.0, %v4108
    %v4110 = vpop.f32.mrb[0].mxu0
    %v4111 = vpop.f32.mrb[0].mxu0
    %4112 = vdwg.mxu0
    %v4113 = vadd.f32 %v514, %v4066
    %v4114 = vadd.f32 %v516, %v4068
    %v4115 = vadd.f32 %v555, %v4107
    %v4116 = vadd.f32 %v557, %v4109
    %v4117 = vmul.f32 %v4113, 0.5
    %v4118 = vmul.f32 %v4114, 0.5
    %v4119 = vmul.f32 %v4115, 0.5
    %v4120 = vtanh.pop %v4117
    %v4121 = vtanh.pop %v4118
    %v4122 = vtanh.pop %v4119
    %v4123 = vmul.f32 %v4120, 0.5
    %v4124 = vmul.f32 %v4121, 0.5
    %v4125 = vmul.f32 %v4122, 0.5
    %v4126 = vadd.f32 %v4123, 0.5
    %v4127 = vadd.f32 %v4124, 0.5
    %v4128 = vadd.f32 %v4125, 0.5
    %v4129 = vtanh.pop %v4116
    %v4130 = vmul.f32 %v4127, %v3834
    %v4131 = vmul.f32 %v4126, %v4129
    %v4132 = vadd.f32 %v4130, %v4131
    %v4133 = vtanh.pop %v4132
    %v4134 = vmul.f32 %v4128, %v4133
    %4135 = vst [vmem:[#allocation2 + $0x58] sm:$0xff] %v4134
    %v4136 = vpack.c.bf16 %v4134, %v4134
    %v4137 = vld [vmem:[#allocation5] sm:$0xff]
    %v4138 = vld [vmem:[#allocation5 + $0x8] sm:$0xff]
    %v4139 = vld [vmem:[#allocation5 + $0x10] sm:$0xff]
    %v4140 = vld [vmem:[#allocation5 + $0x18] sm:$0xff]
    %v4141 = vld [vmem:[#allocation5 + $0x20] sm:$0xff]
    %v4142 = vld [vmem:[#allocation5 + $0x28] sm:$0xff]
    %v4143 = vld [vmem:[#allocation5 + $0x30] sm:$0xff]
    %v4144 = vld [vmem:[#allocation5 + $0x38] sm:$0xff]
    %v4145 = vld [vmem:[#allocation5 + $0x40] sm:$0xff]
    %v4146 = vld [vmem:[#allocation5 + $0x48] sm:$0xff]
    %v4147 = vld [vmem:[#allocation5 + $0x50] sm:$0xff]
    %v4148 = vld [vmem:[#allocation5 + $0x58] sm:$0xff]
    %v4149 = vld [vmem:[#allocation5 + $0x60] sm:$0xff]
    %v4150 = vld [vmem:[#allocation5 + $0x68] sm:$0xff]
    %v4151 = vld [vmem:[#allocation5 + $0x70] sm:$0xff]
    %v4152 = vld [vmem:[#allocation5 + $0x78] sm:$0xff]
    %v4153 = vld [vmem:[#allocation5 + $0x80] sm:$0xff]
    %v4154 = vld [vmem:[#allocation5 + $0x88] sm:$0xff]
    %v4155 = vld [vmem:[#allocation5 + $0x90] sm:$0xff]
    %v4156 = vld [vmem:[#allocation5 + $0x98] sm:$0xff]
    %v4157 = vld [vmem:[#allocation5 + $0xa0] sm:$0xff]
    %v4158 = vld [vmem:[#allocation5 + $0xa8] sm:$0xff]
    %v4159 = vld [vmem:[#allocation5 + $0xb0] sm:$0xff]
    %v4160 = vld [vmem:[#allocation5 + $0xb8] sm:$0xff]
    %v4161 = vld [vmem:[#allocation5 + $0xc0] sm:$0xff]
    %v4162 = vld [vmem:[#allocation5 + $0xc8] sm:$0xff]
    %v4163 = vld [vmem:[#allocation5 + $0xd0] sm:$0xff]
    %v4164 = vld [vmem:[#allocation5 + $0xd8] sm:$0xff]
    %v4165 = vld [vmem:[#allocation5 + $0xe0] sm:$0xff]
    %v4166 = vld [vmem:[#allocation5 + $0xe8] sm:$0xff]
    %v4167 = vld [vmem:[#allocation5 + $0xf0] sm:$0xff]
    %v4168 = vld [vmem:[#allocation5 + $0xf8] sm:$0xff]
    %v4201 = vunpack.c.l.b16 %v4137
    %v4202 = vunpack.c.h.b16 %v4137
    %v4203 = vunpack.c.l.b16 %v4138
    %v4204 = vunpack.c.h.b16 %v4138
    %v4205 = vunpack.c.l.b16 %v4139
    %v4206 = vunpack.c.h.b16 %v4139
    %v4207 = vunpack.c.l.b16 %v4140
    %v4208 = vunpack.c.h.b16 %v4140
    %v4209 = vunpack.c.l.b16 %v4141
    %v4210 = vunpack.c.h.b16 %v4141
    %v4211 = vunpack.c.l.b16 %v4142
    %v4212 = vunpack.c.h.b16 %v4142
    %v4213 = vunpack.c.l.b16 %v4143
    %v4214 = vunpack.c.h.b16 %v4143
    %v4215 = vunpack.c.l.b16 %v4144
    %v4216 = vunpack.c.h.b16 %v4144
    %v4217 = vunpack.c.l.b16 %v4145
    %v4218 = vunpack.c.h.b16 %v4145
    %v4219 = vunpack.c.l.b16 %v4146
    %v4220 = vunpack.c.h.b16 %v4146
    %v4221 = vunpack.c.l.b16 %v4147
    %v4222 = vunpack.c.h.b16 %v4147
    %v4223 = vunpack.c.l.b16 %v4148
    %v4224 = vunpack.c.h.b16 %v4148
    %v4225 = vunpack.c.l.b16 %v4149
    %v4226 = vunpack.c.h.b16 %v4149
    %v4227 = vunpack.c.l.b16 %v4150
    %v4228 = vunpack.c.h.b16 %v4150
    %v4229 = vunpack.c.l.b16 %v4151
    %v4230 = vunpack.c.h.b16 %v4151
    %v4231 = vunpack.c.l.b16 %v4152
    %v4232 = vunpack.c.h.b16 %v4152
    %v4233 = vunpack.c.l.b16 %v4153
    %v4234 = vunpack.c.h.b16 %v4153
    %v4235 = vunpack.c.l.b16 %v4154
    %v4236 = vunpack.c.h.b16 %v4154
    %v4237 = vunpack.c.l.b16 %v4155
    %v4238 = vunpack.c.h.b16 %v4155
    %v4239 = vunpack.c.l.b16 %v4156
    %v4240 = vunpack.c.h.b16 %v4156
    %v4241 = vunpack.c.l.b16 %v4157
    %v4242 = vunpack.c.h.b16 %v4157
    %v4243 = vunpack.c.l.b16 %v4158
    %v4244 = vunpack.c.h.b16 %v4158
    %v4245 = vunpack.c.l.b16 %v4159
    %v4246 = vunpack.c.h.b16 %v4159
    %v4247 = vunpack.c.l.b16 %v4160
    %v4248 = vunpack.c.h.b16 %v4160
    %v4249 = vunpack.c.l.b16 %v4161
    %v4250 = vunpack.c.h.b16 %v4161
    %v4251 = vunpack.c.l.b16 %v4162
    %v4252 = vunpack.c.h.b16 %v4162
    %v4253 = vunpack.c.l.b16 %v4163
    %v4254 = vunpack.c.h.b16 %v4163
    %v4255 = vunpack.c.l.b16 %v4164
    %v4256 = vunpack.c.h.b16 %v4164
    %v4257 = vunpack.c.l.b16 %v4165
    %v4258 = vunpack.c.h.b16 %v4165
    %v4259 = vunpack.c.l.b16 %v4166
    %v4260 = vunpack.c.h.b16 %v4166
    %v4261 = vunpack.c.l.b16 %v4167
    %v4262 = vunpack.c.h.b16 %v4167
    %v4263 = vunpack.c.l.b16 %v4168
    %v4264 = vunpack.c.h.b16 %v4168
    %v4265 = vpack.c.b16 %v4205, %v4201
    %v4266 = vpack.c.b16 %v4206, %v4202
    %v4267 = vpack.c.b16 %v4207, %v4203
    %v4268 = vpack.c.b16 %v4208, %v4204
    %v4269 = vpack.c.b16 %v4213, %v4209
    %v4270 = vpack.c.b16 %v4214, %v4210
    %v4271 = vpack.c.b16 %v4215, %v4211
    %v4272 = vpack.c.b16 %v4216, %v4212
    %v4273 = vpack.c.b16 %v4221, %v4217
    %v4274 = vpack.c.b16 %v4222, %v4218
    %v4275 = vpack.c.b16 %v4223, %v4219
    %v4276 = vpack.c.b16 %v4224, %v4220
    %v4277 = vpack.c.b16 %v4229, %v4225
    %v4278 = vpack.c.b16 %v4230, %v4226
    %v4279 = vpack.c.b16 %v4231, %v4227
    %v4280 = vpack.c.b16 %v4232, %v4228
    %v4281 = vpack.c.b16 %v4237, %v4233
    %v4282 = vpack.c.b16 %v4238, %v4234
    %v4283 = vpack.c.b16 %v4239, %v4235
    %v4284 = vpack.c.b16 %v4240, %v4236
    %v4285 = vpack.c.b16 %v4245, %v4241
    %v4286 = vpack.c.b16 %v4246, %v4242
    %v4287 = vpack.c.b16 %v4247, %v4243
    %v4288 = vpack.c.b16 %v4248, %v4244
    %v4289 = vpack.c.b16 %v4253, %v4249
    %v4290 = vpack.c.b16 %v4254, %v4250
    %v4291 = vpack.c.b16 %v4255, %v4251
    %v4292 = vpack.c.b16 %v4256, %v4252
    %v4293 = vpack.c.b16 %v4261, %v4257
    %v4294 = vpack.c.b16 %v4262, %v4258
    %v4295 = vpack.c.b16 %v4263, %v4259
    %v4296 = vpack.c.b16 %v4264, %v4260
    %4329 = vmatprep.subr.bf16.mxu0 %v4266
    %4330 = vmatpush1.bf16.msra.mxu0 %v4265
    %4331 = vmatprep.subr.bf16.mxu0 %v4270
    %4332 = vmatpush1.bf16.msra.mxu0 %v4269
    %4333 = vmatprep.subr.bf16.mxu0 %v4274
    %4334 = vmatpush1.bf16.msra.mxu0 %v4273
    %4335 = vmatprep.subr.bf16.mxu0 %v4278
    %4336 = vmatpush1.bf16.msra.mxu0 %v4277
    %4337 = vmatprep.subr.bf16.mxu0 %v4282
    %4338 = vmatpush1.bf16.msra.mxu0 %v4281
    %4339 = vmatprep.subr.bf16.mxu0 %v4286
    %4340 = vmatpush1.bf16.msra.mxu0 %v4285
    %4341 = vmatprep.subr.bf16.mxu0 %v4290
    %4342 = vmatpush1.bf16.msra.mxu0 %v4289
    %4343 = vmatprep.subr.bf16.mxu0 %v4294
    %4344 = vmatpush1.bf16.msra.mxu0 %v4293
    %4345 = vmatprep.subr.bf16.mxu0 0
    %4346 = vmatpush1.bf16.msra.mxu0 0
    %4347 = vmatprep.subr.bf16.mxu0 0
    %4348 = vmatpush1.bf16.msra.mxu0 0
    %4349 = vmatprep.subr.bf16.mxu0 0
    %4350 = vmatpush1.bf16.msra.mxu0 0
    %4351 = vmatprep.subr.bf16.mxu0 0
    %4352 = vmatpush1.bf16.msra.mxu0 0
    %4353 = vmatprep.subr.bf16.mxu0 0
    %4354 = vmatpush1.bf16.msra.mxu0 0
    %4355 = vmatprep.subr.bf16.mxu0 0
    %4356 = vmatpush1.bf16.msra.mxu0 0
    %4357 = vmatprep.subr.bf16.mxu0 0
    %4358 = vmatpush1.bf16.msra.mxu0 0
    %4359 = vmatprep.subr.bf16.mxu0 0
    %4360 = vmatpush1.bf16.msra.mxu0 0
    %4361 = vmatprep.mubr.bf16.mxu0 0
    %4362 = vmatmul.mubr.bf16.gmra.mrb[0].mxu0 %v4136
    %v4363 = vpop.f32.mrb[0].mxu0
    %v4364 = vadd.f32 0.0, %v4363
    %v4365 = vpop.f32.mrb[0].mxu0
    %v4366 = vadd.f32 0.0, %v4365
    %v4367 = vpop.f32.mrb[0].mxu0
    %v4368 = vpop.f32.mrb[0].mxu0
    %4369 = vdwg.mxu0
    %4370 = vmatprep.subr.bf16.mxu0 %v4268
    %4371 = vmatpush1.bf16.msra.mxu0 %v4267
    %4372 = vmatprep.subr.bf16.mxu0 %v4272
    %4373 = vmatpush1.bf16.msra.mxu0 %v4271
    %4374 = vmatprep.subr.bf16.mxu0 %v4276
    %4375 = vmatpush1.bf16.msra.mxu0 %v4275
    %4376 = vmatprep.subr.bf16.mxu0 %v4280
    %4377 = vmatpush1.bf16.msra.mxu0 %v4279
    %4378 = vmatprep.subr.bf16.mxu0 %v4284
    %4379 = vmatpush1.bf16.msra.mxu0 %v4283
    %4380 = vmatprep.subr.bf16.mxu0 %v4288
    %4381 = vmatpush1.bf16.msra.mxu0 %v4287
    %4382 = vmatprep.subr.bf16.mxu0 %v4292
    %4383 = vmatpush1.bf16.msra.mxu0 %v4291
    %4384 = vmatprep.subr.bf16.mxu0 %v4296
    %4385 = vmatpush1.bf16.msra.mxu0 %v4295
    %4386 = vmatprep.subr.bf16.mxu0 0
    %4387 = vmatpush1.bf16.msra.mxu0 0
    %4388 = vmatprep.subr.bf16.mxu0 0
    %4389 = vmatpush1.bf16.msra.mxu0 0
    %4390 = vmatprep.subr.bf16.mxu0 0
    %4391 = vmatpush1.bf16.msra.mxu0 0
    %4392 = vmatprep.subr.bf16.mxu0 0
    %4393 = vmatpush1.bf16.msra.mxu0 0
    %4394 = vmatprep.subr.bf16.mxu0 0
    %4395 = vmatpush1.bf16.msra.mxu0 0
    %4396 = vmatprep.subr.bf16.mxu0 0
    %4397 = vmatpush1.bf16.msra.mxu0 0
    %4398 = vmatprep.subr.bf16.mxu0 0
    %4399 = vmatpush1.bf16.msra.mxu0 0
    %4400 = vmatprep.subr.bf16.mxu0 0
    %4401 = vmatpush1.bf16.msra.mxu0 0
    %4402 = vmatprep.mubr.bf16.mxu0 0
    %4403 = vmatmul.mubr.bf16.gmra.mrb[0].mxu0 %v4136
    %v4404 = vpop.f32.mrb[0].mxu0
    %v4405 = vadd.f32 0.0, %v4404
    %v4406 = vpop.f32.mrb[0].mxu0
    %v4407 = vadd.f32 0.0, %v4406
    %v4408 = vpop.f32.mrb[0].mxu0
    %v4409 = vpop.f32.mrb[0].mxu0
    %4410 = vdwg.mxu0
    %v4411 = vadd.f32 %v514, %v4364
    %v4412 = vadd.f32 %v516, %v4366
    %v4413 = vadd.f32 %v555, %v4405
    %v4414 = vadd.f32 %v557, %v4407
    %v4415 = vmul.f32 %v4411, 0.5
    %v4416 = vmul.f32 %v4412, 0.5
    %v4417 = vmul.f32 %v4413, 0.5
    %v4418 = vtanh.pop %v4415
    %v4419 = vtanh.pop %v4416
    %v4420 = vtanh.pop %v4417
    %v4421 = vmul.f32 %v4418, 0.5
    %v4422 = vmul.f32 %v4419, 0.5
    %v4423 = vmul.f32 %v4420, 0.5
    %v4424 = vadd.f32 %v4421, 0.5
    %v4425 = vadd.f32 %v4422, 0.5
    %v4426 = vadd.f32 %v4423, 0.5
    %v4427 = vtanh.pop %v4414
    %v4428 = vmul.f32 %v4425, %v4132
    %v4429 = vmul.f32 %v4424, %v4427
    %v4430 = vadd.f32 %v4428, %v4429
    %v4431 = vtanh.pop %v4430
    %v4432 = vmul.f32 %v4426, %v4431
    %4433 = vst [vmem:[#allocation2 + $0x60] sm:$0xff] %v4432
    %v4434 = vpack.c.bf16 %v4432, %v4432
    %v4435 = vld [vmem:[#allocation5] sm:$0xff]
    %v4436 = vld [vmem:[#allocation5 + $0x8] sm:$0xff]
    %v4437 = vld [vmem:[#allocation5 + $0x10] sm:$0xff]
    %v4438 = vld [vmem:[#allocation5 + $0x18] sm:$0xff]
    %v4439 = vld [vmem:[#allocation5 + $0x20] sm:$0xff]
    %v4440 = vld [vmem:[#allocation5 + $0x28] sm:$0xff]
    %v4441 = vld [vmem:[#allocation5 + $0x30] sm:$0xff]
    %v4442 = vld [vmem:[#allocation5 + $0x38] sm:$0xff]
    %v4443 = vld [vmem:[#allocation5 + $0x40] sm:$0xff]
    %v4444 = vld [vmem:[#allocation5 + $0x48] sm:$0xff]
    %v4445 = vld [vmem:[#allocation5 + $0x50] sm:$0xff]
    %v4446 = vld [vmem:[#allocation5 + $0x58] sm:$0xff]
    %v4447 = vld [vmem:[#allocation5 + $0x60] sm:$0xff]
    %v4448 = vld [vmem:[#allocation5 + $0x68] sm:$0xff]
    %v4449 = vld [vmem:[#allocation5 + $0x70] sm:$0xff]
    %v4450 = vld [vmem:[#allocation5 + $0x78] sm:$0xff]
    %v4451 = vld [vmem:[#allocation5 + $0x80] sm:$0xff]
    %v4452 = vld [vmem:[#allocation5 + $0x88] sm:$0xff]
    %v4453 = vld [vmem:[#allocation5 + $0x90] sm:$0xff]
    %v4454 = vld [vmem:[#allocation5 + $0x98] sm:$0xff]
    %v4455 = vld [vmem:[#allocation5 + $0xa0] sm:$0xff]
    %v4456 = vld [vmem:[#allocation5 + $0xa8] sm:$0xff]
    %v4457 = vld [vmem:[#allocation5 + $0xb0] sm:$0xff]
    %v4458 = vld [vmem:[#allocation5 + $0xb8] sm:$0xff]
    %v4459 = vld [vmem:[#allocation5 + $0xc0] sm:$0xff]
    %v4460 = vld [vmem:[#allocation5 + $0xc8] sm:$0xff]
    %v4461 = vld [vmem:[#allocation5 + $0xd0] sm:$0xff]
    %v4462 = vld [vmem:[#allocation5 + $0xd8] sm:$0xff]
    %v4463 = vld [vmem:[#allocation5 + $0xe0] sm:$0xff]
    %v4464 = vld [vmem:[#allocation5 + $0xe8] sm:$0xff]
    %v4465 = vld [vmem:[#allocation5 + $0xf0] sm:$0xff]
    %v4466 = vld [vmem:[#allocation5 + $0xf8] sm:$0xff]
    %v4499 = vunpack.c.l.b16 %v4435
    %v4500 = vunpack.c.h.b16 %v4435
    %v4501 = vunpack.c.l.b16 %v4436
    %v4502 = vunpack.c.h.b16 %v4436
    %v4503 = vunpack.c.l.b16 %v4437
    %v4504 = vunpack.c.h.b16 %v4437
    %v4505 = vunpack.c.l.b16 %v4438
    %v4506 = vunpack.c.h.b16 %v4438
    %v4507 = vunpack.c.l.b16 %v4439
    %v4508 = vunpack.c.h.b16 %v4439
    %v4509 = vunpack.c.l.b16 %v4440
    %v4510 = vunpack.c.h.b16 %v4440
    %v4511 = vunpack.c.l.b16 %v4441
    %v4512 = vunpack.c.h.b16 %v4441
    %v4513 = vunpack.c.l.b16 %v4442
    %v4514 = vunpack.c.h.b16 %v4442
    %v4515 = vunpack.c.l.b16 %v4443
    %v4516 = vunpack.c.h.b16 %v4443
    %v4517 = vunpack.c.l.b16 %v4444
    %v4518 = vunpack.c.h.b16 %v4444
    %v4519 = vunpack.c.l.b16 %v4445
    %v4520 = vunpack.c.h.b16 %v4445
    %v4521 = vunpack.c.l.b16 %v4446
    %v4522 = vunpack.c.h.b16 %v4446
    %v4523 = vunpack.c.l.b16 %v4447
    %v4524 = vunpack.c.h.b16 %v4447
    %v4525 = vunpack.c.l.b16 %v4448
    %v4526 = vunpack.c.h.b16 %v4448
    %v4527 = vunpack.c.l.b16 %v4449
    %v4528 = vunpack.c.h.b16 %v4449
    %v4529 = vunpack.c.l.b16 %v4450
    %v4530 = vunpack.c.h.b16 %v4450
    %v4531 = vunpack.c.l.b16 %v4451
    %v4532 = vunpack.c.h.b16 %v4451
    %v4533 = vunpack.c.l.b16 %v4452
    %v4534 = vunpack.c.h.b16 %v4452
    %v4535 = vunpack.c.l.b16 %v4453
    %v4536 = vunpack.c.h.b16 %v4453
    %v4537 = vunpack.c.l.b16 %v4454
    %v4538 = vunpack.c.h.b16 %v4454
    %v4539 = vunpack.c.l.b16 %v4455
    %v4540 = vunpack.c.h.b16 %v4455
    %v4541 = vunpack.c.l.b16 %v4456
    %v4542 = vunpack.c.h.b16 %v4456
    %v4543 = vunpack.c.l.b16 %v4457
    %v4544 = vunpack.c.h.b16 %v4457
    %v4545 = vunpack.c.l.b16 %v4458
    %v4546 = vunpack.c.h.b16 %v4458
    %v4547 = vunpack.c.l.b16 %v4459
    %v4548 = vunpack.c.h.b16 %v4459
    %v4549 = vunpack.c.l.b16 %v4460
    %v4550 = vunpack.c.h.b16 %v4460
    %v4551 = vunpack.c.l.b16 %v4461
    %v4552 = vunpack.c.h.b16 %v4461
    %v4553 = vunpack.c.l.b16 %v4462
    %v4554 = vunpack.c.h.b16 %v4462
    %v4555 = vunpack.c.l.b16 %v4463
    %v4556 = vunpack.c.h.b16 %v4463
    %v4557 = vunpack.c.l.b16 %v4464
    %v4558 = vunpack.c.h.b16 %v4464
    %v4559 = vunpack.c.l.b16 %v4465
    %v4560 = vunpack.c.h.b16 %v4465
    %v4561 = vunpack.c.l.b16 %v4466
    %v4562 = vunpack.c.h.b16 %v4466
    %v4563 = vpack.c.b16 %v4503, %v4499
    %v4564 = vpack.c.b16 %v4504, %v4500
    %v4565 = vpack.c.b16 %v4505, %v4501
    %v4566 = vpack.c.b16 %v4506, %v4502
    %v4567 = vpack.c.b16 %v4511, %v4507
    %v4568 = vpack.c.b16 %v4512, %v4508
    %v4569 = vpack.c.b16 %v4513, %v4509
    %v4570 = vpack.c.b16 %v4514, %v4510
    %v4571 = vpack.c.b16 %v4519, %v4515
    %v4572 = vpack.c.b16 %v4520, %v4516
    %v4573 = vpack.c.b16 %v4521, %v4517
    %v4574 = vpack.c.b16 %v4522, %v4518
    %v4575 = vpack.c.b16 %v4527, %v4523
    %v4576 = vpack.c.b16 %v4528, %v4524
    %v4577 = vpack.c.b16 %v4529, %v4525
    %v4578 = vpack.c.b16 %v4530, %v4526
    %v4579 = vpack.c.b16 %v4535, %v4531
    %v4580 = vpack.c.b16 %v4536, %v4532
    %v4581 = vpack.c.b16 %v4537, %v4533
    %v4582 = vpack.c.b16 %v4538, %v4534
    %v4583 = vpack.c.b16 %v4543, %v4539
    %v4584 = vpack.c.b16 %v4544, %v4540
    %v4585 = vpack.c.b16 %v4545, %v4541
    %v4586 = vpack.c.b16 %v4546, %v4542
    %v4587 = vpack.c.b16 %v4551, %v4547
    %v4588 = vpack.c.b16 %v4552, %v4548
    %v4589 = vpack.c.b16 %v4553, %v4549
    %v4590 = vpack.c.b16 %v4554, %v4550
    %v4591 = vpack.c.b16 %v4559, %v4555
    %v4592 = vpack.c.b16 %v4560, %v4556
    %v4593 = vpack.c.b16 %v4561, %v4557
    %v4594 = vpack.c.b16 %v4562, %v4558
    %4627 = vmatprep.subr.bf16.mxu0 %v4564
    %4628 = vmatpush1.bf16.msra.mxu0 %v4563
    %4629 = vmatprep.subr.bf16.mxu0 %v4568
    %4630 = vmatpush1.bf16.msra.mxu0 %v4567
    %4631 = vmatprep.subr.bf16.mxu0 %v4572
    %4632 = vmatpush1.bf16.msra.mxu0 %v4571
    %4633 = vmatprep.subr.bf16.mxu0 %v4576
    %4634 = vmatpush1.bf16.msra.mxu0 %v4575
    %4635 = vmatprep.subr.bf16.mxu0 %v4580
    %4636 = vmatpush1.bf16.msra.mxu0 %v4579
    %4637 = vmatprep.subr.bf16.mxu0 %v4584
    %4638 = vmatpush1.bf16.msra.mxu0 %v4583
    %4639 = vmatprep.subr.bf16.mxu0 %v4588
    %4640 = vmatpush1.bf16.msra.mxu0 %v4587
    %4641 = vmatprep.subr.bf16.mxu0 %v4592
    %4642 = vmatpush1.bf16.msra.mxu0 %v4591
    %4643 = vmatprep.subr.bf16.mxu0 0
    %4644 = vmatpush1.bf16.msra.mxu0 0
    %4645 = vmatprep.subr.bf16.mxu0 0
    %4646 = vmatpush1.bf16.msra.mxu0 0
    %4647 = vmatprep.subr.bf16.mxu0 0
    %4648 = vmatpush1.bf16.msra.mxu0 0
    %4649 = vmatprep.subr.bf16.mxu0 0
    %4650 = vmatpush1.bf16.msra.mxu0 0
    %4651 = vmatprep.subr.bf16.mxu0 0
    %4652 = vmatpush1.bf16.msra.mxu0 0
    %4653 = vmatprep.subr.bf16.mxu0 0
    %4654 = vmatpush1.bf16.msra.mxu0 0
    %4655 = vmatprep.subr.bf16.mxu0 0
    %4656 = vmatpush1.bf16.msra.mxu0 0
    %4657 = vmatprep.subr.bf16.mxu0 0
    %4658 = vmatpush1.bf16.msra.mxu0 0
    %4659 = vmatprep.mubr.bf16.mxu0 0
    %4660 = vmatmul.mubr.bf16.gmra.mrb[0].mxu0 %v4434
    %v4661 = vpop.f32.mrb[0].mxu0
    %v4662 = vadd.f32 0.0, %v4661
    %v4663 = vpop.f32.mrb[0].mxu0
    %v4664 = vadd.f32 0.0, %v4663
    %v4665 = vpop.f32.mrb[0].mxu0
    %v4666 = vpop.f32.mrb[0].mxu0
    %4667 = vdwg.mxu0
    %4668 = vmatprep.subr.bf16.mxu0 %v4566
    %4669 = vmatpush1.bf16.msra.mxu0 %v4565
    %4670 = vmatprep.subr.bf16.mxu0 %v4570
    %4671 = vmatpush1.bf16.msra.mxu0 %v4569
    %4672 = vmatprep.subr.bf16.mxu0 %v4574
    %4673 = vmatpush1.bf16.msra.mxu0 %v4573
    %4674 = vmatprep.subr.bf16.mxu0 %v4578
    %4675 = vmatpush1.bf16.msra.mxu0 %v4577
    %4676 = vmatprep.subr.bf16.mxu0 %v4582
    %4677 = vmatpush1.bf16.msra.mxu0 %v4581
    %4678 = vmatprep.subr.bf16.mxu0 %v4586
    %4679 = vmatpush1.bf16.msra.mxu0 %v4585
    %4680 = vmatprep.subr.bf16.mxu0 %v4590
    %4681 = vmatpush1.bf16.msra.mxu0 %v4589
    %4682 = vmatprep.subr.bf16.mxu0 %v4594
    %4683 = vmatpush1.bf16.msra.mxu0 %v4593
    %4684 = vmatprep.subr.bf16.mxu0 0
    %4685 = vmatpush1.bf16.msra.mxu0 0
    %4686 = vmatprep.subr.bf16.mxu0 0
    %4687 = vmatpush1.bf16.msra.mxu0 0
    %4688 = vmatprep.subr.bf16.mxu0 0
    %4689 = vmatpush1.bf16.msra.mxu0 0
    %4690 = vmatprep.subr.bf16.mxu0 0
    %4691 = vmatpush1.bf16.msra.mxu0 0
    %4692 = vmatprep.subr.bf16.mxu0 0
    %4693 = vmatpush1.bf16.msra.mxu0 0
    %4694 = vmatprep.subr.bf16.mxu0 0
    %4695 = vmatpush1.bf16.msra.mxu0 0
    %4696 = vmatprep.subr.bf16.mxu0 0
    %4697 = vmatpush1.bf16.msra.mxu0 0
    %4698 = vmatprep.subr.bf16.mxu0 0
    %4699 = vmatpush1.bf16.msra.mxu0 0
    %4700 = vmatprep.mubr.bf16.mxu0 0
    %4701 = vmatmul.mubr.bf16.gmra.mrb[0].mxu0 %v4434
    %v4702 = vpop.f32.mrb[0].mxu0
    %v4703 = vadd.f32 0.0, %v4702
    %v4704 = vpop.f32.mrb[0].mxu0
    %v4705 = vadd.f32 0.0, %v4704
    %v4706 = vpop.f32.mrb[0].mxu0
    %v4707 = vpop.f32.mrb[0].mxu0
    %4708 = vdwg.mxu0
    %v4709 = vadd.f32 %v514, %v4662
    %v4710 = vadd.f32 %v516, %v4664
    %v4711 = vadd.f32 %v555, %v4703
    %v4712 = vadd.f32 %v557, %v4705
    %v4713 = vmul.f32 %v4709, 0.5
    %v4714 = vmul.f32 %v4710, 0.5
    %v4715 = vmul.f32 %v4711, 0.5
    %v4716 = vtanh.pop %v4713
    %v4717 = vtanh.pop %v4714
    %v4718 = vtanh.pop %v4715
    %v4719 = vmul.f32 %v4716, 0.5
    %v4720 = vmul.f32 %v4717, 0.5
    %v4721 = vmul.f32 %v4718, 0.5
    %v4722 = vadd.f32 %v4719, 0.5
    %v4723 = vadd.f32 %v4720, 0.5
    %v4724 = vadd.f32 %v4721, 0.5
    %v4725 = vtanh.pop %v4712
    %v4726 = vmul.f32 %v4723, %v4430
    %v4727 = vmul.f32 %v4722, %v4725
    %v4728 = vadd.f32 %v4726, %v4727
    %v4729 = vtanh.pop %v4728
    %v4730 = vmul.f32 %v4724, %v4729
    %4731 = vst [vmem:[#allocation2 + $0x68] sm:$0xff] %v4730
    %v4732 = vpack.c.bf16 %v4730, %v4730
    %v4733 = vld [vmem:[#allocation5] sm:$0xff]
    %v4734 = vld [vmem:[#allocation5 + $0x8] sm:$0xff]
    %v4735 = vld [vmem:[#allocation5 + $0x10] sm:$0xff]
    %v4736 = vld [vmem:[#allocation5 + $0x18] sm:$0xff]
    %v4737 = vld [vmem:[#allocation5 + $0x20] sm:$0xff]
    %v4738 = vld [vmem:[#allocation5 + $0x28] sm:$0xff]
    %v4739 = vld [vmem:[#allocation5 + $0x30] sm:$0xff]
    %v4740 = vld [vmem:[#allocation5 + $0x38] sm:$0xff]
    %v4741 = vld [vmem:[#allocation5 + $0x40] sm:$0xff]
    %v4742 = vld [vmem:[#allocation5 + $0x48] sm:$0xff]
    %v4743 = vld [vmem:[#allocation5 + $0x50] sm:$0xff]
    %v4744 = vld [vmem:[#allocation5 + $0x58] sm:$0xff]
    %v4745 = vld [vmem:[#allocation5 + $0x60] sm:$0xff]
    %v4746 = vld [vmem:[#allocation5 + $0x68] sm:$0xff]
    %v4747 = vld [vmem:[#allocation5 + $0x70] sm:$0xff]
    %v4748 = vld [vmem:[#allocation5 + $0x78] sm:$0xff]
    %v4749 = vld [vmem:[#allocation5 + $0x80] sm:$0xff]
    %v4750 = vld [vmem:[#allocation5 + $0x88] sm:$0xff]
    %v4751 = vld [vmem:[#allocation5 + $0x90] sm:$0xff]
    %v4752 = vld [vmem:[#allocation5 + $0x98] sm:$0xff]
    %v4753 = vld [vmem:[#allocation5 + $0xa0] sm:$0xff]
    %v4754 = vld [vmem:[#allocation5 + $0xa8] sm:$0xff]
    %v4755 = vld [vmem:[#allocation5 + $0xb0] sm:$0xff]
    %v4756 = vld [vmem:[#allocation5 + $0xb8] sm:$0xff]
    %v4757 = vld [vmem:[#allocation5 + $0xc0] sm:$0xff]
    %v4758 = vld [vmem:[#allocation5 + $0xc8] sm:$0xff]
    %v4759 = vld [vmem:[#allocation5 + $0xd0] sm:$0xff]
    %v4760 = vld [vmem:[#allocation5 + $0xd8] sm:$0xff]
    %v4761 = vld [vmem:[#allocation5 + $0xe0] sm:$0xff]
    %v4762 = vld [vmem:[#allocation5 + $0xe8] sm:$0xff]
    %v4763 = vld [vmem:[#allocation5 + $0xf0] sm:$0xff]
    %v4764 = vld [vmem:[#allocation5 + $0xf8] sm:$0xff]
    %v4797 = vunpack.c.l.b16 %v4733
    %v4798 = vunpack.c.h.b16 %v4733
    %v4799 = vunpack.c.l.b16 %v4734
    %v4800 = vunpack.c.h.b16 %v4734
    %v4801 = vunpack.c.l.b16 %v4735
    %v4802 = vunpack.c.h.b16 %v4735
    %v4803 = vunpack.c.l.b16 %v4736
    %v4804 = vunpack.c.h.b16 %v4736
    %v4805 = vunpack.c.l.b16 %v4737
    %v4806 = vunpack.c.h.b16 %v4737
    %v4807 = vunpack.c.l.b16 %v4738
    %v4808 = vunpack.c.h.b16 %v4738
    %v4809 = vunpack.c.l.b16 %v4739
    %v4810 = vunpack.c.h.b16 %v4739
    %v4811 = vunpack.c.l.b16 %v4740
    %v4812 = vunpack.c.h.b16 %v4740
    %v4813 = vunpack.c.l.b16 %v4741
    %v4814 = vunpack.c.h.b16 %v4741
    %v4815 = vunpack.c.l.b16 %v4742
    %v4816 = vunpack.c.h.b16 %v4742
    %v4817 = vunpack.c.l.b16 %v4743
    %v4818 = vunpack.c.h.b16 %v4743
    %v4819 = vunpack.c.l.b16 %v4744
    %v4820 = vunpack.c.h.b16 %v4744
    %v4821 = vunpack.c.l.b16 %v4745
    %v4822 = vunpack.c.h.b16 %v4745
    %v4823 = vunpack.c.l.b16 %v4746
    %v4824 = vunpack.c.h.b16 %v4746
    %v4825 = vunpack.c.l.b16 %v4747
    %v4826 = vunpack.c.h.b16 %v4747
    %v4827 = vunpack.c.l.b16 %v4748
    %v4828 = vunpack.c.h.b16 %v4748
    %v4829 = vunpack.c.l.b16 %v4749
    %v4830 = vunpack.c.h.b16 %v4749
    %v4831 = vunpack.c.l.b16 %v4750
    %v4832 = vunpack.c.h.b16 %v4750
    %v4833 = vunpack.c.l.b16 %v4751
    %v4834 = vunpack.c.h.b16 %v4751
    %v4835 = vunpack.c.l.b16 %v4752
    %v4836 = vunpack.c.h.b16 %v4752
    %v4837 = vunpack.c.l.b16 %v4753
    %v4838 = vunpack.c.h.b16 %v4753
    %v4839 = vunpack.c.l.b16 %v4754
    %v4840 = vunpack.c.h.b16 %v4754
    %v4841 = vunpack.c.l.b16 %v4755
    %v4842 = vunpack.c.h.b16 %v4755
    %v4843 = vunpack.c.l.b16 %v4756
    %v4844 = vunpack.c.h.b16 %v4756
    %v4845 = vunpack.c.l.b16 %v4757
    %v4846 = vunpack.c.h.b16 %v4757
    %v4847 = vunpack.c.l.b16 %v4758
    %v4848 = vunpack.c.h.b16 %v4758
    %v4849 = vunpack.c.l.b16 %v4759
    %v4850 = vunpack.c.h.b16 %v4759
    %v4851 = vunpack.c.l.b16 %v4760
    %v4852 = vunpack.c.h.b16 %v4760
    %v4853 = vunpack.c.l.b16 %v4761
    %v4854 = vunpack.c.h.b16 %v4761
    %v4855 = vunpack.c.l.b16 %v4762
    %v4856 = vunpack.c.h.b16 %v4762
    %v4857 = vunpack.c.l.b16 %v4763
    %v4858 = vunpack.c.h.b16 %v4763
    %v4859 = vunpack.c.l.b16 %v4764
    %v4860 = vunpack.c.h.b16 %v4764
    %v4861 = vpack.c.b16 %v4801, %v4797
    %v4862 = vpack.c.b16 %v4802, %v4798
    %v4863 = vpack.c.b16 %v4803, %v4799
    %v4864 = vpack.c.b16 %v4804, %v4800
    %v4865 = vpack.c.b16 %v4809, %v4805
    %v4866 = vpack.c.b16 %v4810, %v4806
    %v4867 = vpack.c.b16 %v4811, %v4807
    %v4868 = vpack.c.b16 %v4812, %v4808
    %v4869 = vpack.c.b16 %v4817, %v4813
    %v4870 = vpack.c.b16 %v4818, %v4814
    %v4871 = vpack.c.b16 %v4819, %v4815
    %v4872 = vpack.c.b16 %v4820, %v4816
    %v4873 = vpack.c.b16 %v4825, %v4821
    %v4874 = vpack.c.b16 %v4826, %v4822
    %v4875 = vpack.c.b16 %v4827, %v4823
    %v4876 = vpack.c.b16 %v4828, %v4824
    %v4877 = vpack.c.b16 %v4833, %v4829
    %v4878 = vpack.c.b16 %v4834, %v4830
    %v4879 = vpack.c.b16 %v4835, %v4831
    %v4880 = vpack.c.b16 %v4836, %v4832
    %v4881 = vpack.c.b16 %v4841, %v4837
    %v4882 = vpack.c.b16 %v4842, %v4838
    %v4883 = vpack.c.b16 %v4843, %v4839
    %v4884 = vpack.c.b16 %v4844, %v4840
    %v4885 = vpack.c.b16 %v4849, %v4845
    %v4886 = vpack.c.b16 %v4850, %v4846
    %v4887 = vpack.c.b16 %v4851, %v4847
    %v4888 = vpack.c.b16 %v4852, %v4848
    %v4889 = vpack.c.b16 %v4857, %v4853
    %v4890 = vpack.c.b16 %v4858, %v4854
    %v4891 = vpack.c.b16 %v4859, %v4855
    %v4892 = vpack.c.b16 %v4860, %v4856
    %4925 = vmatprep.subr.bf16.mxu0 %v4862
    %4926 = vmatpush1.bf16.msra.mxu0 %v4861
    %4927 = vmatprep.subr.bf16.mxu0 %v4866
    %4928 = vmatpush1.bf16.msra.mxu0 %v4865
    %4929 = vmatprep.subr.bf16.mxu0 %v4870
    %4930 = vmatpush1.bf16.msra.mxu0 %v4869
    %4931 = vmatprep.subr.bf16.mxu0 %v4874
    %4932 = vmatpush1.bf16.msra.mxu0 %v4873
    %4933 = vmatprep.subr.bf16.mxu0 %v4878
    %4934 = vmatpush1.bf16.msra.mxu0 %v4877
    %4935 = vmatprep.subr.bf16.mxu0 %v4882
    %4936 = vmatpush1.bf16.msra.mxu0 %v4881
    %4937 = vmatprep.subr.bf16.mxu0 %v4886
    %4938 = vmatpush1.bf16.msra.mxu0 %v4885
    %4939 = vmatprep.subr.bf16.mxu0 %v4890
    %4940 = vmatpush1.bf16.msra.mxu0 %v4889
    %4941 = vmatprep.subr.bf16.mxu0 0
    %4942 = vmatpush1.bf16.msra.mxu0 0
    %4943 = vmatprep.subr.bf16.mxu0 0
    %4944 = vmatpush1.bf16.msra.mxu0 0
    %4945 = vmatprep.subr.bf16.mxu0 0
    %4946 = vmatpush1.bf16.msra.mxu0 0
    %4947 = vmatprep.subr.bf16.mxu0 0
    %4948 = vmatpush1.bf16.msra.mxu0 0
    %4949 = vmatprep.subr.bf16.mxu0 0
    %4950 = vmatpush1.bf16.msra.mxu0 0
    %4951 = vmatprep.subr.bf16.mxu0 0
    %4952 = vmatpush1.bf16.msra.mxu0 0
    %4953 = vmatprep.subr.bf16.mxu0 0
    %4954 = vmatpush1.bf16.msra.mxu0 0
    %4955 = vmatprep.subr.bf16.mxu0 0
    %4956 = vmatpush1.bf16.msra.mxu0 0
    %4957 = vmatprep.mubr.bf16.mxu0 0
    %4958 = vmatmul.mubr.bf16.gmra.mrb[0].mxu0 %v4732
    %v4959 = vpop.f32.mrb[0].mxu0
    %v4960 = vadd.f32 0.0, %v4959
    %v4961 = vpop.f32.mrb[0].mxu0
    %v4962 = vadd.f32 0.0, %v4961
    %v4963 = vpop.f32.mrb[0].mxu0
    %v4964 = vpop.f32.mrb[0].mxu0
    %4965 = vdwg.mxu0
    %4966 = vmatprep.subr.bf16.mxu0 %v4864
    %4967 = vmatpush1.bf16.msra.mxu0 %v4863
    %4968 = vmatprep.subr.bf16.mxu0 %v4868
    %4969 = vmatpush1.bf16.msra.mxu0 %v4867
    %4970 = vmatprep.subr.bf16.mxu0 %v4872
    %4971 = vmatpush1.bf16.msra.mxu0 %v4871
    %4972 = vmatprep.subr.bf16.mxu0 %v4876
    %4973 = vmatpush1.bf16.msra.mxu0 %v4875
    %4974 = vmatprep.subr.bf16.mxu0 %v4880
    %4975 = vmatpush1.bf16.msra.mxu0 %v4879
    %4976 = vmatprep.subr.bf16.mxu0 %v4884
    %4977 = vmatpush1.bf16.msra.mxu0 %v4883
    %4978 = vmatprep.subr.bf16.mxu0 %v4888
    %4979 = vmatpush1.bf16.msra.mxu0 %v4887
    %4980 = vmatprep.subr.bf16.mxu0 %v4892
    %4981 = vmatpush1.bf16.msra.mxu0 %v4891
    %4982 = vmatprep.subr.bf16.mxu0 0
    %4983 = vmatpush1.bf16.msra.mxu0 0
    %4984 = vmatprep.subr.bf16.mxu0 0
    %4985 = vmatpush1.bf16.msra.mxu0 0
    %4986 = vmatprep.subr.bf16.mxu0 0
    %4987 = vmatpush1.bf16.msra.mxu0 0
    %4988 = vmatprep.subr.bf16.mxu0 0
    %4989 = vmatpush1.bf16.msra.mxu0 0
    %4990 = vmatprep.subr.bf16.mxu0 0
    %4991 = vmatpush1.bf16.msra.mxu0 0
    %4992 = vmatprep.subr.bf16.mxu0 0
    %4993 = vmatpush1.bf16.msra.mxu0 0
    %4994 = vmatprep.subr.bf16.mxu0 0
    %4995 = vmatpush1.bf16.msra.mxu0 0
    %4996 = vmatprep.subr.bf16.mxu0 0
    %4997 = vmatpush1.bf16.msra.mxu0 0
    %4998 = vmatprep.mubr.bf16.mxu0 0
    %4999 = vmatmul.mubr.bf16.gmra.mrb[0].mxu0 %v4732
    %v5000 = vpop.f32.mrb[0].mxu0
    %v5001 = vadd.f32 0.0, %v5000
    %v5002 = vpop.f32.mrb[0].mxu0
    %v5003 = vadd.f32 0.0, %v5002
    %v5004 = vpop.f32.mrb[0].mxu0
    %v5005 = vpop.f32.mrb[0].mxu0
    %5006 = vdwg.mxu0
    %v5007 = vadd.f32 %v514, %v4960
    %v5008 = vadd.f32 %v516, %v4962
    %v5009 = vadd.f32 %v555, %v5001
    %v5010 = vadd.f32 %v557, %v5003
    %v5011 = vmul.f32 %v5007, 0.5
    %v5012 = vmul.f32 %v5008, 0.5
    %v5013 = vmul.f32 %v5009, 0.5
    %v5014 = vtanh.pop %v5011
    %v5015 = vtanh.pop %v5012
    %v5016 = vtanh.pop %v5013
    %v5017 = vmul.f32 %v5014, 0.5
    %v5018 = vmul.f32 %v5015, 0.5
    %v5019 = vmul.f32 %v5016, 0.5
    %v5020 = vadd.f32 %v5017, 0.5
    %v5021 = vadd.f32 %v5018, 0.5
    %v5022 = vadd.f32 %v5019, 0.5
    %v5023 = vtanh.pop %v5010
    %v5024 = vmul.f32 %v5021, %v4728
    %v5025 = vmul.f32 %v5020, %v5023
    %v5026 = vadd.f32 %v5024, %v5025
    %v5027 = vtanh.pop %v5026
    %v5028 = vmul.f32 %v5022, %v5027
    %5029 = vst [vmem:[#allocation2 + $0x70] sm:$0xff] %v5028
    %v5030 = vpack.c.bf16 %v5028, %v5028
    %v5031 = vld [vmem:[#allocation5] sm:$0xff]
    %v5032 = vld [vmem:[#allocation5 + $0x8] sm:$0xff]
    %v5033 = vld [vmem:[#allocation5 + $0x10] sm:$0xff]
    %v5034 = vld [vmem:[#allocation5 + $0x18] sm:$0xff]
    %v5035 = vld [vmem:[#allocation5 + $0x20] sm:$0xff]
    %v5036 = vld [vmem:[#allocation5 + $0x28] sm:$0xff]
    %v5037 = vld [vmem:[#allocation5 + $0x30] sm:$0xff]
    %v5038 = vld [vmem:[#allocation5 + $0x38] sm:$0xff]
    %v5039 = vld [vmem:[#allocation5 + $0x40] sm:$0xff]
    %v5040 = vld [vmem:[#allocation5 + $0x48] sm:$0xff]
    %v5041 = vld [vmem:[#allocation5 + $0x50] sm:$0xff]
    %v5042 = vld [vmem:[#allocation5 + $0x58] sm:$0xff]
    %v5043 = vld [vmem:[#allocation5 + $0x60] sm:$0xff]
    %v5044 = vld [vmem:[#allocation5 + $0x68] sm:$0xff]
    %v5045 = vld [vmem:[#allocation5 + $0x70] sm:$0xff]
    %v5046 = vld [vmem:[#allocation5 + $0x78] sm:$0xff]
    %v5047 = vld [vmem:[#allocation5 + $0x80] sm:$0xff]
    %v5048 = vld [vmem:[#allocation5 + $0x88] sm:$0xff]
    %v5049 = vld [vmem:[#allocation5 + $0x90] sm:$0xff]
    %v5050 = vld [vmem:[#allocation5 + $0x98] sm:$0xff]
    %v5051 = vld [vmem:[#allocation5 + $0xa0] sm:$0xff]
    %v5052 = vld [vmem:[#allocation5 + $0xa8] sm:$0xff]
    %v5053 = vld [vmem:[#allocation5 + $0xb0] sm:$0xff]
    %v5054 = vld [vmem:[#allocation5 + $0xb8] sm:$0xff]
    %v5055 = vld [vmem:[#allocation5 + $0xc0] sm:$0xff]
    %v5056 = vld [vmem:[#allocation5 + $0xc8] sm:$0xff]
    %v5057 = vld [vmem:[#allocation5 + $0xd0] sm:$0xff]
    %v5058 = vld [vmem:[#allocation5 + $0xd8] sm:$0xff]
    %v5059 = vld [vmem:[#allocation5 + $0xe0] sm:$0xff]
    %v5060 = vld [vmem:[#allocation5 + $0xe8] sm:$0xff]
    %v5061 = vld [vmem:[#allocation5 + $0xf0] sm:$0xff]
    %v5062 = vld [vmem:[#allocation5 + $0xf8] sm:$0xff]
    %v5095 = vunpack.c.l.b16 %v5031
    %v5096 = vunpack.c.h.b16 %v5031
    %v5097 = vunpack.c.l.b16 %v5032
    %v5098 = vunpack.c.h.b16 %v5032
    %v5099 = vunpack.c.l.b16 %v5033
    %v5100 = vunpack.c.h.b16 %v5033
    %v5101 = vunpack.c.l.b16 %v5034
    %v5102 = vunpack.c.h.b16 %v5034
    %v5103 = vunpack.c.l.b16 %v5035
    %v5104 = vunpack.c.h.b16 %v5035
    %v5105 = vunpack.c.l.b16 %v5036
    %v5106 = vunpack.c.h.b16 %v5036
    %v5107 = vunpack.c.l.b16 %v5037
    %v5108 = vunpack.c.h.b16 %v5037
    %v5109 = vunpack.c.l.b16 %v5038
    %v5110 = vunpack.c.h.b16 %v5038
    %v5111 = vunpack.c.l.b16 %v5039
    %v5112 = vunpack.c.h.b16 %v5039
    %v5113 = vunpack.c.l.b16 %v5040
    %v5114 = vunpack.c.h.b16 %v5040
    %v5115 = vunpack.c.l.b16 %v5041
    %v5116 = vunpack.c.h.b16 %v5041
    %v5117 = vunpack.c.l.b16 %v5042
    %v5118 = vunpack.c.h.b16 %v5042
    %v5119 = vunpack.c.l.b16 %v5043
    %v5120 = vunpack.c.h.b16 %v5043
    %v5121 = vunpack.c.l.b16 %v5044
    %v5122 = vunpack.c.h.b16 %v5044
    %v5123 = vunpack.c.l.b16 %v5045
    %v5124 = vunpack.c.h.b16 %v5045
    %v5125 = vunpack.c.l.b16 %v5046
    %v5126 = vunpack.c.h.b16 %v5046
    %v5127 = vunpack.c.l.b16 %v5047
    %v5128 = vunpack.c.h.b16 %v5047
    %v5129 = vunpack.c.l.b16 %v5048
    %v5130 = vunpack.c.h.b16 %v5048
    %v5131 = vunpack.c.l.b16 %v5049
    %v5132 = vunpack.c.h.b16 %v5049
    %v5133 = vunpack.c.l.b16 %v5050
    %v5134 = vunpack.c.h.b16 %v5050
    %v5135 = vunpack.c.l.b16 %v5051
    %v5136 = vunpack.c.h.b16 %v5051
    %v5137 = vunpack.c.l.b16 %v5052
    %v5138 = vunpack.c.h.b16 %v5052
    %v5139 = vunpack.c.l.b16 %v5053
    %v5140 = vunpack.c.h.b16 %v5053
    %v5141 = vunpack.c.l.b16 %v5054
    %v5142 = vunpack.c.h.b16 %v5054
    %v5143 = vunpack.c.l.b16 %v5055
    %v5144 = vunpack.c.h.b16 %v5055
    %v5145 = vunpack.c.l.b16 %v5056
    %v5146 = vunpack.c.h.b16 %v5056
    %v5147 = vunpack.c.l.b16 %v5057
    %v5148 = vunpack.c.h.b16 %v5057
    %v5149 = vunpack.c.l.b16 %v5058
    %v5150 = vunpack.c.h.b16 %v5058
    %v5151 = vunpack.c.l.b16 %v5059
    %v5152 = vunpack.c.h.b16 %v5059
    %v5153 = vunpack.c.l.b16 %v5060
    %v5154 = vunpack.c.h.b16 %v5060
    %v5155 = vunpack.c.l.b16 %v5061
    %v5156 = vunpack.c.h.b16 %v5061
    %v5157 = vunpack.c.l.b16 %v5062
    %v5158 = vunpack.c.h.b16 %v5062
    %v5159 = vpack.c.b16 %v5099, %v5095
    %v5160 = vpack.c.b16 %v5100, %v5096
    %v5161 = vpack.c.b16 %v5101, %v5097
    %v5162 = vpack.c.b16 %v5102, %v5098
    %v5163 = vpack.c.b16 %v5107, %v5103
    %v5164 = vpack.c.b16 %v5108, %v5104
    %v5165 = vpack.c.b16 %v5109, %v5105
    %v5166 = vpack.c.b16 %v5110, %v5106
    %v5167 = vpack.c.b16 %v5115, %v5111
    %v5168 = vpack.c.b16 %v5116, %v5112
    %v5169 = vpack.c.b16 %v5117, %v5113
    %v5170 = vpack.c.b16 %v5118, %v5114
    %v5171 = vpack.c.b16 %v5123, %v5119
    %v5172 = vpack.c.b16 %v5124, %v5120
    %v5173 = vpack.c.b16 %v5125, %v5121
    %v5174 = vpack.c.b16 %v5126, %v5122
    %v5175 = vpack.c.b16 %v5131, %v5127
    %v5176 = vpack.c.b16 %v5132, %v5128
    %v5177 = vpack.c.b16 %v5133, %v5129
    %v5178 = vpack.c.b16 %v5134, %v5130
    %v5179 = vpack.c.b16 %v5139, %v5135
    %v5180 = vpack.c.b16 %v5140, %v5136
    %v5181 = vpack.c.b16 %v5141, %v5137
    %v5182 = vpack.c.b16 %v5142, %v5138
    %v5183 = vpack.c.b16 %v5147, %v5143
    %v5184 = vpack.c.b16 %v5148, %v5144
    %v5185 = vpack.c.b16 %v5149, %v5145
    %v5186 = vpack.c.b16 %v5150, %v5146
    %v5187 = vpack.c.b16 %v5155, %v5151
    %v5188 = vpack.c.b16 %v5156, %v5152
    %v5189 = vpack.c.b16 %v5157, %v5153
    %v5190 = vpack.c.b16 %v5158, %v5154
    %5223 = vmatprep.subr.bf16.mxu0 %v5160
    %5224 = vmatpush1.bf16.msra.mxu0 %v5159
    %5225 = vmatprep.subr.bf16.mxu0 %v5164
    %5226 = vmatpush1.bf16.msra.mxu0 %v5163
    %5227 = vmatprep.subr.bf16.mxu0 %v5168
    %5228 = vmatpush1.bf16.msra.mxu0 %v5167
    %5229 = vmatprep.subr.bf16.mxu0 %v5172
    %5230 = vmatpush1.bf16.msra.mxu0 %v5171
    %5231 = vmatprep.subr.bf16.mxu0 %v5176
    %5232 = vmatpush1.bf16.msra.mxu0 %v5175
    %5233 = vmatprep.subr.bf16.mxu0 %v5180
    %5234 = vmatpush1.bf16.msra.mxu0 %v5179
    %5235 = vmatprep.subr.bf16.mxu0 %v5184
    %5236 = vmatpush1.bf16.msra.mxu0 %v5183
    %5237 = vmatprep.subr.bf16.mxu0 %v5188
    %5238 = vmatpush1.bf16.msra.mxu0 %v5187
    %5239 = vmatprep.subr.bf16.mxu0 0
    %5240 = vmatpush1.bf16.msra.mxu0 0
    %5241 = vmatprep.subr.bf16.mxu0 0
    %5242 = vmatpush1.bf16.msra.mxu0 0
    %5243 = vmatprep.subr.bf16.mxu0 0
    %5244 = vmatpush1.bf16.msra.mxu0 0
    %5245 = vmatprep.subr.bf16.mxu0 0
    %5246 = vmatpush1.bf16.msra.mxu0 0
    %5247 = vmatprep.subr.bf16.mxu0 0
    %5248 = vmatpush1.bf16.msra.mxu0 0
    %5249 = vmatprep.subr.bf16.mxu0 0
    %5250 = vmatpush1.bf16.msra.mxu0 0
    %5251 = vmatprep.subr.bf16.mxu0 0
    %5252 = vmatpush1.bf16.msra.mxu0 0
    %5253 = vmatprep.subr.bf16.mxu0 0
    %5254 = vmatpush1.bf16.msra.mxu0 0
    %5255 = vmatprep.mubr.bf16.mxu0 0
    %5256 = vmatmul.mubr.bf16.gmra.mrb[0].mxu0 %v5030
    %v5257 = vpop.f32.mrb[0].mxu0
    %v5258 = vadd.f32 0.0, %v5257
    %v5259 = vpop.f32.mrb[0].mxu0
    %v5260 = vadd.f32 0.0, %v5259
    %v5261 = vpop.f32.mrb[0].mxu0
    %v5262 = vpop.f32.mrb[0].mxu0
    %5263 = vdwg.mxu0
    %5264 = vmatprep.subr.bf16.mxu0 %v5162
    %5265 = vmatpush1.bf16.msra.mxu0 %v5161
    %5266 = vmatprep.subr.bf16.mxu0 %v5166
    %5267 = vmatpush1.bf16.msra.mxu0 %v5165
    %5268 = vmatprep.subr.bf16.mxu0 %v5170
    %5269 = vmatpush1.bf16.msra.mxu0 %v5169
    %5270 = vmatprep.subr.bf16.mxu0 %v5174
    %5271 = vmatpush1.bf16.msra.mxu0 %v5173
    %5272 = vmatprep.subr.bf16.mxu0 %v5178
    %5273 = vmatpush1.bf16.msra.mxu0 %v5177
    %5274 = vmatprep.subr.bf16.mxu0 %v5182
    %5275 = vmatpush1.bf16.msra.mxu0 %v5181
    %5276 = vmatprep.subr.bf16.mxu0 %v5186
    %5277 = vmatpush1.bf16.msra.mxu0 %v5185
    %5278 = vmatprep.subr.bf16.mxu0 %v5190
    %5279 = vmatpush1.bf16.msra.mxu0 %v5189
    %5280 = vmatprep.subr.bf16.mxu0 0
    %5281 = vmatpush1.bf16.msra.mxu0 0
    %5282 = vmatprep.subr.bf16.mxu0 0
    %5283 = vmatpush1.bf16.msra.mxu0 0
    %5284 = vmatprep.subr.bf16.mxu0 0
    %5285 = vmatpush1.bf16.msra.mxu0 0
    %5286 = vmatprep.subr.bf16.mxu0 0
    %5287 = vmatpush1.bf16.msra.mxu0 0
    %5288 = vmatprep.subr.bf16.mxu0 0
    %5289 = vmatpush1.bf16.msra.mxu0 0
    %5290 = vmatprep.subr.bf16.mxu0 0
    %5291 = vmatpush1.bf16.msra.mxu0 0
    %5292 = vmatprep.subr.bf16.mxu0 0
    %5293 = vmatpush1.bf16.msra.mxu0 0
    %5294 = vmatprep.subr.bf16.mxu0 0
    %5295 = vmatpush1.bf16.msra.mxu0 0
    %5296 = vmatprep.mubr.bf16.mxu0 0
    %5297 = vmatmul.mubr.bf16.gmra.mrb[0].mxu0 %v5030
    %v5298 = vpop.f32.mrb[0].mxu0
    %v5299 = vadd.f32 0.0, %v5298
    %v5300 = vpop.f32.mrb[0].mxu0
    %v5301 = vadd.f32 0.0, %v5300
    %v5302 = vpop.f32.mrb[0].mxu0
    %v5303 = vpop.f32.mrb[0].mxu0
    %5304 = vdwg.mxu0
    %v5305 = vadd.f32 %v514, %v5258
    %v5306 = vadd.f32 %v516, %v5260
    %v5307 = vadd.f32 %v555, %v5299
    %v5308 = vadd.f32 %v557, %v5301
    %v5309 = vmul.f32 %v5305, 0.5
    %v5310 = vmul.f32 %v5306, 0.5
    %v5311 = vmul.f32 %v5307, 0.5
    %v5312 = vtanh.pop %v5309
    %v5313 = vtanh.pop %v5310
    %v5314 = vtanh.pop %v5311
    %v5315 = vmul.f32 %v5312, 0.5
    %v5316 = vmul.f32 %v5313, 0.5
    %v5317 = vmul.f32 %v5314, 0.5
    %v5318 = vadd.f32 %v5315, 0.5
    %v5319 = vadd.f32 %v5316, 0.5
    %v5320 = vadd.f32 %v5317, 0.5
    %v5321 = vtanh.pop %v5308
    %v5322 = vmul.f32 %v5319, %v5026
    %v5323 = vmul.f32 %v5318, %v5321
    %v5324 = vadd.f32 %v5322, %v5323
    %v5325 = vtanh.pop %v5324
    %v5326 = vmul.f32 %v5320, %v5325
    %5327 = vst [vmem:[#allocation2 + $0x78] sm:$0xff] %v5326
    %v5328 = vpack.c.bf16 %v5326, %v5326
    %v5329 = vld [vmem:[#allocation5] sm:$0xff]
    %v5330 = vld [vmem:[#allocation5 + $0x8] sm:$0xff]
    %v5331 = vld [vmem:[#allocation5 + $0x10] sm:$0xff]
    %v5332 = vld [vmem:[#allocation5 + $0x18] sm:$0xff]
    %v5333 = vld [vmem:[#allocation5 + $0x20] sm:$0xff]
    %v5334 = vld [vmem:[#allocation5 + $0x28] sm:$0xff]
    %v5335 = vld [vmem:[#allocation5 + $0x30] sm:$0xff]
    %v5336 = vld [vmem:[#allocation5 + $0x38] sm:$0xff]
    %v5337 = vld [vmem:[#allocation5 + $0x40] sm:$0xff]
    %v5338 = vld [vmem:[#allocation5 + $0x48] sm:$0xff]
    %v5339 = vld [vmem:[#allocation5 + $0x50] sm:$0xff]
    %v5340 = vld [vmem:[#allocation5 + $0x58] sm:$0xff]
    %v5341 = vld [vmem:[#allocation5 + $0x60] sm:$0xff]
    %v5342 = vld [vmem:[#allocation5 + $0x68] sm:$0xff]
    %v5343 = vld [vmem:[#allocation5 + $0x70] sm:$0xff]
    %v5344 = vld [vmem:[#allocation5 + $0x78] sm:$0xff]
    %v5345 = vld [vmem:[#allocation5 + $0x80] sm:$0xff]
    %v5346 = vld [vmem:[#allocation5 + $0x88] sm:$0xff]
    %v5347 = vld [vmem:[#allocation5 + $0x90] sm:$0xff]
    %v5348 = vld [vmem:[#allocation5 + $0x98] sm:$0xff]
    %v5349 = vld [vmem:[#allocation5 + $0xa0] sm:$0xff]
    %v5350 = vld [vmem:[#allocation5 + $0xa8] sm:$0xff]
    %v5351 = vld [vmem:[#allocation5 + $0xb0] sm:$0xff]
    %v5352 = vld [vmem:[#allocation5 + $0xb8] sm:$0xff]
    %v5353 = vld [vmem:[#allocation5 + $0xc0] sm:$0xff]
    %v5354 = vld [vmem:[#allocation5 + $0xc8] sm:$0xff]
    %v5355 = vld [vmem:[#allocation5 + $0xd0] sm:$0xff]
    %v5356 = vld [vmem:[#allocation5 + $0xd8] sm:$0xff]
    %v5357 = vld [vmem:[#allocation5 + $0xe0] sm:$0xff]
    %v5358 = vld [vmem:[#allocation5 + $0xe8] sm:$0xff]
    %v5359 = vld [vmem:[#allocation5 + $0xf0] sm:$0xff]
    %v5360 = vld [vmem:[#allocation5 + $0xf8] sm:$0xff]
    %v5393 = vunpack.c.l.b16 %v5329
    %v5394 = vunpack.c.h.b16 %v5329
    %v5395 = vunpack.c.l.b16 %v5330
    %v5396 = vunpack.c.h.b16 %v5330
    %v5397 = vunpack.c.l.b16 %v5331
    %v5398 = vunpack.c.h.b16 %v5331
    %v5399 = vunpack.c.l.b16 %v5332
    %v5400 = vunpack.c.h.b16 %v5332
    %v5401 = vunpack.c.l.b16 %v5333
    %v5402 = vunpack.c.h.b16 %v5333
    %v5403 = vunpack.c.l.b16 %v5334
    %v5404 = vunpack.c.h.b16 %v5334
    %v5405 = vunpack.c.l.b16 %v5335
    %v5406 = vunpack.c.h.b16 %v5335
    %v5407 = vunpack.c.l.b16 %v5336
    %v5408 = vunpack.c.h.b16 %v5336
    %v5409 = vunpack.c.l.b16 %v5337
    %v5410 = vunpack.c.h.b16 %v5337
    %v5411 = vunpack.c.l.b16 %v5338
    %v5412 = vunpack.c.h.b16 %v5338
    %v5413 = vunpack.c.l.b16 %v5339
    %v5414 = vunpack.c.h.b16 %v5339
    %v5415 = vunpack.c.l.b16 %v5340
    %v5416 = vunpack.c.h.b16 %v5340
    %v5417 = vunpack.c.l.b16 %v5341
    %v5418 = vunpack.c.h.b16 %v5341
    %v5419 = vunpack.c.l.b16 %v5342
    %v5420 = vunpack.c.h.b16 %v5342
    %v5421 = vunpack.c.l.b16 %v5343
    %v5422 = vunpack.c.h.b16 %v5343
    %v5423 = vunpack.c.l.b16 %v5344
    %v5424 = vunpack.c.h.b16 %v5344
    %v5425 = vunpack.c.l.b16 %v5345
    %v5426 = vunpack.c.h.b16 %v5345
    %v5427 = vunpack.c.l.b16 %v5346
    %v5428 = vunpack.c.h.b16 %v5346
    %v5429 = vunpack.c.l.b16 %v5347
    %v5430 = vunpack.c.h.b16 %v5347
    %v5431 = vunpack.c.l.b16 %v5348
    %v5432 = vunpack.c.h.b16 %v5348
    %v5433 = vunpack.c.l.b16 %v5349
    %v5434 = vunpack.c.h.b16 %v5349
    %v5435 = vunpack.c.l.b16 %v5350
    %v5436 = vunpack.c.h.b16 %v5350
    %v5437 = vunpack.c.l.b16 %v5351
    %v5438 = vunpack.c.h.b16 %v5351
    %v5439 = vunpack.c.l.b16 %v5352
    %v5440 = vunpack.c.h.b16 %v5352
    %v5441 = vunpack.c.l.b16 %v5353
    %v5442 = vunpack.c.h.b16 %v5353
    %v5443 = vunpack.c.l.b16 %v5354
    %v5444 = vunpack.c.h.b16 %v5354
    %v5445 = vunpack.c.l.b16 %v5355
    %v5446 = vunpack.c.h.b16 %v5355
    %v5447 = vunpack.c.l.b16 %v5356
    %v5448 = vunpack.c.h.b16 %v5356
    %v5449 = vunpack.c.l.b16 %v5357
    %v5450 = vunpack.c.h.b16 %v5357
    %v5451 = vunpack.c.l.b16 %v5358
    %v5452 = vunpack.c.h.b16 %v5358
    %v5453 = vunpack.c.l.b16 %v5359
    %v5454 = vunpack.c.h.b16 %v5359
    %v5455 = vunpack.c.l.b16 %v5360
    %v5456 = vunpack.c.h.b16 %v5360
    %v5457 = vpack.c.b16 %v5397, %v5393
    %v5458 = vpack.c.b16 %v5398, %v5394
    %v5459 = vpack.c.b16 %v5399, %v5395
    %v5460 = vpack.c.b16 %v5400, %v5396
    %v5461 = vpack.c.b16 %v5405, %v5401
    %v5462 = vpack.c.b16 %v5406, %v5402
    %v5463 = vpack.c.b16 %v5407, %v5403
    %v5464 = vpack.c.b16 %v5408, %v5404
    %v5465 = vpack.c.b16 %v5413, %v5409
    %v5466 = vpack.c.b16 %v5414, %v5410
    %v5467 = vpack.c.b16 %v5415, %v5411
    %v5468 = vpack.c.b16 %v5416, %v5412
    %v5469 = vpack.c.b16 %v5421, %v5417
    %v5470 = vpack.c.b16 %v5422, %v5418
    %v5471 = vpack.c.b16 %v5423, %v5419
    %v5472 = vpack.c.b16 %v5424, %v5420
    %v5473 = vpack.c.b16 %v5429, %v5425
    %v5474 = vpack.c.b16 %v5430, %v5426
    %v5475 = vpack.c.b16 %v5431, %v5427
    %v5476 = vpack.c.b16 %v5432, %v5428
    %v5477 = vpack.c.b16 %v5437, %v5433
    %v5478 = vpack.c.b16 %v5438, %v5434
    %v5479 = vpack.c.b16 %v5439, %v5435
    %v5480 = vpack.c.b16 %v5440, %v5436
    %v5481 = vpack.c.b16 %v5445, %v5441
    %v5482 = vpack.c.b16 %v5446, %v5442
    %v5483 = vpack.c.b16 %v5447, %v5443
    %v5484 = vpack.c.b16 %v5448, %v5444
    %v5485 = vpack.c.b16 %v5453, %v5449
    %v5486 = vpack.c.b16 %v5454, %v5450
    %v5487 = vpack.c.b16 %v5455, %v5451
    %v5488 = vpack.c.b16 %v5456, %v5452
    %5521 = vmatprep.subr.bf16.mxu0 %v5458
    %5522 = vmatpush1.bf16.msra.mxu0 %v5457
    %5523 = vmatprep.subr.bf16.mxu0 %v5462
    %5524 = vmatpush1.bf16.msra.mxu0 %v5461
    %5525 = vmatprep.subr.bf16.mxu0 %v5466
    %5526 = vmatpush1.bf16.msra.mxu0 %v5465
    %5527 = vmatprep.subr.bf16.mxu0 %v5470
    %5528 = vmatpush1.bf16.msra.mxu0 %v5469
    %5529 = vmatprep.subr.bf16.mxu0 %v5474
    %5530 = vmatpush1.bf16.msra.mxu0 %v5473
    %5531 = vmatprep.subr.bf16.mxu0 %v5478
    %5532 = vmatpush1.bf16.msra.mxu0 %v5477
    %5533 = vmatprep.subr.bf16.mxu0 %v5482
    %5534 = vmatpush1.bf16.msra.mxu0 %v5481
    %5535 = vmatprep.subr.bf16.mxu0 %v5486
    %5536 = vmatpush1.bf16.msra.mxu0 %v5485
    %5537 = vmatprep.subr.bf16.mxu0 0
    %5538 = vmatpush1.bf16.msra.mxu0 0
    %5539 = vmatprep.subr.bf16.mxu0 0
    %5540 = vmatpush1.bf16.msra.mxu0 0
    %5541 = vmatprep.subr.bf16.mxu0 0
    %5542 = vmatpush1.bf16.msra.mxu0 0
    %5543 = vmatprep.subr.bf16.mxu0 0
    %5544 = vmatpush1.bf16.msra.mxu0 0
    %5545 = vmatprep.subr.bf16.mxu0 0
    %5546 = vmatpush1.bf16.msra.mxu0 0
    %5547 = vmatprep.subr.bf16.mxu0 0
    %5548 = vmatpush1.bf16.msra.mxu0 0
    %5549 = vmatprep.subr.bf16.mxu0 0
    %5550 = vmatpush1.bf16.msra.mxu0 0
    %5551 = vmatprep.subr.bf16.mxu0 0
    %5552 = vmatpush1.bf16.msra.mxu0 0
    %5553 = vmatprep.mubr.bf16.mxu0 0
    %5554 = vmatmul.mubr.bf16.gmra.mrb[0].mxu0 %v5328
    %v5555 = vpop.f32.mrb[0].mxu0
    %v5556 = vadd.f32 0.0, %v5555
    %v5557 = vpop.f32.mrb[0].mxu0
    %v5558 = vadd.f32 0.0, %v5557
    %v5559 = vpop.f32.mrb[0].mxu0
    %v5560 = vpop.f32.mrb[0].mxu0
    %5561 = vdwg.mxu0
    %5562 = vmatprep.subr.bf16.mxu0 %v5460
    %5563 = vmatpush1.bf16.msra.mxu0 %v5459
    %5564 = vmatprep.subr.bf16.mxu0 %v5464
    %5565 = vmatpush1.bf16.msra.mxu0 %v5463
    %5566 = vmatprep.subr.bf16.mxu0 %v5468
    %5567 = vmatpush1.bf16.msra.mxu0 %v5467
    %5568 = vmatprep.subr.bf16.mxu0 %v5472
    %5569 = vmatpush1.bf16.msra.mxu0 %v5471
    %5570 = vmatprep.subr.bf16.mxu0 %v5476
    %5571 = vmatpush1.bf16.msra.mxu0 %v5475
    %5572 = vmatprep.subr.bf16.mxu0 %v5480
    %5573 = vmatpush1.bf16.msra.mxu0 %v5479
    %5574 = vmatprep.subr.bf16.mxu0 %v5484
    %5575 = vmatpush1.bf16.msra.mxu0 %v5483
    %5576 = vmatprep.subr.bf16.mxu0 %v5488
    %5577 = vmatpush1.bf16.msra.mxu0 %v5487
    %5578 = vmatprep.subr.bf16.mxu0 0
    %5579 = vmatpush1.bf16.msra.mxu0 0
    %5580 = vmatprep.subr.bf16.mxu0 0
    %5581 = vmatpush1.bf16.msra.mxu0 0
    %5582 = vmatprep.subr.bf16.mxu0 0
    %5583 = vmatpush1.bf16.msra.mxu0 0
    %5584 = vmatprep.subr.bf16.mxu0 0
    %5585 = vmatpush1.bf16.msra.mxu0 0
    %5586 = vmatprep.subr.bf16.mxu0 0
    %5587 = vmatpush1.bf16.msra.mxu0 0
    %5588 = vmatprep.subr.bf16.mxu0 0
    %5589 = vmatpush1.bf16.msra.mxu0 0
    %5590 = vmatprep.subr.bf16.mxu0 0
    %5591 = vmatpush1.bf16.msra.mxu0 0
    %5592 = vmatprep.subr.bf16.mxu0 0
    %5593 = vmatpush1.bf16.msra.mxu0 0
    %5594 = vmatprep.mubr.bf16.mxu0 0
    %5595 = vmatmul.mubr.bf16.gmra.mrb[0].mxu0 %v5328
    %v5596 = vpop.f32.mrb[0].mxu0
    %v5597 = vadd.f32 0.0, %v5596
    %v5598 = vpop.f32.mrb[0].mxu0
    %v5599 = vadd.f32 0.0, %v5598
    %v5600 = vpop.f32.mrb[0].mxu0
    %v5601 = vpop.f32.mrb[0].mxu0
    %5602 = vdwg.mxu0
    %v5603 = vadd.f32 %v514, %v5556
    %v5604 = vadd.f32 %v516, %v5558
    %v5605 = vadd.f32 %v555, %v5597
    %v5606 = vadd.f32 %v557, %v5599
    %v5607 = vmul.f32 %v5603, 0.5
    %v5608 = vmul.f32 %v5604, 0.5
    %v5609 = vmul.f32 %v5605, 0.5
    %v5610 = vtanh.pop %v5607
    %v5611 = vtanh.pop %v5608
    %v5612 = vtanh.pop %v5609
    %v5613 = vmul.f32 %v5610, 0.5
    %v5614 = vmul.f32 %v5611, 0.5
    %v5615 = vmul.f32 %v5612, 0.5
    %v5616 = vadd.f32 %v5613, 0.5
    %v5617 = vadd.f32 %v5614, 0.5
    %v5618 = vadd.f32 %v5615, 0.5
    %v5619 = vtanh.pop %v5606
    %v5620 = vmul.f32 %v5617, %v5324
    %v5621 = vmul.f32 %v5616, %v5619
    %v5622 = vadd.f32 %v5620, %v5621
    %v5623 = vtanh.pop %v5622
    %v5624 = vmul.f32 %v5618, %v5623
    %5625 = vst [vmem:[#allocation2 + $0x80] sm:$0xff] %v5624
    %v5626 = vpack.c.bf16 %v5624, %v5624
    %v5627 = vld [vmem:[#allocation5] sm:$0xff]
    %v5628 = vld [vmem:[#allocation5 + $0x8] sm:$0xff]
    %v5629 = vld [vmem:[#allocation5 + $0x10] sm:$0xff]
    %v5630 = vld [vmem:[#allocation5 + $0x18] sm:$0xff]
    %v5631 = vld [vmem:[#allocation5 + $0x20] sm:$0xff]
    %v5632 = vld [vmem:[#allocation5 + $0x28] sm:$0xff]
    %v5633 = vld [vmem:[#allocation5 + $0x30] sm:$0xff]
    %v5634 = vld [vmem:[#allocation5 + $0x38] sm:$0xff]
    %v5635 = vld [vmem:[#allocation5 + $0x40] sm:$0xff]
    %v5636 = vld [vmem:[#allocation5 + $0x48] sm:$0xff]
    %v5637 = vld [vmem:[#allocation5 + $0x50] sm:$0xff]
    %v5638 = vld [vmem:[#allocation5 + $0x58] sm:$0xff]
    %v5639 = vld [vmem:[#allocation5 + $0x60] sm:$0xff]
    %v5640 = vld [vmem:[#allocation5 + $0x68] sm:$0xff]
    %v5641 = vld [vmem:[#allocation5 + $0x70] sm:$0xff]
    %v5642 = vld [vmem:[#allocation5 + $0x78] sm:$0xff]
    %v5643 = vld [vmem:[#allocation5 + $0x80] sm:$0xff]
    %v5644 = vld [vmem:[#allocation5 + $0x88] sm:$0xff]
    %v5645 = vld [vmem:[#allocation5 + $0x90] sm:$0xff]
    %v5646 = vld [vmem:[#allocation5 + $0x98] sm:$0xff]
    %v5647 = vld [vmem:[#allocation5 + $0xa0] sm:$0xff]
    %v5648 = vld [vmem:[#allocation5 + $0xa8] sm:$0xff]
    %v5649 = vld [vmem:[#allocation5 + $0xb0] sm:$0xff]
    %v5650 = vld [vmem:[#allocation5 + $0xb8] sm:$0xff]
    %v5651 = vld [vmem:[#allocation5 + $0xc0] sm:$0xff]
    %v5652 = vld [vmem:[#allocation5 + $0xc8] sm:$0xff]
    %v5653 = vld [vmem:[#allocation5 + $0xd0] sm:$0xff]
    %v5654 = vld [vmem:[#allocation5 + $0xd8] sm:$0xff]
    %v5655 = vld [vmem:[#allocation5 + $0xe0] sm:$0xff]
    %v5656 = vld [vmem:[#allocation5 + $0xe8] sm:$0xff]
    %v5657 = vld [vmem:[#allocation5 + $0xf0] sm:$0xff]
    %v5658 = vld [vmem:[#allocation5 + $0xf8] sm:$0xff]
    %v5691 = vunpack.c.l.b16 %v5627
    %v5692 = vunpack.c.h.b16 %v5627
    %v5693 = vunpack.c.l.b16 %v5628
    %v5694 = vunpack.c.h.b16 %v5628
    %v5695 = vunpack.c.l.b16 %v5629
    %v5696 = vunpack.c.h.b16 %v5629
    %v5697 = vunpack.c.l.b16 %v5630
    %v5698 = vunpack.c.h.b16 %v5630
    %v5699 = vunpack.c.l.b16 %v5631
    %v5700 = vunpack.c.h.b16 %v5631
    %v5701 = vunpack.c.l.b16 %v5632
    %v5702 = vunpack.c.h.b16 %v5632
    %v5703 = vunpack.c.l.b16 %v5633
    %v5704 = vunpack.c.h.b16 %v5633
    %v5705 = vunpack.c.l.b16 %v5634
    %v5706 = vunpack.c.h.b16 %v5634
    %v5707 = vunpack.c.l.b16 %v5635
    %v5708 = vunpack.c.h.b16 %v5635
    %v5709 = vunpack.c.l.b16 %v5636
    %v5710 = vunpack.c.h.b16 %v5636
    %v5711 = vunpack.c.l.b16 %v5637
    %v5712 = vunpack.c.h.b16 %v5637
    %v5713 = vunpack.c.l.b16 %v5638
    %v5714 = vunpack.c.h.b16 %v5638
    %v5715 = vunpack.c.l.b16 %v5639
    %v5716 = vunpack.c.h.b16 %v5639
    %v5717 = vunpack.c.l.b16 %v5640
    %v5718 = vunpack.c.h.b16 %v5640
    %v5719 = vunpack.c.l.b16 %v5641
    %v5720 = vunpack.c.h.b16 %v5641
    %v5721 = vunpack.c.l.b16 %v5642
    %v5722 = vunpack.c.h.b16 %v5642
    %v5723 = vunpack.c.l.b16 %v5643
    %v5724 = vunpack.c.h.b16 %v5643
    %v5725 = vunpack.c.l.b16 %v5644
    %v5726 = vunpack.c.h.b16 %v5644
    %v5727 = vunpack.c.l.b16 %v5645
    %v5728 = vunpack.c.h.b16 %v5645
    %v5729 = vunpack.c.l.b16 %v5646
    %v5730 = vunpack.c.h.b16 %v5646
    %v5731 = vunpack.c.l.b16 %v5647
    %v5732 = vunpack.c.h.b16 %v5647
    %v5733 = vunpack.c.l.b16 %v5648
    %v5734 = vunpack.c.h.b16 %v5648
    %v5735 = vunpack.c.l.b16 %v5649
    %v5736 = vunpack.c.h.b16 %v5649
    %v5737 = vunpack.c.l.b16 %v5650
    %v5738 = vunpack.c.h.b16 %v5650
    %v5739 = vunpack.c.l.b16 %v5651
    %v5740 = vunpack.c.h.b16 %v5651
    %v5741 = vunpack.c.l.b16 %v5652
    %v5742 = vunpack.c.h.b16 %v5652
    %v5743 = vunpack.c.l.b16 %v5653
    %v5744 = vunpack.c.h.b16 %v5653
    %v5745 = vunpack.c.l.b16 %v5654
    %v5746 = vunpack.c.h.b16 %v5654
    %v5747 = vunpack.c.l.b16 %v5655
    %v5748 = vunpack.c.h.b16 %v5655
    %v5749 = vunpack.c.l.b16 %v5656
    %v5750 = vunpack.c.h.b16 %v5656
    %v5751 = vunpack.c.l.b16 %v5657
    %v5752 = vunpack.c.h.b16 %v5657
    %v5753 = vunpack.c.l.b16 %v5658
    %v5754 = vunpack.c.h.b16 %v5658
    %v5755 = vpack.c.b16 %v5695, %v5691
    %v5756 = vpack.c.b16 %v5696, %v5692
    %v5757 = vpack.c.b16 %v5697, %v5693
    %v5758 = vpack.c.b16 %v5698, %v5694
    %v5759 = vpack.c.b16 %v5703, %v5699
    %v5760 = vpack.c.b16 %v5704, %v5700
    %v5761 = vpack.c.b16 %v5705, %v5701
    %v5762 = vpack.c.b16 %v5706, %v5702
    %v5763 = vpack.c.b16 %v5711, %v5707
    %v5764 = vpack.c.b16 %v5712, %v5708
    %v5765 = vpack.c.b16 %v5713, %v5709
    %v5766 = vpack.c.b16 %v5714, %v5710
    %v5767 = vpack.c.b16 %v5719, %v5715
    %v5768 = vpack.c.b16 %v5720, %v5716
    %v5769 = vpack.c.b16 %v5721, %v5717
    %v5770 = vpack.c.b16 %v5722, %v5718
    %v5771 = vpack.c.b16 %v5727, %v5723
    %v5772 = vpack.c.b16 %v5728, %v5724
    %v5773 = vpack.c.b16 %v5729, %v5725
    %v5774 = vpack.c.b16 %v5730, %v5726
    %v5775 = vpack.c.b16 %v5735, %v5731
    %v5776 = vpack.c.b16 %v5736, %v5732
    %v5777 = vpack.c.b16 %v5737, %v5733
    %v5778 = vpack.c.b16 %v5738, %v5734
    %v5779 = vpack.c.b16 %v5743, %v5739
    %v5780 = vpack.c.b16 %v5744, %v5740
    %v5781 = vpack.c.b16 %v5745, %v5741
    %v5782 = vpack.c.b16 %v5746, %v5742
    %v5783 = vpack.c.b16 %v5751, %v5747
    %v5784 = vpack.c.b16 %v5752, %v5748
    %v5785 = vpack.c.b16 %v5753, %v5749
    %v5786 = vpack.c.b16 %v5754, %v5750
    %5819 = vmatprep.subr.bf16.mxu0 %v5756
    %5820 = vmatpush1.bf16.msra.mxu0 %v5755
    %5821 = vmatprep.subr.bf16.mxu0 %v5760
    %5822 = vmatpush1.bf16.msra.mxu0 %v5759
    %5823 = vmatprep.subr.bf16.mxu0 %v5764
    %5824 = vmatpush1.bf16.msra.mxu0 %v5763
    %5825 = vmatprep.subr.bf16.mxu0 %v5768
    %5826 = vmatpush1.bf16.msra.mxu0 %v5767
    %5827 = vmatprep.subr.bf16.mxu0 %v5772
    %5828 = vmatpush1.bf16.msra.mxu0 %v5771
    %5829 = vmatprep.subr.bf16.mxu0 %v5776
    %5830 = vmatpush1.bf16.msra.mxu0 %v5775
    %5831 = vmatprep.subr.bf16.mxu0 %v5780
    %5832 = vmatpush1.bf16.msra.mxu0 %v5779
    %5833 = vmatprep.subr.bf16.mxu0 %v5784
    %5834 = vmatpush1.bf16.msra.mxu0 %v5783
    %5835 = vmatprep.subr.bf16.mxu0 0
    %5836 = vmatpush1.bf16.msra.mxu0 0
    %5837 = vmatprep.subr.bf16.mxu0 0
    %5838 = vmatpush1.bf16.msra.mxu0 0
    %5839 = vmatprep.subr.bf16.mxu0 0
    %5840 = vmatpush1.bf16.msra.mxu0 0
    %5841 = vmatprep.subr.bf16.mxu0 0
    %5842 = vmatpush1.bf16.msra.mxu0 0
    %5843 = vmatprep.subr.bf16.mxu0 0
    %5844 = vmatpush1.bf16.msra.mxu0 0
    %5845 = vmatprep.subr.bf16.mxu0 0
    %5846 = vmatpush1.bf16.msra.mxu0 0
    %5847 = vmatprep.subr.bf16.mxu0 0
    %5848 = vmatpush1.bf16.msra.mxu0 0
    %5849 = vmatprep.subr.bf16.mxu0 0
    %5850 = vmatpush1.bf16.msra.mxu0 0
    %5851 = vmatprep.mubr.bf16.mxu0 0
    %5852 = vmatmul.mubr.bf16.gmra.mrb[0].mxu0 %v5626
    %v5853 = vpop.f32.mrb[0].mxu0
    %v5854 = vadd.f32 0.0, %v5853
    %v5855 = vpop.f32.mrb[0].mxu0
    %v5856 = vadd.f32 0.0, %v5855
    %v5857 = vpop.f32.mrb[0].mxu0
    %v5858 = vpop.f32.mrb[0].mxu0
    %5859 = vdwg.mxu0
    %5860 = vmatprep.subr.bf16.mxu0 %v5758
    %5861 = vmatpush1.bf16.msra.mxu0 %v5757
    %5862 = vmatprep.subr.bf16.mxu0 %v5762
    %5863 = vmatpush1.bf16.msra.mxu0 %v5761
    %5864 = vmatprep.subr.bf16.mxu0 %v5766
    %5865 = vmatpush1.bf16.msra.mxu0 %v5765
    %5866 = vmatprep.subr.bf16.mxu0 %v5770
    %5867 = vmatpush1.bf16.msra.mxu0 %v5769
    %5868 = vmatprep.subr.bf16.mxu0 %v5774
    %5869 = vmatpush1.bf16.msra.mxu0 %v5773
    %5870 = vmatprep.subr.bf16.mxu0 %v5778
    %5871 = vmatpush1.bf16.msra.mxu0 %v5777
    %5872 = vmatprep.subr.bf16.mxu0 %v5782
    %5873 = vmatpush1.bf16.msra.mxu0 %v5781
    %5874 = vmatprep.subr.bf16.mxu0 %v5786
    %5875 = vmatpush1.bf16.msra.mxu0 %v5785
    %5876 = vmatprep.subr.bf16.mxu0 0
    %5877 = vmatpush1.bf16.msra.mxu0 0
    %5878 = vmatprep.subr.bf16.mxu0 0
    %5879 = vmatpush1.bf16.msra.mxu0 0
    %5880 = vmatprep.subr.bf16.mxu0 0
    %5881 = vmatpush1.bf16.msra.mxu0 0
    %5882 = vmatprep.subr.bf16.mxu0 0
    %5883 = vmatpush1.bf16.msra.mxu0 0
    %5884 = vmatprep.subr.bf16.mxu0 0
    %5885 = vmatpush1.bf16.msra.mxu0 0
    %5886 = vmatprep.subr.bf16.mxu0 0
    %5887 = vmatpush1.bf16.msra.mxu0 0
    %5888 = vmatprep.subr.bf16.mxu0 0
    %5889 = vmatpush1.bf16.msra.mxu0 0
    %5890 = vmatprep.subr.bf16.mxu0 0
    %5891 = vmatpush1.bf16.msra.mxu0 0
    %5892 = vmatprep.mubr.bf16.mxu0 0
    %5893 = vmatmul.mubr.bf16.gmra.mrb[0].mxu0 %v5626
    %v5894 = vpop.f32.mrb[0].mxu0
    %v5895 = vadd.f32 0.0, %v5894
    %v5896 = vpop.f32.mrb[0].mxu0
    %v5897 = vadd.f32 0.0, %v5896
    %v5898 = vpop.f32.mrb[0].mxu0
    %v5899 = vpop.f32.mrb[0].mxu0
    %5900 = vdwg.mxu0
    %v5901 = vadd.f32 %v514, %v5854
    %v5902 = vadd.f32 %v516, %v5856
    %v5903 = vadd.f32 %v555, %v5895
    %v5904 = vadd.f32 %v557, %v5897
    %v5905 = vmul.f32 %v5901, 0.5
    %v5906 = vmul.f32 %v5902, 0.5
    %v5907 = vmul.f32 %v5903, 0.5
    %v5908 = vtanh.pop %v5905
    %v5909 = vtanh.pop %v5906
    %v5910 = vtanh.pop %v5907
    %v5911 = vmul.f32 %v5908, 0.5
    %v5912 = vmul.f32 %v5909, 0.5
    %v5913 = vmul.f32 %v5910, 0.5
    %v5914 = vadd.f32 %v5911, 0.5
    %v5915 = vadd.f32 %v5912, 0.5
    %v5916 = vadd.f32 %v5913, 0.5
    %v5917 = vtanh.pop %v5904
    %v5918 = vmul.f32 %v5915, %v5622
    %v5919 = vmul.f32 %v5914, %v5917
    %v5920 = vadd.f32 %v5918, %v5919
    %v5921 = vtanh.pop %v5920
    %v5922 = vmul.f32 %v5916, %v5921
    %5923 = vst [vmem:[#allocation2 + $0x88] sm:$0xff] %v5922
    %v5924 = vpack.c.bf16 %v5922, %v5922
    %v5925 = vld [vmem:[#allocation5] sm:$0xff]
    %v5926 = vld [vmem:[#allocation5 + $0x8] sm:$0xff]
    %v5927 = vld [vmem:[#allocation5 + $0x10] sm:$0xff]
    %v5928 = vld [vmem:[#allocation5 + $0x18] sm:$0xff]
    %v5929 = vld [vmem:[#allocation5 + $0x20] sm:$0xff]
    %v5930 = vld [vmem:[#allocation5 + $0x28] sm:$0xff]
    %v5931 = vld [vmem:[#allocation5 + $0x30] sm:$0xff]
    %v5932 = vld [vmem:[#allocation5 + $0x38] sm:$0xff]
    %v5933 = vld [vmem:[#allocation5 + $0x40] sm:$0xff]
    %v5934 = vld [vmem:[#allocation5 + $0x48] sm:$0xff]
    %v5935 = vld [vmem:[#allocation5 + $0x50] sm:$0xff]
    %v5936 = vld [vmem:[#allocation5 + $0x58] sm:$0xff]
    %v5937 = vld [vmem:[#allocation5 + $0x60] sm:$0xff]
    %v5938 = vld [vmem:[#allocation5 + $0x68] sm:$0xff]
    %v5939 = vld [vmem:[#allocation5 + $0x70] sm:$0xff]
    %v5940 = vld [vmem:[#allocation5 + $0x78] sm:$0xff]
    %v5941 = vld [vmem:[#allocation5 + $0x80] sm:$0xff]
    %v5942 = vld [vmem:[#allocation5 + $0x88] sm:$0xff]
    %v5943 = vld [vmem:[#allocation5 + $0x90] sm:$0xff]
    %v5944 = vld [vmem:[#allocation5 + $0x98] sm:$0xff]
    %v5945 = vld [vmem:[#allocation5 + $0xa0] sm:$0xff]
    %v5946 = vld [vmem:[#allocation5 + $0xa8] sm:$0xff]
    %v5947 = vld [vmem:[#allocation5 + $0xb0] sm:$0xff]
    %v5948 = vld [vmem:[#allocation5 + $0xb8] sm:$0xff]
    %v5949 = vld [vmem:[#allocation5 + $0xc0] sm:$0xff]
    %v5950 = vld [vmem:[#allocation5 + $0xc8] sm:$0xff]
    %v5951 = vld [vmem:[#allocation5 + $0xd0] sm:$0xff]
    %v5952 = vld [vmem:[#allocation5 + $0xd8] sm:$0xff]
    %v5953 = vld [vmem:[#allocation5 + $0xe0] sm:$0xff]
    %v5954 = vld [vmem:[#allocation5 + $0xe8] sm:$0xff]
    %v5955 = vld [vmem:[#allocation5 + $0xf0] sm:$0xff]
    %v5956 = vld [vmem:[#allocation5 + $0xf8] sm:$0xff]
    %v5989 = vunpack.c.l.b16 %v5925
    %v5990 = vunpack.c.h.b16 %v5925
    %v5991 = vunpack.c.l.b16 %v5926
    %v5992 = vunpack.c.h.b16 %v5926
    %v5993 = vunpack.c.l.b16 %v5927
    %v5994 = vunpack.c.h.b16 %v5927
    %v5995 = vunpack.c.l.b16 %v5928
    %v5996 = vunpack.c.h.b16 %v5928
    %v5997 = vunpack.c.l.b16 %v5929
    %v5998 = vunpack.c.h.b16 %v5929
    %v5999 = vunpack.c.l.b16 %v5930
    %v6000 = vunpack.c.h.b16 %v5930
    %v6001 = vunpack.c.l.b16 %v5931
    %v6002 = vunpack.c.h.b16 %v5931
    %v6003 = vunpack.c.l.b16 %v5932
    %v6004 = vunpack.c.h.b16 %v5932
    %v6005 = vunpack.c.l.b16 %v5933
    %v6006 = vunpack.c.h.b16 %v5933
    %v6007 = vunpack.c.l.b16 %v5934
    %v6008 = vunpack.c.h.b16 %v5934
    %v6009 = vunpack.c.l.b16 %v5935
    %v6010 = vunpack.c.h.b16 %v5935
    %v6011 = vunpack.c.l.b16 %v5936
    %v6012 = vunpack.c.h.b16 %v5936
    %v6013 = vunpack.c.l.b16 %v5937
    %v6014 = vunpack.c.h.b16 %v5937
    %v6015 = vunpack.c.l.b16 %v5938
    %v6016 = vunpack.c.h.b16 %v5938
    %v6017 = vunpack.c.l.b16 %v5939
    %v6018 = vunpack.c.h.b16 %v5939
    %v6019 = vunpack.c.l.b16 %v5940
    %v6020 = vunpack.c.h.b16 %v5940
    %v6021 = vunpack.c.l.b16 %v5941
    %v6022 = vunpack.c.h.b16 %v5941
    %v6023 = vunpack.c.l.b16 %v5942
    %v6024 = vunpack.c.h.b16 %v5942
    %v6025 = vunpack.c.l.b16 %v5943
    %v6026 = vunpack.c.h.b16 %v5943
    %v6027 = vunpack.c.l.b16 %v5944
    %v6028 = vunpack.c.h.b16 %v5944
    %v6029 = vunpack.c.l.b16 %v5945
    %v6030 = vunpack.c.h.b16 %v5945
    %v6031 = vunpack.c.l.b16 %v5946
    %v6032 = vunpack.c.h.b16 %v5946
    %v6033 = vunpack.c.l.b16 %v5947
    %v6034 = vunpack.c.h.b16 %v5947
    %v6035 = vunpack.c.l.b16 %v5948
    %v6036 = vunpack.c.h.b16 %v5948
    %v6037 = vunpack.c.l.b16 %v5949
    %v6038 = vunpack.c.h.b16 %v5949
    %v6039 = vunpack.c.l.b16 %v5950
    %v6040 = vunpack.c.h.b16 %v5950
    %v6041 = vunpack.c.l.b16 %v5951
    %v6042 = vunpack.c.h.b16 %v5951
    %v6043 = vunpack.c.l.b16 %v5952
    %v6044 = vunpack.c.h.b16 %v5952
    %v6045 = vunpack.c.l.b16 %v5953
    %v6046 = vunpack.c.h.b16 %v5953
    %v6047 = vunpack.c.l.b16 %v5954
    %v6048 = vunpack.c.h.b16 %v5954
    %v6049 = vunpack.c.l.b16 %v5955
    %v6050 = vunpack.c.h.b16 %v5955
    %v6051 = vunpack.c.l.b16 %v5956
    %v6052 = vunpack.c.h.b16 %v5956
    %v6053 = vpack.c.b16 %v5993, %v5989
    %v6054 = vpack.c.b16 %v5994, %v5990
    %v6055 = vpack.c.b16 %v5995, %v5991
    %v6056 = vpack.c.b16 %v5996, %v5992
    %v6057 = vpack.c.b16 %v6001, %v5997
    %v6058 = vpack.c.b16 %v6002, %v5998
    %v6059 = vpack.c.b16 %v6003, %v5999
    %v6060 = vpack.c.b16 %v6004, %v6000
    %v6061 = vpack.c.b16 %v6009, %v6005
    %v6062 = vpack.c.b16 %v6010, %v6006
    %v6063 = vpack.c.b16 %v6011, %v6007
    %v6064 = vpack.c.b16 %v6012, %v6008
    %v6065 = vpack.c.b16 %v6017, %v6013
    %v6066 = vpack.c.b16 %v6018, %v6014
    %v6067 = vpack.c.b16 %v6019, %v6015
    %v6068 = vpack.c.b16 %v6020, %v6016
    %v6069 = vpack.c.b16 %v6025, %v6021
    %v6070 = vpack.c.b16 %v6026, %v6022
    %v6071 = vpack.c.b16 %v6027, %v6023
    %v6072 = vpack.c.b16 %v6028, %v6024
    %v6073 = vpack.c.b16 %v6033, %v6029
    %v6074 = vpack.c.b16 %v6034, %v6030
    %v6075 = vpack.c.b16 %v6035, %v6031
    %v6076 = vpack.c.b16 %v6036, %v6032
    %v6077 = vpack.c.b16 %v6041, %v6037
    %v6078 = vpack.c.b16 %v6042, %v6038
    %v6079 = vpack.c.b16 %v6043, %v6039
    %v6080 = vpack.c.b16 %v6044, %v6040
    %v6081 = vpack.c.b16 %v6049, %v6045
    %v6082 = vpack.c.b16 %v6050, %v6046
    %v6083 = vpack.c.b16 %v6051, %v6047
    %v6084 = vpack.c.b16 %v6052, %v6048
    %6117 = vmatprep.subr.bf16.mxu0 %v6054
    %6118 = vmatpush1.bf16.msra.mxu0 %v6053
    %6119 = vmatprep.subr.bf16.mxu0 %v6058
    %6120 = vmatpush1.bf16.msra.mxu0 %v6057
    %6121 = vmatprep.subr.bf16.mxu0 %v6062
    %6122 = vmatpush1.bf16.msra.mxu0 %v6061
    %6123 = vmatprep.subr.bf16.mxu0 %v6066
    %6124 = vmatpush1.bf16.msra.mxu0 %v6065
    %6125 = vmatprep.subr.bf16.mxu0 %v6070
    %6126 = vmatpush1.bf16.msra.mxu0 %v6069
    %6127 = vmatprep.subr.bf16.mxu0 %v6074
    %6128 = vmatpush1.bf16.msra.mxu0 %v6073
    %6129 = vmatprep.subr.bf16.mxu0 %v6078
    %6130 = vmatpush1.bf16.msra.mxu0 %v6077
    %6131 = vmatprep.subr.bf16.mxu0 %v6082
    %6132 = vmatpush1.bf16.msra.mxu0 %v6081
    %6133 = vmatprep.subr.bf16.mxu0 0
    %6134 = vmatpush1.bf16.msra.mxu0 0
    %6135 = vmatprep.subr.bf16.mxu0 0
    %6136 = vmatpush1.bf16.msra.mxu0 0
    %6137 = vmatprep.subr.bf16.mxu0 0
    %6138 = vmatpush1.bf16.msra.mxu0 0
    %6139 = vmatprep.subr.bf16.mxu0 0
    %6140 = vmatpush1.bf16.msra.mxu0 0
    %6141 = vmatprep.subr.bf16.mxu0 0
    %6142 = vmatpush1.bf16.msra.mxu0 0
    %6143 = vmatprep.subr.bf16.mxu0 0
    %6144 = vmatpush1.bf16.msra.mxu0 0
    %6145 = vmatprep.subr.bf16.mxu0 0
    %6146 = vmatpush1.bf16.msra.mxu0 0
    %6147 = vmatprep.subr.bf16.mxu0 0
    %6148 = vmatpush1.bf16.msra.mxu0 0
    %6149 = vmatprep.mubr.bf16.mxu0 0
    %6150 = vmatmul.mubr.bf16.gmra.mrb[0].mxu0 %v5924
    %v6151 = vpop.f32.mrb[0].mxu0
    %v6152 = vadd.f32 0.0, %v6151
    %v6153 = vpop.f32.mrb[0].mxu0
    %v6154 = vadd.f32 0.0, %v6153
    %v6155 = vpop.f32.mrb[0].mxu0
    %v6156 = vpop.f32.mrb[0].mxu0
    %6157 = vdwg.mxu0
    %6158 = vmatprep.subr.bf16.mxu0 %v6056
    %6159 = vmatpush1.bf16.msra.mxu0 %v6055
    %6160 = vmatprep.subr.bf16.mxu0 %v6060
    %6161 = vmatpush1.bf16.msra.mxu0 %v6059
    %6162 = vmatprep.subr.bf16.mxu0 %v6064
    %6163 = vmatpush1.bf16.msra.mxu0 %v6063
    %6164 = vmatprep.subr.bf16.mxu0 %v6068
    %6165 = vmatpush1.bf16.msra.mxu0 %v6067
    %6166 = vmatprep.subr.bf16.mxu0 %v6072
    %6167 = vmatpush1.bf16.msra.mxu0 %v6071
    %6168 = vmatprep.subr.bf16.mxu0 %v6076
    %6169 = vmatpush1.bf16.msra.mxu0 %v6075
    %6170 = vmatprep.subr.bf16.mxu0 %v6080
    %6171 = vmatpush1.bf16.msra.mxu0 %v6079
    %6172 = vmatprep.subr.bf16.mxu0 %v6084
    %6173 = vmatpush1.bf16.msra.mxu0 %v6083
    %6174 = vmatprep.subr.bf16.mxu0 0
    %6175 = vmatpush1.bf16.msra.mxu0 0
    %6176 = vmatprep.subr.bf16.mxu0 0
    %6177 = vmatpush1.bf16.msra.mxu0 0
    %6178 = vmatprep.subr.bf16.mxu0 0
    %6179 = vmatpush1.bf16.msra.mxu0 0
    %6180 = vmatprep.subr.bf16.mxu0 0
    %6181 = vmatpush1.bf16.msra.mxu0 0
    %6182 = vmatprep.subr.bf16.mxu0 0
    %6183 = vmatpush1.bf16.msra.mxu0 0
    %6184 = vmatprep.subr.bf16.mxu0 0
    %6185 = vmatpush1.bf16.msra.mxu0 0
    %6186 = vmatprep.subr.bf16.mxu0 0
    %6187 = vmatpush1.bf16.msra.mxu0 0
    %6188 = vmatprep.subr.bf16.mxu0 0
    %6189 = vmatpush1.bf16.msra.mxu0 0
    %6190 = vmatprep.mubr.bf16.mxu0 0
    %6191 = vmatmul.mubr.bf16.gmra.mrb[0].mxu0 %v5924
    %v6192 = vpop.f32.mrb[0].mxu0
    %v6193 = vadd.f32 0.0, %v6192
    %v6194 = vpop.f32.mrb[0].mxu0
    %v6195 = vadd.f32 0.0, %v6194
    %v6196 = vpop.f32.mrb[0].mxu0
    %v6197 = vpop.f32.mrb[0].mxu0
    %6198 = vdwg.mxu0
    %v6199 = vadd.f32 %v514, %v6152
    %v6200 = vadd.f32 %v516, %v6154
    %v6201 = vadd.f32 %v555, %v6193
    %v6202 = vadd.f32 %v557, %v6195
    %v6203 = vmul.f32 %v6199, 0.5
    %v6204 = vmul.f32 %v6200, 0.5
    %v6205 = vmul.f32 %v6201, 0.5
    %v6206 = vtanh.pop %v6203
    %v6207 = vtanh.pop %v6204
    %v6208 = vtanh.pop %v6205
    %v6209 = vmul.f32 %v6206, 0.5
    %v6210 = vmul.f32 %v6207, 0.5
    %v6211 = vmul.f32 %v6208, 0.5
    %v6212 = vadd.f32 %v6209, 0.5
    %v6213 = vadd.f32 %v6210, 0.5
    %v6214 = vadd.f32 %v6211, 0.5
    %v6215 = vtanh.pop %v6202
    %v6216 = vmul.f32 %v6213, %v5920
    %v6217 = vmul.f32 %v6212, %v6215
    %v6218 = vadd.f32 %v6216, %v6217
    %v6219 = vtanh.pop %v6218
    %v6220 = vmul.f32 %v6214, %v6219
    %6221 = vst [vmem:[#allocation2 + $0x90] sm:$0xff] %v6220
    %v6222 = vpack.c.bf16 %v6220, %v6220
    %v6223 = vld [vmem:[#allocation5] sm:$0xff]
    %v6224 = vld [vmem:[#allocation5 + $0x8] sm:$0xff]
    %v6225 = vld [vmem:[#allocation5 + $0x10] sm:$0xff]
    %v6226 = vld [vmem:[#allocation5 + $0x18] sm:$0xff]
    %v6227 = vld [vmem:[#allocation5 + $0x20] sm:$0xff]
    %v6228 = vld [vmem:[#allocation5 + $0x28] sm:$0xff]
    %v6229 = vld [vmem:[#allocation5 + $0x30] sm:$0xff]
    %v6230 = vld [vmem:[#allocation5 + $0x38] sm:$0xff]
    %v6231 = vld [vmem:[#allocation5 + $0x40] sm:$0xff]
    %v6232 = vld [vmem:[#allocation5 + $0x48] sm:$0xff]
    %v6233 = vld [vmem:[#allocation5 + $0x50] sm:$0xff]
    %v6234 = vld [vmem:[#allocation5 + $0x58] sm:$0xff]
    %v6235 = vld [vmem:[#allocation5 + $0x60] sm:$0xff]
    %v6236 = vld [vmem:[#allocation5 + $0x68] sm:$0xff]
    %v6237 = vld [vmem:[#allocation5 + $0x70] sm:$0xff]
    %v6238 = vld [vmem:[#allocation5 + $0x78] sm:$0xff]
    %v6239 = vld [vmem:[#allocation5 + $0x80] sm:$0xff]
    %v6240 = vld [vmem:[#allocation5 + $0x88] sm:$0xff]
    %v6241 = vld [vmem:[#allocation5 + $0x90] sm:$0xff]
    %v6242 = vld [vmem:[#allocation5 + $0x98] sm:$0xff]
    %v6243 = vld [vmem:[#allocation5 + $0xa0] sm:$0xff]
    %v6244 = vld [vmem:[#allocation5 + $0xa8] sm:$0xff]
    %v6245 = vld [vmem:[#allocation5 + $0xb0] sm:$0xff]
    %v6246 = vld [vmem:[#allocation5 + $0xb8] sm:$0xff]
    %v6247 = vld [vmem:[#allocation5 + $0xc0] sm:$0xff]
    %v6248 = vld [vmem:[#allocation5 + $0xc8] sm:$0xff]
    %v6249 = vld [vmem:[#allocation5 + $0xd0] sm:$0xff]
    %v6250 = vld [vmem:[#allocation5 + $0xd8] sm:$0xff]
    %v6251 = vld [vmem:[#allocation5 + $0xe0] sm:$0xff]
    %v6252 = vld [vmem:[#allocation5 + $0xe8] sm:$0xff]
    %v6253 = vld [vmem:[#allocation5 + $0xf0] sm:$0xff]
    %v6254 = vld [vmem:[#allocation5 + $0xf8] sm:$0xff]
    %v6287 = vunpack.c.l.b16 %v6223
    %v6288 = vunpack.c.h.b16 %v6223
    %v6289 = vunpack.c.l.b16 %v6224
    %v6290 = vunpack.c.h.b16 %v6224
    %v6291 = vunpack.c.l.b16 %v6225
    %v6292 = vunpack.c.h.b16 %v6225
    %v6293 = vunpack.c.l.b16 %v6226
    %v6294 = vunpack.c.h.b16 %v6226
    %v6295 = vunpack.c.l.b16 %v6227
    %v6296 = vunpack.c.h.b16 %v6227
    %v6297 = vunpack.c.l.b16 %v6228
    %v6298 = vunpack.c.h.b16 %v6228
    %v6299 = vunpack.c.l.b16 %v6229
    %v6300 = vunpack.c.h.b16 %v6229
    %v6301 = vunpack.c.l.b16 %v6230
    %v6302 = vunpack.c.h.b16 %v6230
    %v6303 = vunpack.c.l.b16 %v6231
    %v6304 = vunpack.c.h.b16 %v6231
    %v6305 = vunpack.c.l.b16 %v6232
    %v6306 = vunpack.c.h.b16 %v6232
    %v6307 = vunpack.c.l.b16 %v6233
    %v6308 = vunpack.c.h.b16 %v6233
    %v6309 = vunpack.c.l.b16 %v6234
    %v6310 = vunpack.c.h.b16 %v6234
    %v6311 = vunpack.c.l.b16 %v6235
    %v6312 = vunpack.c.h.b16 %v6235
    %v6313 = vunpack.c.l.b16 %v6236
    %v6314 = vunpack.c.h.b16 %v6236
    %v6315 = vunpack.c.l.b16 %v6237
    %v6316 = vunpack.c.h.b16 %v6237
    %v6317 = vunpack.c.l.b16 %v6238
    %v6318 = vunpack.c.h.b16 %v6238
    %v6319 = vunpack.c.l.b16 %v6239
    %v6320 = vunpack.c.h.b16 %v6239
    %v6321 = vunpack.c.l.b16 %v6240
    %v6322 = vunpack.c.h.b16 %v6240
    %v6323 = vunpack.c.l.b16 %v6241
    %v6324 = vunpack.c.h.b16 %v6241
    %v6325 = vunpack.c.l.b16 %v6242
    %v6326 = vunpack.c.h.b16 %v6242
    %v6327 = vunpack.c.l.b16 %v6243
    %v6328 = vunpack.c.h.b16 %v6243
    %v6329 = vunpack.c.l.b16 %v6244
    %v6330 = vunpack.c.h.b16 %v6244
    %v6331 = vunpack.c.l.b16 %v6245
    %v6332 = vunpack.c.h.b16 %v6245
    %v6333 = vunpack.c.l.b16 %v6246
    %v6334 = vunpack.c.h.b16 %v6246
    %v6335 = vunpack.c.l.b16 %v6247
    %v6336 = vunpack.c.h.b16 %v6247
    %v6337 = vunpack.c.l.b16 %v6248
    %v6338 = vunpack.c.h.b16 %v6248
    %v6339 = vunpack.c.l.b16 %v6249
    %v6340 = vunpack.c.h.b16 %v6249
    %v6341 = vunpack.c.l.b16 %v6250
    %v6342 = vunpack.c.h.b16 %v6250
    %v6343 = vunpack.c.l.b16 %v6251
    %v6344 = vunpack.c.h.b16 %v6251
    %v6345 = vunpack.c.l.b16 %v6252
    %v6346 = vunpack.c.h.b16 %v6252
    %v6347 = vunpack.c.l.b16 %v6253
    %v6348 = vunpack.c.h.b16 %v6253
    %v6349 = vunpack.c.l.b16 %v6254
    %v6350 = vunpack.c.h.b16 %v6254
    %v6351 = vpack.c.b16 %v6291, %v6287
    %v6352 = vpack.c.b16 %v6292, %v6288
    %v6353 = vpack.c.b16 %v6293, %v6289
    %v6354 = vpack.c.b16 %v6294, %v6290
    %v6355 = vpack.c.b16 %v6299, %v6295
    %v6356 = vpack.c.b16 %v6300, %v6296
    %v6357 = vpack.c.b16 %v6301, %v6297
    %v6358 = vpack.c.b16 %v6302, %v6298
    %v6359 = vpack.c.b16 %v6307, %v6303
    %v6360 = vpack.c.b16 %v6308, %v6304
    %v6361 = vpack.c.b16 %v6309, %v6305
    %v6362 = vpack.c.b16 %v6310, %v6306
    %v6363 = vpack.c.b16 %v6315, %v6311
    %v6364 = vpack.c.b16 %v6316, %v6312
    %v6365 = vpack.c.b16 %v6317, %v6313
    %v6366 = vpack.c.b16 %v6318, %v6314
    %v6367 = vpack.c.b16 %v6323, %v6319
    %v6368 = vpack.c.b16 %v6324, %v6320
    %v6369 = vpack.c.b16 %v6325, %v6321
    %v6370 = vpack.c.b16 %v6326, %v6322
    %v6371 = vpack.c.b16 %v6331, %v6327
    %v6372 = vpack.c.b16 %v6332, %v6328
    %v6373 = vpack.c.b16 %v6333, %v6329
    %v6374 = vpack.c.b16 %v6334, %v6330
    %v6375 = vpack.c.b16 %v6339, %v6335
    %v6376 = vpack.c.b16 %v6340, %v6336
    %v6377 = vpack.c.b16 %v6341, %v6337
    %v6378 = vpack.c.b16 %v6342, %v6338
    %v6379 = vpack.c.b16 %v6347, %v6343
    %v6380 = vpack.c.b16 %v6348, %v6344
    %v6381 = vpack.c.b16 %v6349, %v6345
    %v6382 = vpack.c.b16 %v6350, %v6346
    %6415 = vmatprep.subr.bf16.mxu0 %v6352
    %6416 = vmatpush1.bf16.msra.mxu0 %v6351
    %6417 = vmatprep.subr.bf16.mxu0 %v6356
    %6418 = vmatpush1.bf16.msra.mxu0 %v6355
    %6419 = vmatprep.subr.bf16.mxu0 %v6360
    %6420 = vmatpush1.bf16.msra.mxu0 %v6359
    %6421 = vmatprep.subr.bf16.mxu0 %v6364
    %6422 = vmatpush1.bf16.msra.mxu0 %v6363
    %6423 = vmatprep.subr.bf16.mxu0 %v6368
    %6424 = vmatpush1.bf16.msra.mxu0 %v6367
    %6425 = vmatprep.subr.bf16.mxu0 %v6372
    %6426 = vmatpush1.bf16.msra.mxu0 %v6371
    %6427 = vmatprep.subr.bf16.mxu0 %v6376
    %6428 = vmatpush1.bf16.msra.mxu0 %v6375
    %6429 = vmatprep.subr.bf16.mxu0 %v6380
    %6430 = vmatpush1.bf16.msra.mxu0 %v6379
    %6431 = vmatprep.subr.bf16.mxu0 0
    %6432 = vmatpush1.bf16.msra.mxu0 0
    %6433 = vmatprep.subr.bf16.mxu0 0
    %6434 = vmatpush1.bf16.msra.mxu0 0
    %6435 = vmatprep.subr.bf16.mxu0 0
    %6436 = vmatpush1.bf16.msra.mxu0 0
    %6437 = vmatprep.subr.bf16.mxu0 0
    %6438 = vmatpush1.bf16.msra.mxu0 0
    %6439 = vmatprep.subr.bf16.mxu0 0
    %6440 = vmatpush1.bf16.msra.mxu0 0
    %6441 = vmatprep.subr.bf16.mxu0 0
    %6442 = vmatpush1.bf16.msra.mxu0 0
    %6443 = vmatprep.subr.bf16.mxu0 0
    %6444 = vmatpush1.bf16.msra.mxu0 0
    %6445 = vmatprep.subr.bf16.mxu0 0
    %6446 = vmatpush1.bf16.msra.mxu0 0
    %6447 = vmatprep.mubr.bf16.mxu0 0
    %6448 = vmatmul.mubr.bf16.gmra.mrb[0].mxu0 %v6222
    %v6449 = vpop.f32.mrb[0].mxu0
    %v6450 = vadd.f32 0.0, %v6449
    %v6451 = vpop.f32.mrb[0].mxu0
    %v6452 = vadd.f32 0.0, %v6451
    %v6453 = vpop.f32.mrb[0].mxu0
    %v6454 = vpop.f32.mrb[0].mxu0
    %6455 = vdwg.mxu0
    %6456 = vmatprep.subr.bf16.mxu0 %v6354
    %6457 = vmatpush1.bf16.msra.mxu0 %v6353
    %6458 = vmatprep.subr.bf16.mxu0 %v6358
    %6459 = vmatpush1.bf16.msra.mxu0 %v6357
    %6460 = vmatprep.subr.bf16.mxu0 %v6362
    %6461 = vmatpush1.bf16.msra.mxu0 %v6361
    %6462 = vmatprep.subr.bf16.mxu0 %v6366
    %6463 = vmatpush1.bf16.msra.mxu0 %v6365
    %6464 = vmatprep.subr.bf16.mxu0 %v6370
    %6465 = vmatpush1.bf16.msra.mxu0 %v6369
    %6466 = vmatprep.subr.bf16.mxu0 %v6374
    %6467 = vmatpush1.bf16.msra.mxu0 %v6373
    %6468 = vmatprep.subr.bf16.mxu0 %v6378
    %6469 = vmatpush1.bf16.msra.mxu0 %v6377
    %6470 = vmatprep.subr.bf16.mxu0 %v6382
    %6471 = vmatpush1.bf16.msra.mxu0 %v6381
    %6472 = vmatprep.subr.bf16.mxu0 0
    %6473 = vmatpush1.bf16.msra.mxu0 0
    %6474 = vmatprep.subr.bf16.mxu0 0
    %6475 = vmatpush1.bf16.msra.mxu0 0
    %6476 = vmatprep.subr.bf16.mxu0 0
    %6477 = vmatpush1.bf16.msra.mxu0 0
    %6478 = vmatprep.subr.bf16.mxu0 0
    %6479 = vmatpush1.bf16.msra.mxu0 0
    %6480 = vmatprep.subr.bf16.mxu0 0
    %6481 = vmatpush1.bf16.msra.mxu0 0
    %6482 = vmatprep.subr.bf16.mxu0 0
    %6483 = vmatpush1.bf16.msra.mxu0 0
    %6484 = vmatprep.subr.bf16.mxu0 0
    %6485 = vmatpush1.bf16.msra.mxu0 0
    %6486 = vmatprep.subr.bf16.mxu0 0
    %6487 = vmatpush1.bf16.msra.mxu0 0
    %6488 = vmatprep.mubr.bf16.mxu0 0
    %6489 = vmatmul.mubr.bf16.gmra.mrb[0].mxu0 %v6222
    %v6490 = vpop.f32.mrb[0].mxu0
    %v6491 = vadd.f32 0.0, %v6490
    %v6492 = vpop.f32.mrb[0].mxu0
    %v6493 = vadd.f32 0.0, %v6492
    %v6494 = vpop.f32.mrb[0].mxu0
    %v6495 = vpop.f32.mrb[0].mxu0
    %6496 = vdwg.mxu0
    %v6497 = vadd.f32 %v514, %v6450
    %v6498 = vadd.f32 %v516, %v6452
    %v6499 = vadd.f32 %v555, %v6491
    %v6500 = vadd.f32 %v557, %v6493
    %v6501 = vmul.f32 %v6497, 0.5
    %v6502 = vmul.f32 %v6498, 0.5
    %v6503 = vmul.f32 %v6499, 0.5
    %v6504 = vtanh.pop %v6501
    %v6505 = vtanh.pop %v6502
    %v6506 = vtanh.pop %v6503
    %v6507 = vmul.f32 %v6504, 0.5
    %v6508 = vmul.f32 %v6505, 0.5
    %v6509 = vmul.f32 %v6506, 0.5
    %v6510 = vadd.f32 %v6507, 0.5
    %v6511 = vadd.f32 %v6508, 0.5
    %v6512 = vadd.f32 %v6509, 0.5
    %v6513 = vtanh.pop %v6500
    %v6514 = vmul.f32 %v6511, %v6218
    %v6515 = vmul.f32 %v6510, %v6513
    %v6516 = vadd.f32 %v6514, %v6515
    %v6517 = vtanh.pop %v6516
    %v6518 = vmul.f32 %v6512, %v6517
    %6519 = vst [vmem:[#allocation2 + $0x98] sm:$0xff] %v6518
    %v6520 = vpack.c.bf16 %v6518, %v6518
    %v6521 = vld [vmem:[#allocation5] sm:$0xff]
    %v6522 = vld [vmem:[#allocation5 + $0x8] sm:$0xff]
    %v6523 = vld [vmem:[#allocation5 + $0x10] sm:$0xff]
    %v6524 = vld [vmem:[#allocation5 + $0x18] sm:$0xff]
    %v6525 = vld [vmem:[#allocation5 + $0x20] sm:$0xff]
    %v6526 = vld [vmem:[#allocation5 + $0x28] sm:$0xff]
    %v6527 = vld [vmem:[#allocation5 + $0x30] sm:$0xff]
    %v6528 = vld [vmem:[#allocation5 + $0x38] sm:$0xff]
    %v6529 = vld [vmem:[#allocation5 + $0x40] sm:$0xff]
    %v6530 = vld [vmem:[#allocation5 + $0x48] sm:$0xff]
    %v6531 = vld [vmem:[#allocation5 + $0x50] sm:$0xff]
    %v6532 = vld [vmem:[#allocation5 + $0x58] sm:$0xff]
    %v6533 = vld [vmem:[#allocation5 + $0x60] sm:$0xff]
    %v6534 = vld [vmem:[#allocation5 + $0x68] sm:$0xff]
    %v6535 = vld [vmem:[#allocation5 + $0x70] sm:$0xff]
    %v6536 = vld [vmem:[#allocation5 + $0x78] sm:$0xff]
    %v6537 = vld [vmem:[#allocation5 + $0x80] sm:$0xff]
    %v6538 = vld [vmem:[#allocation5 + $0x88] sm:$0xff]
    %v6539 = vld [vmem:[#allocation5 + $0x90] sm:$0xff]
    %v6540 = vld [vmem:[#allocation5 + $0x98] sm:$0xff]
    %v6541 = vld [vmem:[#allocation5 + $0xa0] sm:$0xff]
    %v6542 = vld [vmem:[#allocation5 + $0xa8] sm:$0xff]
    %v6543 = vld [vmem:[#allocation5 + $0xb0] sm:$0xff]
    %v6544 = vld [vmem:[#allocation5 + $0xb8] sm:$0xff]
    %v6545 = vld [vmem:[#allocation5 + $0xc0] sm:$0xff]
    %v6546 = vld [vmem:[#allocation5 + $0xc8] sm:$0xff]
    %v6547 = vld [vmem:[#allocation5 + $0xd0] sm:$0xff]
    %v6548 = vld [vmem:[#allocation5 + $0xd8] sm:$0xff]
    %v6549 = vld [vmem:[#allocation5 + $0xe0] sm:$0xff]
    %v6550 = vld [vmem:[#allocation5 + $0xe8] sm:$0xff]
    %v6551 = vld [vmem:[#allocation5 + $0xf0] sm:$0xff]
    %v6552 = vld [vmem:[#allocation5 + $0xf8] sm:$0xff]
    %v6585 = vunpack.c.l.b16 %v6521
    %v6586 = vunpack.c.h.b16 %v6521
    %v6587 = vunpack.c.l.b16 %v6522
    %v6588 = vunpack.c.h.b16 %v6522
    %v6589 = vunpack.c.l.b16 %v6523
    %v6590 = vunpack.c.h.b16 %v6523
    %v6591 = vunpack.c.l.b16 %v6524
    %v6592 = vunpack.c.h.b16 %v6524
    %v6593 = vunpack.c.l.b16 %v6525
    %v6594 = vunpack.c.h.b16 %v6525
    %v6595 = vunpack.c.l.b16 %v6526
    %v6596 = vunpack.c.h.b16 %v6526
    %v6597 = vunpack.c.l.b16 %v6527
    %v6598 = vunpack.c.h.b16 %v6527
    %v6599 = vunpack.c.l.b16 %v6528
    %v6600 = vunpack.c.h.b16 %v6528
    %v6601 = vunpack.c.l.b16 %v6529
    %v6602 = vunpack.c.h.b16 %v6529
    %v6603 = vunpack.c.l.b16 %v6530
    %v6604 = vunpack.c.h.b16 %v6530
    %v6605 = vunpack.c.l.b16 %v6531
    %v6606 = vunpack.c.h.b16 %v6531
    %v6607 = vunpack.c.l.b16 %v6532
    %v6608 = vunpack.c.h.b16 %v6532
    %v6609 = vunpack.c.l.b16 %v6533
    %v6610 = vunpack.c.h.b16 %v6533
    %v6611 = vunpack.c.l.b16 %v6534
    %v6612 = vunpack.c.h.b16 %v6534
    %v6613 = vunpack.c.l.b16 %v6535
    %v6614 = vunpack.c.h.b16 %v6535
    %v6615 = vunpack.c.l.b16 %v6536
    %v6616 = vunpack.c.h.b16 %v6536
    %v6617 = vunpack.c.l.b16 %v6537
    %v6618 = vunpack.c.h.b16 %v6537
    %v6619 = vunpack.c.l.b16 %v6538
    %v6620 = vunpack.c.h.b16 %v6538
    %v6621 = vunpack.c.l.b16 %v6539
    %v6622 = vunpack.c.h.b16 %v6539
    %v6623 = vunpack.c.l.b16 %v6540
    %v6624 = vunpack.c.h.b16 %v6540
    %v6625 = vunpack.c.l.b16 %v6541
    %v6626 = vunpack.c.h.b16 %v6541
    %v6627 = vunpack.c.l.b16 %v6542
    %v6628 = vunpack.c.h.b16 %v6542
    %v6629 = vunpack.c.l.b16 %v6543
    %v6630 = vunpack.c.h.b16 %v6543
    %v6631 = vunpack.c.l.b16 %v6544
    %v6632 = vunpack.c.h.b16 %v6544
    %v6633 = vunpack.c.l.b16 %v6545
    %v6634 = vunpack.c.h.b16 %v6545
    %v6635 = vunpack.c.l.b16 %v6546
    %v6636 = vunpack.c.h.b16 %v6546
    %v6637 = vunpack.c.l.b16 %v6547
    %v6638 = vunpack.c.h.b16 %v6547
    %v6639 = vunpack.c.l.b16 %v6548
    %v6640 = vunpack.c.h.b16 %v6548
    %v6641 = vunpack.c.l.b16 %v6549
    %v6642 = vunpack.c.h.b16 %v6549
    %v6643 = vunpack.c.l.b16 %v6550
    %v6644 = vunpack.c.h.b16 %v6550
    %v6645 = vunpack.c.l.b16 %v6551
    %v6646 = vunpack.c.h.b16 %v6551
    %v6647 = vunpack.c.l.b16 %v6552
    %v6648 = vunpack.c.h.b16 %v6552
    %v6649 = vpack.c.b16 %v6589, %v6585
    %v6650 = vpack.c.b16 %v6590, %v6586
    %v6651 = vpack.c.b16 %v6591, %v6587
    %v6652 = vpack.c.b16 %v6592, %v6588
    %v6653 = vpack.c.b16 %v6597, %v6593
    %v6654 = vpack.c.b16 %v6598, %v6594
    %v6655 = vpack.c.b16 %v6599, %v6595
    %v6656 = vpack.c.b16 %v6600, %v6596
    %v6657 = vpack.c.b16 %v6605, %v6601
    %v6658 = vpack.c.b16 %v6606, %v6602
    %v6659 = vpack.c.b16 %v6607, %v6603
    %v6660 = vpack.c.b16 %v6608, %v6604
    %v6661 = vpack.c.b16 %v6613, %v6609
    %v6662 = vpack.c.b16 %v6614, %v6610
    %v6663 = vpack.c.b16 %v6615, %v6611
    %v6664 = vpack.c.b16 %v6616, %v6612
    %v6665 = vpack.c.b16 %v6621, %v6617
    %v6666 = vpack.c.b16 %v6622, %v6618
    %v6667 = vpack.c.b16 %v6623, %v6619
    %v6668 = vpack.c.b16 %v6624, %v6620
    %v6669 = vpack.c.b16 %v6629, %v6625
    %v6670 = vpack.c.b16 %v6630, %v6626
    %v6671 = vpack.c.b16 %v6631, %v6627
    %v6672 = vpack.c.b16 %v6632, %v6628
    %v6673 = vpack.c.b16 %v6637, %v6633
    %v6674 = vpack.c.b16 %v6638, %v6634
    %v6675 = vpack.c.b16 %v6639, %v6635
    %v6676 = vpack.c.b16 %v6640, %v6636
    %v6677 = vpack.c.b16 %v6645, %v6641
    %v6678 = vpack.c.b16 %v6646, %v6642
    %v6679 = vpack.c.b16 %v6647, %v6643
    %v6680 = vpack.c.b16 %v6648, %v6644
    %6713 = vmatprep.subr.bf16.mxu0 %v6650
    %6714 = vmatpush1.bf16.msra.mxu0 %v6649
    %6715 = vmatprep.subr.bf16.mxu0 %v6654
    %6716 = vmatpush1.bf16.msra.mxu0 %v6653
    %6717 = vmatprep.subr.bf16.mxu0 %v6658
    %6718 = vmatpush1.bf16.msra.mxu0 %v6657
    %6719 = vmatprep.subr.bf16.mxu0 %v6662
    %6720 = vmatpush1.bf16.msra.mxu0 %v6661
    %6721 = vmatprep.subr.bf16.mxu0 %v6666
    %6722 = vmatpush1.bf16.msra.mxu0 %v6665
    %6723 = vmatprep.subr.bf16.mxu0 %v6670
    %6724 = vmatpush1.bf16.msra.mxu0 %v6669
    %6725 = vmatprep.subr.bf16.mxu0 %v6674
    %6726 = vmatpush1.bf16.msra.mxu0 %v6673
    %6727 = vmatprep.subr.bf16.mxu0 %v6678
    %6728 = vmatpush1.bf16.msra.mxu0 %v6677
    %6729 = vmatprep.subr.bf16.mxu0 0
    %6730 = vmatpush1.bf16.msra.mxu0 0
    %6731 = vmatprep.subr.bf16.mxu0 0
    %6732 = vmatpush1.bf16.msra.mxu0 0
    %6733 = vmatprep.subr.bf16.mxu0 0
    %6734 = vmatpush1.bf16.msra.mxu0 0
    %6735 = vmatprep.subr.bf16.mxu0 0
    %6736 = vmatpush1.bf16.msra.mxu0 0
    %6737 = vmatprep.subr.bf16.mxu0 0
    %6738 = vmatpush1.bf16.msra.mxu0 0
    %6739 = vmatprep.subr.bf16.mxu0 0
    %6740 = vmatpush1.bf16.msra.mxu0 0
    %6741 = vmatprep.subr.bf16.mxu0 0
    %6742 = vmatpush1.bf16.msra.mxu0 0
    %6743 = vmatprep.subr.bf16.mxu0 0
    %6744 = vmatpush1.bf16.msra.mxu0 0
    %6745 = vmatprep.mubr.bf16.mxu0 0
    %6746 = vmatmul.mubr.bf16.gmra.mrb[0].mxu0 %v6520
    %v6747 = vpop.f32.mrb[0].mxu0
    %v6748 = vadd.f32 0.0, %v6747
    %v6749 = vpop.f32.mrb[0].mxu0
    %v6750 = vadd.f32 0.0, %v6749
    %v6751 = vpop.f32.mrb[0].mxu0
    %v6752 = vpop.f32.mrb[0].mxu0
    %6753 = vdwg.mxu0
    %6754 = vmatprep.subr.bf16.mxu0 %v6652
    %6755 = vmatpush1.bf16.msra.mxu0 %v6651
    %6756 = vmatprep.subr.bf16.mxu0 %v6656
    %6757 = vmatpush1.bf16.msra.mxu0 %v6655
    %6758 = vmatprep.subr.bf16.mxu0 %v6660
    %6759 = vmatpush1.bf16.msra.mxu0 %v6659
    %6760 = vmatprep.subr.bf16.mxu0 %v6664
    %6761 = vmatpush1.bf16.msra.mxu0 %v6663
    %6762 = vmatprep.subr.bf16.mxu0 %v6668
    %6763 = vmatpush1.bf16.msra.mxu0 %v6667
    %6764 = vmatprep.subr.bf16.mxu0 %v6672
    %6765 = vmatpush1.bf16.msra.mxu0 %v6671
    %6766 = vmatprep.subr.bf16.mxu0 %v6676
    %6767 = vmatpush1.bf16.msra.mxu0 %v6675
    %6768 = vmatprep.subr.bf16.mxu0 %v6680
    %6769 = vmatpush1.bf16.msra.mxu0 %v6679
    %6770 = vmatprep.subr.bf16.mxu0 0
    %6771 = vmatpush1.bf16.msra.mxu0 0
    %6772 = vmatprep.subr.bf16.mxu0 0
    %6773 = vmatpush1.bf16.msra.mxu0 0
    %6774 = vmatprep.subr.bf16.mxu0 0
    %6775 = vmatpush1.bf16.msra.mxu0 0
    %6776 = vmatprep.subr.bf16.mxu0 0
    %6777 = vmatpush1.bf16.msra.mxu0 0
    %6778 = vmatprep.subr.bf16.mxu0 0
    %6779 = vmatpush1.bf16.msra.mxu0 0
    %6780 = vmatprep.subr.bf16.mxu0 0
    %6781 = vmatpush1.bf16.msra.mxu0 0
    %6782 = vmatprep.subr.bf16.mxu0 0
    %6783 = vmatpush1.bf16.msra.mxu0 0
    %6784 = vmatprep.subr.bf16.mxu0 0
    %6785 = vmatpush1.bf16.msra.mxu0 0
    %6786 = vmatprep.mubr.bf16.mxu0 0
    %6787 = vmatmul.mubr.bf16.gmra.mrb[0].mxu0 %v6520
    %v6788 = vpop.f32.mrb[0].mxu0
    %v6789 = vadd.f32 0.0, %v6788
    %v6790 = vpop.f32.mrb[0].mxu0
    %v6791 = vadd.f32 0.0, %v6790
    %v6792 = vpop.f32.mrb[0].mxu0
    %v6793 = vpop.f32.mrb[0].mxu0
    %6794 = vdwg.mxu0
    %v6795 = vadd.f32 %v514, %v6748
    %v6796 = vadd.f32 %v516, %v6750
    %v6797 = vadd.f32 %v555, %v6789
    %v6798 = vadd.f32 %v557, %v6791
    %v6799 = vmul.f32 %v6795, 0.5
    %v6800 = vmul.f32 %v6796, 0.5
    %v6801 = vmul.f32 %v6797, 0.5
    %v6802 = vtanh.pop %v6799
    %v6803 = vtanh.pop %v6800
    %v6804 = vtanh.pop %v6801
    %v6805 = vmul.f32 %v6802, 0.5
    %v6806 = vmul.f32 %v6803, 0.5
    %v6807 = vmul.f32 %v6804, 0.5
    %v6808 = vadd.f32 %v6805, 0.5
    %v6809 = vadd.f32 %v6806, 0.5
    %v6810 = vadd.f32 %v6807, 0.5
    %v6811 = vtanh.pop %v6798
    %v6812 = vmul.f32 %v6809, %v6516
    %v6813 = vmul.f32 %v6808, %v6811
    %v6814 = vadd.f32 %v6812, %v6813
    %v6815 = vtanh.pop %v6814
    %v6816 = vmul.f32 %v6810, %v6815
    %6817 = vst [vmem:[#allocation2 + $0xa0] sm:$0xff] %v6816
    %v6818 = vpack.c.bf16 %v6816, %v6816
    %v6819 = vld [vmem:[#allocation5] sm:$0xff]
    %v6820 = vld [vmem:[#allocation5 + $0x8] sm:$0xff]
    %v6821 = vld [vmem:[#allocation5 + $0x10] sm:$0xff]
    %v6822 = vld [vmem:[#allocation5 + $0x18] sm:$0xff]
    %v6823 = vld [vmem:[#allocation5 + $0x20] sm:$0xff]
    %v6824 = vld [vmem:[#allocation5 + $0x28] sm:$0xff]
    %v6825 = vld [vmem:[#allocation5 + $0x30] sm:$0xff]
    %v6826 = vld [vmem:[#allocation5 + $0x38] sm:$0xff]
    %v6827 = vld [vmem:[#allocation5 + $0x40] sm:$0xff]
    %v6828 = vld [vmem:[#allocation5 + $0x48] sm:$0xff]
    %v6829 = vld [vmem:[#allocation5 + $0x50] sm:$0xff]
    %v6830 = vld [vmem:[#allocation5 + $0x58] sm:$0xff]
    %v6831 = vld [vmem:[#allocation5 + $0x60] sm:$0xff]
    %v6832 = vld [vmem:[#allocation5 + $0x68] sm:$0xff]
    %v6833 = vld [vmem:[#allocation5 + $0x70] sm:$0xff]
    %v6834 = vld [vmem:[#allocation5 + $0x78] sm:$0xff]
    %v6835 = vld [vmem:[#allocation5 + $0x80] sm:$0xff]
    %v6836 = vld [vmem:[#allocation5 + $0x88] sm:$0xff]
    %v6837 = vld [vmem:[#allocation5 + $0x90] sm:$0xff]
    %v6838 = vld [vmem:[#allocation5 + $0x98] sm:$0xff]
    %v6839 = vld [vmem:[#allocation5 + $0xa0] sm:$0xff]
    %v6840 = vld [vmem:[#allocation5 + $0xa8] sm:$0xff]
    %v6841 = vld [vmem:[#allocation5 + $0xb0] sm:$0xff]
    %v6842 = vld [vmem:[#allocation5 + $0xb8] sm:$0xff]
    %v6843 = vld [vmem:[#allocation5 + $0xc0] sm:$0xff]
    %v6844 = vld [vmem:[#allocation5 + $0xc8] sm:$0xff]
    %v6845 = vld [vmem:[#allocation5 + $0xd0] sm:$0xff]
    %v6846 = vld [vmem:[#allocation5 + $0xd8] sm:$0xff]
    %v6847 = vld [vmem:[#allocation5 + $0xe0] sm:$0xff]
    %v6848 = vld [vmem:[#allocation5 + $0xe8] sm:$0xff]
    %v6849 = vld [vmem:[#allocation5 + $0xf0] sm:$0xff]
    %v6850 = vld [vmem:[#allocation5 + $0xf8] sm:$0xff]
    %v6883 = vunpack.c.l.b16 %v6819
    %v6884 = vunpack.c.h.b16 %v6819
    %v6885 = vunpack.c.l.b16 %v6820
    %v6886 = vunpack.c.h.b16 %v6820
    %v6887 = vunpack.c.l.b16 %v6821
    %v6888 = vunpack.c.h.b16 %v6821
    %v6889 = vunpack.c.l.b16 %v6822
    %v6890 = vunpack.c.h.b16 %v6822
    %v6891 = vunpack.c.l.b16 %v6823
    %v6892 = vunpack.c.h.b16 %v6823
    %v6893 = vunpack.c.l.b16 %v6824
    %v6894 = vunpack.c.h.b16 %v6824
    %v6895 = vunpack.c.l.b16 %v6825
    %v6896 = vunpack.c.h.b16 %v6825
    %v6897 = vunpack.c.l.b16 %v6826
    %v6898 = vunpack.c.h.b16 %v6826
    %v6899 = vunpack.c.l.b16 %v6827
    %v6900 = vunpack.c.h.b16 %v6827
    %v6901 = vunpack.c.l.b16 %v6828
    %v6902 = vunpack.c.h.b16 %v6828
    %v6903 = vunpack.c.l.b16 %v6829
    %v6904 = vunpack.c.h.b16 %v6829
    %v6905 = vunpack.c.l.b16 %v6830
    %v6906 = vunpack.c.h.b16 %v6830
    %v6907 = vunpack.c.l.b16 %v6831
    %v6908 = vunpack.c.h.b16 %v6831
    %v6909 = vunpack.c.l.b16 %v6832
    %v6910 = vunpack.c.h.b16 %v6832
    %v6911 = vunpack.c.l.b16 %v6833
    %v6912 = vunpack.c.h.b16 %v6833
    %v6913 = vunpack.c.l.b16 %v6834
    %v6914 = vunpack.c.h.b16 %v6834
    %v6915 = vunpack.c.l.b16 %v6835
    %v6916 = vunpack.c.h.b16 %v6835
    %v6917 = vunpack.c.l.b16 %v6836
    %v6918 = vunpack.c.h.b16 %v6836
    %v6919 = vunpack.c.l.b16 %v6837
    %v6920 = vunpack.c.h.b16 %v6837
    %v6921 = vunpack.c.l.b16 %v6838
    %v6922 = vunpack.c.h.b16 %v6838
    %v6923 = vunpack.c.l.b16 %v6839
    %v6924 = vunpack.c.h.b16 %v6839
    %v6925 = vunpack.c.l.b16 %v6840
    %v6926 = vunpack.c.h.b16 %v6840
    %v6927 = vunpack.c.l.b16 %v6841
    %v6928 = vunpack.c.h.b16 %v6841
    %v6929 = vunpack.c.l.b16 %v6842
    %v6930 = vunpack.c.h.b16 %v6842
    %v6931 = vunpack.c.l.b16 %v6843
    %v6932 = vunpack.c.h.b16 %v6843
    %v6933 = vunpack.c.l.b16 %v6844
    %v6934 = vunpack.c.h.b16 %v6844
    %v6935 = vunpack.c.l.b16 %v6845
    %v6936 = vunpack.c.h.b16 %v6845
    %v6937 = vunpack.c.l.b16 %v6846
    %v6938 = vunpack.c.h.b16 %v6846
    %v6939 = vunpack.c.l.b16 %v6847
    %v6940 = vunpack.c.h.b16 %v6847
    %v6941 = vunpack.c.l.b16 %v6848
    %v6942 = vunpack.c.h.b16 %v6848
    %v6943 = vunpack.c.l.b16 %v6849
    %v6944 = vunpack.c.h.b16 %v6849
    %v6945 = vunpack.c.l.b16 %v6850
    %v6946 = vunpack.c.h.b16 %v6850
    %v6947 = vpack.c.b16 %v6887, %v6883
    %v6948 = vpack.c.b16 %v6888, %v6884
    %v6949 = vpack.c.b16 %v6889, %v6885
    %v6950 = vpack.c.b16 %v6890, %v6886
    %v6951 = vpack.c.b16 %v6895, %v6891
    %v6952 = vpack.c.b16 %v6896, %v6892
    %v6953 = vpack.c.b16 %v6897, %v6893
    %v6954 = vpack.c.b16 %v6898, %v6894
    %v6955 = vpack.c.b16 %v6903, %v6899
    %v6956 = vpack.c.b16 %v6904, %v6900
    %v6957 = vpack.c.b16 %v6905, %v6901
    %v6958 = vpack.c.b16 %v6906, %v6902
    %v6959 = vpack.c.b16 %v6911, %v6907
    %v6960 = vpack.c.b16 %v6912, %v6908
    %v6961 = vpack.c.b16 %v6913, %v6909
    %v6962 = vpack.c.b16 %v6914, %v6910
    %v6963 = vpack.c.b16 %v6919, %v6915
    %v6964 = vpack.c.b16 %v6920, %v6916
    %v6965 = vpack.c.b16 %v6921, %v6917
    %v6966 = vpack.c.b16 %v6922, %v6918
    %v6967 = vpack.c.b16 %v6927, %v6923
    %v6968 = vpack.c.b16 %v6928, %v6924
    %v6969 = vpack.c.b16 %v6929, %v6925
    %v6970 = vpack.c.b16 %v6930, %v6926
    %v6971 = vpack.c.b16 %v6935, %v6931
    %v6972 = vpack.c.b16 %v6936, %v6932
    %v6973 = vpack.c.b16 %v6937, %v6933
    %v6974 = vpack.c.b16 %v6938, %v6934
    %v6975 = vpack.c.b16 %v6943, %v6939
    %v6976 = vpack.c.b16 %v6944, %v6940
    %v6977 = vpack.c.b16 %v6945, %v6941
    %v6978 = vpack.c.b16 %v6946, %v6942
    %7011 = vmatprep.subr.bf16.mxu0 %v6948
    %7012 = vmatpush1.bf16.msra.mxu0 %v6947
    %7013 = vmatprep.subr.bf16.mxu0 %v6952
    %7014 = vmatpush1.bf16.msra.mxu0 %v6951
    %7015 = vmatprep.subr.bf16.mxu0 %v6956
    %7016 = vmatpush1.bf16.msra.mxu0 %v6955
    %7017 = vmatprep.subr.bf16.mxu0 %v6960
    %7018 = vmatpush1.bf16.msra.mxu0 %v6959
    %7019 = vmatprep.subr.bf16.mxu0 %v6964
    %7020 = vmatpush1.bf16.msra.mxu0 %v6963
    %7021 = vmatprep.subr.bf16.mxu0 %v6968
    %7022 = vmatpush1.bf16.msra.mxu0 %v6967
    %7023 = vmatprep.subr.bf16.mxu0 %v6972
    %7024 = vmatpush1.bf16.msra.mxu0 %v6971
    %7025 = vmatprep.subr.bf16.mxu0 %v6976
    %7026 = vmatpush1.bf16.msra.mxu0 %v6975
    %7027 = vmatprep.subr.bf16.mxu0 0
    %7028 = vmatpush1.bf16.msra.mxu0 0
    %7029 = vmatprep.subr.bf16.mxu0 0
    %7030 = vmatpush1.bf16.msra.mxu0 0
    %7031 = vmatprep.subr.bf16.mxu0 0
    %7032 = vmatpush1.bf16.msra.mxu0 0
    %7033 = vmatprep.subr.bf16.mxu0 0
    %7034 = vmatpush1.bf16.msra.mxu0 0
    %7035 = vmatprep.subr.bf16.mxu0 0
    %7036 = vmatpush1.bf16.msra.mxu0 0
    %7037 = vmatprep.subr.bf16.mxu0 0
    %7038 = vmatpush1.bf16.msra.mxu0 0
    %7039 = vmatprep.subr.bf16.mxu0 0
    %7040 = vmatpush1.bf16.msra.mxu0 0
    %7041 = vmatprep.subr.bf16.mxu0 0
    %7042 = vmatpush1.bf16.msra.mxu0 0
    %7043 = vmatprep.mubr.bf16.mxu0 0
    %7044 = vmatmul.mubr.bf16.gmra.mrb[0].mxu0 %v6818
    %v7045 = vpop.f32.mrb[0].mxu0
    %v7046 = vadd.f32 0.0, %v7045
    %v7047 = vpop.f32.mrb[0].mxu0
    %v7048 = vadd.f32 0.0, %v7047
    %v7049 = vpop.f32.mrb[0].mxu0
    %v7050 = vpop.f32.mrb[0].mxu0
    %7051 = vdwg.mxu0
    %7052 = vmatprep.subr.bf16.mxu0 %v6950
    %7053 = vmatpush1.bf16.msra.mxu0 %v6949
    %7054 = vmatprep.subr.bf16.mxu0 %v6954
    %7055 = vmatpush1.bf16.msra.mxu0 %v6953
    %7056 = vmatprep.subr.bf16.mxu0 %v6958
    %7057 = vmatpush1.bf16.msra.mxu0 %v6957
    %7058 = vmatprep.subr.bf16.mxu0 %v6962
    %7059 = vmatpush1.bf16.msra.mxu0 %v6961
    %7060 = vmatprep.subr.bf16.mxu0 %v6966
    %7061 = vmatpush1.bf16.msra.mxu0 %v6965
    %7062 = vmatprep.subr.bf16.mxu0 %v6970
    %7063 = vmatpush1.bf16.msra.mxu0 %v6969
    %7064 = vmatprep.subr.bf16.mxu0 %v6974
    %7065 = vmatpush1.bf16.msra.mxu0 %v6973
    %7066 = vmatprep.subr.bf16.mxu0 %v6978
    %7067 = vmatpush1.bf16.msra.mxu0 %v6977
    %7068 = vmatprep.subr.bf16.mxu0 0
    %7069 = vmatpush1.bf16.msra.mxu0 0
    %7070 = vmatprep.subr.bf16.mxu0 0
    %7071 = vmatpush1.bf16.msra.mxu0 0
    %7072 = vmatprep.subr.bf16.mxu0 0
    %7073 = vmatpush1.bf16.msra.mxu0 0
    %7074 = vmatprep.subr.bf16.mxu0 0
    %7075 = vmatpush1.bf16.msra.mxu0 0
    %7076 = vmatprep.subr.bf16.mxu0 0
    %7077 = vmatpush1.bf16.msra.mxu0 0
    %7078 = vmatprep.subr.bf16.mxu0 0
    %7079 = vmatpush1.bf16.msra.mxu0 0
    %7080 = vmatprep.subr.bf16.mxu0 0
    %7081 = vmatpush1.bf16.msra.mxu0 0
    %7082 = vmatprep.subr.bf16.mxu0 0
    %7083 = vmatpush1.bf16.msra.mxu0 0
    %7084 = vmatprep.mubr.bf16.mxu0 0
    %7085 = vmatmul.mubr.bf16.gmra.mrb[0].mxu0 %v6818
    %v7086 = vpop.f32.mrb[0].mxu0
    %v7087 = vadd.f32 0.0, %v7086
    %v7088 = vpop.f32.mrb[0].mxu0
    %v7089 = vadd.f32 0.0, %v7088
    %v7090 = vpop.f32.mrb[0].mxu0
    %v7091 = vpop.f32.mrb[0].mxu0
    %7092 = vdwg.mxu0
    %v7093 = vadd.f32 %v514, %v7046
    %v7094 = vadd.f32 %v516, %v7048
    %v7095 = vadd.f32 %v555, %v7087
    %v7096 = vadd.f32 %v557, %v7089
    %v7097 = vmul.f32 %v7093, 0.5
    %v7098 = vmul.f32 %v7094, 0.5
    %v7099 = vmul.f32 %v7095, 0.5
    %v7100 = vtanh.pop %v7097
    %v7101 = vtanh.pop %v7098
    %v7102 = vtanh.pop %v7099
    %v7103 = vmul.f32 %v7100, 0.5
    %v7104 = vmul.f32 %v7101, 0.5
    %v7105 = vmul.f32 %v7102, 0.5
    %v7106 = vadd.f32 %v7103, 0.5
    %v7107 = vadd.f32 %v7104, 0.5
    %v7108 = vadd.f32 %v7105, 0.5
    %v7109 = vtanh.pop %v7096
    %v7110 = vmul.f32 %v7107, %v6814
    %v7111 = vmul.f32 %v7106, %v7109
    %v7112 = vadd.f32 %v7110, %v7111
    %v7113 = vtanh.pop %v7112
    %v7114 = vmul.f32 %v7108, %v7113
    %7115 = vst [vmem:[#allocation2 + $0xa8] sm:$0xff] %v7114
    %v7116 = vpack.c.bf16 %v7114, %v7114
    %v7117 = vld [vmem:[#allocation5] sm:$0xff]
    %v7118 = vld [vmem:[#allocation5 + $0x8] sm:$0xff]
    %v7119 = vld [vmem:[#allocation5 + $0x10] sm:$0xff]
    %v7120 = vld [vmem:[#allocation5 + $0x18] sm:$0xff]
    %v7121 = vld [vmem:[#allocation5 + $0x20] sm:$0xff]
    %v7122 = vld [vmem:[#allocation5 + $0x28] sm:$0xff]
    %v7123 = vld [vmem:[#allocation5 + $0x30] sm:$0xff]
    %v7124 = vld [vmem:[#allocation5 + $0x38] sm:$0xff]
    %v7125 = vld [vmem:[#allocation5 + $0x40] sm:$0xff]
    %v7126 = vld [vmem:[#allocation5 + $0x48] sm:$0xff]
    %v7127 = vld [vmem:[#allocation5 + $0x50] sm:$0xff]
    %v7128 = vld [vmem:[#allocation5 + $0x58] sm:$0xff]
    %v7129 = vld [vmem:[#allocation5 + $0x60] sm:$0xff]
    %v7130 = vld [vmem:[#allocation5 + $0x68] sm:$0xff]
    %v7131 = vld [vmem:[#allocation5 + $0x70] sm:$0xff]
    %v7132 = vld [vmem:[#allocation5 + $0x78] sm:$0xff]
    %v7133 = vld [vmem:[#allocation5 + $0x80] sm:$0xff]
    %v7134 = vld [vmem:[#allocation5 + $0x88] sm:$0xff]
    %v7135 = vld [vmem:[#allocation5 + $0x90] sm:$0xff]
    %v7136 = vld [vmem:[#allocation5 + $0x98] sm:$0xff]
    %v7137 = vld [vmem:[#allocation5 + $0xa0] sm:$0xff]
    %v7138 = vld [vmem:[#allocation5 + $0xa8] sm:$0xff]
    %v7139 = vld [vmem:[#allocation5 + $0xb0] sm:$0xff]
    %v7140 = vld [vmem:[#allocation5 + $0xb8] sm:$0xff]
    %v7141 = vld [vmem:[#allocation5 + $0xc0] sm:$0xff]
    %v7142 = vld [vmem:[#allocation5 + $0xc8] sm:$0xff]
    %v7143 = vld [vmem:[#allocation5 + $0xd0] sm:$0xff]
    %v7144 = vld [vmem:[#allocation5 + $0xd8] sm:$0xff]
    %v7145 = vld [vmem:[#allocation5 + $0xe0] sm:$0xff]
    %v7146 = vld [vmem:[#allocation5 + $0xe8] sm:$0xff]
    %v7147 = vld [vmem:[#allocation5 + $0xf0] sm:$0xff]
    %v7148 = vld [vmem:[#allocation5 + $0xf8] sm:$0xff]
    %v7181 = vunpack.c.l.b16 %v7117
    %v7182 = vunpack.c.h.b16 %v7117
    %v7183 = vunpack.c.l.b16 %v7118
    %v7184 = vunpack.c.h.b16 %v7118
    %v7185 = vunpack.c.l.b16 %v7119
    %v7186 = vunpack.c.h.b16 %v7119
    %v7187 = vunpack.c.l.b16 %v7120
    %v7188 = vunpack.c.h.b16 %v7120
    %v7189 = vunpack.c.l.b16 %v7121
    %v7190 = vunpack.c.h.b16 %v7121
    %v7191 = vunpack.c.l.b16 %v7122
    %v7192 = vunpack.c.h.b16 %v7122
    %v7193 = vunpack.c.l.b16 %v7123
    %v7194 = vunpack.c.h.b16 %v7123
    %v7195 = vunpack.c.l.b16 %v7124
    %v7196 = vunpack.c.h.b16 %v7124
    %v7197 = vunpack.c.l.b16 %v7125
    %v7198 = vunpack.c.h.b16 %v7125
    %v7199 = vunpack.c.l.b16 %v7126
    %v7200 = vunpack.c.h.b16 %v7126
    %v7201 = vunpack.c.l.b16 %v7127
    %v7202 = vunpack.c.h.b16 %v7127
    %v7203 = vunpack.c.l.b16 %v7128
    %v7204 = vunpack.c.h.b16 %v7128
    %v7205 = vunpack.c.l.b16 %v7129
    %v7206 = vunpack.c.h.b16 %v7129
    %v7207 = vunpack.c.l.b16 %v7130
    %v7208 = vunpack.c.h.b16 %v7130
    %v7209 = vunpack.c.l.b16 %v7131
    %v7210 = vunpack.c.h.b16 %v7131
    %v7211 = vunpack.c.l.b16 %v7132
    %v7212 = vunpack.c.h.b16 %v7132
    %v7213 = vunpack.c.l.b16 %v7133
    %v7214 = vunpack.c.h.b16 %v7133
    %v7215 = vunpack.c.l.b16 %v7134
    %v7216 = vunpack.c.h.b16 %v7134
    %v7217 = vunpack.c.l.b16 %v7135
    %v7218 = vunpack.c.h.b16 %v7135
    %v7219 = vunpack.c.l.b16 %v7136
    %v7220 = vunpack.c.h.b16 %v7136
    %v7221 = vunpack.c.l.b16 %v7137
    %v7222 = vunpack.c.h.b16 %v7137
    %v7223 = vunpack.c.l.b16 %v7138
    %v7224 = vunpack.c.h.b16 %v7138
    %v7225 = vunpack.c.l.b16 %v7139
    %v7226 = vunpack.c.h.b16 %v7139
    %v7227 = vunpack.c.l.b16 %v7140
    %v7228 = vunpack.c.h.b16 %v7140
    %v7229 = vunpack.c.l.b16 %v7141
    %v7230 = vunpack.c.h.b16 %v7141
    %v7231 = vunpack.c.l.b16 %v7142
    %v7232 = vunpack.c.h.b16 %v7142
    %v7233 = vunpack.c.l.b16 %v7143
    %v7234 = vunpack.c.h.b16 %v7143
    %v7235 = vunpack.c.l.b16 %v7144
    %v7236 = vunpack.c.h.b16 %v7144
    %v7237 = vunpack.c.l.b16 %v7145
    %v7238 = vunpack.c.h.b16 %v7145
    %v7239 = vunpack.c.l.b16 %v7146
    %v7240 = vunpack.c.h.b16 %v7146
    %v7241 = vunpack.c.l.b16 %v7147
    %v7242 = vunpack.c.h.b16 %v7147
    %v7243 = vunpack.c.l.b16 %v7148
    %v7244 = vunpack.c.h.b16 %v7148
    %v7245 = vpack.c.b16 %v7185, %v7181
    %v7246 = vpack.c.b16 %v7186, %v7182
    %v7247 = vpack.c.b16 %v7187, %v7183
    %v7248 = vpack.c.b16 %v7188, %v7184
    %v7249 = vpack.c.b16 %v7193, %v7189
    %v7250 = vpack.c.b16 %v7194, %v7190
    %v7251 = vpack.c.b16 %v7195, %v7191
    %v7252 = vpack.c.b16 %v7196, %v7192
    %v7253 = vpack.c.b16 %v7201, %v7197
    %v7254 = vpack.c.b16 %v7202, %v7198
    %v7255 = vpack.c.b16 %v7203, %v7199
    %v7256 = vpack.c.b16 %v7204, %v7200
    %v7257 = vpack.c.b16 %v7209, %v7205
    %v7258 = vpack.c.b16 %v7210, %v7206
    %v7259 = vpack.c.b16 %v7211, %v7207
    %v7260 = vpack.c.b16 %v7212, %v7208
    %v7261 = vpack.c.b16 %v7217, %v7213
    %v7262 = vpack.c.b16 %v7218, %v7214
    %v7263 = vpack.c.b16 %v7219, %v7215
    %v7264 = vpack.c.b16 %v7220, %v7216
    %v7265 = vpack.c.b16 %v7225, %v7221
    %v7266 = vpack.c.b16 %v7226, %v7222
    %v7267 = vpack.c.b16 %v7227, %v7223
    %v7268 = vpack.c.b16 %v7228, %v7224
    %v7269 = vpack.c.b16 %v7233, %v7229
    %v7270 = vpack.c.b16 %v7234, %v7230
    %v7271 = vpack.c.b16 %v7235, %v7231
    %v7272 = vpack.c.b16 %v7236, %v7232
    %v7273 = vpack.c.b16 %v7241, %v7237
    %v7274 = vpack.c.b16 %v7242, %v7238
    %v7275 = vpack.c.b16 %v7243, %v7239
    %v7276 = vpack.c.b16 %v7244, %v7240
    %7309 = vmatprep.subr.bf16.mxu0 %v7246
    %7310 = vmatpush1.bf16.msra.mxu0 %v7245
    %7311 = vmatprep.subr.bf16.mxu0 %v7250
    %7312 = vmatpush1.bf16.msra.mxu0 %v7249
    %7313 = vmatprep.subr.bf16.mxu0 %v7254
    %7314 = vmatpush1.bf16.msra.mxu0 %v7253
    %7315 = vmatprep.subr.bf16.mxu0 %v7258
    %7316 = vmatpush1.bf16.msra.mxu0 %v7257
    %7317 = vmatprep.subr.bf16.mxu0 %v7262
    %7318 = vmatpush1.bf16.msra.mxu0 %v7261
    %7319 = vmatprep.subr.bf16.mxu0 %v7266
    %7320 = vmatpush1.bf16.msra.mxu0 %v7265
    %7321 = vmatprep.subr.bf16.mxu0 %v7270
    %7322 = vmatpush1.bf16.msra.mxu0 %v7269
    %7323 = vmatprep.subr.bf16.mxu0 %v7274
    %7324 = vmatpush1.bf16.msra.mxu0 %v7273
    %7325 = vmatprep.subr.bf16.mxu0 0
    %7326 = vmatpush1.bf16.msra.mxu0 0
    %7327 = vmatprep.subr.bf16.mxu0 0
    %7328 = vmatpush1.bf16.msra.mxu0 0
    %7329 = vmatprep.subr.bf16.mxu0 0
    %7330 = vmatpush1.bf16.msra.mxu0 0
    %7331 = vmatprep.subr.bf16.mxu0 0
    %7332 = vmatpush1.bf16.msra.mxu0 0
    %7333 = vmatprep.subr.bf16.mxu0 0
    %7334 = vmatpush1.bf16.msra.mxu0 0
    %7335 = vmatprep.subr.bf16.mxu0 0
    %7336 = vmatpush1.bf16.msra.mxu0 0
    %7337 = vmatprep.subr.bf16.mxu0 0
    %7338 = vmatpush1.bf16.msra.mxu0 0
    %7339 = vmatprep.subr.bf16.mxu0 0
    %7340 = vmatpush1.bf16.msra.mxu0 0
    %7341 = vmatprep.mubr.bf16.mxu0 0
    %7342 = vmatmul.mubr.bf16.gmra.mrb[0].mxu0 %v7116
    %v7343 = vpop.f32.mrb[0].mxu0
    %v7344 = vadd.f32 0.0, %v7343
    %v7345 = vpop.f32.mrb[0].mxu0
    %v7346 = vadd.f32 0.0, %v7345
    %v7347 = vpop.f32.mrb[0].mxu0
    %v7348 = vpop.f32.mrb[0].mxu0
    %7349 = vdwg.mxu0
    %7350 = vmatprep.subr.bf16.mxu0 %v7248
    %7351 = vmatpush1.bf16.msra.mxu0 %v7247
    %7352 = vmatprep.subr.bf16.mxu0 %v7252
    %7353 = vmatpush1.bf16.msra.mxu0 %v7251
    %7354 = vmatprep.subr.bf16.mxu0 %v7256
    %7355 = vmatpush1.bf16.msra.mxu0 %v7255
    %7356 = vmatprep.subr.bf16.mxu0 %v7260
    %7357 = vmatpush1.bf16.msra.mxu0 %v7259
    %7358 = vmatprep.subr.bf16.mxu0 %v7264
    %7359 = vmatpush1.bf16.msra.mxu0 %v7263
    %7360 = vmatprep.subr.bf16.mxu0 %v7268
    %7361 = vmatpush1.bf16.msra.mxu0 %v7267
    %7362 = vmatprep.subr.bf16.mxu0 %v7272
    %7363 = vmatpush1.bf16.msra.mxu0 %v7271
    %7364 = vmatprep.subr.bf16.mxu0 %v7276
    %7365 = vmatpush1.bf16.msra.mxu0 %v7275
    %7366 = vmatprep.subr.bf16.mxu0 0
    %7367 = vmatpush1.bf16.msra.mxu0 0
    %7368 = vmatprep.subr.bf16.mxu0 0
    %7369 = vmatpush1.bf16.msra.mxu0 0
    %7370 = vmatprep.subr.bf16.mxu0 0
    %7371 = vmatpush1.bf16.msra.mxu0 0
    %7372 = vmatprep.subr.bf16.mxu0 0
    %7373 = vmatpush1.bf16.msra.mxu0 0
    %7374 = vmatprep.subr.bf16.mxu0 0
    %7375 = vmatpush1.bf16.msra.mxu0 0
    %7376 = vmatprep.subr.bf16.mxu0 0
    %7377 = vmatpush1.bf16.msra.mxu0 0
    %7378 = vmatprep.subr.bf16.mxu0 0
    %7379 = vmatpush1.bf16.msra.mxu0 0
    %7380 = vmatprep.subr.bf16.mxu0 0
    %7381 = vmatpush1.bf16.msra.mxu0 0
    %7382 = vmatprep.mubr.bf16.mxu0 0
    %7383 = vmatmul.mubr.bf16.gmra.mrb[0].mxu0 %v7116
    %v7384 = vpop.f32.mrb[0].mxu0
    %v7385 = vadd.f32 0.0, %v7384
    %v7386 = vpop.f32.mrb[0].mxu0
    %v7387 = vadd.f32 0.0, %v7386
    %v7388 = vpop.f32.mrb[0].mxu0
    %v7389 = vpop.f32.mrb[0].mxu0
    %7390 = vdwg.mxu0
    %v7391 = vadd.f32 %v514, %v7344
    %v7392 = vadd.f32 %v516, %v7346
    %v7393 = vadd.f32 %v555, %v7385
    %v7394 = vadd.f32 %v557, %v7387
    %v7395 = vmul.f32 %v7391, 0.5
    %v7396 = vmul.f32 %v7392, 0.5
    %v7397 = vmul.f32 %v7393, 0.5
    %v7398 = vtanh.pop %v7395
    %v7399 = vtanh.pop %v7396
    %v7400 = vtanh.pop %v7397
    %v7401 = vmul.f32 %v7398, 0.5
    %v7402 = vmul.f32 %v7399, 0.5
    %v7403 = vmul.f32 %v7400, 0.5
    %v7404 = vadd.f32 %v7401, 0.5
    %v7405 = vadd.f32 %v7402, 0.5
    %v7406 = vadd.f32 %v7403, 0.5
    %v7407 = vtanh.pop %v7394
    %v7408 = vmul.f32 %v7405, %v7112
    %v7409 = vmul.f32 %v7404, %v7407
    %v7410 = vadd.f32 %v7408, %v7409
    %v7411 = vtanh.pop %v7410
    %v7412 = vmul.f32 %v7406, %v7411
    %7413 = vst [vmem:[#allocation2 + $0xb0] sm:$0xff] %v7412
    %v7414 = vpack.c.bf16 %v7412, %v7412
    %v7415 = vld [vmem:[#allocation5] sm:$0xff]
    %v7416 = vld [vmem:[#allocation5 + $0x8] sm:$0xff]
    %v7417 = vld [vmem:[#allocation5 + $0x10] sm:$0xff]
    %v7418 = vld [vmem:[#allocation5 + $0x18] sm:$0xff]
    %v7419 = vld [vmem:[#allocation5 + $0x20] sm:$0xff]
    %v7420 = vld [vmem:[#allocation5 + $0x28] sm:$0xff]
    %v7421 = vld [vmem:[#allocation5 + $0x30] sm:$0xff]
    %v7422 = vld [vmem:[#allocation5 + $0x38] sm:$0xff]
    %v7423 = vld [vmem:[#allocation5 + $0x40] sm:$0xff]
    %v7424 = vld [vmem:[#allocation5 + $0x48] sm:$0xff]
    %v7425 = vld [vmem:[#allocation5 + $0x50] sm:$0xff]
    %v7426 = vld [vmem:[#allocation5 + $0x58] sm:$0xff]
    %v7427 = vld [vmem:[#allocation5 + $0x60] sm:$0xff]
    %v7428 = vld [vmem:[#allocation5 + $0x68] sm:$0xff]
    %v7429 = vld [vmem:[#allocation5 + $0x70] sm:$0xff]
    %v7430 = vld [vmem:[#allocation5 + $0x78] sm:$0xff]
    %v7431 = vld [vmem:[#allocation5 + $0x80] sm:$0xff]
    %v7432 = vld [vmem:[#allocation5 + $0x88] sm:$0xff]
    %v7433 = vld [vmem:[#allocation5 + $0x90] sm:$0xff]
    %v7434 = vld [vmem:[#allocation5 + $0x98] sm:$0xff]
    %v7435 = vld [vmem:[#allocation5 + $0xa0] sm:$0xff]
    %v7436 = vld [vmem:[#allocation5 + $0xa8] sm:$0xff]
    %v7437 = vld [vmem:[#allocation5 + $0xb0] sm:$0xff]
    %v7438 = vld [vmem:[#allocation5 + $0xb8] sm:$0xff]
    %v7439 = vld [vmem:[#allocation5 + $0xc0] sm:$0xff]
    %v7440 = vld [vmem:[#allocation5 + $0xc8] sm:$0xff]
    %v7441 = vld [vmem:[#allocation5 + $0xd0] sm:$0xff]
    %v7442 = vld [vmem:[#allocation5 + $0xd8] sm:$0xff]
    %v7443 = vld [vmem:[#allocation5 + $0xe0] sm:$0xff]
    %v7444 = vld [vmem:[#allocation5 + $0xe8] sm:$0xff]
    %v7445 = vld [vmem:[#allocation5 + $0xf0] sm:$0xff]
    %v7446 = vld [vmem:[#allocation5 + $0xf8] sm:$0xff]
    %v7479 = vunpack.c.l.b16 %v7415
    %v7480 = vunpack.c.h.b16 %v7415
    %v7481 = vunpack.c.l.b16 %v7416
    %v7482 = vunpack.c.h.b16 %v7416
    %v7483 = vunpack.c.l.b16 %v7417
    %v7484 = vunpack.c.h.b16 %v7417
    %v7485 = vunpack.c.l.b16 %v7418
    %v7486 = vunpack.c.h.b16 %v7418
    %v7487 = vunpack.c.l.b16 %v7419
    %v7488 = vunpack.c.h.b16 %v7419
    %v7489 = vunpack.c.l.b16 %v7420
    %v7490 = vunpack.c.h.b16 %v7420
    %v7491 = vunpack.c.l.b16 %v7421
    %v7492 = vunpack.c.h.b16 %v7421
    %v7493 = vunpack.c.l.b16 %v7422
    %v7494 = vunpack.c.h.b16 %v7422
    %v7495 = vunpack.c.l.b16 %v7423
    %v7496 = vunpack.c.h.b16 %v7423
    %v7497 = vunpack.c.l.b16 %v7424
    %v7498 = vunpack.c.h.b16 %v7424
    %v7499 = vunpack.c.l.b16 %v7425
    %v7500 = vunpack.c.h.b16 %v7425
    %v7501 = vunpack.c.l.b16 %v7426
    %v7502 = vunpack.c.h.b16 %v7426
    %v7503 = vunpack.c.l.b16 %v7427
    %v7504 = vunpack.c.h.b16 %v7427
    %v7505 = vunpack.c.l.b16 %v7428
    %v7506 = vunpack.c.h.b16 %v7428
    %v7507 = vunpack.c.l.b16 %v7429
    %v7508 = vunpack.c.h.b16 %v7429
    %v7509 = vunpack.c.l.b16 %v7430
    %v7510 = vunpack.c.h.b16 %v7430
    %v7511 = vunpack.c.l.b16 %v7431
    %v7512 = vunpack.c.h.b16 %v7431
    %v7513 = vunpack.c.l.b16 %v7432
    %v7514 = vunpack.c.h.b16 %v7432
    %v7515 = vunpack.c.l.b16 %v7433
    %v7516 = vunpack.c.h.b16 %v7433
    %v7517 = vunpack.c.l.b16 %v7434
    %v7518 = vunpack.c.h.b16 %v7434
    %v7519 = vunpack.c.l.b16 %v7435
    %v7520 = vunpack.c.h.b16 %v7435
    %v7521 = vunpack.c.l.b16 %v7436
    %v7522 = vunpack.c.h.b16 %v7436
    %v7523 = vunpack.c.l.b16 %v7437
    %v7524 = vunpack.c.h.b16 %v7437
    %v7525 = vunpack.c.l.b16 %v7438
    %v7526 = vunpack.c.h.b16 %v7438
    %v7527 = vunpack.c.l.b16 %v7439
    %v7528 = vunpack.c.h.b16 %v7439
    %v7529 = vunpack.c.l.b16 %v7440
    %v7530 = vunpack.c.h.b16 %v7440
    %v7531 = vunpack.c.l.b16 %v7441
    %v7532 = vunpack.c.h.b16 %v7441
    %v7533 = vunpack.c.l.b16 %v7442
    %v7534 = vunpack.c.h.b16 %v7442
    %v7535 = vunpack.c.l.b16 %v7443
    %v7536 = vunpack.c.h.b16 %v7443
    %v7537 = vunpack.c.l.b16 %v7444
    %v7538 = vunpack.c.h.b16 %v7444
    %v7539 = vunpack.c.l.b16 %v7445
    %v7540 = vunpack.c.h.b16 %v7445
    %v7541 = vunpack.c.l.b16 %v7446
    %v7542 = vunpack.c.h.b16 %v7446
    %v7543 = vpack.c.b16 %v7483, %v7479
    %v7544 = vpack.c.b16 %v7484, %v7480
    %v7545 = vpack.c.b16 %v7485, %v7481
    %v7546 = vpack.c.b16 %v7486, %v7482
    %v7547 = vpack.c.b16 %v7491, %v7487
    %v7548 = vpack.c.b16 %v7492, %v7488
    %v7549 = vpack.c.b16 %v7493, %v7489
    %v7550 = vpack.c.b16 %v7494, %v7490
    %v7551 = vpack.c.b16 %v7499, %v7495
    %v7552 = vpack.c.b16 %v7500, %v7496
    %v7553 = vpack.c.b16 %v7501, %v7497
    %v7554 = vpack.c.b16 %v7502, %v7498
    %v7555 = vpack.c.b16 %v7507, %v7503
    %v7556 = vpack.c.b16 %v7508, %v7504
    %v7557 = vpack.c.b16 %v7509, %v7505
    %v7558 = vpack.c.b16 %v7510, %v7506
    %v7559 = vpack.c.b16 %v7515, %v7511
    %v7560 = vpack.c.b16 %v7516, %v7512
    %v7561 = vpack.c.b16 %v7517, %v7513
    %v7562 = vpack.c.b16 %v7518, %v7514
    %v7563 = vpack.c.b16 %v7523, %v7519
    %v7564 = vpack.c.b16 %v7524, %v7520
    %v7565 = vpack.c.b16 %v7525, %v7521
    %v7566 = vpack.c.b16 %v7526, %v7522
    %v7567 = vpack.c.b16 %v7531, %v7527
    %v7568 = vpack.c.b16 %v7532, %v7528
    %v7569 = vpack.c.b16 %v7533, %v7529
    %v7570 = vpack.c.b16 %v7534, %v7530
    %v7571 = vpack.c.b16 %v7539, %v7535
    %v7572 = vpack.c.b16 %v7540, %v7536
    %v7573 = vpack.c.b16 %v7541, %v7537
    %v7574 = vpack.c.b16 %v7542, %v7538
    %7607 = vmatprep.subr.bf16.mxu0 %v7544
    %7608 = vmatpush1.bf16.msra.mxu0 %v7543
    %7609 = vmatprep.subr.bf16.mxu0 %v7548
    %7610 = vmatpush1.bf16.msra.mxu0 %v7547
    %7611 = vmatprep.subr.bf16.mxu0 %v7552
    %7612 = vmatpush1.bf16.msra.mxu0 %v7551
    %7613 = vmatprep.subr.bf16.mxu0 %v7556
    %7614 = vmatpush1.bf16.msra.mxu0 %v7555
    %7615 = vmatprep.subr.bf16.mxu0 %v7560
    %7616 = vmatpush1.bf16.msra.mxu0 %v7559
    %7617 = vmatprep.subr.bf16.mxu0 %v7564
    %7618 = vmatpush1.bf16.msra.mxu0 %v7563
    %7619 = vmatprep.subr.bf16.mxu0 %v7568
    %7620 = vmatpush1.bf16.msra.mxu0 %v7567
    %7621 = vmatprep.subr.bf16.mxu0 %v7572
    %7622 = vmatpush1.bf16.msra.mxu0 %v7571
    %7623 = vmatprep.subr.bf16.mxu0 0
    %7624 = vmatpush1.bf16.msra.mxu0 0
    %7625 = vmatprep.subr.bf16.mxu0 0
    %7626 = vmatpush1.bf16.msra.mxu0 0
    %7627 = vmatprep.subr.bf16.mxu0 0
    %7628 = vmatpush1.bf16.msra.mxu0 0
    %7629 = vmatprep.subr.bf16.mxu0 0
    %7630 = vmatpush1.bf16.msra.mxu0 0
    %7631 = vmatprep.subr.bf16.mxu0 0
    %7632 = vmatpush1.bf16.msra.mxu0 0
    %7633 = vmatprep.subr.bf16.mxu0 0
    %7634 = vmatpush1.bf16.msra.mxu0 0
    %7635 = vmatprep.subr.bf16.mxu0 0
    %7636 = vmatpush1.bf16.msra.mxu0 0
    %7637 = vmatprep.subr.bf16.mxu0 0
    %7638 = vmatpush1.bf16.msra.mxu0 0
    %7639 = vmatprep.mubr.bf16.mxu0 0
    %7640 = vmatmul.mubr.bf16.gmra.mrb[0].mxu0 %v7414
    %v7641 = vpop.f32.mrb[0].mxu0
    %v7642 = vadd.f32 0.0, %v7641
    %v7643 = vpop.f32.mrb[0].mxu0
    %v7644 = vadd.f32 0.0, %v7643
    %v7645 = vpop.f32.mrb[0].mxu0
    %v7646 = vpop.f32.mrb[0].mxu0
    %7647 = vdwg.mxu0
    %7648 = vmatprep.subr.bf16.mxu0 %v7546
    %7649 = vmatpush1.bf16.msra.mxu0 %v7545
    %7650 = vmatprep.subr.bf16.mxu0 %v7550
    %7651 = vmatpush1.bf16.msra.mxu0 %v7549
    %7652 = vmatprep.subr.bf16.mxu0 %v7554
    %7653 = vmatpush1.bf16.msra.mxu0 %v7553
    %7654 = vmatprep.subr.bf16.mxu0 %v7558
    %7655 = vmatpush1.bf16.msra.mxu0 %v7557
    %7656 = vmatprep.subr.bf16.mxu0 %v7562
    %7657 = vmatpush1.bf16.msra.mxu0 %v7561
    %7658 = vmatprep.subr.bf16.mxu0 %v7566
    %7659 = vmatpush1.bf16.msra.mxu0 %v7565
    %7660 = vmatprep.subr.bf16.mxu0 %v7570
    %7661 = vmatpush1.bf16.msra.mxu0 %v7569
    %7662 = vmatprep.subr.bf16.mxu0 %v7574
    %7663 = vmatpush1.bf16.msra.mxu0 %v7573
    %7664 = vmatprep.subr.bf16.mxu0 0
    %7665 = vmatpush1.bf16.msra.mxu0 0
    %7666 = vmatprep.subr.bf16.mxu0 0
    %7667 = vmatpush1.bf16.msra.mxu0 0
    %7668 = vmatprep.subr.bf16.mxu0 0
    %7669 = vmatpush1.bf16.msra.mxu0 0
    %7670 = vmatprep.subr.bf16.mxu0 0
    %7671 = vmatpush1.bf16.msra.mxu0 0
    %7672 = vmatprep.subr.bf16.mxu0 0
    %7673 = vmatpush1.bf16.msra.mxu0 0
    %7674 = vmatprep.subr.bf16.mxu0 0
    %7675 = vmatpush1.bf16.msra.mxu0 0
    %7676 = vmatprep.subr.bf16.mxu0 0
    %7677 = vmatpush1.bf16.msra.mxu0 0
    %7678 = vmatprep.subr.bf16.mxu0 0
    %7679 = vmatpush1.bf16.msra.mxu0 0
    %7680 = vmatprep.mubr.bf16.mxu0 0
    %7681 = vmatmul.mubr.bf16.gmra.mrb[0].mxu0 %v7414
    %v7682 = vpop.f32.mrb[0].mxu0
    %v7683 = vadd.f32 0.0, %v7682
    %v7684 = vpop.f32.mrb[0].mxu0
    %v7685 = vadd.f32 0.0, %v7684
    %v7686 = vpop.f32.mrb[0].mxu0
    %v7687 = vpop.f32.mrb[0].mxu0
    %7688 = vdwg.mxu0
    %v7689 = vadd.f32 %v514, %v7642
    %v7690 = vadd.f32 %v516, %v7644
    %v7691 = vadd.f32 %v555, %v7683
    %v7692 = vadd.f32 %v557, %v7685
    %v7693 = vmul.f32 %v7689, 0.5
    %v7694 = vmul.f32 %v7690, 0.5
    %v7695 = vmul.f32 %v7691, 0.5
    %v7696 = vtanh.pop %v7693
    %v7697 = vtanh.pop %v7694
    %v7698 = vtanh.pop %v7695
    %v7699 = vmul.f32 %v7696, 0.5
    %v7700 = vmul.f32 %v7697, 0.5
    %v7701 = vmul.f32 %v7698, 0.5
    %v7702 = vadd.f32 %v7699, 0.5
    %v7703 = vadd.f32 %v7700, 0.5
    %v7704 = vadd.f32 %v7701, 0.5
    %v7705 = vtanh.pop %v7692
    %v7706 = vmul.f32 %v7703, %v7410
    %v7707 = vmul.f32 %v7702, %v7705
    %v7708 = vadd.f32 %v7706, %v7707
    %v7709 = vtanh.pop %v7708
    %v7710 = vmul.f32 %v7704, %v7709
    %7711 = vst [vmem:[#allocation2 + $0xb8] sm:$0xff] %v7710
    %v7712 = vpack.c.bf16 %v7710, %v7710
    %v7713 = vld [vmem:[#allocation5] sm:$0xff]
    %v7714 = vld [vmem:[#allocation5 + $0x8] sm:$0xff]
    %v7715 = vld [vmem:[#allocation5 + $0x10] sm:$0xff]
    %v7716 = vld [vmem:[#allocation5 + $0x18] sm:$0xff]
    %v7717 = vld [vmem:[#allocation5 + $0x20] sm:$0xff]
    %v7718 = vld [vmem:[#allocation5 + $0x28] sm:$0xff]
    %v7719 = vld [vmem:[#allocation5 + $0x30] sm:$0xff]
    %v7720 = vld [vmem:[#allocation5 + $0x38] sm:$0xff]
    %v7721 = vld [vmem:[#allocation5 + $0x40] sm:$0xff]
    %v7722 = vld [vmem:[#allocation5 + $0x48] sm:$0xff]
    %v7723 = vld [vmem:[#allocation5 + $0x50] sm:$0xff]
    %v7724 = vld [vmem:[#allocation5 + $0x58] sm:$0xff]
    %v7725 = vld [vmem:[#allocation5 + $0x60] sm:$0xff]
    %v7726 = vld [vmem:[#allocation5 + $0x68] sm:$0xff]
    %v7727 = vld [vmem:[#allocation5 + $0x70] sm:$0xff]
    %v7728 = vld [vmem:[#allocation5 + $0x78] sm:$0xff]
    %v7729 = vld [vmem:[#allocation5 + $0x80] sm:$0xff]
    %v7730 = vld [vmem:[#allocation5 + $0x88] sm:$0xff]
    %v7731 = vld [vmem:[#allocation5 + $0x90] sm:$0xff]
    %v7732 = vld [vmem:[#allocation5 + $0x98] sm:$0xff]
    %v7733 = vld [vmem:[#allocation5 + $0xa0] sm:$0xff]
    %v7734 = vld [vmem:[#allocation5 + $0xa8] sm:$0xff]
    %v7735 = vld [vmem:[#allocation5 + $0xb0] sm:$0xff]
    %v7736 = vld [vmem:[#allocation5 + $0xb8] sm:$0xff]
    %v7737 = vld [vmem:[#allocation5 + $0xc0] sm:$0xff]
    %v7738 = vld [vmem:[#allocation5 + $0xc8] sm:$0xff]
    %v7739 = vld [vmem:[#allocation5 + $0xd0] sm:$0xff]
    %v7740 = vld [vmem:[#allocation5 + $0xd8] sm:$0xff]
    %v7741 = vld [vmem:[#allocation5 + $0xe0] sm:$0xff]
    %v7742 = vld [vmem:[#allocation5 + $0xe8] sm:$0xff]
    %v7743 = vld [vmem:[#allocation5 + $0xf0] sm:$0xff]
    %v7744 = vld [vmem:[#allocation5 + $0xf8] sm:$0xff]
    %v7777 = vunpack.c.l.b16 %v7713
    %v7778 = vunpack.c.h.b16 %v7713
    %v7779 = vunpack.c.l.b16 %v7714
    %v7780 = vunpack.c.h.b16 %v7714
    %v7781 = vunpack.c.l.b16 %v7715
    %v7782 = vunpack.c.h.b16 %v7715
    %v7783 = vunpack.c.l.b16 %v7716
    %v7784 = vunpack.c.h.b16 %v7716
    %v7785 = vunpack.c.l.b16 %v7717
    %v7786 = vunpack.c.h.b16 %v7717
    %v7787 = vunpack.c.l.b16 %v7718
    %v7788 = vunpack.c.h.b16 %v7718
    %v7789 = vunpack.c.l.b16 %v7719
    %v7790 = vunpack.c.h.b16 %v7719
    %v7791 = vunpack.c.l.b16 %v7720
    %v7792 = vunpack.c.h.b16 %v7720
    %v7793 = vunpack.c.l.b16 %v7721
    %v7794 = vunpack.c.h.b16 %v7721
    %v7795 = vunpack.c.l.b16 %v7722
    %v7796 = vunpack.c.h.b16 %v7722
    %v7797 = vunpack.c.l.b16 %v7723
    %v7798 = vunpack.c.h.b16 %v7723
    %v7799 = vunpack.c.l.b16 %v7724
    %v7800 = vunpack.c.h.b16 %v7724
    %v7801 = vunpack.c.l.b16 %v7725
    %v7802 = vunpack.c.h.b16 %v7725
    %v7803 = vunpack.c.l.b16 %v7726
    %v7804 = vunpack.c.h.b16 %v7726
    %v7805 = vunpack.c.l.b16 %v7727
    %v7806 = vunpack.c.h.b16 %v7727
    %v7807 = vunpack.c.l.b16 %v7728
    %v7808 = vunpack.c.h.b16 %v7728
    %v7809 = vunpack.c.l.b16 %v7729
    %v7810 = vunpack.c.h.b16 %v7729
    %v7811 = vunpack.c.l.b16 %v7730
    %v7812 = vunpack.c.h.b16 %v7730
    %v7813 = vunpack.c.l.b16 %v7731
    %v7814 = vunpack.c.h.b16 %v7731
    %v7815 = vunpack.c.l.b16 %v7732
    %v7816 = vunpack.c.h.b16 %v7732
    %v7817 = vunpack.c.l.b16 %v7733
    %v7818 = vunpack.c.h.b16 %v7733
    %v7819 = vunpack.c.l.b16 %v7734
    %v7820 = vunpack.c.h.b16 %v7734
    %v7821 = vunpack.c.l.b16 %v7735
    %v7822 = vunpack.c.h.b16 %v7735
    %v7823 = vunpack.c.l.b16 %v7736
    %v7824 = vunpack.c.h.b16 %v7736
    %v7825 = vunpack.c.l.b16 %v7737
    %v7826 = vunpack.c.h.b16 %v7737
    %v7827 = vunpack.c.l.b16 %v7738
    %v7828 = vunpack.c.h.b16 %v7738
    %v7829 = vunpack.c.l.b16 %v7739
    %v7830 = vunpack.c.h.b16 %v7739
    %v7831 = vunpack.c.l.b16 %v7740
    %v7832 = vunpack.c.h.b16 %v7740
    %v7833 = vunpack.c.l.b16 %v7741
    %v7834 = vunpack.c.h.b16 %v7741
    %v7835 = vunpack.c.l.b16 %v7742
    %v7836 = vunpack.c.h.b16 %v7742
    %v7837 = vunpack.c.l.b16 %v7743
    %v7838 = vunpack.c.h.b16 %v7743
    %v7839 = vunpack.c.l.b16 %v7744
    %v7840 = vunpack.c.h.b16 %v7744
    %v7841 = vpack.c.b16 %v7781, %v7777
    %v7842 = vpack.c.b16 %v7782, %v7778
    %v7843 = vpack.c.b16 %v7783, %v7779
    %v7844 = vpack.c.b16 %v7784, %v7780
    %v7845 = vpack.c.b16 %v7789, %v7785
    %v7846 = vpack.c.b16 %v7790, %v7786
    %v7847 = vpack.c.b16 %v7791, %v7787
    %v7848 = vpack.c.b16 %v7792, %v7788
    %v7849 = vpack.c.b16 %v7797, %v7793
    %v7850 = vpack.c.b16 %v7798, %v7794
    %v7851 = vpack.c.b16 %v7799, %v7795
    %v7852 = vpack.c.b16 %v7800, %v7796
    %v7853 = vpack.c.b16 %v7805, %v7801
    %v7854 = vpack.c.b16 %v7806, %v7802
    %v7855 = vpack.c.b16 %v7807, %v7803
    %v7856 = vpack.c.b16 %v7808, %v7804
    %v7857 = vpack.c.b16 %v7813, %v7809
    %v7858 = vpack.c.b16 %v7814, %v7810
    %v7859 = vpack.c.b16 %v7815, %v7811
    %v7860 = vpack.c.b16 %v7816, %v7812
    %v7861 = vpack.c.b16 %v7821, %v7817
    %v7862 = vpack.c.b16 %v7822, %v7818
    %v7863 = vpack.c.b16 %v7823, %v7819
    %v7864 = vpack.c.b16 %v7824, %v7820
    %v7865 = vpack.c.b16 %v7829, %v7825
    %v7866 = vpack.c.b16 %v7830, %v7826
    %v7867 = vpack.c.b16 %v7831, %v7827
    %v7868 = vpack.c.b16 %v7832, %v7828
    %v7869 = vpack.c.b16 %v7837, %v7833
    %v7870 = vpack.c.b16 %v7838, %v7834
    %v7871 = vpack.c.b16 %v7839, %v7835
    %v7872 = vpack.c.b16 %v7840, %v7836
    %7905 = vmatprep.subr.bf16.mxu0 %v7842
    %7906 = vmatpush1.bf16.msra.mxu0 %v7841
    %7907 = vmatprep.subr.bf16.mxu0 %v7846
    %7908 = vmatpush1.bf16.msra.mxu0 %v7845
    %7909 = vmatprep.subr.bf16.mxu0 %v7850
    %7910 = vmatpush1.bf16.msra.mxu0 %v7849
    %7911 = vmatprep.subr.bf16.mxu0 %v7854
    %7912 = vmatpush1.bf16.msra.mxu0 %v7853
    %7913 = vmatprep.subr.bf16.mxu0 %v7858
    %7914 = vmatpush1.bf16.msra.mxu0 %v7857
    %7915 = vmatprep.subr.bf16.mxu0 %v7862
    %7916 = vmatpush1.bf16.msra.mxu0 %v7861
    %7917 = vmatprep.subr.bf16.mxu0 %v7866
    %7918 = vmatpush1.bf16.msra.mxu0 %v7865
    %7919 = vmatprep.subr.bf16.mxu0 %v7870
    %7920 = vmatpush1.bf16.msra.mxu0 %v7869
    %7921 = vmatprep.subr.bf16.mxu0 0
    %7922 = vmatpush1.bf16.msra.mxu0 0
    %7923 = vmatprep.subr.bf16.mxu0 0
    %7924 = vmatpush1.bf16.msra.mxu0 0
    %7925 = vmatprep.subr.bf16.mxu0 0
    %7926 = vmatpush1.bf16.msra.mxu0 0
    %7927 = vmatprep.subr.bf16.mxu0 0
    %7928 = vmatpush1.bf16.msra.mxu0 0
    %7929 = vmatprep.subr.bf16.mxu0 0
    %7930 = vmatpush1.bf16.msra.mxu0 0
    %7931 = vmatprep.subr.bf16.mxu0 0
    %7932 = vmatpush1.bf16.msra.mxu0 0
    %7933 = vmatprep.subr.bf16.mxu0 0
    %7934 = vmatpush1.bf16.msra.mxu0 0
    %7935 = vmatprep.subr.bf16.mxu0 0
    %7936 = vmatpush1.bf16.msra.mxu0 0
    %7937 = vmatprep.mubr.bf16.mxu0 0
    %7938 = vmatmul.mubr.bf16.gmra.mrb[0].mxu0 %v7712
    %v7939 = vpop.f32.mrb[0].mxu0
    %v7940 = vadd.f32 0.0, %v7939
    %v7941 = vpop.f32.mrb[0].mxu0
    %v7942 = vadd.f32 0.0, %v7941
    %v7943 = vpop.f32.mrb[0].mxu0
    %v7944 = vpop.f32.mrb[0].mxu0
    %7945 = vdwg.mxu0
    %7946 = vmatprep.subr.bf16.mxu0 %v7844
    %7947 = vmatpush1.bf16.msra.mxu0 %v7843
    %7948 = vmatprep.subr.bf16.mxu0 %v7848
    %7949 = vmatpush1.bf16.msra.mxu0 %v7847
    %7950 = vmatprep.subr.bf16.mxu0 %v7852
    %7951 = vmatpush1.bf16.msra.mxu0 %v7851
    %7952 = vmatprep.subr.bf16.mxu0 %v7856
    %7953 = vmatpush1.bf16.msra.mxu0 %v7855
    %7954 = vmatprep.subr.bf16.mxu0 %v7860
    %7955 = vmatpush1.bf16.msra.mxu0 %v7859
    %7956 = vmatprep.subr.bf16.mxu0 %v7864
    %7957 = vmatpush1.bf16.msra.mxu0 %v7863
    %7958 = vmatprep.subr.bf16.mxu0 %v7868
    %7959 = vmatpush1.bf16.msra.mxu0 %v7867
    %7960 = vmatprep.subr.bf16.mxu0 %v7872
    %7961 = vmatpush1.bf16.msra.mxu0 %v7871
    %7962 = vmatprep.subr.bf16.mxu0 0
    %7963 = vmatpush1.bf16.msra.mxu0 0
    %7964 = vmatprep.subr.bf16.mxu0 0
    %7965 = vmatpush1.bf16.msra.mxu0 0
    %7966 = vmatprep.subr.bf16.mxu0 0
    %7967 = vmatpush1.bf16.msra.mxu0 0
    %7968 = vmatprep.subr.bf16.mxu0 0
    %7969 = vmatpush1.bf16.msra.mxu0 0
    %7970 = vmatprep.subr.bf16.mxu0 0
    %7971 = vmatpush1.bf16.msra.mxu0 0
    %7972 = vmatprep.subr.bf16.mxu0 0
    %7973 = vmatpush1.bf16.msra.mxu0 0
    %7974 = vmatprep.subr.bf16.mxu0 0
    %7975 = vmatpush1.bf16.msra.mxu0 0
    %7976 = vmatprep.subr.bf16.mxu0 0
    %7977 = vmatpush1.bf16.msra.mxu0 0
    %7978 = vmatprep.mubr.bf16.mxu0 0
    %7979 = vmatmul.mubr.bf16.gmra.mrb[0].mxu0 %v7712
    %v7980 = vpop.f32.mrb[0].mxu0
    %v7981 = vadd.f32 0.0, %v7980
    %v7982 = vpop.f32.mrb[0].mxu0
    %v7983 = vadd.f32 0.0, %v7982
    %v7984 = vpop.f32.mrb[0].mxu0
    %v7985 = vpop.f32.mrb[0].mxu0
    %7986 = vdwg.mxu0
    %v7987 = vadd.f32 %v514, %v7940
    %v7988 = vadd.f32 %v516, %v7942
    %v7989 = vadd.f32 %v555, %v7981
    %v7990 = vadd.f32 %v557, %v7983
    %v7991 = vmul.f32 %v7987, 0.5
    %v7992 = vmul.f32 %v7988, 0.5
    %v7993 = vmul.f32 %v7989, 0.5
    %v7994 = vtanh.pop %v7991
    %v7995 = vtanh.pop %v7992
    %v7996 = vtanh.pop %v7993
    %v7997 = vmul.f32 %v7994, 0.5
    %v7998 = vmul.f32 %v7995, 0.5
    %v7999 = vmul.f32 %v7996, 0.5
    %v8000 = vadd.f32 %v7997, 0.5
    %v8001 = vadd.f32 %v7998, 0.5
    %v8002 = vadd.f32 %v7999, 0.5
    %v8003 = vtanh.pop %v7990
    %v8004 = vmul.f32 %v8001, %v7708
    %v8005 = vmul.f32 %v8000, %v8003
    %v8006 = vadd.f32 %v8004, %v8005
    %v8007 = vtanh.pop %v8006
    %v8008 = vmul.f32 %v8002, %v8007
    %8009 = vst [vmem:[#allocation2 + $0xc0] sm:$0xff] %v8008
    %v8010 = vld [vmem:[#allocation2] sm:$0xff]
    %v8011 = vld [vmem:[#allocation2 + $0x8] sm:$0xff]
    %v8012 = vld [vmem:[#allocation2 + $0x10] sm:$0xff]
    %v8013 = vld [vmem:[#allocation2 + $0x18] sm:$0xff]
    %v8014 = vld [vmem:[#allocation2 + $0x20] sm:$0xff]
    %v8015 = vld [vmem:[#allocation2 + $0x28] sm:$0xff]
    %v8016 = vld [vmem:[#allocation2 + $0x30] sm:$0xff]
    %v8017 = vld [vmem:[#allocation2 + $0x38] sm:$0xff]
    %v8018 = vld [vmem:[#allocation2 + $0x40] sm:$0xff]
    %v8019 = vld [vmem:[#allocation2 + $0x48] sm:$0xff]
    %v8020 = vld [vmem:[#allocation2 + $0x50] sm:$0xff]
    %v8021 = vld [vmem:[#allocation2 + $0x58] sm:$0xff]
    %v8022 = vld [vmem:[#allocation2 + $0x60] sm:$0xff]
    %v8023 = vld [vmem:[#allocation2 + $0x68] sm:$0xff]
    %v8024 = vld [vmem:[#allocation2 + $0x70] sm:$0xff]
    %v8025 = vld [vmem:[#allocation2 + $0x78] sm:$0xff]
    %v8026 = vld [vmem:[#allocation2 + $0x80] sm:$0xff]
    %v8027 = vld [vmem:[#allocation2 + $0x88] sm:$0xff]
    %v8028 = vld [vmem:[#allocation2 + $0x90] sm:$0xff]
    %v8029 = vld [vmem:[#allocation2 + $0x98] sm:$0xff]
    %v8030 = vld [vmem:[#allocation2 + $0xa0] sm:$0xff]
    %v8031 = vld [vmem:[#allocation2 + $0xa8] sm:$0xff]
    %v8032 = vld [vmem:[#allocation2 + $0xb0] sm:$0xff]
    %v8033 = vld [vmem:[#allocation2 + $0xb8] sm:$0xff]
    %v8034 = vld [vmem:[#allocation2 + $0xc0] sm:$0xff]
    %v8035 = vld [vmem:[#allocation7] sm:$0xff]
    %v8036 = vld [vmem:[#allocation7 + $0x8] sm:$0xff]
    %v8037 = vld [vmem:[#allocation7 + $0x10] sm:$0xff]
    %v8038 = vld [vmem:[#allocation7 + $0x18] sm:$0xff]
    %v8039 = vld [vmem:[#allocation7 + $0x20] sm:$0xff]
    %v8040 = vld [vmem:[#allocation7 + $0x28] sm:$0xff]
    %v8041 = vld [vmem:[#allocation7 + $0x30] sm:$0xff]
    %v8042 = vld [vmem:[#allocation7 + $0x38] sm:$0xff]
    %v8043 = vld [vmem:[#allocation7 + $0x40] sm:$0xff]
    %v8044 = vld [vmem:[#allocation7 + $0x48] sm:$0xff]
    %v8045 = vld [vmem:[#allocation7 + $0x50] sm:$0xff]
    %v8046 = vld [vmem:[#allocation7 + $0x58] sm:$0xff]
    %v8047 = vld [vmem:[#allocation7 + $0x60] sm:$0xff]
    %v8048 = vld [vmem:[#allocation7 + $0x68] sm:$0xff]
    %v8049 = vld [vmem:[#allocation7 + $0x70] sm:$0xff]
    %v8050 = vld [vmem:[#allocation7 + $0x78] sm:$0xff]
    %v8051 = vld [vmem:[%s5] sm:$0x1]
    %v8053 = vlaneseq
    %v8054 = vshrl.u32 %v8053, 7
    %v8055 = vsub.s32 0, %v8054
    %v8056 = vrot.slane %v8051, %v8055
    %8058 = vmatprep.subr.mxu0 0.0
    %8059 = vmatpush1.msra.mxu0 %v8035
    %8060 = vmatprep.subr.mxu0 0.0
    %8061 = vmatpush1.msra.mxu0 %v8036
    %8062 = vmatprep.subr.mxu0 0.0
    %8063 = vmatpush1.msra.mxu0 %v8037
    %8064 = vmatprep.subr.mxu0 0.0
    %8065 = vmatpush1.msra.mxu0 %v8038
    %8066 = vmatprep.subr.mxu0 0.0
    %8067 = vmatpush1.msra.mxu0 %v8039
    %8068 = vmatprep.subr.mxu0 0.0
    %8069 = vmatpush1.msra.mxu0 %v8040
    %8070 = vmatprep.subr.mxu0 0.0
    %8071 = vmatpush1.msra.mxu0 %v8041
    %8072 = vmatprep.subr.mxu0 0.0
    %8073 = vmatpush1.msra.mxu0 %v8042
    %8074 = vmatprep.subr.mxu0 0.0
    %8075 = vmatpush1.msra.mxu0 %v8043
    %8076 = vmatprep.subr.mxu0 0.0
    %8077 = vmatpush1.msra.mxu0 %v8044
    %8078 = vmatprep.subr.mxu0 0.0
    %8079 = vmatpush1.msra.mxu0 %v8045
    %8080 = vmatprep.subr.mxu0 0.0
    %8081 = vmatpush1.msra.mxu0 %v8046
    %8082 = vmatprep.subr.mxu0 0.0
    %8083 = vmatpush1.msra.mxu0 %v8047
    %8084 = vmatprep.subr.mxu0 0.0
    %8085 = vmatpush1.msra.mxu0 %v8048
    %8086 = vmatprep.subr.mxu0 0.0
    %8087 = vmatpush1.msra.mxu0 %v8049
    %8088 = vmatprep.subr.mxu0 0.0
    %8089 = vmatpush1.msra.mxu0 %v8050
    %8090 = vmatprep.subr.mxu0 0.0
    %8091 = vmatpush1.msra.mxu0 0.0
    %8092 = vmatprep.subr.mxu0 0.0
    %8093 = vmatpush1.msra.mxu0 0.0
    %8094 = vmatprep.subr.mxu0 0.0
    %8095 = vmatpush1.msra.mxu0 0.0
    %8096 = vmatprep.subr.mxu0 0.0
    %8097 = vmatpush1.msra.mxu0 0.0
    %8098 = vmatprep.subr.mxu0 0.0
    %8099 = vmatpush1.msra.mxu0 0.0
    %8100 = vmatprep.subr.mxu0 0.0
    %8101 = vmatpush1.msra.mxu0 0.0
    %8102 = vmatprep.subr.mxu0 0.0
    %8103 = vmatpush1.msra.mxu0 0.0
    %8104 = vmatprep.subr.mxu0 0.0
    %8105 = vmatpush1.msra.mxu0 0.0
    %8106 = vmatprep.subr.mxu0 0.0
    %8107 = vmatpush1.msra.mxu0 0.0
    %8108 = vmatprep.subr.mxu0 0.0
    %8109 = vmatpush1.msra.mxu0 0.0
    %8110 = vmatprep.subr.mxu0 0.0
    %8111 = vmatpush1.msra.mxu0 0.0
    %8112 = vmatprep.subr.mxu0 0.0
    %8113 = vmatpush1.msra.mxu0 0.0
    %8114 = vmatprep.subr.mxu0 0.0
    %8115 = vmatpush1.msra.mxu0 0.0
    %8116 = vmatprep.subr.mxu0 0.0
    %8117 = vmatpush1.msra.mxu0 0.0
    %8118 = vmatprep.subr.mxu0 0.0
    %8119 = vmatpush1.msra.mxu0 0.0
    %8120 = vmatprep.subr.mxu0 0.0
    %8121 = vmatpush1.msra.mxu0 0.0
    %8122 = vmatprep.mubr.f32.mxu0 0.0
    %8123 = vmatmul.mubr.f32.gmra.mrb[0].mxu0 %v8010
    %v8124 = vpop.f32.mrb[0].mxu0
    %v8125 = vadd.f32 %v8056, %v8124
    %v8126 = vpop.f32.mrb[0].mxu0
    %8127 = vmatprep.mubr.f32.mxu0 0.0
    %8128 = vmatmul.mubr.f32.gmra.mrb[0].mxu0 %v8011
    %v8129 = vpop.f32.mrb[0].mxu0
    %v8130 = vadd.f32 %v8056, %v8129
    %v8131 = vpop.f32.mrb[0].mxu0
    %8132 = vmatprep.mubr.f32.mxu0 0.0
    %8133 = vmatmul.mubr.f32.gmra.mrb[0].mxu0 %v8012
    %v8134 = vpop.f32.mrb[0].mxu0
    %v8135 = vadd.f32 %v8056, %v8134
    %v8136 = vpop.f32.mrb[0].mxu0
    %8137 = vmatprep.mubr.f32.mxu0 0.0
    %8138 = vmatmul.mubr.f32.gmra.mrb[0].mxu0 %v8013
    %v8139 = vpop.f32.mrb[0].mxu0
    %v8140 = vadd.f32 %v8056, %v8139
    %v8141 = vpop.f32.mrb[0].mxu0
    %8142 = vmatprep.mubr.f32.mxu0 0.0
    %8143 = vmatmul.mubr.f32.gmra.mrb[0].mxu0 %v8014
    %v8144 = vpop.f32.mrb[0].mxu0
    %v8145 = vadd.f32 %v8056, %v8144
    %v8146 = vpop.f32.mrb[0].mxu0
    %8147 = vmatprep.mubr.f32.mxu0 0.0
    %8148 = vmatmul.mubr.f32.gmra.mrb[0].mxu0 %v8015
    %v8149 = vpop.f32.mrb[0].mxu0
    %v8150 = vadd.f32 %v8056, %v8149
    %v8151 = vpop.f32.mrb[0].mxu0
    %8152 = vmatprep.mubr.f32.mxu0 0.0
    %8153 = vmatmul.mubr.f32.gmra.mrb[0].mxu0 %v8016
    %v8154 = vpop.f32.mrb[0].mxu0
    %v8155 = vadd.f32 %v8056, %v8154
    %v8156 = vpop.f32.mrb[0].mxu0
    %8157 = vmatprep.mubr.f32.mxu0 0.0
    %8158 = vmatmul.mubr.f32.gmra.mrb[0].mxu0 %v8017
    %v8159 = vpop.f32.mrb[0].mxu0
    %v8160 = vadd.f32 %v8056, %v8159
    %v8161 = vpop.f32.mrb[0].mxu0
    %8162 = vmatprep.mubr.f32.mxu0 0.0
    %8163 = vmatmul.mubr.f32.gmra.mrb[0].mxu0 %v8018
    %v8164 = vpop.f32.mrb[0].mxu0
    %v8165 = vadd.f32 %v8056, %v8164
    %v8166 = vpop.f32.mrb[0].mxu0
    %8167 = vmatprep.mubr.f32.mxu0 0.0
    %8168 = vmatmul.mubr.f32.gmra.mrb[0].mxu0 %v8019
    %v8169 = vpop.f32.mrb[0].mxu0
    %v8170 = vadd.f32 %v8056, %v8169
    %v8171 = vpop.f32.mrb[0].mxu0
    %8172 = vmatprep.mubr.f32.mxu0 0.0
    %8173 = vmatmul.mubr.f32.gmra.mrb[0].mxu0 %v8020
    %v8174 = vpop.f32.mrb[0].mxu0
    %v8175 = vadd.f32 %v8056, %v8174
    %v8176 = vpop.f32.mrb[0].mxu0
    %8177 = vmatprep.mubr.f32.mxu0 0.0
    %8178 = vmatmul.mubr.f32.gmra.mrb[0].mxu0 %v8021
    %v8179 = vpop.f32.mrb[0].mxu0
    %v8180 = vadd.f32 %v8056, %v8179
    %v8181 = vpop.f32.mrb[0].mxu0
    %8182 = vmatprep.mubr.f32.mxu0 0.0
    %8183 = vmatmul.mubr.f32.gmra.mrb[0].mxu0 %v8022
    %v8184 = vpop.f32.mrb[0].mxu0
    %v8185 = vadd.f32 %v8056, %v8184
    %v8186 = vpop.f32.mrb[0].mxu0
    %8187 = vmatprep.mubr.f32.mxu0 0.0
    %8188 = vmatmul.mubr.f32.gmra.mrb[0].mxu0 %v8023
    %v8189 = vpop.f32.mrb[0].mxu0
    %v8190 = vadd.f32 %v8056, %v8189
    %v8191 = vpop.f32.mrb[0].mxu0
    %8192 = vmatprep.mubr.f32.mxu0 0.0
    %8193 = vmatmul.mubr.f32.gmra.mrb[0].mxu0 %v8024
    %v8194 = vpop.f32.mrb[0].mxu0
    %v8195 = vadd.f32 %v8056, %v8194
    %v8196 = vpop.f32.mrb[0].mxu0
    %8197 = vmatprep.mubr.f32.mxu0 0.0
    %8198 = vmatmul.mubr.f32.gmra.mrb[0].mxu0 %v8025
    %v8199 = vpop.f32.mrb[0].mxu0
    %v8200 = vadd.f32 %v8056, %v8199
    %v8201 = vpop.f32.mrb[0].mxu0
    %8202 = vmatprep.mubr.f32.mxu0 0.0
    %8203 = vmatmul.mubr.f32.gmra.mrb[0].mxu0 %v8026
    %v8204 = vpop.f32.mrb[0].mxu0
    %v8205 = vadd.f32 %v8056, %v8204
    %v8206 = vpop.f32.mrb[0].mxu0
    %8207 = vmatprep.mubr.f32.mxu0 0.0
    %8208 = vmatmul.mubr.f32.gmra.mrb[0].mxu0 %v8027
    %v8209 = vpop.f32.mrb[0].mxu0
    %v8210 = vadd.f32 %v8056, %v8209
    %v8211 = vpop.f32.mrb[0].mxu0
    %8212 = vmatprep.mubr.f32.mxu0 0.0
    %8213 = vmatmul.mubr.f32.gmra.mrb[0].mxu0 %v8028
    %v8214 = vpop.f32.mrb[0].mxu0
    %v8215 = vadd.f32 %v8056, %v8214
    %v8216 = vpop.f32.mrb[0].mxu0
    %8217 = vmatprep.mubr.f32.mxu0 0.0
    %8218 = vmatmul.mubr.f32.gmra.mrb[0].mxu0 %v8029
    %v8219 = vpop.f32.mrb[0].mxu0
    %v8220 = vadd.f32 %v8056, %v8219
    %v8221 = vpop.f32.mrb[0].mxu0
    %8222 = vmatprep.mubr.f32.mxu0 0.0
    %8223 = vmatmul.mubr.f32.gmra.mrb[0].mxu0 %v8030
    %v8224 = vpop.f32.mrb[0].mxu0
    %v8225 = vadd.f32 %v8056, %v8224
    %v8226 = vpop.f32.mrb[0].mxu0
    %8227 = vmatprep.mubr.f32.mxu0 0.0
    %8228 = vmatmul.mubr.f32.gmra.mrb[0].mxu0 %v8031
    %v8229 = vpop.f32.mrb[0].mxu0
    %v8230 = vadd.f32 %v8056, %v8229
    %v8231 = vpop.f32.mrb[0].mxu0
    %8232 = vmatprep.mubr.f32.mxu0 0.0
    %8233 = vmatmul.mubr.f32.gmra.mrb[0].mxu0 %v8032
    %v8234 = vpop.f32.mrb[0].mxu0
    %v8235 = vadd.f32 %v8056, %v8234
    %v8236 = vpop.f32.mrb[0].mxu0
    %8237 = vmatprep.mubr.f32.mxu0 0.0
    %8238 = vmatmul.mubr.f32.gmra.mrb[0].mxu0 %v8033
    %v8239 = vpop.f32.mrb[0].mxu0
    %v8240 = vadd.f32 %v8056, %v8239
    %v8241 = vpop.f32.mrb[0].mxu0
    %8242 = vmatprep.mubr.f32.mxu0 0.0
    %8243 = vmatmul.mubr.f32.gmra.mrb[0].mxu0 %v8034
    %v8244 = vpop.f32.mrb[0].mxu0
    %v8245 = vadd.f32 %v8056, %v8244
    %v8246 = vpop.f32.mrb[0].mxu0
    %8247 = vdwg.mxu0
    %8248 = vst [vmem:[%s6] sm:$0xff] %v8125
    %8249 = vst [vmem:[%s6 + $0x8] sm:$0xff] %v8130
    %8250 = vst [vmem:[%s6 + $0x10] sm:$0xff] %v8135
    %8251 = vst [vmem:[%s6 + $0x18] sm:$0xff] %v8140
    %8252 = vst [vmem:[%s6 + $0x20] sm:$0xff] %v8145
    %8253 = vst [vmem:[%s6 + $0x28] sm:$0xff] %v8150
    %8254 = vst [vmem:[%s6 + $0x30] sm:$0xff] %v8155
    %8255 = vst [vmem:[%s6 + $0x38] sm:$0xff] %v8160
    %8256 = vst [vmem:[%s6 + $0x40] sm:$0xff] %v8165
    %8257 = vst [vmem:[%s6 + $0x48] sm:$0xff] %v8170
    %8258 = vst [vmem:[%s6 + $0x50] sm:$0xff] %v8175
    %8259 = vst [vmem:[%s6 + $0x58] sm:$0xff] %v8180
    %8260 = vst [vmem:[%s6 + $0x60] sm:$0xff] %v8185
    %8261 = vst [vmem:[%s6 + $0x68] sm:$0xff] %v8190
    %8262 = vst [vmem:[%s6 + $0x70] sm:$0xff] %v8195
    %8263 = vst [vmem:[%s6 + $0x78] sm:$0xff] %v8200
    %8264 = vst [vmem:[%s6 + $0x80] sm:$0xff] %v8205
    %8265 = vst [vmem:[%s6 + $0x88] sm:$0xff] %v8210
    %8266 = vst [vmem:[%s6 + $0x90] sm:$0xff] %v8215
    %8267 = vst [vmem:[%s6 + $0x98] sm:$0xff] %v8220
    %8268 = vst [vmem:[%s6 + $0xa0] sm:$0xff] %v8225
    %8269 = vst [vmem:[%s6 + $0xa8] sm:$0xff] %v8230
    %8270 = vst [vmem:[%s6 + $0xb0] sm:$0xff] %v8235
    %8271 = vst [vmem:[%s6 + $0xb8] sm:$0xff] %v8240
    %8272 = vst [vmem:[%s6 + $0xc0] sm:$0xff] %v8245
    // Predicated region
    $region38: #{decoder_forward.1} parent=1 // pred_check
      _
    $region39: #{decoder_forward.1} parent=1 // pred_check_branch
      %8274 = sbr.rel (0) target = $region41
    $region40: #{decoder_forward.1} parent=1 // pred_region
      _
    $region41: #{decoder_forward.1} parent=1 // pred_fallthru
      _
    // Predicated region
    $region42: #{decoder_forward.1} parent=1 // pred_check
      _
    $region43: #{decoder_forward.1} parent=1 // pred_check_branch
      %8276 = sbr.rel (0) target = $region45
    $region44: #{decoder_forward.1} parent=1 // pred_region
      _
    $region45: #{decoder_forward.1} parent=1 // pred_fallthru
      _
    %8277 = vsyncpa [#allocation4], 1
    %8278 = vsyncpa [#allocation6], 1

</llo_original>
